<compile_context>
chip_gen: v6e
topology: v6e:2x2x1
jax: 0.10.0
libtpu: 0.0.40
codegen_flags: <defaults>
</compile_context>

<pallas_src>
import functools

import jax
import jax.numpy as jnp
from jax.experimental import pallas as pl
from jax.experimental.pallas import tpu as pltpu

EPS = 1e-5
NEG_BIG = 1e30   # additive "minus infinity" for masked max-pool taps (finite, f32-safe)

PRIMITIVES = [
    "none", "max_pool_3x3", "avg_pool_3x3", "skip_connect",
    "sep_conv_3x3", "sep_conv_5x5", "dil_conv_3x3", "dil_conv_5x5",
]


# ----------------------------------------------------------------------------
# Static stencil geometry (shared by wrapper and kernel so index orders match)
# ----------------------------------------------------------------------------
def _stencil_offsets(K, dil, pad):
    return [(ki * dil - pad, kj * dil - pad) for ki in range(K) for kj in range(K)]


_OFF_3x3 = _stencil_offsets(3, 1, 1)      # pool3 + sep_conv_3x3 depthwise  (9 taps)
_OFF_5x5 = _stencil_offsets(5, 1, 2)      # sep_conv_5x5 depthwise         (25 taps)
_OFF_D3 = _stencil_offsets(3, 2, 2)       # dil_conv_3x3 depthwise          (9 taps)
_OFF_D5 = _stencil_offsets(5, 2, 4)       # dil_conv_5x5 depthwise         (25 taps)
_OFF_UNION = sorted(set(_OFF_3x3) | set(_OFF_5x5) | set(_OFF_D3) | set(_OFF_D5))  # 41
_UIDX = {o: i for i, o in enumerate(_OFF_UNION)}
_IDX_3x3 = {o: t for t, o in enumerate(_OFF_3x3)}
_IDX_5x5 = {o: t for t, o in enumerate(_OFF_5x5)}
_IDX_D3 = {o: t for t, o in enumerate(_OFF_D3)}
_IDX_D5 = {o: t for t, o in enumerate(_OFF_D5)}


# ----------------------------------------------------------------------------
# The single fused kernel
# ----------------------------------------------------------------------------
def _mixed_op_kernel(x_ref, alpha_ref, tapmask_ref, poolneg_ref, invcnt_ref, grp_ref,
                     s3d1_ref, s3p1_ref, s3d2_ref, s3p2_ref,
                     s5d1_ref, s5p1_ref, s5d2_ref, s5p2_ref,
                     d3d_ref, d3p_ref, d5d_ref, d5p_ref,
                     o_ref, shift_ref, *, N, C, H, W, OFF):
    """Packed layout: rows = (n, c) on sublanes (NC = N*C), cols = H*W on lanes.

    x_ref       : (NC, M)   f32 input activation, row index n*C + c
    alpha_ref   : (8,)      f32 architecture weights (SMEM scalars)
    tapmask_ref : (41, M)   f32 validity mask of each distinct tap offset (geometry-only)
    poolneg_ref : (9, M)    f32 additive -BIG at invalid 3x3 pool taps (geometry-only)
    invcnt_ref  : (1, M)    f32 1 / (# valid 3x3 taps)  -> count_include_pad=False
    grp_ref     : (NC, NC)  f32 per-channel group-sum matrix (grp[i,j] = [i%C == j%C])
    *_d* refs   : (NC, K*K) f32 depthwise weights (tiled over batch groups)
    *_p* refs   : (NC, NC)  f32 block-diagonal 1x1-conv weights
    o_ref       : (NC, M)   f32 output
    shift_ref   : (NC, M + 2*OFF) f32 scratch line realizing static spatial shifts
    """
    NC = N * C
    M = H * W
    inv_nhw = 1.0 / float(N * H * W)

    # Zero only the two pad strips, once (the interior is always rewritten before reads).
    shift_ref[:, 0:OFF] = jnp.zeros((NC, OFF), jnp.float32)
    shift_ref[:, OFF + M:OFF + M + OFF] = jnp.zeros((NC, OFF), jnp.float32)

    def patch(di, dj):
        start = OFF + di * W + dj                         # static lane offset
        return shift_ref[:, start:start + M]

    def mask(di, dj):
        u = _UIDX[(di, dj)]
        return tapmask_ref[u:u + 1, :]                    # (1, M) float mask

    grp = grp_ref[...]                                    # hoisted, read once

    def bn_stats(v):
        # Fused single-pass BN statistics.  The cross-sublane per-channel combine is a
        # tiny group-sum matmul on the idle MXU (rows of one channel get identical sums).
        gs = jnp.dot(grp, v, preferred_element_type=jnp.float32)
        gq = jnp.dot(grp, v * v, preferred_element_type=jnp.float32)
        mean = jnp.sum(gs, axis=1, keepdims=True) * inv_nhw
        var = jnp.sum(gq, axis=1, keepdims=True) * inv_nhw - mean * mean
        return mean, jax.lax.rsqrt(var + EPS)

    def bn(v):
        mean, inv = bn_stats(v)
        return (v - mean) * inv

    def bn_relu(v):
        mean, inv = bn_stats(v)
        return jnp.maximum((v - mean) * inv, 0.0)

    def pointwise(v, w_ref):
        # 1x1 conv == block-diagonal matmul on the otherwise idle MXU.
        return jnp.dot(w_ref[...], v, preferred_element_type=jnp.float32)

    x = x_ref[...]

    # ---------------- shared stencil pass over x ----------------
    # x is written to the scratch line ONCE; every distinct tap offset is read ONCE and
    # feeds all consumers (max/avg pool + the four first-stage depthwise convs).
    shift_ref[:, OFF:OFF + M] = x
    zero = jnp.zeros((NC, M), jnp.float32)
    mx = None
    psum = zero
    a_s3 = zero
    a_s5 = zero
    a_d3 = zero
    a_d5 = zero
    for (di, dj) in _OFF_UNION:
        masked = patch(di, dj) * mask(di, dj)             # 0 at zero-padded positions
        if (di, dj) in _IDX_3x3:
            t = _IDX_3x3[(di, dj)]
            cand = masked + poolneg_ref[t:t + 1, :]       # -BIG where the tap is invalid
            mx = cand if mx is None else jnp.maximum(mx, cand)
            psum = psum + masked
            a_s3 = a_s3 + masked * s3d1_ref[:, t:t + 1]
        if (di, dj) in _IDX_5x5:
            t = _IDX_5x5[(di, dj)]
            a_s5 = a_s5 + masked * s5d1_ref[:, t:t + 1]
        if (di, dj) in _IDX_D3:
            t = _IDX_D3[(di, dj)]
            a_d3 = a_d3 + masked * d3d_ref[:, t:t + 1]
        if (di, dj) in _IDX_D5:
            t = _IDX_D5[(di, dj)]
            a_d5 = a_d5 + masked * d5d_ref[:, t:t + 1]
    avgp = psum * invcnt_ref[...]                         # count_include_pad=False

    # Second-stage depthwise convs (their inputs differ from x -> own tap pass, same scratch).
    def depthwise(v, offs, dw_ref):
        shift_ref[:, OFF:OFF + M] = v
        acc = zero
        for t, (di, dj) in enumerate(offs):
            acc = acc + patch(di, dj) * mask(di, dj) * dw_ref[:, t:t + 1]
        return acc

    def dil_conv_tail(acc_dw, pw_ref):
        # spec DilConv.net: depthwise conv -> BN -> ReLU -> 1x1 conv -> (final BN by caller)
        return pointwise(bn_relu(acc_dw), pw_ref)

    # sep_conv_K = DilConv(dil=1) applied twice; the inner BN (after the first 1x1) has no ReLU.
    m3 = bn(dil_conv_tail(a_s3, s3p1_ref))
    v_s3 = dil_conv_tail(depthwise(m3, _OFF_3x3, s3d2_ref), s3p2_ref)

    m5 = bn(dil_conv_tail(a_s5, s5p1_ref))
    v_s5 = dil_conv_tail(depthwise(m5, _OFF_5x5, s5d2_ref), s5p2_ref)

    v_d3 = dil_conv_tail(a_d3, d3p_ref)
    v_d5 = dil_conv_tail(a_d5, d5p_ref)

    # ---------------- weighted mix ----------------
    # 'none' (alpha[0]) contributes exactly zero; skip_connect is alpha[3] * x.
    # Every branch ends in an affine-free BN, so alpha_i folds into that BN's per-channel
    # scale/shift: contribution = v * (alpha_i * inv_std) + (-alpha_i * mean * inv_std).
    y = x * alpha_ref[3]
    shift_acc = jnp.zeros((NC, 1), jnp.float32)
    for v, ai in ((mx, 1), (avgp, 2), (v_s3, 4), (v_s5, 5), (v_d3, 6), (v_d5, 7)):
        mean, inv = bn_stats(v)
        sc = inv * alpha_ref[ai]
        y = y + v * sc
        shift_acc = shift_acc - mean * sc
    o_ref[...] = y + shift_acc


# ----------------------------------------------------------------------------
# Wrapper (pure reshapes at entry / exit, one pallas_call, geometry precomputed)
# ----------------------------------------------------------------------------
def _vmem_full(shape):
    nd = len(shape)
    return pl.BlockSpec(shape, lambda *_: (0,) * nd)


def mixed_op_forward(x, weights, params):
    """sum_i weights[i] * op_i(x) for the stride=1 MixedOp, fused into one kernel."""
    N, C, H, W = x.shape
    NC, M = N * C, H * W
    # Largest tap displacement (dil_conv_5x5: 4*W + 4), rounded to a 128-lane multiple so
    # the scratch interior write stays lane-aligned.
    OFF = ((4 * W + 4 + 127) // 128) * 128

    # Packed layout: (N*C, H*W) -> rows on sublanes, flattened spatial on lanes.
    # NCHW -> packed is a pure reshape (row index = n*C + c), and so is the exit path.
    x2 = x.reshape(NC, M).astype(jnp.float32)

    # Geometry-only stencil data (tap validity masks, max-pool -BIG terms, avg-pool 1/count,
    # BN per-channel group-sum matrix) -- all computed once outside the kernel.
    p = jnp.arange(M, dtype=jnp.int32)
    hh, ww = p // W, p % W

    def tap_ok(di, dj):
        return (((hh + di) >= 0) & ((hh + di) < H) &
                ((ww + dj) >= 0) & ((ww + dj) < W)).astype(jnp.float32)

    tapmask = jnp.stack([tap_ok(di, dj) for (di, dj) in _OFF_UNION])          # (41, M)
    pool_ok = jnp.stack([tap_ok(di, dj) for (di, dj) in _OFF_3x3])            # (9, M)
    poolneg = (pool_ok - 1.0) * NEG_BIG                                       # (9, M)
    invcnt = (1.0 / jnp.sum(pool_ok, axis=0)).reshape(1, M)                   # (1, M)
    rows = jnp.arange(NC, dtype=jnp.int32)
    grp = (rows[:, None] % C == rows[None, :] % C).astype(jnp.float32)        # (NC, NC)

    # Depthwise weights tiled over the batch groups (row n*C+c uses dw[c]); 1x1 weights as
    # block-diagonal (N*C, N*C) matrices so the pointwise conv is one MXU matmul.
    dw = lambda w: jnp.tile(w.reshape(C, -1).astype(jnp.float32), (N, 1))     # (NC, K*K)
    pw = lambda w: jnp.kron(jnp.eye(N, dtype=jnp.float32), w.astype(jnp.float32))  # (NC, NC)

    args = (
        x2, weights.astype(jnp.float32), tapmask, poolneg, invcnt, grp,
        dw(params["sep3"]["dw1"]), pw(params["sep3"]["pw1"]),
        dw(params["sep3"]["dw2"]), pw(params["sep3"]["pw2"]),
        dw(params["sep5"]["dw1"]), pw(params["sep5"]["pw1"]),
        dw(params["sep5"]["dw2"]), pw(params["sep5"]["pw2"]),
        dw(params["dil3"]["dw"]), pw(params["dil3"]["pw"]),
        dw(params["dil5"]["dw"]), pw(params["dil5"]["pw"]),
    )

    in_specs = [_vmem_full(a.shape) for a in args]
    in_specs[1] = pl.BlockSpec(memory_space=pltpu.MemorySpace.SMEM)   # mix weights as scalars

    kernel = functools.partial(_mixed_op_kernel, N=N, C=C, H=H, W=W, OFF=OFF)
    y2 = pl.pallas_call(
        kernel,
        out_shape=jax.ShapeDtypeStruct((NC, M), jnp.float32),
        in_specs=in_specs,
        out_specs=_vmem_full((NC, M)),
        scratch_shapes=[pltpu.VMEM((NC, M + 2 * OFF), jnp.float32)],
    )(*args)

    # packed -> NCHW is again a pure reshape
    return y2.reshape(N, C, H, W)


# ----------------------------------------------------------------------------
# Parameter initialization (same structure as the reference module's weights)
# ----------------------------------------------------------------------------
def init_dilconv_params(key, C, K):
    k1, k2 = jax.random.split(key)
    return {
        "dw": jax.random.normal(k1, (C, K, K), jnp.float32) * 0.1,   # torch: (C,1,K,K)
        "pw": jax.random.normal(k2, (C, C), jnp.float32) * 0.1,      # torch: (C_out,C_in,1,1)
    }


def init_sepconv_params(key, C, K):
    k1, k2 = jax.random.split(key)
    p1, p2 = init_dilconv_params(k1, C, K), init_dilconv_params(k2, C, K)
    return {"dw1": p1["dw"], "pw1": p1["pw"], "dw2": p2["dw"], "pw2": p2["pw"]}


def init_mixed_op_params(key, C):
    ks = jax.random.split(key, 4)
    return {
        "sep3": init_sepconv_params(ks[0], C, 3),
        "sep5": init_sepconv_params(ks[1], C, 5),
        "dil3": init_dilconv_params(ks[2], C, 3),
        "dil5": init_dilconv_params(ks[3], C, 5),
    }


if __name__ == "__main__":
    key = jax.random.PRNGKey(0)
    kx, kw, kp = jax.random.split(key, 3)

    N, C, H, W = 2, 4, 16, 16
    x = jax.random.normal(kx, (N, C, H, W), jnp.float32)
    weights = jax.nn.softmax(jax.random.normal(kw, (len(PRIMITIVES),), jnp.float32))
    params = init_mixed_op_params(kp, C)

    out = jax.jit(mixed_op_forward)(x, weights, params)
    jax.block_until_ready(out)
    assert out.shape == (N, C, H, W) and out.dtype == jnp.float32
    assert bool(jnp.all(jnp.isfinite(out)))
    print("KERNEL_OK")
</pallas_src>

<mosaic_0001>
module attributes {stable_mosaic.version = 11 : i64} {
  func.func @_mixed_op_kernel(%arg0: memref<8x256xf32, #tpu.memory_space<vmem>>, %arg1: memref<8xf32, #tpu.memory_space<smem>>, %arg2: memref<41x256xf32, #tpu.memory_space<vmem>>, %arg3: memref<9x256xf32, #tpu.memory_space<vmem>>, %arg4: memref<1x256xf32, #tpu.memory_space<vmem>>, %arg5: memref<8x8xf32, #tpu.memory_space<vmem>>, %arg6: memref<8x9xf32, #tpu.memory_space<vmem>>, %arg7: memref<8x8xf32, #tpu.memory_space<vmem>>, %arg8: memref<8x9xf32, #tpu.memory_space<vmem>>, %arg9: memref<8x8xf32, #tpu.memory_space<vmem>>, %arg10: memref<8x25xf32, #tpu.memory_space<vmem>>, %arg11: memref<8x8xf32, #tpu.memory_space<vmem>>, %arg12: memref<8x25xf32, #tpu.memory_space<vmem>>, %arg13: memref<8x8xf32, #tpu.memory_space<vmem>>, %arg14: memref<8x9xf32, #tpu.memory_space<vmem>>, %arg15: memref<8x8xf32, #tpu.memory_space<vmem>>, %arg16: memref<8x25xf32, #tpu.memory_space<vmem>>, %arg17: memref<8x8xf32, #tpu.memory_space<vmem>>, %arg18: memref<8x256xf32, #tpu.memory_space<vmem>>, %arg19: memref<8x512xf32, #tpu.memory_space<vmem>>) attributes {dimension_semantics = [], scalar_prefetch = 0 : i64, scratch_operands = 1 : i64, tpu.core_type = #tpu.core_type<tc>} {
    %cst = arith.constant 0.000000e+00 : f32
    %0 = vector.broadcast %cst : f32 to vector<8x128xf32>
    %c0 = arith.constant 0 : index
    %c0_0 = arith.constant 0 : index
    %1 = vector.load %arg19[%c0, %c0_0] : memref<8x512xf32, #tpu.memory_space<vmem>>, vector<8x128xf32>
    tpu.vector_store %arg19[%c0, %c0_0], %0 {strides = array<i32>} : memref<8x512xf32, #tpu.memory_space<vmem>>, vector<8x128xf32>,
    %cst_1 = arith.constant 0.000000e+00 : f32
    %2 = vector.broadcast %cst_1 : f32 to vector<8x128xf32>
    %c0_2 = arith.constant 0 : index
    %c384 = arith.constant 384 : index
    %3 = vector.load %arg19[%c0_2, %c384] : memref<8x512xf32, #tpu.memory_space<vmem>>, vector<8x128xf32>
    tpu.vector_store %arg19[%c0_2, %c384], %2 {strides = array<i32>} : memref<8x512xf32, #tpu.memory_space<vmem>>, vector<8x128xf32>,
    %c0_3 = arith.constant 0 : index
    %c0_4 = arith.constant 0 : index
    %4 = vector.load %arg5[%c0_3, %c0_4] : memref<8x8xf32, #tpu.memory_space<vmem>>, vector<8x8xf32>
    %c0_5 = arith.constant 0 : index
    %c0_6 = arith.constant 0 : index
    %5 = vector.load %arg0[%c0_5, %c0_6] : memref<8x256xf32, #tpu.memory_space<vmem>>, vector<8x256xf32>
    %c0_7 = arith.constant 0 : index
    %c128 = arith.constant 128 : index
    %6 = vector.load %arg19[%c0_7, %c128] : memref<8x512xf32, #tpu.memory_space<vmem>>, vector<8x256xf32>
    tpu.vector_store %arg19[%c0_7, %c128], %5 {strides = array<i32>} : memref<8x512xf32, #tpu.memory_space<vmem>>, vector<8x256xf32>,
    %cst_8 = arith.constant 0.000000e+00 : f32
    %7 = vector.broadcast %cst_8 : f32 to vector<8x256xf32>
    %c0_9 = arith.constant 0 : index
    %c60 = arith.constant 60 : index
    %8 = vector.load %arg19[%c0_9, %c60] : memref<8x512xf32, #tpu.memory_space<vmem>>, vector<8x256xf32>
    %c0_10 = arith.constant 0 : index
    %c0_11 = arith.constant 0 : index
    %9 = vector.load %arg2[%c0_10, %c0_11] : memref<41x256xf32, #tpu.memory_space<vmem>>, vector<1x256xf32>
    %10 = vector.broadcast %9 : vector<1x256xf32> to vector<8x256xf32>
    %11 = arith.mulf %8, %10 : vector<8x256xf32>
    %c0_12 = arith.constant 0 : index
    %c0_13 = arith.constant 0 : index
    %12 = vector.load %arg16[%c0_12, %c0_13] : memref<8x25xf32, #tpu.memory_space<vmem>>, vector<8x1xf32>
    %13 = vector.broadcast %12 : vector<8x1xf32> to vector<8x256xf32>
    %14 = arith.mulf %11, %13 : vector<8x256xf32>
    %15 = arith.addf %7, %14 : vector<8x256xf32>
    %c0_14 = arith.constant 0 : index
    %c62 = arith.constant 62 : index
    %16 = vector.load %arg19[%c0_14, %c62] : memref<8x512xf32, #tpu.memory_space<vmem>>, vector<8x256xf32>
    %c1 = arith.constant 1 : index
    %c0_15 = arith.constant 0 : index
    %17 = vector.load %arg2[%c1, %c0_15] : memref<41x256xf32, #tpu.memory_space<vmem>>, vector<1x256xf32>
    %18 = vector.broadcast %17 : vector<1x256xf32> to vector<8x256xf32>
    %19 = arith.mulf %16, %18 : vector<8x256xf32>
    %c0_16 = arith.constant 0 : index
    %c1_17 = arith.constant 1 : index
    %20 = vector.load %arg16[%c0_16, %c1_17] : memref<8x25xf32, #tpu.memory_space<vmem>>, vector<8x1xf32>
    %21 = vector.broadcast %20 : vector<8x1xf32> to vector<8x256xf32>
    %22 = arith.mulf %19, %21 : vector<8x256xf32>
    %23 = arith.addf %15, %22 : vector<8x256xf32>
    %c0_18 = arith.constant 0 : index
    %c64 = arith.constant 64 : index
    %24 = vector.load %arg19[%c0_18, %c64] : memref<8x512xf32, #tpu.memory_space<vmem>>, vector<8x256xf32>
    %c2 = arith.constant 2 : index
    %c0_19 = arith.constant 0 : index
    %25 = vector.load %arg2[%c2, %c0_19] : memref<41x256xf32, #tpu.memory_space<vmem>>, vector<1x256xf32>
    %26 = vector.broadcast %25 : vector<1x256xf32> to vector<8x256xf32>
    %27 = arith.mulf %24, %26 : vector<8x256xf32>
    %c0_20 = arith.constant 0 : index
    %c2_21 = arith.constant 2 : index
    %28 = vector.load %arg16[%c0_20, %c2_21] : memref<8x25xf32, #tpu.memory_space<vmem>>, vector<8x1xf32>
    %29 = vector.broadcast %28 : vector<8x1xf32> to vector<8x256xf32>
    %30 = arith.mulf %27, %29 : vector<8x256xf32>
    %31 = arith.addf %23, %30 : vector<8x256xf32>
    %c0_22 = arith.constant 0 : index
    %c66 = arith.constant 66 : index
    %32 = vector.load %arg19[%c0_22, %c66] : memref<8x512xf32, #tpu.memory_space<vmem>>, vector<8x256xf32>
    %c3 = arith.constant 3 : index
    %c0_23 = arith.constant 0 : index
    %33 = vector.load %arg2[%c3, %c0_23] : memref<41x256xf32, #tpu.memory_space<vmem>>, vector<1x256xf32>
    %34 = vector.broadcast %33 : vector<1x256xf32> to vector<8x256xf32>
    %35 = arith.mulf %32, %34 : vector<8x256xf32>
    %c0_24 = arith.constant 0 : index
    %c3_25 = arith.constant 3 : index
    %36 = vector.load %arg16[%c0_24, %c3_25] : memref<8x25xf32, #tpu.memory_space<vmem>>, vector<8x1xf32>
    %37 = vector.broadcast %36 : vector<8x1xf32> to vector<8x256xf32>
    %38 = arith.mulf %35, %37 : vector<8x256xf32>
    %39 = arith.addf %31, %38 : vector<8x256xf32>
    %c0_26 = arith.constant 0 : index
    %c68 = arith.constant 68 : index
    %40 = vector.load %arg19[%c0_26, %c68] : memref<8x512xf32, #tpu.memory_space<vmem>>, vector<8x256xf32>
    %c4 = arith.constant 4 : index
    %c0_27 = arith.constant 0 : index
    %41 = vector.load %arg2[%c4, %c0_27] : memref<41x256xf32, #tpu.memory_space<vmem>>, vector<1x256xf32>
    %42 = vector.broadcast %41 : vector<1x256xf32> to vector<8x256xf32>
    %43 = arith.mulf %40, %42 : vector<8x256xf32>
    %c0_28 = arith.constant 0 : index
    %c4_29 = arith.constant 4 : index
    %44 = vector.load %arg16[%c0_28, %c4_29] : memref<8x25xf32, #tpu.memory_space<vmem>>, vector<8x1xf32>
    %45 = vector.broadcast %44 : vector<8x1xf32> to vector<8x256xf32>
    %46 = arith.mulf %43, %45 : vector<8x256xf32>
    %47 = arith.addf %39, %46 : vector<8x256xf32>
    %c0_30 = arith.constant 0 : index
    %c92 = arith.constant 92 : index
    %48 = vector.load %arg19[%c0_30, %c92] : memref<8x512xf32, #tpu.memory_space<vmem>>, vector<8x256xf32>
    %c5 = arith.constant 5 : index
    %c0_31 = arith.constant 0 : index
    %49 = vector.load %arg2[%c5, %c0_31] : memref<41x256xf32, #tpu.memory_space<vmem>>, vector<1x256xf32>
    %50 = vector.broadcast %49 : vector<1x256xf32> to vector<8x256xf32>
    %51 = arith.mulf %48, %50 : vector<8x256xf32>
    %c0_32 = arith.constant 0 : index
    %c5_33 = arith.constant 5 : index
    %52 = vector.load %arg16[%c0_32, %c5_33] : memref<8x25xf32, #tpu.memory_space<vmem>>, vector<8x1xf32>
    %53 = vector.broadcast %52 : vector<8x1xf32> to vector<8x256xf32>
    %54 = arith.mulf %51, %53 : vector<8x256xf32>
    %55 = arith.addf %47, %54 : vector<8x256xf32>
    %c0_34 = arith.constant 0 : index
    %c94 = arith.constant 94 : index
    %56 = vector.load %arg19[%c0_34, %c94] : memref<8x512xf32, #tpu.memory_space<vmem>>, vector<8x256xf32>
    %c6 = arith.constant 6 : index
    %c0_35 = arith.constant 0 : index
    %57 = vector.load %arg2[%c6, %c0_35] : memref<41x256xf32, #tpu.memory_space<vmem>>, vector<1x256xf32>
    %58 = vector.broadcast %57 : vector<1x256xf32> to vector<8x256xf32>
    %59 = arith.mulf %56, %58 : vector<8x256xf32>
    %c0_36 = arith.constant 0 : index
    %c0_37 = arith.constant 0 : index
    %60 = vector.load %arg10[%c0_36, %c0_37] : memref<8x25xf32, #tpu.memory_space<vmem>>, vector<8x1xf32>
    %61 = vector.broadcast %60 : vector<8x1xf32> to vector<8x256xf32>
    %62 = arith.mulf %59, %61 : vector<8x256xf32>
    %63 = arith.addf %7, %62 : vector<8x256xf32>
    %c0_38 = arith.constant 0 : index
    %c0_39 = arith.constant 0 : index
    %64 = vector.load %arg14[%c0_38, %c0_39] : memref<8x9xf32, #tpu.memory_space<vmem>>, vector<8x1xf32>
    %65 = vector.broadcast %64 : vector<8x1xf32> to vector<8x256xf32>
    %66 = arith.mulf %59, %65 : vector<8x256xf32>
    %67 = arith.addf %7, %66 : vector<8x256xf32>
    %c0_40 = arith.constant 0 : index
    %c6_41 = arith.constant 6 : index
    %68 = vector.load %arg16[%c0_40, %c6_41] : memref<8x25xf32, #tpu.memory_space<vmem>>, vector<8x1xf32>
    %69 = vector.broadcast %68 : vector<8x1xf32> to vector<8x256xf32>
    %70 = arith.mulf %59, %69 : vector<8x256xf32>
    %71 = arith.addf %55, %70 : vector<8x256xf32>
    %c0_42 = arith.constant 0 : index
    %c95 = arith.constant 95 : index
    %72 = vector.load %arg19[%c0_42, %c95] : memref<8x512xf32, #tpu.memory_space<vmem>>, vector<8x256xf32>
    %c7 = arith.constant 7 : index
    %c0_43 = arith.constant 0 : index
    %73 = vector.load %arg2[%c7, %c0_43] : memref<41x256xf32, #tpu.memory_space<vmem>>, vector<1x256xf32>
    %74 = vector.broadcast %73 : vector<1x256xf32> to vector<8x256xf32>
    %75 = arith.mulf %72, %74 : vector<8x256xf32>
    %c0_44 = arith.constant 0 : index
    %c1_45 = arith.constant 1 : index
    %76 = vector.load %arg10[%c0_44, %c1_45] : memref<8x25xf32, #tpu.memory_space<vmem>>, vector<8x1xf32>
    %77 = vector.broadcast %76 : vector<8x1xf32> to vector<8x256xf32>
    %78 = arith.mulf %75, %77 : vector<8x256xf32>
    %79 = arith.addf %63, %78 : vector<8x256xf32>
    %c0_46 = arith.constant 0 : index
    %c96 = arith.constant 96 : index
    %80 = vector.load %arg19[%c0_46, %c96] : memref<8x512xf32, #tpu.memory_space<vmem>>, vector<8x256xf32>
    %c8 = arith.constant 8 : index
    %c0_47 = arith.constant 0 : index
    %81 = vector.load %arg2[%c8, %c0_47] : memref<41x256xf32, #tpu.memory_space<vmem>>, vector<1x256xf32>
    %82 = vector.broadcast %81 : vector<1x256xf32> to vector<8x256xf32>
    %83 = arith.mulf %80, %82 : vector<8x256xf32>
    %c0_48 = arith.constant 0 : index
    %c2_49 = arith.constant 2 : index
    %84 = vector.load %arg10[%c0_48, %c2_49] : memref<8x25xf32, #tpu.memory_space<vmem>>, vector<8x1xf32>
    %85 = vector.broadcast %84 : vector<8x1xf32> to vector<8x256xf32>
    %86 = arith.mulf %83, %85 : vector<8x256xf32>
    %87 = arith.addf %79, %86 : vector<8x256xf32>
    %c0_50 = arith.constant 0 : index
    %c1_51 = arith.constant 1 : index
    %88 = vector.load %arg14[%c0_50, %c1_51] : memref<8x9xf32, #tpu.memory_space<vmem>>, vector<8x1xf32>
    %89 = vector.broadcast %88 : vector<8x1xf32> to vector<8x256xf32>
    %90 = arith.mulf %83, %89 : vector<8x256xf32>
    %91 = arith.addf %67, %90 : vector<8x256xf32>
    %c0_52 = arith.constant 0 : index
    %c7_53 = arith.constant 7 : index
    %92 = vector.load %arg16[%c0_52, %c7_53] : memref<8x25xf32, #tpu.memory_space<vmem>>, vector<8x1xf32>
    %93 = vector.broadcast %92 : vector<8x1xf32> to vector<8x256xf32>
    %94 = arith.mulf %83, %93 : vector<8x256xf32>
    %95 = arith.addf %71, %94 : vector<8x256xf32>
    %c0_54 = arith.constant 0 : index
    %c97 = arith.constant 97 : index
    %96 = vector.load %arg19[%c0_54, %c97] : memref<8x512xf32, #tpu.memory_space<vmem>>, vector<8x256xf32>
    %c9 = arith.constant 9 : index
    %c0_55 = arith.constant 0 : index
    %97 = vector.load %arg2[%c9, %c0_55] : memref<41x256xf32, #tpu.memory_space<vmem>>, vector<1x256xf32>
    %98 = vector.broadcast %97 : vector<1x256xf32> to vector<8x256xf32>
    %99 = arith.mulf %96, %98 : vector<8x256xf32>
    %c0_56 = arith.constant 0 : index
    %c3_57 = arith.constant 3 : index
    %100 = vector.load %arg10[%c0_56, %c3_57] : memref<8x25xf32, #tpu.memory_space<vmem>>, vector<8x1xf32>
    %101 = vector.broadcast %100 : vector<8x1xf32> to vector<8x256xf32>
    %102 = arith.mulf %99, %101 : vector<8x256xf32>
    %103 = arith.addf %87, %102 : vector<8x256xf32>
    %c0_58 = arith.constant 0 : index
    %c98 = arith.constant 98 : index
    %104 = vector.load %arg19[%c0_58, %c98] : memref<8x512xf32, #tpu.memory_space<vmem>>, vector<8x256xf32>
    %c10 = arith.constant 10 : index
    %c0_59 = arith.constant 0 : index
    %105 = vector.load %arg2[%c10, %c0_59] : memref<41x256xf32, #tpu.memory_space<vmem>>, vector<1x256xf32>
    %106 = vector.broadcast %105 : vector<1x256xf32> to vector<8x256xf32>
    %107 = arith.mulf %104, %106 : vector<8x256xf32>
    %c0_60 = arith.constant 0 : index
    %c4_61 = arith.constant 4 : index
    %108 = vector.load %arg10[%c0_60, %c4_61] : memref<8x25xf32, #tpu.memory_space<vmem>>, vector<8x1xf32>
    %109 = vector.broadcast %108 : vector<8x1xf32> to vector<8x256xf32>
    %110 = arith.mulf %107, %109 : vector<8x256xf32>
    %111 = arith.addf %103, %110 : vector<8x256xf32>
    %c0_62 = arith.constant 0 : index
    %c2_63 = arith.constant 2 : index
    %112 = vector.load %arg14[%c0_62, %c2_63] : memref<8x9xf32, #tpu.memory_space<vmem>>, vector<8x1xf32>
    %113 = vector.broadcast %112 : vector<8x1xf32> to vector<8x256xf32>
    %114 = arith.mulf %107, %113 : vector<8x256xf32>
    %115 = arith.addf %91, %114 : vector<8x256xf32>
    %c0_64 = arith.constant 0 : index
    %c8_65 = arith.constant 8 : index
    %116 = vector.load %arg16[%c0_64, %c8_65] : memref<8x25xf32, #tpu.memory_space<vmem>>, vector<8x1xf32>
    %117 = vector.broadcast %116 : vector<8x1xf32> to vector<8x256xf32>
    %118 = arith.mulf %107, %117 : vector<8x256xf32>
    %119 = arith.addf %95, %118 : vector<8x256xf32>
    %c0_66 = arith.constant 0 : index
    %c100 = arith.constant 100 : index
    %120 = vector.load %arg19[%c0_66, %c100] : memref<8x512xf32, #tpu.memory_space<vmem>>, vector<8x256xf32>
    %c11 = arith.constant 11 : index
    %c0_67 = arith.constant 0 : index
    %121 = vector.load %arg2[%c11, %c0_67] : memref<41x256xf32, #tpu.memory_space<vmem>>, vector<1x256xf32>
    %122 = vector.broadcast %121 : vector<1x256xf32> to vector<8x256xf32>
    %123 = arith.mulf %120, %122 : vector<8x256xf32>
    %c0_68 = arith.constant 0 : index
    %c9_69 = arith.constant 9 : index
    %124 = vector.load %arg16[%c0_68, %c9_69] : memref<8x25xf32, #tpu.memory_space<vmem>>, vector<8x1xf32>
    %125 = vector.broadcast %124 : vector<8x1xf32> to vector<8x256xf32>
    %126 = arith.mulf %123, %125 : vector<8x256xf32>
    %127 = arith.addf %119, %126 : vector<8x256xf32>
    %c0_70 = arith.constant 0 : index
    %c110 = arith.constant 110 : index
    %128 = vector.load %arg19[%c0_70, %c110] : memref<8x512xf32, #tpu.memory_space<vmem>>, vector<8x256xf32>
    %c12 = arith.constant 12 : index
    %c0_71 = arith.constant 0 : index
    %129 = vector.load %arg2[%c12, %c0_71] : memref<41x256xf32, #tpu.memory_space<vmem>>, vector<1x256xf32>
    %130 = vector.broadcast %129 : vector<1x256xf32> to vector<8x256xf32>
    %131 = arith.mulf %128, %130 : vector<8x256xf32>
    %c0_72 = arith.constant 0 : index
    %c5_73 = arith.constant 5 : index
    %132 = vector.load %arg10[%c0_72, %c5_73] : memref<8x25xf32, #tpu.memory_space<vmem>>, vector<8x1xf32>
    %133 = vector.broadcast %132 : vector<8x1xf32> to vector<8x256xf32>
    %134 = arith.mulf %131, %133 : vector<8x256xf32>
    %135 = arith.addf %111, %134 : vector<8x256xf32>
    %c0_74 = arith.constant 0 : index
    %c111 = arith.constant 111 : index
    %136 = vector.load %arg19[%c0_74, %c111] : memref<8x512xf32, #tpu.memory_space<vmem>>, vector<8x256xf32>
    %c13 = arith.constant 13 : index
    %c0_75 = arith.constant 0 : index
    %137 = vector.load %arg2[%c13, %c0_75] : memref<41x256xf32, #tpu.memory_space<vmem>>, vector<1x256xf32>
    %138 = vector.broadcast %137 : vector<1x256xf32> to vector<8x256xf32>
    %139 = arith.mulf %136, %138 : vector<8x256xf32>
    %c0_76 = arith.constant 0 : index
    %c0_77 = arith.constant 0 : index
    %140 = vector.load %arg3[%c0_76, %c0_77] : memref<9x256xf32, #tpu.memory_space<vmem>>, vector<1x256xf32>
    %141 = vector.broadcast %140 : vector<1x256xf32> to vector<8x256xf32>
    %142 = arith.addf %139, %141 : vector<8x256xf32>
    %143 = arith.addf %7, %139 : vector<8x256xf32>
    %c0_78 = arith.constant 0 : index
    %c0_79 = arith.constant 0 : index
    %144 = vector.load %arg6[%c0_78, %c0_79] : memref<8x9xf32, #tpu.memory_space<vmem>>, vector<8x1xf32>
    %145 = vector.broadcast %144 : vector<8x1xf32> to vector<8x256xf32>
    %146 = arith.mulf %139, %145 : vector<8x256xf32>
    %147 = arith.addf %7, %146 : vector<8x256xf32>
    %c0_80 = arith.constant 0 : index
    %c6_81 = arith.constant 6 : index
    %148 = vector.load %arg10[%c0_80, %c6_81] : memref<8x25xf32, #tpu.memory_space<vmem>>, vector<8x1xf32>
    %149 = vector.broadcast %148 : vector<8x1xf32> to vector<8x256xf32>
    %150 = arith.mulf %139, %149 : vector<8x256xf32>
    %151 = arith.addf %135, %150 : vector<8x256xf32>
    %c0_82 = arith.constant 0 : index
    %c112 = arith.constant 112 : index
    %152 = vector.load %arg19[%c0_82, %c112] : memref<8x512xf32, #tpu.memory_space<vmem>>, vector<8x256xf32>
    %c14 = arith.constant 14 : index
    %c0_83 = arith.constant 0 : index
    %153 = vector.load %arg2[%c14, %c0_83] : memref<41x256xf32, #tpu.memory_space<vmem>>, vector<1x256xf32>
    %154 = vector.broadcast %153 : vector<1x256xf32> to vector<8x256xf32>
    %155 = arith.mulf %152, %154 : vector<8x256xf32>
    %c1_84 = arith.constant 1 : index
    %c0_85 = arith.constant 0 : index
    %156 = vector.load %arg3[%c1_84, %c0_85] : memref<9x256xf32, #tpu.memory_space<vmem>>, vector<1x256xf32>
    %157 = vector.broadcast %156 : vector<1x256xf32> to vector<8x256xf32>
    %158 = arith.addf %155, %157 : vector<8x256xf32>
    %159 = arith.maximumf %142, %158 : vector<8x256xf32>
    %160 = arith.addf %143, %155 : vector<8x256xf32>
    %c0_86 = arith.constant 0 : index
    %c1_87 = arith.constant 1 : index
    %161 = vector.load %arg6[%c0_86, %c1_87] : memref<8x9xf32, #tpu.memory_space<vmem>>, vector<8x1xf32>
    %162 = vector.broadcast %161 : vector<8x1xf32> to vector<8x256xf32>
    %163 = arith.mulf %155, %162 : vector<8x256xf32>
    %164 = arith.addf %147, %163 : vector<8x256xf32>
    %c0_88 = arith.constant 0 : index
    %c7_89 = arith.constant 7 : index
    %165 = vector.load %arg10[%c0_88, %c7_89] : memref<8x25xf32, #tpu.memory_space<vmem>>, vector<8x1xf32>
    %166 = vector.broadcast %165 : vector<8x1xf32> to vector<8x256xf32>
    %167 = arith.mulf %155, %166 : vector<8x256xf32>
    %168 = arith.addf %151, %167 : vector<8x256xf32>
    %c0_90 = arith.constant 0 : index
    %c113 = arith.constant 113 : index
    %169 = vector.load %arg19[%c0_90, %c113] : memref<8x512xf32, #tpu.memory_space<vmem>>, vector<8x256xf32>
    %c15 = arith.constant 15 : index
    %c0_91 = arith.constant 0 : index
    %170 = vector.load %arg2[%c15, %c0_91] : memref<41x256xf32, #tpu.memory_space<vmem>>, vector<1x256xf32>
    %171 = vector.broadcast %170 : vector<1x256xf32> to vector<8x256xf32>
    %172 = arith.mulf %169, %171 : vector<8x256xf32>
    %c2_92 = arith.constant 2 : index
    %c0_93 = arith.constant 0 : index
    %173 = vector.load %arg3[%c2_92, %c0_93] : memref<9x256xf32, #tpu.memory_space<vmem>>, vector<1x256xf32>
    %174 = vector.broadcast %173 : vector<1x256xf32> to vector<8x256xf32>
    %175 = arith.addf %172, %174 : vector<8x256xf32>
    %176 = arith.maximumf %159, %175 : vector<8x256xf32>
    %177 = arith.addf %160, %172 : vector<8x256xf32>
    %c0_94 = arith.constant 0 : index
    %c2_95 = arith.constant 2 : index
    %178 = vector.load %arg6[%c0_94, %c2_95] : memref<8x9xf32, #tpu.memory_space<vmem>>, vector<8x1xf32>
    %179 = vector.broadcast %178 : vector<8x1xf32> to vector<8x256xf32>
    %180 = arith.mulf %172, %179 : vector<8x256xf32>
    %181 = arith.addf %164, %180 : vector<8x256xf32>
    %c0_96 = arith.constant 0 : index
    %c8_97 = arith.constant 8 : index
    %182 = vector.load %arg10[%c0_96, %c8_97] : memref<8x25xf32, #tpu.memory_space<vmem>>, vector<8x1xf32>
    %183 = vector.broadcast %182 : vector<8x1xf32> to vector<8x256xf32>
    %184 = arith.mulf %172, %183 : vector<8x256xf32>
    %185 = arith.addf %168, %184 : vector<8x256xf32>
    %c0_98 = arith.constant 0 : index
    %c114 = arith.constant 114 : index
    %186 = vector.load %arg19[%c0_98, %c114] : memref<8x512xf32, #tpu.memory_space<vmem>>, vector<8x256xf32>
    %c16 = arith.constant 16 : index
    %c0_99 = arith.constant 0 : index
    %187 = vector.load %arg2[%c16, %c0_99] : memref<41x256xf32, #tpu.memory_space<vmem>>, vector<1x256xf32>
    %188 = vector.broadcast %187 : vector<1x256xf32> to vector<8x256xf32>
    %189 = arith.mulf %186, %188 : vector<8x256xf32>
    %c0_100 = arith.constant 0 : index
    %c9_101 = arith.constant 9 : index
    %190 = vector.load %arg10[%c0_100, %c9_101] : memref<8x25xf32, #tpu.memory_space<vmem>>, vector<8x1xf32>
    %191 = vector.broadcast %190 : vector<8x1xf32> to vector<8x256xf32>
    %192 = arith.mulf %189, %191 : vector<8x256xf32>
    %193 = arith.addf %185, %192 : vector<8x256xf32>
    %c0_102 = arith.constant 0 : index
    %c124 = arith.constant 124 : index
    %194 = vector.load %arg19[%c0_102, %c124] : memref<8x512xf32, #tpu.memory_space<vmem>>, vector<8x256xf32>
    %c17 = arith.constant 17 : index
    %c0_103 = arith.constant 0 : index
    %195 = vector.load %arg2[%c17, %c0_103] : memref<41x256xf32, #tpu.memory_space<vmem>>, vector<1x256xf32>
    %196 = vector.broadcast %195 : vector<1x256xf32> to vector<8x256xf32>
    %197 = arith.mulf %194, %196 : vector<8x256xf32>
    %c0_104 = arith.constant 0 : index
    %c10_105 = arith.constant 10 : index
    %198 = vector.load %arg16[%c0_104, %c10_105] : memref<8x25xf32, #tpu.memory_space<vmem>>, vector<8x1xf32>
    %199 = vector.broadcast %198 : vector<8x1xf32> to vector<8x256xf32>
    %200 = arith.mulf %197, %199 : vector<8x256xf32>
    %201 = arith.addf %127, %200 : vector<8x256xf32>
    %c0_106 = arith.constant 0 : index
    %c126 = arith.constant 126 : index
    %202 = vector.load %arg19[%c0_106, %c126] : memref<8x512xf32, #tpu.memory_space<vmem>>, vector<8x256xf32>
    %c18 = arith.constant 18 : index
    %c0_107 = arith.constant 0 : index
    %203 = vector.load %arg2[%c18, %c0_107] : memref<41x256xf32, #tpu.memory_space<vmem>>, vector<1x256xf32>
    %204 = vector.broadcast %203 : vector<1x256xf32> to vector<8x256xf32>
    %205 = arith.mulf %202, %204 : vector<8x256xf32>
    %c0_108 = arith.constant 0 : index
    %c10_109 = arith.constant 10 : index
    %206 = vector.load %arg10[%c0_108, %c10_109] : memref<8x25xf32, #tpu.memory_space<vmem>>, vector<8x1xf32>
    %207 = vector.broadcast %206 : vector<8x1xf32> to vector<8x256xf32>
    %208 = arith.mulf %205, %207 : vector<8x256xf32>
    %209 = arith.addf %193, %208 : vector<8x256xf32>
    %c0_110 = arith.constant 0 : index
    %c3_111 = arith.constant 3 : index
    %210 = vector.load %arg14[%c0_110, %c3_111] : memref<8x9xf32, #tpu.memory_space<vmem>>, vector<8x1xf32>
    %211 = vector.broadcast %210 : vector<8x1xf32> to vector<8x256xf32>
    %212 = arith.mulf %205, %211 : vector<8x256xf32>
    %213 = arith.addf %115, %212 : vector<8x256xf32>
    %c0_112 = arith.constant 0 : index
    %c11_113 = arith.constant 11 : index
    %214 = vector.load %arg16[%c0_112, %c11_113] : memref<8x25xf32, #tpu.memory_space<vmem>>, vector<8x1xf32>
    %215 = vector.broadcast %214 : vector<8x1xf32> to vector<8x256xf32>
    %216 = arith.mulf %205, %215 : vector<8x256xf32>
    %217 = arith.addf %201, %216 : vector<8x256xf32>
    %c0_114 = arith.constant 0 : index
    %c127 = arith.constant 127 : index
    %218 = vector.load %arg19[%c0_114, %c127] : memref<8x512xf32, #tpu.memory_space<vmem>>, vector<8x256xf32>
    %c19 = arith.constant 19 : index
    %c0_115 = arith.constant 0 : index
    %219 = vector.load %arg2[%c19, %c0_115] : memref<41x256xf32, #tpu.memory_space<vmem>>, vector<1x256xf32>
    %220 = vector.broadcast %219 : vector<1x256xf32> to vector<8x256xf32>
    %221 = arith.mulf %218, %220 : vector<8x256xf32>
    %c3_116 = arith.constant 3 : index
    %c0_117 = arith.constant 0 : index
    %222 = vector.load %arg3[%c3_116, %c0_117] : memref<9x256xf32, #tpu.memory_space<vmem>>, vector<1x256xf32>
    %223 = vector.broadcast %222 : vector<1x256xf32> to vector<8x256xf32>
    %224 = arith.addf %221, %223 : vector<8x256xf32>
    %225 = arith.maximumf %176, %224 : vector<8x256xf32>
    %226 = arith.addf %177, %221 : vector<8x256xf32>
    %c0_118 = arith.constant 0 : index
    %c3_119 = arith.constant 3 : index
    %227 = vector.load %arg6[%c0_118, %c3_119] : memref<8x9xf32, #tpu.memory_space<vmem>>, vector<8x1xf32>
    %228 = vector.broadcast %227 : vector<8x1xf32> to vector<8x256xf32>
    %229 = arith.mulf %221, %228 : vector<8x256xf32>
    %230 = arith.addf %181, %229 : vector<8x256xf32>
    %c0_120 = arith.constant 0 : index
    %c11_121 = arith.constant 11 : index
    %231 = vector.load %arg10[%c0_120, %c11_121] : memref<8x25xf32, #tpu.memory_space<vmem>>, vector<8x1xf32>
    %232 = vector.broadcast %231 : vector<8x1xf32> to vector<8x256xf32>
    %233 = arith.mulf %221, %232 : vector<8x256xf32>
    %234 = arith.addf %209, %233 : vector<8x256xf32>
    %c0_122 = arith.constant 0 : index
    %c128_123 = arith.constant 128 : index
    %235 = vector.load %arg19[%c0_122, %c128_123] : memref<8x512xf32, #tpu.memory_space<vmem>>, vector<8x256xf32>
    %c20 = arith.constant 20 : index
    %c0_124 = arith.constant 0 : index
    %236 = vector.load %arg2[%c20, %c0_124] : memref<41x256xf32, #tpu.memory_space<vmem>>, vector<1x256xf32>
    %237 = vector.broadcast %236 : vector<1x256xf32> to vector<8x256xf32>
    %238 = arith.mulf %235, %237 : vector<8x256xf32>
    %c4_125 = arith.constant 4 : index
    %c0_126 = arith.constant 0 : index
    %239 = vector.load %arg3[%c4_125, %c0_126] : memref<9x256xf32, #tpu.memory_space<vmem>>, vector<1x256xf32>
    %240 = vector.broadcast %239 : vector<1x256xf32> to vector<8x256xf32>
    %241 = arith.addf %238, %240 : vector<8x256xf32>
    %242 = arith.maximumf %225, %241 : vector<8x256xf32>
    %243 = arith.addf %226, %238 : vector<8x256xf32>
    %c0_127 = arith.constant 0 : index
    %c4_128 = arith.constant 4 : index
    %244 = vector.load %arg6[%c0_127, %c4_128] : memref<8x9xf32, #tpu.memory_space<vmem>>, vector<8x1xf32>
    %245 = vector.broadcast %244 : vector<8x1xf32> to vector<8x256xf32>
    %246 = arith.mulf %238, %245 : vector<8x256xf32>
    %247 = arith.addf %230, %246 : vector<8x256xf32>
    %c0_129 = arith.constant 0 : index
    %c12_130 = arith.constant 12 : index
    %248 = vector.load %arg10[%c0_129, %c12_130] : memref<8x25xf32, #tpu.memory_space<vmem>>, vector<8x1xf32>
    %249 = vector.broadcast %248 : vector<8x1xf32> to vector<8x256xf32>
    %250 = arith.mulf %238, %249 : vector<8x256xf32>
    %251 = arith.addf %234, %250 : vector<8x256xf32>
    %c0_131 = arith.constant 0 : index
    %c4_132 = arith.constant 4 : index
    %252 = vector.load %arg14[%c0_131, %c4_132] : memref<8x9xf32, #tpu.memory_space<vmem>>, vector<8x1xf32>
    %253 = vector.broadcast %252 : vector<8x1xf32> to vector<8x256xf32>
    %254 = arith.mulf %238, %253 : vector<8x256xf32>
    %255 = arith.addf %213, %254 : vector<8x256xf32>
    %c0_133 = arith.constant 0 : index
    %c12_134 = arith.constant 12 : index
    %256 = vector.load %arg16[%c0_133, %c12_134] : memref<8x25xf32, #tpu.memory_space<vmem>>, vector<8x1xf32>
    %257 = vector.broadcast %256 : vector<8x1xf32> to vector<8x256xf32>
    %258 = arith.mulf %238, %257 : vector<8x256xf32>
    %259 = arith.addf %217, %258 : vector<8x256xf32>
    %c0_135 = arith.constant 0 : index
    %c129 = arith.constant 129 : index
    %260 = vector.load %arg19[%c0_135, %c129] : memref<8x512xf32, #tpu.memory_space<vmem>>, vector<8x256xf32>
    %c21 = arith.constant 21 : index
    %c0_136 = arith.constant 0 : index
    %261 = vector.load %arg2[%c21, %c0_136] : memref<41x256xf32, #tpu.memory_space<vmem>>, vector<1x256xf32>
    %262 = vector.broadcast %261 : vector<1x256xf32> to vector<8x256xf32>
    %263 = arith.mulf %260, %262 : vector<8x256xf32>
    %c5_137 = arith.constant 5 : index
    %c0_138 = arith.constant 0 : index
    %264 = vector.load %arg3[%c5_137, %c0_138] : memref<9x256xf32, #tpu.memory_space<vmem>>, vector<1x256xf32>
    %265 = vector.broadcast %264 : vector<1x256xf32> to vector<8x256xf32>
    %266 = arith.addf %263, %265 : vector<8x256xf32>
    %267 = arith.maximumf %242, %266 : vector<8x256xf32>
    %268 = arith.addf %243, %263 : vector<8x256xf32>
    %c0_139 = arith.constant 0 : index
    %c5_140 = arith.constant 5 : index
    %269 = vector.load %arg6[%c0_139, %c5_140] : memref<8x9xf32, #tpu.memory_space<vmem>>, vector<8x1xf32>
    %270 = vector.broadcast %269 : vector<8x1xf32> to vector<8x256xf32>
    %271 = arith.mulf %263, %270 : vector<8x256xf32>
    %272 = arith.addf %247, %271 : vector<8x256xf32>
    %c0_141 = arith.constant 0 : index
    %c13_142 = arith.constant 13 : index
    %273 = vector.load %arg10[%c0_141, %c13_142] : memref<8x25xf32, #tpu.memory_space<vmem>>, vector<8x1xf32>
    %274 = vector.broadcast %273 : vector<8x1xf32> to vector<8x256xf32>
    %275 = arith.mulf %263, %274 : vector<8x256xf32>
    %276 = arith.addf %251, %275 : vector<8x256xf32>
    %c0_143 = arith.constant 0 : index
    %c130 = arith.constant 130 : index
    %277 = vector.load %arg19[%c0_143, %c130] : memref<8x512xf32, #tpu.memory_space<vmem>>, vector<8x256xf32>
    %c22 = arith.constant 22 : index
    %c0_144 = arith.constant 0 : index
    %278 = vector.load %arg2[%c22, %c0_144] : memref<41x256xf32, #tpu.memory_space<vmem>>, vector<1x256xf32>
    %279 = vector.broadcast %278 : vector<1x256xf32> to vector<8x256xf32>
    %280 = arith.mulf %277, %279 : vector<8x256xf32>
    %c0_145 = arith.constant 0 : index
    %c14_146 = arith.constant 14 : index
    %281 = vector.load %arg10[%c0_145, %c14_146] : memref<8x25xf32, #tpu.memory_space<vmem>>, vector<8x1xf32>
    %282 = vector.broadcast %281 : vector<8x1xf32> to vector<8x256xf32>
    %283 = arith.mulf %280, %282 : vector<8x256xf32>
    %284 = arith.addf %276, %283 : vector<8x256xf32>
    %c0_147 = arith.constant 0 : index
    %c5_148 = arith.constant 5 : index
    %285 = vector.load %arg14[%c0_147, %c5_148] : memref<8x9xf32, #tpu.memory_space<vmem>>, vector<8x1xf32>
    %286 = vector.broadcast %285 : vector<8x1xf32> to vector<8x256xf32>
    %287 = arith.mulf %280, %286 : vector<8x256xf32>
    %288 = arith.addf %255, %287 : vector<8x256xf32>
    %c0_149 = arith.constant 0 : index
    %c13_150 = arith.constant 13 : index
    %289 = vector.load %arg16[%c0_149, %c13_150] : memref<8x25xf32, #tpu.memory_space<vmem>>, vector<8x1xf32>
    %290 = vector.broadcast %289 : vector<8x1xf32> to vector<8x256xf32>
    %291 = arith.mulf %280, %290 : vector<8x256xf32>
    %292 = arith.addf %259, %291 : vector<8x256xf32>
    %c0_151 = arith.constant 0 : index
    %c132 = arith.constant 132 : index
    %293 = vector.load %arg19[%c0_151, %c132] : memref<8x512xf32, #tpu.memory_space<vmem>>, vector<8x256xf32>
    %c23 = arith.constant 23 : index
    %c0_152 = arith.constant 0 : index
    %294 = vector.load %arg2[%c23, %c0_152] : memref<41x256xf32, #tpu.memory_space<vmem>>, vector<1x256xf32>
    %295 = vector.broadcast %294 : vector<1x256xf32> to vector<8x256xf32>
    %296 = arith.mulf %293, %295 : vector<8x256xf32>
    %c0_153 = arith.constant 0 : index
    %c14_154 = arith.constant 14 : index
    %297 = vector.load %arg16[%c0_153, %c14_154] : memref<8x25xf32, #tpu.memory_space<vmem>>, vector<8x1xf32>
    %298 = vector.broadcast %297 : vector<8x1xf32> to vector<8x256xf32>
    %299 = arith.mulf %296, %298 : vector<8x256xf32>
    %300 = arith.addf %292, %299 : vector<8x256xf32>
    %c0_155 = arith.constant 0 : index
    %c142 = arith.constant 142 : index
    %301 = vector.load %arg19[%c0_155, %c142] : memref<8x512xf32, #tpu.memory_space<vmem>>, vector<8x256xf32>
    %c24 = arith.constant 24 : index
    %c0_156 = arith.constant 0 : index
    %302 = vector.load %arg2[%c24, %c0_156] : memref<41x256xf32, #tpu.memory_space<vmem>>, vector<1x256xf32>
    %303 = vector.broadcast %302 : vector<1x256xf32> to vector<8x256xf32>
    %304 = arith.mulf %301, %303 : vector<8x256xf32>
    %c0_157 = arith.constant 0 : index
    %c15_158 = arith.constant 15 : index
    %305 = vector.load %arg10[%c0_157, %c15_158] : memref<8x25xf32, #tpu.memory_space<vmem>>, vector<8x1xf32>
    %306 = vector.broadcast %305 : vector<8x1xf32> to vector<8x256xf32>
    %307 = arith.mulf %304, %306 : vector<8x256xf32>
    %308 = arith.addf %284, %307 : vector<8x256xf32>
    %c0_159 = arith.constant 0 : index
    %c143 = arith.constant 143 : index
    %309 = vector.load %arg19[%c0_159, %c143] : memref<8x512xf32, #tpu.memory_space<vmem>>, vector<8x256xf32>
    %c25 = arith.constant 25 : index
    %c0_160 = arith.constant 0 : index
    %310 = vector.load %arg2[%c25, %c0_160] : memref<41x256xf32, #tpu.memory_space<vmem>>, vector<1x256xf32>
    %311 = vector.broadcast %310 : vector<1x256xf32> to vector<8x256xf32>
    %312 = arith.mulf %309, %311 : vector<8x256xf32>
    %c6_161 = arith.constant 6 : index
    %c0_162 = arith.constant 0 : index
    %313 = vector.load %arg3[%c6_161, %c0_162] : memref<9x256xf32, #tpu.memory_space<vmem>>, vector<1x256xf32>
    %314 = vector.broadcast %313 : vector<1x256xf32> to vector<8x256xf32>
    %315 = arith.addf %312, %314 : vector<8x256xf32>
    %316 = arith.maximumf %267, %315 : vector<8x256xf32>
    %317 = arith.addf %268, %312 : vector<8x256xf32>
    %c0_163 = arith.constant 0 : index
    %c6_164 = arith.constant 6 : index
    %318 = vector.load %arg6[%c0_163, %c6_164] : memref<8x9xf32, #tpu.memory_space<vmem>>, vector<8x1xf32>
    %319 = vector.broadcast %318 : vector<8x1xf32> to vector<8x256xf32>
    %320 = arith.mulf %312, %319 : vector<8x256xf32>
    %321 = arith.addf %272, %320 : vector<8x256xf32>
    %c0_165 = arith.constant 0 : index
    %c16_166 = arith.constant 16 : index
    %322 = vector.load %arg10[%c0_165, %c16_166] : memref<8x25xf32, #tpu.memory_space<vmem>>, vector<8x1xf32>
    %323 = vector.broadcast %322 : vector<8x1xf32> to vector<8x256xf32>
    %324 = arith.mulf %312, %323 : vector<8x256xf32>
    %325 = arith.addf %308, %324 : vector<8x256xf32>
    %c0_167 = arith.constant 0 : index
    %c144 = arith.constant 144 : index
    %326 = vector.load %arg19[%c0_167, %c144] : memref<8x512xf32, #tpu.memory_space<vmem>>, vector<8x256xf32>
    %c26 = arith.constant 26 : index
    %c0_168 = arith.constant 0 : index
    %327 = vector.load %arg2[%c26, %c0_168] : memref<41x256xf32, #tpu.memory_space<vmem>>, vector<1x256xf32>
    %328 = vector.broadcast %327 : vector<1x256xf32> to vector<8x256xf32>
    %329 = arith.mulf %326, %328 : vector<8x256xf32>
    %c7_169 = arith.constant 7 : index
    %c0_170 = arith.constant 0 : index
    %330 = vector.load %arg3[%c7_169, %c0_170] : memref<9x256xf32, #tpu.memory_space<vmem>>, vector<1x256xf32>
    %331 = vector.broadcast %330 : vector<1x256xf32> to vector<8x256xf32>
    %332 = arith.addf %329, %331 : vector<8x256xf32>
    %333 = arith.maximumf %316, %332 : vector<8x256xf32>
    %334 = arith.addf %317, %329 : vector<8x256xf32>
    %c0_171 = arith.constant 0 : index
    %c7_172 = arith.constant 7 : index
    %335 = vector.load %arg6[%c0_171, %c7_172] : memref<8x9xf32, #tpu.memory_space<vmem>>, vector<8x1xf32>
    %336 = vector.broadcast %335 : vector<8x1xf32> to vector<8x256xf32>
    %337 = arith.mulf %329, %336 : vector<8x256xf32>
    %338 = arith.addf %321, %337 : vector<8x256xf32>
    %c0_173 = arith.constant 0 : index
    %c17_174 = arith.constant 17 : index
    %339 = vector.load %arg10[%c0_173, %c17_174] : memref<8x25xf32, #tpu.memory_space<vmem>>, vector<8x1xf32>
    %340 = vector.broadcast %339 : vector<8x1xf32> to vector<8x256xf32>
    %341 = arith.mulf %329, %340 : vector<8x256xf32>
    %342 = arith.addf %325, %341 : vector<8x256xf32>
    %c0_175 = arith.constant 0 : index
    %c145 = arith.constant 145 : index
    %343 = vector.load %arg19[%c0_175, %c145] : memref<8x512xf32, #tpu.memory_space<vmem>>, vector<8x256xf32>
    %c27 = arith.constant 27 : index
    %c0_176 = arith.constant 0 : index
    %344 = vector.load %arg2[%c27, %c0_176] : memref<41x256xf32, #tpu.memory_space<vmem>>, vector<1x256xf32>
    %345 = vector.broadcast %344 : vector<1x256xf32> to vector<8x256xf32>
    %346 = arith.mulf %343, %345 : vector<8x256xf32>
    %c8_177 = arith.constant 8 : index
    %c0_178 = arith.constant 0 : index
    %347 = vector.load %arg3[%c8_177, %c0_178] : memref<9x256xf32, #tpu.memory_space<vmem>>, vector<1x256xf32>
    %348 = vector.broadcast %347 : vector<1x256xf32> to vector<8x256xf32>
    %349 = arith.addf %346, %348 : vector<8x256xf32>
    %350 = arith.maximumf %333, %349 : vector<8x256xf32>
    %351 = arith.addf %334, %346 : vector<8x256xf32>
    %c0_179 = arith.constant 0 : index
    %c8_180 = arith.constant 8 : index
    %352 = vector.load %arg6[%c0_179, %c8_180] : memref<8x9xf32, #tpu.memory_space<vmem>>, vector<8x1xf32>
    %353 = vector.broadcast %352 : vector<8x1xf32> to vector<8x256xf32>
    %354 = arith.mulf %346, %353 : vector<8x256xf32>
    %355 = arith.addf %338, %354 : vector<8x256xf32>
    %c0_181 = arith.constant 0 : index
    %c18_182 = arith.constant 18 : index
    %356 = vector.load %arg10[%c0_181, %c18_182] : memref<8x25xf32, #tpu.memory_space<vmem>>, vector<8x1xf32>
    %357 = vector.broadcast %356 : vector<8x1xf32> to vector<8x256xf32>
    %358 = arith.mulf %346, %357 : vector<8x256xf32>
    %359 = arith.addf %342, %358 : vector<8x256xf32>
    %c0_183 = arith.constant 0 : index
    %c146 = arith.constant 146 : index
    %360 = vector.load %arg19[%c0_183, %c146] : memref<8x512xf32, #tpu.memory_space<vmem>>, vector<8x256xf32>
    %c28 = arith.constant 28 : index
    %c0_184 = arith.constant 0 : index
    %361 = vector.load %arg2[%c28, %c0_184] : memref<41x256xf32, #tpu.memory_space<vmem>>, vector<1x256xf32>
    %362 = vector.broadcast %361 : vector<1x256xf32> to vector<8x256xf32>
    %363 = arith.mulf %360, %362 : vector<8x256xf32>
    %c0_185 = arith.constant 0 : index
    %c19_186 = arith.constant 19 : index
    %364 = vector.load %arg10[%c0_185, %c19_186] : memref<8x25xf32, #tpu.memory_space<vmem>>, vector<8x1xf32>
    %365 = vector.broadcast %364 : vector<8x1xf32> to vector<8x256xf32>
    %366 = arith.mulf %363, %365 : vector<8x256xf32>
    %367 = arith.addf %359, %366 : vector<8x256xf32>
    %c0_187 = arith.constant 0 : index
    %c156 = arith.constant 156 : index
    %368 = vector.load %arg19[%c0_187, %c156] : memref<8x512xf32, #tpu.memory_space<vmem>>, vector<8x256xf32>
    %c29 = arith.constant 29 : index
    %c0_188 = arith.constant 0 : index
    %369 = vector.load %arg2[%c29, %c0_188] : memref<41x256xf32, #tpu.memory_space<vmem>>, vector<1x256xf32>
    %370 = vector.broadcast %369 : vector<1x256xf32> to vector<8x256xf32>
    %371 = arith.mulf %368, %370 : vector<8x256xf32>
    %c0_189 = arith.constant 0 : index
    %c15_190 = arith.constant 15 : index
    %372 = vector.load %arg16[%c0_189, %c15_190] : memref<8x25xf32, #tpu.memory_space<vmem>>, vector<8x1xf32>
    %373 = vector.broadcast %372 : vector<8x1xf32> to vector<8x256xf32>
    %374 = arith.mulf %371, %373 : vector<8x256xf32>
    %375 = arith.addf %300, %374 : vector<8x256xf32>
    %c0_191 = arith.constant 0 : index
    %c158 = arith.constant 158 : index
    %376 = vector.load %arg19[%c0_191, %c158] : memref<8x512xf32, #tpu.memory_space<vmem>>, vector<8x256xf32>
    %c30 = arith.constant 30 : index
    %c0_192 = arith.constant 0 : index
    %377 = vector.load %arg2[%c30, %c0_192] : memref<41x256xf32, #tpu.memory_space<vmem>>, vector<1x256xf32>
    %378 = vector.broadcast %377 : vector<1x256xf32> to vector<8x256xf32>
    %379 = arith.mulf %376, %378 : vector<8x256xf32>
    %c0_193 = arith.constant 0 : index
    %c20_194 = arith.constant 20 : index
    %380 = vector.load %arg10[%c0_193, %c20_194] : memref<8x25xf32, #tpu.memory_space<vmem>>, vector<8x1xf32>
    %381 = vector.broadcast %380 : vector<8x1xf32> to vector<8x256xf32>
    %382 = arith.mulf %379, %381 : vector<8x256xf32>
    %383 = arith.addf %367, %382 : vector<8x256xf32>
    %c0_195 = arith.constant 0 : index
    %c6_196 = arith.constant 6 : index
    %384 = vector.load %arg14[%c0_195, %c6_196] : memref<8x9xf32, #tpu.memory_space<vmem>>, vector<8x1xf32>
    %385 = vector.broadcast %384 : vector<8x1xf32> to vector<8x256xf32>
    %386 = arith.mulf %379, %385 : vector<8x256xf32>
    %387 = arith.addf %288, %386 : vector<8x256xf32>
    %c0_197 = arith.constant 0 : index
    %c16_198 = arith.constant 16 : index
    %388 = vector.load %arg16[%c0_197, %c16_198] : memref<8x25xf32, #tpu.memory_space<vmem>>, vector<8x1xf32>
    %389 = vector.broadcast %388 : vector<8x1xf32> to vector<8x256xf32>
    %390 = arith.mulf %379, %389 : vector<8x256xf32>
    %391 = arith.addf %375, %390 : vector<8x256xf32>
    %c0_199 = arith.constant 0 : index
    %c159 = arith.constant 159 : index
    %392 = vector.load %arg19[%c0_199, %c159] : memref<8x512xf32, #tpu.memory_space<vmem>>, vector<8x256xf32>
    %c31 = arith.constant 31 : index
    %c0_200 = arith.constant 0 : index
    %393 = vector.load %arg2[%c31, %c0_200] : memref<41x256xf32, #tpu.memory_space<vmem>>, vector<1x256xf32>
    %394 = vector.broadcast %393 : vector<1x256xf32> to vector<8x256xf32>
    %395 = arith.mulf %392, %394 : vector<8x256xf32>
    %c0_201 = arith.constant 0 : index
    %c21_202 = arith.constant 21 : index
    %396 = vector.load %arg10[%c0_201, %c21_202] : memref<8x25xf32, #tpu.memory_space<vmem>>, vector<8x1xf32>
    %397 = vector.broadcast %396 : vector<8x1xf32> to vector<8x256xf32>
    %398 = arith.mulf %395, %397 : vector<8x256xf32>
    %399 = arith.addf %383, %398 : vector<8x256xf32>
    %c0_203 = arith.constant 0 : index
    %c160 = arith.constant 160 : index
    %400 = vector.load %arg19[%c0_203, %c160] : memref<8x512xf32, #tpu.memory_space<vmem>>, vector<8x256xf32>
    %c32 = arith.constant 32 : index
    %c0_204 = arith.constant 0 : index
    %401 = vector.load %arg2[%c32, %c0_204] : memref<41x256xf32, #tpu.memory_space<vmem>>, vector<1x256xf32>
    %402 = vector.broadcast %401 : vector<1x256xf32> to vector<8x256xf32>
    %403 = arith.mulf %400, %402 : vector<8x256xf32>
    %c0_205 = arith.constant 0 : index
    %c22_206 = arith.constant 22 : index
    %404 = vector.load %arg10[%c0_205, %c22_206] : memref<8x25xf32, #tpu.memory_space<vmem>>, vector<8x1xf32>
    %405 = vector.broadcast %404 : vector<8x1xf32> to vector<8x256xf32>
    %406 = arith.mulf %403, %405 : vector<8x256xf32>
    %407 = arith.addf %399, %406 : vector<8x256xf32>
    %c0_207 = arith.constant 0 : index
    %c7_208 = arith.constant 7 : index
    %408 = vector.load %arg14[%c0_207, %c7_208] : memref<8x9xf32, #tpu.memory_space<vmem>>, vector<8x1xf32>
    %409 = vector.broadcast %408 : vector<8x1xf32> to vector<8x256xf32>
    %410 = arith.mulf %403, %409 : vector<8x256xf32>
    %411 = arith.addf %387, %410 : vector<8x256xf32>
    %c0_209 = arith.constant 0 : index
    %c17_210 = arith.constant 17 : index
    %412 = vector.load %arg16[%c0_209, %c17_210] : memref<8x25xf32, #tpu.memory_space<vmem>>, vector<8x1xf32>
    %413 = vector.broadcast %412 : vector<8x1xf32> to vector<8x256xf32>
    %414 = arith.mulf %403, %413 : vector<8x256xf32>
    %415 = arith.addf %391, %414 : vector<8x256xf32>
    %c0_211 = arith.constant 0 : index
    %c161 = arith.constant 161 : index
    %416 = vector.load %arg19[%c0_211, %c161] : memref<8x512xf32, #tpu.memory_space<vmem>>, vector<8x256xf32>
    %c33 = arith.constant 33 : index
    %c0_212 = arith.constant 0 : index
    %417 = vector.load %arg2[%c33, %c0_212] : memref<41x256xf32, #tpu.memory_space<vmem>>, vector<1x256xf32>
    %418 = vector.broadcast %417 : vector<1x256xf32> to vector<8x256xf32>
    %419 = arith.mulf %416, %418 : vector<8x256xf32>
    %c0_213 = arith.constant 0 : index
    %c23_214 = arith.constant 23 : index
    %420 = vector.load %arg10[%c0_213, %c23_214] : memref<8x25xf32, #tpu.memory_space<vmem>>, vector<8x1xf32>
    %421 = vector.broadcast %420 : vector<8x1xf32> to vector<8x256xf32>
    %422 = arith.mulf %419, %421 : vector<8x256xf32>
    %423 = arith.addf %407, %422 : vector<8x256xf32>
    %c0_215 = arith.constant 0 : index
    %c162 = arith.constant 162 : index
    %424 = vector.load %arg19[%c0_215, %c162] : memref<8x512xf32, #tpu.memory_space<vmem>>, vector<8x256xf32>
    %c34 = arith.constant 34 : index
    %c0_216 = arith.constant 0 : index
    %425 = vector.load %arg2[%c34, %c0_216] : memref<41x256xf32, #tpu.memory_space<vmem>>, vector<1x256xf32>
    %426 = vector.broadcast %425 : vector<1x256xf32> to vector<8x256xf32>
    %427 = arith.mulf %424, %426 : vector<8x256xf32>
    %c0_217 = arith.constant 0 : index
    %c24_218 = arith.constant 24 : index
    %428 = vector.load %arg10[%c0_217, %c24_218] : memref<8x25xf32, #tpu.memory_space<vmem>>, vector<8x1xf32>
    %429 = vector.broadcast %428 : vector<8x1xf32> to vector<8x256xf32>
    %430 = arith.mulf %427, %429 : vector<8x256xf32>
    %431 = arith.addf %423, %430 : vector<8x256xf32>
    %c0_219 = arith.constant 0 : index
    %c8_220 = arith.constant 8 : index
    %432 = vector.load %arg14[%c0_219, %c8_220] : memref<8x9xf32, #tpu.memory_space<vmem>>, vector<8x1xf32>
    %433 = vector.broadcast %432 : vector<8x1xf32> to vector<8x256xf32>
    %434 = arith.mulf %427, %433 : vector<8x256xf32>
    %435 = arith.addf %411, %434 : vector<8x256xf32>
    %c0_221 = arith.constant 0 : index
    %c18_222 = arith.constant 18 : index
    %436 = vector.load %arg16[%c0_221, %c18_222] : memref<8x25xf32, #tpu.memory_space<vmem>>, vector<8x1xf32>
    %437 = vector.broadcast %436 : vector<8x1xf32> to vector<8x256xf32>
    %438 = arith.mulf %427, %437 : vector<8x256xf32>
    %439 = arith.addf %415, %438 : vector<8x256xf32>
    %c0_223 = arith.constant 0 : index
    %c164 = arith.constant 164 : index
    %440 = vector.load %arg19[%c0_223, %c164] : memref<8x512xf32, #tpu.memory_space<vmem>>, vector<8x256xf32>
    %c35 = arith.constant 35 : index
    %c0_224 = arith.constant 0 : index
    %441 = vector.load %arg2[%c35, %c0_224] : memref<41x256xf32, #tpu.memory_space<vmem>>, vector<1x256xf32>
    %442 = vector.broadcast %441 : vector<1x256xf32> to vector<8x256xf32>
    %443 = arith.mulf %440, %442 : vector<8x256xf32>
    %c0_225 = arith.constant 0 : index
    %c19_226 = arith.constant 19 : index
    %444 = vector.load %arg16[%c0_225, %c19_226] : memref<8x25xf32, #tpu.memory_space<vmem>>, vector<8x1xf32>
    %445 = vector.broadcast %444 : vector<8x1xf32> to vector<8x256xf32>
    %446 = arith.mulf %443, %445 : vector<8x256xf32>
    %447 = arith.addf %439, %446 : vector<8x256xf32>
    %c0_227 = arith.constant 0 : index
    %c188 = arith.constant 188 : index
    %448 = vector.load %arg19[%c0_227, %c188] : memref<8x512xf32, #tpu.memory_space<vmem>>, vector<8x256xf32>
    %c36 = arith.constant 36 : index
    %c0_228 = arith.constant 0 : index
    %449 = vector.load %arg2[%c36, %c0_228] : memref<41x256xf32, #tpu.memory_space<vmem>>, vector<1x256xf32>
    %450 = vector.broadcast %449 : vector<1x256xf32> to vector<8x256xf32>
    %451 = arith.mulf %448, %450 : vector<8x256xf32>
    %c0_229 = arith.constant 0 : index
    %c20_230 = arith.constant 20 : index
    %452 = vector.load %arg16[%c0_229, %c20_230] : memref<8x25xf32, #tpu.memory_space<vmem>>, vector<8x1xf32>
    %453 = vector.broadcast %452 : vector<8x1xf32> to vector<8x256xf32>
    %454 = arith.mulf %451, %453 : vector<8x256xf32>
    %455 = arith.addf %447, %454 : vector<8x256xf32>
    %c0_231 = arith.constant 0 : index
    %c190 = arith.constant 190 : index
    %456 = vector.load %arg19[%c0_231, %c190] : memref<8x512xf32, #tpu.memory_space<vmem>>, vector<8x256xf32>
    %c37 = arith.constant 37 : index
    %c0_232 = arith.constant 0 : index
    %457 = vector.load %arg2[%c37, %c0_232] : memref<41x256xf32, #tpu.memory_space<vmem>>, vector<1x256xf32>
    %458 = vector.broadcast %457 : vector<1x256xf32> to vector<8x256xf32>
    %459 = arith.mulf %456, %458 : vector<8x256xf32>
    %c0_233 = arith.constant 0 : index
    %c21_234 = arith.constant 21 : index
    %460 = vector.load %arg16[%c0_233, %c21_234] : memref<8x25xf32, #tpu.memory_space<vmem>>, vector<8x1xf32>
    %461 = vector.broadcast %460 : vector<8x1xf32> to vector<8x256xf32>
    %462 = arith.mulf %459, %461 : vector<8x256xf32>
    %463 = arith.addf %455, %462 : vector<8x256xf32>
    %c0_235 = arith.constant 0 : index
    %c192 = arith.constant 192 : index
    %464 = vector.load %arg19[%c0_235, %c192] : memref<8x512xf32, #tpu.memory_space<vmem>>, vector<8x256xf32>
    %c38 = arith.constant 38 : index
    %c0_236 = arith.constant 0 : index
    %465 = vector.load %arg2[%c38, %c0_236] : memref<41x256xf32, #tpu.memory_space<vmem>>, vector<1x256xf32>
    %466 = vector.broadcast %465 : vector<1x256xf32> to vector<8x256xf32>
    %467 = arith.mulf %464, %466 : vector<8x256xf32>
    %c0_237 = arith.constant 0 : index
    %c22_238 = arith.constant 22 : index
    %468 = vector.load %arg16[%c0_237, %c22_238] : memref<8x25xf32, #tpu.memory_space<vmem>>, vector<8x1xf32>
    %469 = vector.broadcast %468 : vector<8x1xf32> to vector<8x256xf32>
    %470 = arith.mulf %467, %469 : vector<8x256xf32>
    %471 = arith.addf %463, %470 : vector<8x256xf32>
    %c0_239 = arith.constant 0 : index
    %c194 = arith.constant 194 : index
    %472 = vector.load %arg19[%c0_239, %c194] : memref<8x512xf32, #tpu.memory_space<vmem>>, vector<8x256xf32>
    %c39 = arith.constant 39 : index
    %c0_240 = arith.constant 0 : index
    %473 = vector.load %arg2[%c39, %c0_240] : memref<41x256xf32, #tpu.memory_space<vmem>>, vector<1x256xf32>
    %474 = vector.broadcast %473 : vector<1x256xf32> to vector<8x256xf32>
    %475 = arith.mulf %472, %474 : vector<8x256xf32>
    %c0_241 = arith.constant 0 : index
    %c23_242 = arith.constant 23 : index
    %476 = vector.load %arg16[%c0_241, %c23_242] : memref<8x25xf32, #tpu.memory_space<vmem>>, vector<8x1xf32>
    %477 = vector.broadcast %476 : vector<8x1xf32> to vector<8x256xf32>
    %478 = arith.mulf %475, %477 : vector<8x256xf32>
    %479 = arith.addf %471, %478 : vector<8x256xf32>
    %c0_243 = arith.constant 0 : index
    %c196 = arith.constant 196 : index
    %480 = vector.load %arg19[%c0_243, %c196] : memref<8x512xf32, #tpu.memory_space<vmem>>, vector<8x256xf32>
    %c40 = arith.constant 40 : index
    %c0_244 = arith.constant 0 : index
    %481 = vector.load %arg2[%c40, %c0_244] : memref<41x256xf32, #tpu.memory_space<vmem>>, vector<1x256xf32>
    %482 = vector.broadcast %481 : vector<1x256xf32> to vector<8x256xf32>
    %483 = arith.mulf %480, %482 : vector<8x256xf32>
    %c0_245 = arith.constant 0 : index
    %c24_246 = arith.constant 24 : index
    %484 = vector.load %arg16[%c0_245, %c24_246] : memref<8x25xf32, #tpu.memory_space<vmem>>, vector<8x1xf32>
    %485 = vector.broadcast %484 : vector<8x1xf32> to vector<8x256xf32>
    %486 = arith.mulf %483, %485 : vector<8x256xf32>
    %487 = arith.addf %479, %486 : vector<8x256xf32>
    %c0_247 = arith.constant 0 : index
    %c0_248 = arith.constant 0 : index
    %488 = vector.load %arg4[%c0_247, %c0_248] : memref<1x256xf32, #tpu.memory_space<vmem>>, vector<1x256xf32>
    %489 = vector.broadcast %488 : vector<1x256xf32> to vector<8x256xf32>
    %490 = arith.mulf %351, %489 : vector<8x256xf32>
    %cst_249 = arith.constant dense<0.000000e+00> : vector<8x256xf32>
    %491 = tpu.matmul %4, %355, %cst_249 {dimension_numbers = #tpu.dot_dimension_numbers<[1], [0], [0], [1], [0, 0, 1, 1], [], []>} : vector<8x8xf32>, vector<8x256xf32>, vector<8x256xf32> -> vector<8x256xf32>
    %492 = arith.mulf %355, %355 : vector<8x256xf32>
    %cst_250 = arith.constant dense<0.000000e+00> : vector<8x256xf32>
    %493 = tpu.matmul %4, %492, %cst_250 {dimension_numbers = #tpu.dot_dimension_numbers<[1], [0], [0], [1], [0, 0, 1, 1], [], []>} : vector<8x8xf32>, vector<8x256xf32>, vector<8x256xf32> -> vector<8x256xf32>
    %cst_251 = arith.constant dense<0.000000e+00> : vector<8xf32>
    %494 = vector.multi_reduction <add>, %491, %cst_251 [1] : vector<8x256xf32> to vector<8xf32>
    %495 = vector.shape_cast %494 : vector<8xf32> to vector<8x1xf32>
    %cst_252 = arith.constant 0.001953125 : f32
    %496 = vector.broadcast %cst_252 : f32 to vector<8x1xf32>
    %497 = arith.mulf %495, %496 : vector<8x1xf32>
    %cst_253 = arith.constant dense<0.000000e+00> : vector<8xf32>
    %498 = vector.multi_reduction <add>, %493, %cst_253 [1] : vector<8x256xf32> to vector<8xf32>
    %499 = vector.shape_cast %498 : vector<8xf32> to vector<8x1xf32>
    %cst_254 = arith.constant 0.001953125 : f32
    %500 = vector.broadcast %cst_254 : f32 to vector<8x1xf32>
    %501 = arith.mulf %499, %500 : vector<8x1xf32>
    %502 = arith.mulf %497, %497 : vector<8x1xf32>
    %503 = arith.subf %501, %502 : vector<8x1xf32>
    %cst_255 = arith.constant 9.99999974E-6 : f32
    %504 = vector.broadcast %cst_255 : f32 to vector<8x1xf32>
    %505 = arith.addf %503, %504 : vector<8x1xf32>
    %506 = math.rsqrt %505 : vector<8x1xf32>
    %507 = vector.broadcast %497 : vector<8x1xf32> to vector<8x256xf32>
    %508 = arith.subf %355, %507 : vector<8x256xf32>
    %509 = vector.broadcast %506 : vector<8x1xf32> to vector<8x256xf32>
    %510 = arith.mulf %508, %509 : vector<8x256xf32>
    %cst_256 = arith.constant 0.000000e+00 : f32
    %511 = vector.broadcast %cst_256 : f32 to vector<8x256xf32>
    %512 = arith.maximumf %510, %511 : vector<8x256xf32>
    %c0_257 = arith.constant 0 : index
    %c0_258 = arith.constant 0 : index
    %513 = vector.load %arg7[%c0_257, %c0_258] : memref<8x8xf32, #tpu.memory_space<vmem>>, vector<8x8xf32>
    %cst_259 = arith.constant dense<0.000000e+00> : vector<8x256xf32>
    %514 = tpu.matmul %513, %512, %cst_259 {dimension_numbers = #tpu.dot_dimension_numbers<[1], [0], [0], [1], [0, 0, 1, 1], [], []>} : vector<8x8xf32>, vector<8x256xf32>, vector<8x256xf32> -> vector<8x256xf32>
    %cst_260 = arith.constant dense<0.000000e+00> : vector<8x256xf32>
    %515 = tpu.matmul %4, %514, %cst_260 {dimension_numbers = #tpu.dot_dimension_numbers<[1], [0], [0], [1], [0, 0, 1, 1], [], []>} : vector<8x8xf32>, vector<8x256xf32>, vector<8x256xf32> -> vector<8x256xf32>
    %516 = arith.mulf %514, %514 : vector<8x256xf32>
    %cst_261 = arith.constant dense<0.000000e+00> : vector<8x256xf32>
    %517 = tpu.matmul %4, %516, %cst_261 {dimension_numbers = #tpu.dot_dimension_numbers<[1], [0], [0], [1], [0, 0, 1, 1], [], []>} : vector<8x8xf32>, vector<8x256xf32>, vector<8x256xf32> -> vector<8x256xf32>
    %cst_262 = arith.constant dense<0.000000e+00> : vector<8xf32>
    %518 = vector.multi_reduction <add>, %515, %cst_262 [1] : vector<8x256xf32> to vector<8xf32>
    %519 = vector.shape_cast %518 : vector<8xf32> to vector<8x1xf32>
    %cst_263 = arith.constant 0.001953125 : f32
    %520 = vector.broadcast %cst_263 : f32 to vector<8x1xf32>
    %521 = arith.mulf %519, %520 : vector<8x1xf32>
    %cst_264 = arith.constant dense<0.000000e+00> : vector<8xf32>
    %522 = vector.multi_reduction <add>, %517, %cst_264 [1] : vector<8x256xf32> to vector<8xf32>
    %523 = vector.shape_cast %522 : vector<8xf32> to vector<8x1xf32>
    %cst_265 = arith.constant 0.001953125 : f32
    %524 = vector.broadcast %cst_265 : f32 to vector<8x1xf32>
    %525 = arith.mulf %523, %524 : vector<8x1xf32>
    %526 = arith.mulf %521, %521 : vector<8x1xf32>
    %527 = arith.subf %525, %526 : vector<8x1xf32>
    %cst_266 = arith.constant 9.99999974E-6 : f32
    %528 = vector.broadcast %cst_266 : f32 to vector<8x1xf32>
    %529 = arith.addf %527, %528 : vector<8x1xf32>
    %530 = math.rsqrt %529 : vector<8x1xf32>
    %531 = vector.broadcast %521 : vector<8x1xf32> to vector<8x256xf32>
    %532 = arith.subf %514, %531 : vector<8x256xf32>
    %533 = vector.broadcast %530 : vector<8x1xf32> to vector<8x256xf32>
    %534 = arith.mulf %532, %533 : vector<8x256xf32>
    %c0_267 = arith.constant 0 : index
    %c128_268 = arith.constant 128 : index
    %535 = vector.load %arg19[%c0_267, %c128_268] : memref<8x512xf32, #tpu.memory_space<vmem>>, vector<8x256xf32>
    tpu.vector_store %arg19[%c0_267, %c128_268], %534 {strides = array<i32>} : memref<8x512xf32, #tpu.memory_space<vmem>>, vector<8x256xf32>,
    %c0_269 = arith.constant 0 : index
    %c111_270 = arith.constant 111 : index
    %536 = vector.load %arg19[%c0_269, %c111_270] : memref<8x512xf32, #tpu.memory_space<vmem>>, vector<8x256xf32>
    %c13_271 = arith.constant 13 : index
    %c0_272 = arith.constant 0 : index
    %537 = vector.load %arg2[%c13_271, %c0_272] : memref<41x256xf32, #tpu.memory_space<vmem>>, vector<1x256xf32>
    %538 = vector.broadcast %537 : vector<1x256xf32> to vector<8x256xf32>
    %539 = arith.mulf %536, %538 : vector<8x256xf32>
    %c0_273 = arith.constant 0 : index
    %c0_274 = arith.constant 0 : index
    %540 = vector.load %arg8[%c0_273, %c0_274] : memref<8x9xf32, #tpu.memory_space<vmem>>, vector<8x1xf32>
    %541 = vector.broadcast %540 : vector<8x1xf32> to vector<8x256xf32>
    %542 = arith.mulf %539, %541 : vector<8x256xf32>
    %543 = arith.addf %7, %542 : vector<8x256xf32>
    %c0_275 = arith.constant 0 : index
    %c112_276 = arith.constant 112 : index
    %544 = vector.load %arg19[%c0_275, %c112_276] : memref<8x512xf32, #tpu.memory_space<vmem>>, vector<8x256xf32>
    %c14_277 = arith.constant 14 : index
    %c0_278 = arith.constant 0 : index
    %545 = vector.load %arg2[%c14_277, %c0_278] : memref<41x256xf32, #tpu.memory_space<vmem>>, vector<1x256xf32>
    %546 = vector.broadcast %545 : vector<1x256xf32> to vector<8x256xf32>
    %547 = arith.mulf %544, %546 : vector<8x256xf32>
    %c0_279 = arith.constant 0 : index
    %c1_280 = arith.constant 1 : index
    %548 = vector.load %arg8[%c0_279, %c1_280] : memref<8x9xf32, #tpu.memory_space<vmem>>, vector<8x1xf32>
    %549 = vector.broadcast %548 : vector<8x1xf32> to vector<8x256xf32>
    %550 = arith.mulf %547, %549 : vector<8x256xf32>
    %551 = arith.addf %543, %550 : vector<8x256xf32>
    %c0_281 = arith.constant 0 : index
    %c113_282 = arith.constant 113 : index
    %552 = vector.load %arg19[%c0_281, %c113_282] : memref<8x512xf32, #tpu.memory_space<vmem>>, vector<8x256xf32>
    %c15_283 = arith.constant 15 : index
    %c0_284 = arith.constant 0 : index
    %553 = vector.load %arg2[%c15_283, %c0_284] : memref<41x256xf32, #tpu.memory_space<vmem>>, vector<1x256xf32>
    %554 = vector.broadcast %553 : vector<1x256xf32> to vector<8x256xf32>
    %555 = arith.mulf %552, %554 : vector<8x256xf32>
    %c0_285 = arith.constant 0 : index
    %c2_286 = arith.constant 2 : index
    %556 = vector.load %arg8[%c0_285, %c2_286] : memref<8x9xf32, #tpu.memory_space<vmem>>, vector<8x1xf32>
    %557 = vector.broadcast %556 : vector<8x1xf32> to vector<8x256xf32>
    %558 = arith.mulf %555, %557 : vector<8x256xf32>
    %559 = arith.addf %551, %558 : vector<8x256xf32>
    %c0_287 = arith.constant 0 : index
    %c127_288 = arith.constant 127 : index
    %560 = vector.load %arg19[%c0_287, %c127_288] : memref<8x512xf32, #tpu.memory_space<vmem>>, vector<8x256xf32>
    %c19_289 = arith.constant 19 : index
    %c0_290 = arith.constant 0 : index
    %561 = vector.load %arg2[%c19_289, %c0_290] : memref<41x256xf32, #tpu.memory_space<vmem>>, vector<1x256xf32>
    %562 = vector.broadcast %561 : vector<1x256xf32> to vector<8x256xf32>
    %563 = arith.mulf %560, %562 : vector<8x256xf32>
    %c0_291 = arith.constant 0 : index
    %c3_292 = arith.constant 3 : index
    %564 = vector.load %arg8[%c0_291, %c3_292] : memref<8x9xf32, #tpu.memory_space<vmem>>, vector<8x1xf32>
    %565 = vector.broadcast %564 : vector<8x1xf32> to vector<8x256xf32>
    %566 = arith.mulf %563, %565 : vector<8x256xf32>
    %567 = arith.addf %559, %566 : vector<8x256xf32>
    %c0_293 = arith.constant 0 : index
    %c128_294 = arith.constant 128 : index
    %568 = vector.load %arg19[%c0_293, %c128_294] : memref<8x512xf32, #tpu.memory_space<vmem>>, vector<8x256xf32>
    %c20_295 = arith.constant 20 : index
    %c0_296 = arith.constant 0 : index
    %569 = vector.load %arg2[%c20_295, %c0_296] : memref<41x256xf32, #tpu.memory_space<vmem>>, vector<1x256xf32>
    %570 = vector.broadcast %569 : vector<1x256xf32> to vector<8x256xf32>
    %571 = arith.mulf %568, %570 : vector<8x256xf32>
    %c0_297 = arith.constant 0 : index
    %c4_298 = arith.constant 4 : index
    %572 = vector.load %arg8[%c0_297, %c4_298] : memref<8x9xf32, #tpu.memory_space<vmem>>, vector<8x1xf32>
    %573 = vector.broadcast %572 : vector<8x1xf32> to vector<8x256xf32>
    %574 = arith.mulf %571, %573 : vector<8x256xf32>
    %575 = arith.addf %567, %574 : vector<8x256xf32>
    %c0_299 = arith.constant 0 : index
    %c129_300 = arith.constant 129 : index
    %576 = vector.load %arg19[%c0_299, %c129_300] : memref<8x512xf32, #tpu.memory_space<vmem>>, vector<8x256xf32>
    %c21_301 = arith.constant 21 : index
    %c0_302 = arith.constant 0 : index
    %577 = vector.load %arg2[%c21_301, %c0_302] : memref<41x256xf32, #tpu.memory_space<vmem>>, vector<1x256xf32>
    %578 = vector.broadcast %577 : vector<1x256xf32> to vector<8x256xf32>
    %579 = arith.mulf %576, %578 : vector<8x256xf32>
    %c0_303 = arith.constant 0 : index
    %c5_304 = arith.constant 5 : index
    %580 = vector.load %arg8[%c0_303, %c5_304] : memref<8x9xf32, #tpu.memory_space<vmem>>, vector<8x1xf32>
    %581 = vector.broadcast %580 : vector<8x1xf32> to vector<8x256xf32>
    %582 = arith.mulf %579, %581 : vector<8x256xf32>
    %583 = arith.addf %575, %582 : vector<8x256xf32>
    %c0_305 = arith.constant 0 : index
    %c143_306 = arith.constant 143 : index
    %584 = vector.load %arg19[%c0_305, %c143_306] : memref<8x512xf32, #tpu.memory_space<vmem>>, vector<8x256xf32>
    %c25_307 = arith.constant 25 : index
    %c0_308 = arith.constant 0 : index
    %585 = vector.load %arg2[%c25_307, %c0_308] : memref<41x256xf32, #tpu.memory_space<vmem>>, vector<1x256xf32>
    %586 = vector.broadcast %585 : vector<1x256xf32> to vector<8x256xf32>
    %587 = arith.mulf %584, %586 : vector<8x256xf32>
    %c0_309 = arith.constant 0 : index
    %c6_310 = arith.constant 6 : index
    %588 = vector.load %arg8[%c0_309, %c6_310] : memref<8x9xf32, #tpu.memory_space<vmem>>, vector<8x1xf32>
    %589 = vector.broadcast %588 : vector<8x1xf32> to vector<8x256xf32>
    %590 = arith.mulf %587, %589 : vector<8x256xf32>
    %591 = arith.addf %583, %590 : vector<8x256xf32>
    %c0_311 = arith.constant 0 : index
    %c144_312 = arith.constant 144 : index
    %592 = vector.load %arg19[%c0_311, %c144_312] : memref<8x512xf32, #tpu.memory_space<vmem>>, vector<8x256xf32>
    %c26_313 = arith.constant 26 : index
    %c0_314 = arith.constant 0 : index
    %593 = vector.load %arg2[%c26_313, %c0_314] : memref<41x256xf32, #tpu.memory_space<vmem>>, vector<1x256xf32>
    %594 = vector.broadcast %593 : vector<1x256xf32> to vector<8x256xf32>
    %595 = arith.mulf %592, %594 : vector<8x256xf32>
    %c0_315 = arith.constant 0 : index
    %c7_316 = arith.constant 7 : index
    %596 = vector.load %arg8[%c0_315, %c7_316] : memref<8x9xf32, #tpu.memory_space<vmem>>, vector<8x1xf32>
    %597 = vector.broadcast %596 : vector<8x1xf32> to vector<8x256xf32>
    %598 = arith.mulf %595, %597 : vector<8x256xf32>
    %599 = arith.addf %591, %598 : vector<8x256xf32>
    %c0_317 = arith.constant 0 : index
    %c145_318 = arith.constant 145 : index
    %600 = vector.load %arg19[%c0_317, %c145_318] : memref<8x512xf32, #tpu.memory_space<vmem>>, vector<8x256xf32>
    %c27_319 = arith.constant 27 : index
    %c0_320 = arith.constant 0 : index
    %601 = vector.load %arg2[%c27_319, %c0_320] : memref<41x256xf32, #tpu.memory_space<vmem>>, vector<1x256xf32>
    %602 = vector.broadcast %601 : vector<1x256xf32> to vector<8x256xf32>
    %603 = arith.mulf %600, %602 : vector<8x256xf32>
    %c0_321 = arith.constant 0 : index
    %c8_322 = arith.constant 8 : index
    %604 = vector.load %arg8[%c0_321, %c8_322] : memref<8x9xf32, #tpu.memory_space<vmem>>, vector<8x1xf32>
    %605 = vector.broadcast %604 : vector<8x1xf32> to vector<8x256xf32>
    %606 = arith.mulf %603, %605 : vector<8x256xf32>
    %607 = arith.addf %599, %606 : vector<8x256xf32>
    %cst_323 = arith.constant dense<0.000000e+00> : vector<8x256xf32>
    %608 = tpu.matmul %4, %607, %cst_323 {dimension_numbers = #tpu.dot_dimension_numbers<[1], [0], [0], [1], [0, 0, 1, 1], [], []>} : vector<8x8xf32>, vector<8x256xf32>, vector<8x256xf32> -> vector<8x256xf32>
    %609 = arith.mulf %607, %607 : vector<8x256xf32>
    %cst_324 = arith.constant dense<0.000000e+00> : vector<8x256xf32>
    %610 = tpu.matmul %4, %609, %cst_324 {dimension_numbers = #tpu.dot_dimension_numbers<[1], [0], [0], [1], [0, 0, 1, 1], [], []>} : vector<8x8xf32>, vector<8x256xf32>, vector<8x256xf32> -> vector<8x256xf32>
    %cst_325 = arith.constant dense<0.000000e+00> : vector<8xf32>
    %611 = vector.multi_reduction <add>, %608, %cst_325 [1] : vector<8x256xf32> to vector<8xf32>
    %612 = vector.shape_cast %611 : vector<8xf32> to vector<8x1xf32>
    %cst_326 = arith.constant 0.001953125 : f32
    %613 = vector.broadcast %cst_326 : f32 to vector<8x1xf32>
    %614 = arith.mulf %612, %613 : vector<8x1xf32>
    %cst_327 = arith.constant dense<0.000000e+00> : vector<8xf32>
    %615 = vector.multi_reduction <add>, %610, %cst_327 [1] : vector<8x256xf32> to vector<8xf32>
    %616 = vector.shape_cast %615 : vector<8xf32> to vector<8x1xf32>
    %cst_328 = arith.constant 0.001953125 : f32
    %617 = vector.broadcast %cst_328 : f32 to vector<8x1xf32>
    %618 = arith.mulf %616, %617 : vector<8x1xf32>
    %619 = arith.mulf %614, %614 : vector<8x1xf32>
    %620 = arith.subf %618, %619 : vector<8x1xf32>
    %cst_329 = arith.constant 9.99999974E-6 : f32
    %621 = vector.broadcast %cst_329 : f32 to vector<8x1xf32>
    %622 = arith.addf %620, %621 : vector<8x1xf32>
    %623 = math.rsqrt %622 : vector<8x1xf32>
    %624 = vector.broadcast %614 : vector<8x1xf32> to vector<8x256xf32>
    %625 = arith.subf %607, %624 : vector<8x256xf32>
    %626 = vector.broadcast %623 : vector<8x1xf32> to vector<8x256xf32>
    %627 = arith.mulf %625, %626 : vector<8x256xf32>
    %cst_330 = arith.constant 0.000000e+00 : f32
    %628 = vector.broadcast %cst_330 : f32 to vector<8x256xf32>
    %629 = arith.maximumf %627, %628 : vector<8x256xf32>
    %c0_331 = arith.constant 0 : index
    %c0_332 = arith.constant 0 : index
    %630 = vector.load %arg9[%c0_331, %c0_332] : memref<8x8xf32, #tpu.memory_space<vmem>>, vector<8x8xf32>
    %cst_333 = arith.constant dense<0.000000e+00> : vector<8x256xf32>
    %631 = tpu.matmul %630, %629, %cst_333 {dimension_numbers = #tpu.dot_dimension_numbers<[1], [0], [0], [1], [0, 0, 1, 1], [], []>} : vector<8x8xf32>, vector<8x256xf32>, vector<8x256xf32> -> vector<8x256xf32>
    %cst_334 = arith.constant dense<0.000000e+00> : vector<8x256xf32>
    %632 = tpu.matmul %4, %431, %cst_334 {dimension_numbers = #tpu.dot_dimension_numbers<[1], [0], [0], [1], [0, 0, 1, 1], [], []>} : vector<8x8xf32>, vector<8x256xf32>, vector<8x256xf32> -> vector<8x256xf32>
    %633 = arith.mulf %431, %431 : vector<8x256xf32>
    %cst_335 = arith.constant dense<0.000000e+00> : vector<8x256xf32>
    %634 = tpu.matmul %4, %633, %cst_335 {dimension_numbers = #tpu.dot_dimension_numbers<[1], [0], [0], [1], [0, 0, 1, 1], [], []>} : vector<8x8xf32>, vector<8x256xf32>, vector<8x256xf32> -> vector<8x256xf32>
    %cst_336 = arith.constant dense<0.000000e+00> : vector<8xf32>
    %635 = vector.multi_reduction <add>, %632, %cst_336 [1] : vector<8x256xf32> to vector<8xf32>
    %636 = vector.shape_cast %635 : vector<8xf32> to vector<8x1xf32>
    %cst_337 = arith.constant 0.001953125 : f32
    %637 = vector.broadcast %cst_337 : f32 to vector<8x1xf32>
    %638 = arith.mulf %636, %637 : vector<8x1xf32>
    %cst_338 = arith.constant dense<0.000000e+00> : vector<8xf32>
    %639 = vector.multi_reduction <add>, %634, %cst_338 [1] : vector<8x256xf32> to vector<8xf32>
    %640 = vector.shape_cast %639 : vector<8xf32> to vector<8x1xf32>
    %cst_339 = arith.constant 0.001953125 : f32
    %641 = vector.broadcast %cst_339 : f32 to vector<8x1xf32>
    %642 = arith.mulf %640, %641 : vector<8x1xf32>
    %643 = arith.mulf %638, %638 : vector<8x1xf32>
    %644 = arith.subf %642, %643 : vector<8x1xf32>
    %cst_340 = arith.constant 9.99999974E-6 : f32
    %645 = vector.broadcast %cst_340 : f32 to vector<8x1xf32>
    %646 = arith.addf %644, %645 : vector<8x1xf32>
    %647 = math.rsqrt %646 : vector<8x1xf32>
    %648 = vector.broadcast %638 : vector<8x1xf32> to vector<8x256xf32>
    %649 = arith.subf %431, %648 : vector<8x256xf32>
    %650 = vector.broadcast %647 : vector<8x1xf32> to vector<8x256xf32>
    %651 = arith.mulf %649, %650 : vector<8x256xf32>
    %cst_341 = arith.constant 0.000000e+00 : f32
    %652 = vector.broadcast %cst_341 : f32 to vector<8x256xf32>
    %653 = arith.maximumf %651, %652 : vector<8x256xf32>
    %c0_342 = arith.constant 0 : index
    %c0_343 = arith.constant 0 : index
    %654 = vector.load %arg11[%c0_342, %c0_343] : memref<8x8xf32, #tpu.memory_space<vmem>>, vector<8x8xf32>
    %cst_344 = arith.constant dense<0.000000e+00> : vector<8x256xf32>
    %655 = tpu.matmul %654, %653, %cst_344 {dimension_numbers = #tpu.dot_dimension_numbers<[1], [0], [0], [1], [0, 0, 1, 1], [], []>} : vector<8x8xf32>, vector<8x256xf32>, vector<8x256xf32> -> vector<8x256xf32>
    %cst_345 = arith.constant dense<0.000000e+00> : vector<8x256xf32>
    %656 = tpu.matmul %4, %655, %cst_345 {dimension_numbers = #tpu.dot_dimension_numbers<[1], [0], [0], [1], [0, 0, 1, 1], [], []>} : vector<8x8xf32>, vector<8x256xf32>, vector<8x256xf32> -> vector<8x256xf32>
    %657 = arith.mulf %655, %655 : vector<8x256xf32>
    %cst_346 = arith.constant dense<0.000000e+00> : vector<8x256xf32>
    %658 = tpu.matmul %4, %657, %cst_346 {dimension_numbers = #tpu.dot_dimension_numbers<[1], [0], [0], [1], [0, 0, 1, 1], [], []>} : vector<8x8xf32>, vector<8x256xf32>, vector<8x256xf32> -> vector<8x256xf32>
    %cst_347 = arith.constant dense<0.000000e+00> : vector<8xf32>
    %659 = vector.multi_reduction <add>, %656, %cst_347 [1] : vector<8x256xf32> to vector<8xf32>
    %660 = vector.shape_cast %659 : vector<8xf32> to vector<8x1xf32>
    %cst_348 = arith.constant 0.001953125 : f32
    %661 = vector.broadcast %cst_348 : f32 to vector<8x1xf32>
    %662 = arith.mulf %660, %661 : vector<8x1xf32>
    %cst_349 = arith.constant dense<0.000000e+00> : vector<8xf32>
    %663 = vector.multi_reduction <add>, %658, %cst_349 [1] : vector<8x256xf32> to vector<8xf32>
    %664 = vector.shape_cast %663 : vector<8xf32> to vector<8x1xf32>
    %cst_350 = arith.constant 0.001953125 : f32
    %665 = vector.broadcast %cst_350 : f32 to vector<8x1xf32>
    %666 = arith.mulf %664, %665 : vector<8x1xf32>
    %667 = arith.mulf %662, %662 : vector<8x1xf32>
    %668 = arith.subf %666, %667 : vector<8x1xf32>
    %cst_351 = arith.constant 9.99999974E-6 : f32
    %669 = vector.broadcast %cst_351 : f32 to vector<8x1xf32>
    %670 = arith.addf %668, %669 : vector<8x1xf32>
    %671 = math.rsqrt %670 : vector<8x1xf32>
    %672 = vector.broadcast %662 : vector<8x1xf32> to vector<8x256xf32>
    %673 = arith.subf %655, %672 : vector<8x256xf32>
    %674 = vector.broadcast %671 : vector<8x1xf32> to vector<8x256xf32>
    %675 = arith.mulf %673, %674 : vector<8x256xf32>
    %c0_352 = arith.constant 0 : index
    %c128_353 = arith.constant 128 : index
    %676 = vector.load %arg19[%c0_352, %c128_353] : memref<8x512xf32, #tpu.memory_space<vmem>>, vector<8x256xf32>
    tpu.vector_store %arg19[%c0_352, %c128_353], %675 {strides = array<i32>} : memref<8x512xf32, #tpu.memory_space<vmem>>, vector<8x256xf32>,
    %c0_354 = arith.constant 0 : index
    %c94_355 = arith.constant 94 : index
    %677 = vector.load %arg19[%c0_354, %c94_355] : memref<8x512xf32, #tpu.memory_space<vmem>>, vector<8x256xf32>
    %c6_356 = arith.constant 6 : index
    %c0_357 = arith.constant 0 : index
    %678 = vector.load %arg2[%c6_356, %c0_357] : memref<41x256xf32, #tpu.memory_space<vmem>>, vector<1x256xf32>
    %679 = vector.broadcast %678 : vector<1x256xf32> to vector<8x256xf32>
    %680 = arith.mulf %677, %679 : vector<8x256xf32>
    %c0_358 = arith.constant 0 : index
    %c0_359 = arith.constant 0 : index
    %681 = vector.load %arg12[%c0_358, %c0_359] : memref<8x25xf32, #tpu.memory_space<vmem>>, vector<8x1xf32>
    %682 = vector.broadcast %681 : vector<8x1xf32> to vector<8x256xf32>
    %683 = arith.mulf %680, %682 : vector<8x256xf32>
    %684 = arith.addf %7, %683 : vector<8x256xf32>
    %c0_360 = arith.constant 0 : index
    %c95_361 = arith.constant 95 : index
    %685 = vector.load %arg19[%c0_360, %c95_361] : memref<8x512xf32, #tpu.memory_space<vmem>>, vector<8x256xf32>
    %c7_362 = arith.constant 7 : index
    %c0_363 = arith.constant 0 : index
    %686 = vector.load %arg2[%c7_362, %c0_363] : memref<41x256xf32, #tpu.memory_space<vmem>>, vector<1x256xf32>
    %687 = vector.broadcast %686 : vector<1x256xf32> to vector<8x256xf32>
    %688 = arith.mulf %685, %687 : vector<8x256xf32>
    %c0_364 = arith.constant 0 : index
    %c1_365 = arith.constant 1 : index
    %689 = vector.load %arg12[%c0_364, %c1_365] : memref<8x25xf32, #tpu.memory_space<vmem>>, vector<8x1xf32>
    %690 = vector.broadcast %689 : vector<8x1xf32> to vector<8x256xf32>
    %691 = arith.mulf %688, %690 : vector<8x256xf32>
    %692 = arith.addf %684, %691 : vector<8x256xf32>
    %c0_366 = arith.constant 0 : index
    %c96_367 = arith.constant 96 : index
    %693 = vector.load %arg19[%c0_366, %c96_367] : memref<8x512xf32, #tpu.memory_space<vmem>>, vector<8x256xf32>
    %c8_368 = arith.constant 8 : index
    %c0_369 = arith.constant 0 : index
    %694 = vector.load %arg2[%c8_368, %c0_369] : memref<41x256xf32, #tpu.memory_space<vmem>>, vector<1x256xf32>
    %695 = vector.broadcast %694 : vector<1x256xf32> to vector<8x256xf32>
    %696 = arith.mulf %693, %695 : vector<8x256xf32>
    %c0_370 = arith.constant 0 : index
    %c2_371 = arith.constant 2 : index
    %697 = vector.load %arg12[%c0_370, %c2_371] : memref<8x25xf32, #tpu.memory_space<vmem>>, vector<8x1xf32>
    %698 = vector.broadcast %697 : vector<8x1xf32> to vector<8x256xf32>
    %699 = arith.mulf %696, %698 : vector<8x256xf32>
    %700 = arith.addf %692, %699 : vector<8x256xf32>
    %c0_372 = arith.constant 0 : index
    %c97_373 = arith.constant 97 : index
    %701 = vector.load %arg19[%c0_372, %c97_373] : memref<8x512xf32, #tpu.memory_space<vmem>>, vector<8x256xf32>
    %c9_374 = arith.constant 9 : index
    %c0_375 = arith.constant 0 : index
    %702 = vector.load %arg2[%c9_374, %c0_375] : memref<41x256xf32, #tpu.memory_space<vmem>>, vector<1x256xf32>
    %703 = vector.broadcast %702 : vector<1x256xf32> to vector<8x256xf32>
    %704 = arith.mulf %701, %703 : vector<8x256xf32>
    %c0_376 = arith.constant 0 : index
    %c3_377 = arith.constant 3 : index
    %705 = vector.load %arg12[%c0_376, %c3_377] : memref<8x25xf32, #tpu.memory_space<vmem>>, vector<8x1xf32>
    %706 = vector.broadcast %705 : vector<8x1xf32> to vector<8x256xf32>
    %707 = arith.mulf %704, %706 : vector<8x256xf32>
    %708 = arith.addf %700, %707 : vector<8x256xf32>
    %c0_378 = arith.constant 0 : index
    %c98_379 = arith.constant 98 : index
    %709 = vector.load %arg19[%c0_378, %c98_379] : memref<8x512xf32, #tpu.memory_space<vmem>>, vector<8x256xf32>
    %c10_380 = arith.constant 10 : index
    %c0_381 = arith.constant 0 : index
    %710 = vector.load %arg2[%c10_380, %c0_381] : memref<41x256xf32, #tpu.memory_space<vmem>>, vector<1x256xf32>
    %711 = vector.broadcast %710 : vector<1x256xf32> to vector<8x256xf32>
    %712 = arith.mulf %709, %711 : vector<8x256xf32>
    %c0_382 = arith.constant 0 : index
    %c4_383 = arith.constant 4 : index
    %713 = vector.load %arg12[%c0_382, %c4_383] : memref<8x25xf32, #tpu.memory_space<vmem>>, vector<8x1xf32>
    %714 = vector.broadcast %713 : vector<8x1xf32> to vector<8x256xf32>
    %715 = arith.mulf %712, %714 : vector<8x256xf32>
    %716 = arith.addf %708, %715 : vector<8x256xf32>
    %c0_384 = arith.constant 0 : index
    %c110_385 = arith.constant 110 : index
    %717 = vector.load %arg19[%c0_384, %c110_385] : memref<8x512xf32, #tpu.memory_space<vmem>>, vector<8x256xf32>
    %c12_386 = arith.constant 12 : index
    %c0_387 = arith.constant 0 : index
    %718 = vector.load %arg2[%c12_386, %c0_387] : memref<41x256xf32, #tpu.memory_space<vmem>>, vector<1x256xf32>
    %719 = vector.broadcast %718 : vector<1x256xf32> to vector<8x256xf32>
    %720 = arith.mulf %717, %719 : vector<8x256xf32>
    %c0_388 = arith.constant 0 : index
    %c5_389 = arith.constant 5 : index
    %721 = vector.load %arg12[%c0_388, %c5_389] : memref<8x25xf32, #tpu.memory_space<vmem>>, vector<8x1xf32>
    %722 = vector.broadcast %721 : vector<8x1xf32> to vector<8x256xf32>
    %723 = arith.mulf %720, %722 : vector<8x256xf32>
    %724 = arith.addf %716, %723 : vector<8x256xf32>
    %c0_390 = arith.constant 0 : index
    %c111_391 = arith.constant 111 : index
    %725 = vector.load %arg19[%c0_390, %c111_391] : memref<8x512xf32, #tpu.memory_space<vmem>>, vector<8x256xf32>
    %c13_392 = arith.constant 13 : index
    %c0_393 = arith.constant 0 : index
    %726 = vector.load %arg2[%c13_392, %c0_393] : memref<41x256xf32, #tpu.memory_space<vmem>>, vector<1x256xf32>
    %727 = vector.broadcast %726 : vector<1x256xf32> to vector<8x256xf32>
    %728 = arith.mulf %725, %727 : vector<8x256xf32>
    %c0_394 = arith.constant 0 : index
    %c6_395 = arith.constant 6 : index
    %729 = vector.load %arg12[%c0_394, %c6_395] : memref<8x25xf32, #tpu.memory_space<vmem>>, vector<8x1xf32>
    %730 = vector.broadcast %729 : vector<8x1xf32> to vector<8x256xf32>
    %731 = arith.mulf %728, %730 : vector<8x256xf32>
    %732 = arith.addf %724, %731 : vector<8x256xf32>
    %c0_396 = arith.constant 0 : index
    %c112_397 = arith.constant 112 : index
    %733 = vector.load %arg19[%c0_396, %c112_397] : memref<8x512xf32, #tpu.memory_space<vmem>>, vector<8x256xf32>
    %c14_398 = arith.constant 14 : index
    %c0_399 = arith.constant 0 : index
    %734 = vector.load %arg2[%c14_398, %c0_399] : memref<41x256xf32, #tpu.memory_space<vmem>>, vector<1x256xf32>
    %735 = vector.broadcast %734 : vector<1x256xf32> to vector<8x256xf32>
    %736 = arith.mulf %733, %735 : vector<8x256xf32>
    %c0_400 = arith.constant 0 : index
    %c7_401 = arith.constant 7 : index
    %737 = vector.load %arg12[%c0_400, %c7_401] : memref<8x25xf32, #tpu.memory_space<vmem>>, vector<8x1xf32>
    %738 = vector.broadcast %737 : vector<8x1xf32> to vector<8x256xf32>
    %739 = arith.mulf %736, %738 : vector<8x256xf32>
    %740 = arith.addf %732, %739 : vector<8x256xf32>
    %c0_402 = arith.constant 0 : index
    %c113_403 = arith.constant 113 : index
    %741 = vector.load %arg19[%c0_402, %c113_403] : memref<8x512xf32, #tpu.memory_space<vmem>>, vector<8x256xf32>
    %c15_404 = arith.constant 15 : index
    %c0_405 = arith.constant 0 : index
    %742 = vector.load %arg2[%c15_404, %c0_405] : memref<41x256xf32, #tpu.memory_space<vmem>>, vector<1x256xf32>
    %743 = vector.broadcast %742 : vector<1x256xf32> to vector<8x256xf32>
    %744 = arith.mulf %741, %743 : vector<8x256xf32>
    %c0_406 = arith.constant 0 : index
    %c8_407 = arith.constant 8 : index
    %745 = vector.load %arg12[%c0_406, %c8_407] : memref<8x25xf32, #tpu.memory_space<vmem>>, vector<8x1xf32>
    %746 = vector.broadcast %745 : vector<8x1xf32> to vector<8x256xf32>
    %747 = arith.mulf %744, %746 : vector<8x256xf32>
    %748 = arith.addf %740, %747 : vector<8x256xf32>
    %c0_408 = arith.constant 0 : index
    %c114_409 = arith.constant 114 : index
    %749 = vector.load %arg19[%c0_408, %c114_409] : memref<8x512xf32, #tpu.memory_space<vmem>>, vector<8x256xf32>
    %c16_410 = arith.constant 16 : index
    %c0_411 = arith.constant 0 : index
    %750 = vector.load %arg2[%c16_410, %c0_411] : memref<41x256xf32, #tpu.memory_space<vmem>>, vector<1x256xf32>
    %751 = vector.broadcast %750 : vector<1x256xf32> to vector<8x256xf32>
    %752 = arith.mulf %749, %751 : vector<8x256xf32>
    %c0_412 = arith.constant 0 : index
    %c9_413 = arith.constant 9 : index
    %753 = vector.load %arg12[%c0_412, %c9_413] : memref<8x25xf32, #tpu.memory_space<vmem>>, vector<8x1xf32>
    %754 = vector.broadcast %753 : vector<8x1xf32> to vector<8x256xf32>
    %755 = arith.mulf %752, %754 : vector<8x256xf32>
    %756 = arith.addf %748, %755 : vector<8x256xf32>
    %c0_414 = arith.constant 0 : index
    %c126_415 = arith.constant 126 : index
    %757 = vector.load %arg19[%c0_414, %c126_415] : memref<8x512xf32, #tpu.memory_space<vmem>>, vector<8x256xf32>
    %c18_416 = arith.constant 18 : index
    %c0_417 = arith.constant 0 : index
    %758 = vector.load %arg2[%c18_416, %c0_417] : memref<41x256xf32, #tpu.memory_space<vmem>>, vector<1x256xf32>
    %759 = vector.broadcast %758 : vector<1x256xf32> to vector<8x256xf32>
    %760 = arith.mulf %757, %759 : vector<8x256xf32>
    %c0_418 = arith.constant 0 : index
    %c10_419 = arith.constant 10 : index
    %761 = vector.load %arg12[%c0_418, %c10_419] : memref<8x25xf32, #tpu.memory_space<vmem>>, vector<8x1xf32>
    %762 = vector.broadcast %761 : vector<8x1xf32> to vector<8x256xf32>
    %763 = arith.mulf %760, %762 : vector<8x256xf32>
    %764 = arith.addf %756, %763 : vector<8x256xf32>
    %c0_420 = arith.constant 0 : index
    %c127_421 = arith.constant 127 : index
    %765 = vector.load %arg19[%c0_420, %c127_421] : memref<8x512xf32, #tpu.memory_space<vmem>>, vector<8x256xf32>
    %c19_422 = arith.constant 19 : index
    %c0_423 = arith.constant 0 : index
    %766 = vector.load %arg2[%c19_422, %c0_423] : memref<41x256xf32, #tpu.memory_space<vmem>>, vector<1x256xf32>
    %767 = vector.broadcast %766 : vector<1x256xf32> to vector<8x256xf32>
    %768 = arith.mulf %765, %767 : vector<8x256xf32>
    %c0_424 = arith.constant 0 : index
    %c11_425 = arith.constant 11 : index
    %769 = vector.load %arg12[%c0_424, %c11_425] : memref<8x25xf32, #tpu.memory_space<vmem>>, vector<8x1xf32>
    %770 = vector.broadcast %769 : vector<8x1xf32> to vector<8x256xf32>
    %771 = arith.mulf %768, %770 : vector<8x256xf32>
    %772 = arith.addf %764, %771 : vector<8x256xf32>
    %c0_426 = arith.constant 0 : index
    %c128_427 = arith.constant 128 : index
    %773 = vector.load %arg19[%c0_426, %c128_427] : memref<8x512xf32, #tpu.memory_space<vmem>>, vector<8x256xf32>
    %c20_428 = arith.constant 20 : index
    %c0_429 = arith.constant 0 : index
    %774 = vector.load %arg2[%c20_428, %c0_429] : memref<41x256xf32, #tpu.memory_space<vmem>>, vector<1x256xf32>
    %775 = vector.broadcast %774 : vector<1x256xf32> to vector<8x256xf32>
    %776 = arith.mulf %773, %775 : vector<8x256xf32>
    %c0_430 = arith.constant 0 : index
    %c12_431 = arith.constant 12 : index
    %777 = vector.load %arg12[%c0_430, %c12_431] : memref<8x25xf32, #tpu.memory_space<vmem>>, vector<8x1xf32>
    %778 = vector.broadcast %777 : vector<8x1xf32> to vector<8x256xf32>
    %779 = arith.mulf %776, %778 : vector<8x256xf32>
    %780 = arith.addf %772, %779 : vector<8x256xf32>
    %c0_432 = arith.constant 0 : index
    %c129_433 = arith.constant 129 : index
    %781 = vector.load %arg19[%c0_432, %c129_433] : memref<8x512xf32, #tpu.memory_space<vmem>>, vector<8x256xf32>
    %c21_434 = arith.constant 21 : index
    %c0_435 = arith.constant 0 : index
    %782 = vector.load %arg2[%c21_434, %c0_435] : memref<41x256xf32, #tpu.memory_space<vmem>>, vector<1x256xf32>
    %783 = vector.broadcast %782 : vector<1x256xf32> to vector<8x256xf32>
    %784 = arith.mulf %781, %783 : vector<8x256xf32>
    %c0_436 = arith.constant 0 : index
    %c13_437 = arith.constant 13 : index
    %785 = vector.load %arg12[%c0_436, %c13_437] : memref<8x25xf32, #tpu.memory_space<vmem>>, vector<8x1xf32>
    %786 = vector.broadcast %785 : vector<8x1xf32> to vector<8x256xf32>
    %787 = arith.mulf %784, %786 : vector<8x256xf32>
    %788 = arith.addf %780, %787 : vector<8x256xf32>
    %c0_438 = arith.constant 0 : index
    %c130_439 = arith.constant 130 : index
    %789 = vector.load %arg19[%c0_438, %c130_439] : memref<8x512xf32, #tpu.memory_space<vmem>>, vector<8x256xf32>
    %c22_440 = arith.constant 22 : index
    %c0_441 = arith.constant 0 : index
    %790 = vector.load %arg2[%c22_440, %c0_441] : memref<41x256xf32, #tpu.memory_space<vmem>>, vector<1x256xf32>
    %791 = vector.broadcast %790 : vector<1x256xf32> to vector<8x256xf32>
    %792 = arith.mulf %789, %791 : vector<8x256xf32>
    %c0_442 = arith.constant 0 : index
    %c14_443 = arith.constant 14 : index
    %793 = vector.load %arg12[%c0_442, %c14_443] : memref<8x25xf32, #tpu.memory_space<vmem>>, vector<8x1xf32>
    %794 = vector.broadcast %793 : vector<8x1xf32> to vector<8x256xf32>
    %795 = arith.mulf %792, %794 : vector<8x256xf32>
    %796 = arith.addf %788, %795 : vector<8x256xf32>
    %c0_444 = arith.constant 0 : index
    %c142_445 = arith.constant 142 : index
    %797 = vector.load %arg19[%c0_444, %c142_445] : memref<8x512xf32, #tpu.memory_space<vmem>>, vector<8x256xf32>
    %c24_446 = arith.constant 24 : index
    %c0_447 = arith.constant 0 : index
    %798 = vector.load %arg2[%c24_446, %c0_447] : memref<41x256xf32, #tpu.memory_space<vmem>>, vector<1x256xf32>
    %799 = vector.broadcast %798 : vector<1x256xf32> to vector<8x256xf32>
    %800 = arith.mulf %797, %799 : vector<8x256xf32>
    %c0_448 = arith.constant 0 : index
    %c15_449 = arith.constant 15 : index
    %801 = vector.load %arg12[%c0_448, %c15_449] : memref<8x25xf32, #tpu.memory_space<vmem>>, vector<8x1xf32>
    %802 = vector.broadcast %801 : vector<8x1xf32> to vector<8x256xf32>
    %803 = arith.mulf %800, %802 : vector<8x256xf32>
    %804 = arith.addf %796, %803 : vector<8x256xf32>
    %c0_450 = arith.constant 0 : index
    %c143_451 = arith.constant 143 : index
    %805 = vector.load %arg19[%c0_450, %c143_451] : memref<8x512xf32, #tpu.memory_space<vmem>>, vector<8x256xf32>
    %c25_452 = arith.constant 25 : index
    %c0_453 = arith.constant 0 : index
    %806 = vector.load %arg2[%c25_452, %c0_453] : memref<41x256xf32, #tpu.memory_space<vmem>>, vector<1x256xf32>
    %807 = vector.broadcast %806 : vector<1x256xf32> to vector<8x256xf32>
    %808 = arith.mulf %805, %807 : vector<8x256xf32>
    %c0_454 = arith.constant 0 : index
    %c16_455 = arith.constant 16 : index
    %809 = vector.load %arg12[%c0_454, %c16_455] : memref<8x25xf32, #tpu.memory_space<vmem>>, vector<8x1xf32>
    %810 = vector.broadcast %809 : vector<8x1xf32> to vector<8x256xf32>
    %811 = arith.mulf %808, %810 : vector<8x256xf32>
    %812 = arith.addf %804, %811 : vector<8x256xf32>
    %c0_456 = arith.constant 0 : index
    %c144_457 = arith.constant 144 : index
    %813 = vector.load %arg19[%c0_456, %c144_457] : memref<8x512xf32, #tpu.memory_space<vmem>>, vector<8x256xf32>
    %c26_458 = arith.constant 26 : index
    %c0_459 = arith.constant 0 : index
    %814 = vector.load %arg2[%c26_458, %c0_459] : memref<41x256xf32, #tpu.memory_space<vmem>>, vector<1x256xf32>
    %815 = vector.broadcast %814 : vector<1x256xf32> to vector<8x256xf32>
    %816 = arith.mulf %813, %815 : vector<8x256xf32>
    %c0_460 = arith.constant 0 : index
    %c17_461 = arith.constant 17 : index
    %817 = vector.load %arg12[%c0_460, %c17_461] : memref<8x25xf32, #tpu.memory_space<vmem>>, vector<8x1xf32>
    %818 = vector.broadcast %817 : vector<8x1xf32> to vector<8x256xf32>
    %819 = arith.mulf %816, %818 : vector<8x256xf32>
    %820 = arith.addf %812, %819 : vector<8x256xf32>
    %c0_462 = arith.constant 0 : index
    %c145_463 = arith.constant 145 : index
    %821 = vector.load %arg19[%c0_462, %c145_463] : memref<8x512xf32, #tpu.memory_space<vmem>>, vector<8x256xf32>
    %c27_464 = arith.constant 27 : index
    %c0_465 = arith.constant 0 : index
    %822 = vector.load %arg2[%c27_464, %c0_465] : memref<41x256xf32, #tpu.memory_space<vmem>>, vector<1x256xf32>
    %823 = vector.broadcast %822 : vector<1x256xf32> to vector<8x256xf32>
    %824 = arith.mulf %821, %823 : vector<8x256xf32>
    %c0_466 = arith.constant 0 : index
    %c18_467 = arith.constant 18 : index
    %825 = vector.load %arg12[%c0_466, %c18_467] : memref<8x25xf32, #tpu.memory_space<vmem>>, vector<8x1xf32>
    %826 = vector.broadcast %825 : vector<8x1xf32> to vector<8x256xf32>
    %827 = arith.mulf %824, %826 : vector<8x256xf32>
    %828 = arith.addf %820, %827 : vector<8x256xf32>
    %c0_468 = arith.constant 0 : index
    %c146_469 = arith.constant 146 : index
    %829 = vector.load %arg19[%c0_468, %c146_469] : memref<8x512xf32, #tpu.memory_space<vmem>>, vector<8x256xf32>
    %c28_470 = arith.constant 28 : index
    %c0_471 = arith.constant 0 : index
    %830 = vector.load %arg2[%c28_470, %c0_471] : memref<41x256xf32, #tpu.memory_space<vmem>>, vector<1x256xf32>
    %831 = vector.broadcast %830 : vector<1x256xf32> to vector<8x256xf32>
    %832 = arith.mulf %829, %831 : vector<8x256xf32>
    %c0_472 = arith.constant 0 : index
    %c19_473 = arith.constant 19 : index
    %833 = vector.load %arg12[%c0_472, %c19_473] : memref<8x25xf32, #tpu.memory_space<vmem>>, vector<8x1xf32>
    %834 = vector.broadcast %833 : vector<8x1xf32> to vector<8x256xf32>
    %835 = arith.mulf %832, %834 : vector<8x256xf32>
    %836 = arith.addf %828, %835 : vector<8x256xf32>
    %c0_474 = arith.constant 0 : index
    %c158_475 = arith.constant 158 : index
    %837 = vector.load %arg19[%c0_474, %c158_475] : memref<8x512xf32, #tpu.memory_space<vmem>>, vector<8x256xf32>
    %c30_476 = arith.constant 30 : index
    %c0_477 = arith.constant 0 : index
    %838 = vector.load %arg2[%c30_476, %c0_477] : memref<41x256xf32, #tpu.memory_space<vmem>>, vector<1x256xf32>
    %839 = vector.broadcast %838 : vector<1x256xf32> to vector<8x256xf32>
    %840 = arith.mulf %837, %839 : vector<8x256xf32>
    %c0_478 = arith.constant 0 : index
    %c20_479 = arith.constant 20 : index
    %841 = vector.load %arg12[%c0_478, %c20_479] : memref<8x25xf32, #tpu.memory_space<vmem>>, vector<8x1xf32>
    %842 = vector.broadcast %841 : vector<8x1xf32> to vector<8x256xf32>
    %843 = arith.mulf %840, %842 : vector<8x256xf32>
    %844 = arith.addf %836, %843 : vector<8x256xf32>
    %c0_480 = arith.constant 0 : index
    %c159_481 = arith.constant 159 : index
    %845 = vector.load %arg19[%c0_480, %c159_481] : memref<8x512xf32, #tpu.memory_space<vmem>>, vector<8x256xf32>
    %c31_482 = arith.constant 31 : index
    %c0_483 = arith.constant 0 : index
    %846 = vector.load %arg2[%c31_482, %c0_483] : memref<41x256xf32, #tpu.memory_space<vmem>>, vector<1x256xf32>
    %847 = vector.broadcast %846 : vector<1x256xf32> to vector<8x256xf32>
    %848 = arith.mulf %845, %847 : vector<8x256xf32>
    %c0_484 = arith.constant 0 : index
    %c21_485 = arith.constant 21 : index
    %849 = vector.load %arg12[%c0_484, %c21_485] : memref<8x25xf32, #tpu.memory_space<vmem>>, vector<8x1xf32>
    %850 = vector.broadcast %849 : vector<8x1xf32> to vector<8x256xf32>
    %851 = arith.mulf %848, %850 : vector<8x256xf32>
    %852 = arith.addf %844, %851 : vector<8x256xf32>
    %c0_486 = arith.constant 0 : index
    %c160_487 = arith.constant 160 : index
    %853 = vector.load %arg19[%c0_486, %c160_487] : memref<8x512xf32, #tpu.memory_space<vmem>>, vector<8x256xf32>
    %c32_488 = arith.constant 32 : index
    %c0_489 = arith.constant 0 : index
    %854 = vector.load %arg2[%c32_488, %c0_489] : memref<41x256xf32, #tpu.memory_space<vmem>>, vector<1x256xf32>
    %855 = vector.broadcast %854 : vector<1x256xf32> to vector<8x256xf32>
    %856 = arith.mulf %853, %855 : vector<8x256xf32>
    %c0_490 = arith.constant 0 : index
    %c22_491 = arith.constant 22 : index
    %857 = vector.load %arg12[%c0_490, %c22_491] : memref<8x25xf32, #tpu.memory_space<vmem>>, vector<8x1xf32>
    %858 = vector.broadcast %857 : vector<8x1xf32> to vector<8x256xf32>
    %859 = arith.mulf %856, %858 : vector<8x256xf32>
    %860 = arith.addf %852, %859 : vector<8x256xf32>
    %c0_492 = arith.constant 0 : index
    %c161_493 = arith.constant 161 : index
    %861 = vector.load %arg19[%c0_492, %c161_493] : memref<8x512xf32, #tpu.memory_space<vmem>>, vector<8x256xf32>
    %c33_494 = arith.constant 33 : index
    %c0_495 = arith.constant 0 : index
    %862 = vector.load %arg2[%c33_494, %c0_495] : memref<41x256xf32, #tpu.memory_space<vmem>>, vector<1x256xf32>
    %863 = vector.broadcast %862 : vector<1x256xf32> to vector<8x256xf32>
    %864 = arith.mulf %861, %863 : vector<8x256xf32>
    %c0_496 = arith.constant 0 : index
    %c23_497 = arith.constant 23 : index
    %865 = vector.load %arg12[%c0_496, %c23_497] : memref<8x25xf32, #tpu.memory_space<vmem>>, vector<8x1xf32>
    %866 = vector.broadcast %865 : vector<8x1xf32> to vector<8x256xf32>
    %867 = arith.mulf %864, %866 : vector<8x256xf32>
    %868 = arith.addf %860, %867 : vector<8x256xf32>
    %c0_498 = arith.constant 0 : index
    %c162_499 = arith.constant 162 : index
    %869 = vector.load %arg19[%c0_498, %c162_499] : memref<8x512xf32, #tpu.memory_space<vmem>>, vector<8x256xf32>
    %c34_500 = arith.constant 34 : index
    %c0_501 = arith.constant 0 : index
    %870 = vector.load %arg2[%c34_500, %c0_501] : memref<41x256xf32, #tpu.memory_space<vmem>>, vector<1x256xf32>
    %871 = vector.broadcast %870 : vector<1x256xf32> to vector<8x256xf32>
    %872 = arith.mulf %869, %871 : vector<8x256xf32>
    %c0_502 = arith.constant 0 : index
    %c24_503 = arith.constant 24 : index
    %873 = vector.load %arg12[%c0_502, %c24_503] : memref<8x25xf32, #tpu.memory_space<vmem>>, vector<8x1xf32>
    %874 = vector.broadcast %873 : vector<8x1xf32> to vector<8x256xf32>
    %875 = arith.mulf %872, %874 : vector<8x256xf32>
    %876 = arith.addf %868, %875 : vector<8x256xf32>
    %cst_504 = arith.constant dense<0.000000e+00> : vector<8x256xf32>
    %877 = tpu.matmul %4, %876, %cst_504 {dimension_numbers = #tpu.dot_dimension_numbers<[1], [0], [0], [1], [0, 0, 1, 1], [], []>} : vector<8x8xf32>, vector<8x256xf32>, vector<8x256xf32> -> vector<8x256xf32>
    %878 = arith.mulf %876, %876 : vector<8x256xf32>
    %cst_505 = arith.constant dense<0.000000e+00> : vector<8x256xf32>
    %879 = tpu.matmul %4, %878, %cst_505 {dimension_numbers = #tpu.dot_dimension_numbers<[1], [0], [0], [1], [0, 0, 1, 1], [], []>} : vector<8x8xf32>, vector<8x256xf32>, vector<8x256xf32> -> vector<8x256xf32>
    %cst_506 = arith.constant dense<0.000000e+00> : vector<8xf32>
    %880 = vector.multi_reduction <add>, %877, %cst_506 [1] : vector<8x256xf32> to vector<8xf32>
    %881 = vector.shape_cast %880 : vector<8xf32> to vector<8x1xf32>
    %cst_507 = arith.constant 0.001953125 : f32
    %882 = vector.broadcast %cst_507 : f32 to vector<8x1xf32>
    %883 = arith.mulf %881, %882 : vector<8x1xf32>
    %cst_508 = arith.constant dense<0.000000e+00> : vector<8xf32>
    %884 = vector.multi_reduction <add>, %879, %cst_508 [1] : vector<8x256xf32> to vector<8xf32>
    %885 = vector.shape_cast %884 : vector<8xf32> to vector<8x1xf32>
    %cst_509 = arith.constant 0.001953125 : f32
    %886 = vector.broadcast %cst_509 : f32 to vector<8x1xf32>
    %887 = arith.mulf %885, %886 : vector<8x1xf32>
    %888 = arith.mulf %883, %883 : vector<8x1xf32>
    %889 = arith.subf %887, %888 : vector<8x1xf32>
    %cst_510 = arith.constant 9.99999974E-6 : f32
    %890 = vector.broadcast %cst_510 : f32 to vector<8x1xf32>
    %891 = arith.addf %889, %890 : vector<8x1xf32>
    %892 = math.rsqrt %891 : vector<8x1xf32>
    %893 = vector.broadcast %883 : vector<8x1xf32> to vector<8x256xf32>
    %894 = arith.subf %876, %893 : vector<8x256xf32>
    %895 = vector.broadcast %892 : vector<8x1xf32> to vector<8x256xf32>
    %896 = arith.mulf %894, %895 : vector<8x256xf32>
    %cst_511 = arith.constant 0.000000e+00 : f32
    %897 = vector.broadcast %cst_511 : f32 to vector<8x256xf32>
    %898 = arith.maximumf %896, %897 : vector<8x256xf32>
    %c0_512 = arith.constant 0 : index
    %c0_513 = arith.constant 0 : index
    %899 = vector.load %arg13[%c0_512, %c0_513] : memref<8x8xf32, #tpu.memory_space<vmem>>, vector<8x8xf32>
    %cst_514 = arith.constant dense<0.000000e+00> : vector<8x256xf32>
    %900 = tpu.matmul %899, %898, %cst_514 {dimension_numbers = #tpu.dot_dimension_numbers<[1], [0], [0], [1], [0, 0, 1, 1], [], []>} : vector<8x8xf32>, vector<8x256xf32>, vector<8x256xf32> -> vector<8x256xf32>
    %cst_515 = arith.constant dense<0.000000e+00> : vector<8x256xf32>
    %901 = tpu.matmul %4, %435, %cst_515 {dimension_numbers = #tpu.dot_dimension_numbers<[1], [0], [0], [1], [0, 0, 1, 1], [], []>} : vector<8x8xf32>, vector<8x256xf32>, vector<8x256xf32> -> vector<8x256xf32>
    %902 = arith.mulf %435, %435 : vector<8x256xf32>
    %cst_516 = arith.constant dense<0.000000e+00> : vector<8x256xf32>
    %903 = tpu.matmul %4, %902, %cst_516 {dimension_numbers = #tpu.dot_dimension_numbers<[1], [0], [0], [1], [0, 0, 1, 1], [], []>} : vector<8x8xf32>, vector<8x256xf32>, vector<8x256xf32> -> vector<8x256xf32>
    %cst_517 = arith.constant dense<0.000000e+00> : vector<8xf32>
    %904 = vector.multi_reduction <add>, %901, %cst_517 [1] : vector<8x256xf32> to vector<8xf32>
    %905 = vector.shape_cast %904 : vector<8xf32> to vector<8x1xf32>
    %cst_518 = arith.constant 0.001953125 : f32
    %906 = vector.broadcast %cst_518 : f32 to vector<8x1xf32>
    %907 = arith.mulf %905, %906 : vector<8x1xf32>
    %cst_519 = arith.constant dense<0.000000e+00> : vector<8xf32>
    %908 = vector.multi_reduction <add>, %903, %cst_519 [1] : vector<8x256xf32> to vector<8xf32>
    %909 = vector.shape_cast %908 : vector<8xf32> to vector<8x1xf32>
    %cst_520 = arith.constant 0.001953125 : f32
    %910 = vector.broadcast %cst_520 : f32 to vector<8x1xf32>
    %911 = arith.mulf %909, %910 : vector<8x1xf32>
    %912 = arith.mulf %907, %907 : vector<8x1xf32>
    %913 = arith.subf %911, %912 : vector<8x1xf32>
    %cst_521 = arith.constant 9.99999974E-6 : f32
    %914 = vector.broadcast %cst_521 : f32 to vector<8x1xf32>
    %915 = arith.addf %913, %914 : vector<8x1xf32>
    %916 = math.rsqrt %915 : vector<8x1xf32>
    %917 = vector.broadcast %907 : vector<8x1xf32> to vector<8x256xf32>
    %918 = arith.subf %435, %917 : vector<8x256xf32>
    %919 = vector.broadcast %916 : vector<8x1xf32> to vector<8x256xf32>
    %920 = arith.mulf %918, %919 : vector<8x256xf32>
    %cst_522 = arith.constant 0.000000e+00 : f32
    %921 = vector.broadcast %cst_522 : f32 to vector<8x256xf32>
    %922 = arith.maximumf %920, %921 : vector<8x256xf32>
    %c0_523 = arith.constant 0 : index
    %c0_524 = arith.constant 0 : index
    %923 = vector.load %arg15[%c0_523, %c0_524] : memref<8x8xf32, #tpu.memory_space<vmem>>, vector<8x8xf32>
    %cst_525 = arith.constant dense<0.000000e+00> : vector<8x256xf32>
    %924 = tpu.matmul %923, %922, %cst_525 {dimension_numbers = #tpu.dot_dimension_numbers<[1], [0], [0], [1], [0, 0, 1, 1], [], []>} : vector<8x8xf32>, vector<8x256xf32>, vector<8x256xf32> -> vector<8x256xf32>
    %cst_526 = arith.constant dense<0.000000e+00> : vector<8x256xf32>
    %925 = tpu.matmul %4, %487, %cst_526 {dimension_numbers = #tpu.dot_dimension_numbers<[1], [0], [0], [1], [0, 0, 1, 1], [], []>} : vector<8x8xf32>, vector<8x256xf32>, vector<8x256xf32> -> vector<8x256xf32>
    %926 = arith.mulf %487, %487 : vector<8x256xf32>
    %cst_527 = arith.constant dense<0.000000e+00> : vector<8x256xf32>
    %927 = tpu.matmul %4, %926, %cst_527 {dimension_numbers = #tpu.dot_dimension_numbers<[1], [0], [0], [1], [0, 0, 1, 1], [], []>} : vector<8x8xf32>, vector<8x256xf32>, vector<8x256xf32> -> vector<8x256xf32>
    %cst_528 = arith.constant dense<0.000000e+00> : vector<8xf32>
    %928 = vector.multi_reduction <add>, %925, %cst_528 [1] : vector<8x256xf32> to vector<8xf32>
    %929 = vector.shape_cast %928 : vector<8xf32> to vector<8x1xf32>
    %cst_529 = arith.constant 0.001953125 : f32
    %930 = vector.broadcast %cst_529 : f32 to vector<8x1xf32>
    %931 = arith.mulf %929, %930 : vector<8x1xf32>
    %cst_530 = arith.constant dense<0.000000e+00> : vector<8xf32>
    %932 = vector.multi_reduction <add>, %927, %cst_530 [1] : vector<8x256xf32> to vector<8xf32>
    %933 = vector.shape_cast %932 : vector<8xf32> to vector<8x1xf32>
    %cst_531 = arith.constant 0.001953125 : f32
    %934 = vector.broadcast %cst_531 : f32 to vector<8x1xf32>
    %935 = arith.mulf %933, %934 : vector<8x1xf32>
    %936 = arith.mulf %931, %931 : vector<8x1xf32>
    %937 = arith.subf %935, %936 : vector<8x1xf32>
    %cst_532 = arith.constant 9.99999974E-6 : f32
    %938 = vector.broadcast %cst_532 : f32 to vector<8x1xf32>
    %939 = arith.addf %937, %938 : vector<8x1xf32>
    %940 = math.rsqrt %939 : vector<8x1xf32>
    %941 = vector.broadcast %931 : vector<8x1xf32> to vector<8x256xf32>
    %942 = arith.subf %487, %941 : vector<8x256xf32>
    %943 = vector.broadcast %940 : vector<8x1xf32> to vector<8x256xf32>
    %944 = arith.mulf %942, %943 : vector<8x256xf32>
    %cst_533 = arith.constant 0.000000e+00 : f32
    %945 = vector.broadcast %cst_533 : f32 to vector<8x256xf32>
    %946 = arith.maximumf %944, %945 : vector<8x256xf32>
    %c0_534 = arith.constant 0 : index
    %c0_535 = arith.constant 0 : index
    %947 = vector.load %arg17[%c0_534, %c0_535] : memref<8x8xf32, #tpu.memory_space<vmem>>, vector<8x8xf32>
    %cst_536 = arith.constant dense<0.000000e+00> : vector<8x256xf32>
    %948 = tpu.matmul %947, %946, %cst_536 {dimension_numbers = #tpu.dot_dimension_numbers<[1], [0], [0], [1], [0, 0, 1, 1], [], []>} : vector<8x8xf32>, vector<8x256xf32>, vector<8x256xf32> -> vector<8x256xf32>
    %c3_537 = arith.constant 3 : index
    %949 = memref.load %arg1[%c3_537] : memref<8xf32, #tpu.memory_space<smem>>
    %950 = vector.broadcast %949 : f32 to vector<8x256xf32>
    %951 = arith.mulf %5, %950 : vector<8x256xf32>
    %cst_538 = arith.constant 0.000000e+00 : f32
    %952 = vector.broadcast %cst_538 : f32 to vector<8x1xf32>
    %cst_539 = arith.constant dense<0.000000e+00> : vector<8x256xf32>
    %953 = tpu.matmul %4, %350, %cst_539 {dimension_numbers = #tpu.dot_dimension_numbers<[1], [0], [0], [1], [0, 0, 1, 1], [], []>} : vector<8x8xf32>, vector<8x256xf32>, vector<8x256xf32> -> vector<8x256xf32>
    %954 = arith.mulf %350, %350 : vector<8x256xf32>
    %cst_540 = arith.constant dense<0.000000e+00> : vector<8x256xf32>
    %955 = tpu.matmul %4, %954, %cst_540 {dimension_numbers = #tpu.dot_dimension_numbers<[1], [0], [0], [1], [0, 0, 1, 1], [], []>} : vector<8x8xf32>, vector<8x256xf32>, vector<8x256xf32> -> vector<8x256xf32>
    %cst_541 = arith.constant dense<0.000000e+00> : vector<8xf32>
    %956 = vector.multi_reduction <add>, %953, %cst_541 [1] : vector<8x256xf32> to vector<8xf32>
    %957 = vector.shape_cast %956 : vector<8xf32> to vector<8x1xf32>
    %cst_542 = arith.constant 0.001953125 : f32
    %958 = vector.broadcast %cst_542 : f32 to vector<8x1xf32>
    %959 = arith.mulf %957, %958 : vector<8x1xf32>
    %cst_543 = arith.constant dense<0.000000e+00> : vector<8xf32>
    %960 = vector.multi_reduction <add>, %955, %cst_543 [1] : vector<8x256xf32> to vector<8xf32>
    %961 = vector.shape_cast %960 : vector<8xf32> to vector<8x1xf32>
    %cst_544 = arith.constant 0.001953125 : f32
    %962 = vector.broadcast %cst_544 : f32 to vector<8x1xf32>
    %963 = arith.mulf %961, %962 : vector<8x1xf32>
    %964 = arith.mulf %959, %959 : vector<8x1xf32>
    %965 = arith.subf %963, %964 : vector<8x1xf32>
    %cst_545 = arith.constant 9.99999974E-6 : f32
    %966 = vector.broadcast %cst_545 : f32 to vector<8x1xf32>
    %967 = arith.addf %965, %966 : vector<8x1xf32>
    %968 = math.rsqrt %967 : vector<8x1xf32>
    %c1_546 = arith.constant 1 : index
    %969 = memref.load %arg1[%c1_546] : memref<8xf32, #tpu.memory_space<smem>>
    %970 = vector.broadcast %969 : f32 to vector<8x1xf32>
    %971 = arith.mulf %968, %970 : vector<8x1xf32>
    %972 = vector.broadcast %971 : vector<8x1xf32> to vector<8x256xf32>
    %973 = arith.mulf %350, %972 : vector<8x256xf32>
    %974 = arith.addf %951, %973 : vector<8x256xf32>
    %975 = arith.mulf %959, %971 : vector<8x1xf32>
    %976 = arith.subf %952, %975 : vector<8x1xf32>
    %cst_547 = arith.constant dense<0.000000e+00> : vector<8x256xf32>
    %977 = tpu.matmul %4, %490, %cst_547 {dimension_numbers = #tpu.dot_dimension_numbers<[1], [0], [0], [1], [0, 0, 1, 1], [], []>} : vector<8x8xf32>, vector<8x256xf32>, vector<8x256xf32> -> vector<8x256xf32>
    %978 = arith.mulf %490, %490 : vector<8x256xf32>
    %cst_548 = arith.constant dense<0.000000e+00> : vector<8x256xf32>
    %979 = tpu.matmul %4, %978, %cst_548 {dimension_numbers = #tpu.dot_dimension_numbers<[1], [0], [0], [1], [0, 0, 1, 1], [], []>} : vector<8x8xf32>, vector<8x256xf32>, vector<8x256xf32> -> vector<8x256xf32>
    %cst_549 = arith.constant dense<0.000000e+00> : vector<8xf32>
    %980 = vector.multi_reduction <add>, %977, %cst_549 [1] : vector<8x256xf32> to vector<8xf32>
    %981 = vector.shape_cast %980 : vector<8xf32> to vector<8x1xf32>
    %cst_550 = arith.constant 0.001953125 : f32
    %982 = vector.broadcast %cst_550 : f32 to vector<8x1xf32>
    %983 = arith.mulf %981, %982 : vector<8x1xf32>
    %cst_551 = arith.constant dense<0.000000e+00> : vector<8xf32>
    %984 = vector.multi_reduction <add>, %979, %cst_551 [1] : vector<8x256xf32> to vector<8xf32>
    %985 = vector.shape_cast %984 : vector<8xf32> to vector<8x1xf32>
    %cst_552 = arith.constant 0.001953125 : f32
    %986 = vector.broadcast %cst_552 : f32 to vector<8x1xf32>
    %987 = arith.mulf %985, %986 : vector<8x1xf32>
    %988 = arith.mulf %983, %983 : vector<8x1xf32>
    %989 = arith.subf %987, %988 : vector<8x1xf32>
    %cst_553 = arith.constant 9.99999974E-6 : f32
    %990 = vector.broadcast %cst_553 : f32 to vector<8x1xf32>
    %991 = arith.addf %989, %990 : vector<8x1xf32>
    %992 = math.rsqrt %991 : vector<8x1xf32>
    %c2_554 = arith.constant 2 : index
    %993 = memref.load %arg1[%c2_554] : memref<8xf32, #tpu.memory_space<smem>>
    %994 = vector.broadcast %993 : f32 to vector<8x1xf32>
    %995 = arith.mulf %992, %994 : vector<8x1xf32>
    %996 = vector.broadcast %995 : vector<8x1xf32> to vector<8x256xf32>
    %997 = arith.mulf %490, %996 : vector<8x256xf32>
    %998 = arith.addf %974, %997 : vector<8x256xf32>
    %999 = arith.mulf %983, %995 : vector<8x1xf32>
    %1000 = arith.subf %976, %999 : vector<8x1xf32>
    %cst_555 = arith.constant dense<0.000000e+00> : vector<8x256xf32>
    %1001 = tpu.matmul %4, %631, %cst_555 {dimension_numbers = #tpu.dot_dimension_numbers<[1], [0], [0], [1], [0, 0, 1, 1], [], []>} : vector<8x8xf32>, vector<8x256xf32>, vector<8x256xf32> -> vector<8x256xf32>
    %1002 = arith.mulf %631, %631 : vector<8x256xf32>
    %cst_556 = arith.constant dense<0.000000e+00> : vector<8x256xf32>
    %1003 = tpu.matmul %4, %1002, %cst_556 {dimension_numbers = #tpu.dot_dimension_numbers<[1], [0], [0], [1], [0, 0, 1, 1], [], []>} : vector<8x8xf32>, vector<8x256xf32>, vector<8x256xf32> -> vector<8x256xf32>
    %cst_557 = arith.constant dense<0.000000e+00> : vector<8xf32>
    %1004 = vector.multi_reduction <add>, %1001, %cst_557 [1] : vector<8x256xf32> to vector<8xf32>
    %1005 = vector.shape_cast %1004 : vector<8xf32> to vector<8x1xf32>
    %cst_558 = arith.constant 0.001953125 : f32
    %1006 = vector.broadcast %cst_558 : f32 to vector<8x1xf32>
    %1007 = arith.mulf %1005, %1006 : vector<8x1xf32>
    %cst_559 = arith.constant dense<0.000000e+00> : vector<8xf32>
    %1008 = vector.multi_reduction <add>, %1003, %cst_559 [1] : vector<8x256xf32> to vector<8xf32>
    %1009 = vector.shape_cast %1008 : vector<8xf32> to vector<8x1xf32>
    %cst_560 = arith.constant 0.001953125 : f32
    %1010 = vector.broadcast %cst_560 : f32 to vector<8x1xf32>
    %1011 = arith.mulf %1009, %1010 : vector<8x1xf32>
    %1012 = arith.mulf %1007, %1007 : vector<8x1xf32>
    %1013 = arith.subf %1011, %1012 : vector<8x1xf32>
    %cst_561 = arith.constant 9.99999974E-6 : f32
    %1014 = vector.broadcast %cst_561 : f32 to vector<8x1xf32>
    %1015 = arith.addf %1013, %1014 : vector<8x1xf32>
    %1016 = math.rsqrt %1015 : vector<8x1xf32>
    %c4_562 = arith.constant 4 : index
    %1017 = memref.load %arg1[%c4_562] : memref<8xf32, #tpu.memory_space<smem>>
    %1018 = vector.broadcast %1017 : f32 to vector<8x1xf32>
    %1019 = arith.mulf %1016, %1018 : vector<8x1xf32>
    %1020 = vector.broadcast %1019 : vector<8x1xf32> to vector<8x256xf32>
    %1021 = arith.mulf %631, %1020 : vector<8x256xf32>
    %1022 = arith.addf %998, %1021 : vector<8x256xf32>
    %1023 = arith.mulf %1007, %1019 : vector<8x1xf32>
    %1024 = arith.subf %1000, %1023 : vector<8x1xf32>
    %cst_563 = arith.constant dense<0.000000e+00> : vector<8x256xf32>
    %1025 = tpu.matmul %4, %900, %cst_563 {dimension_numbers = #tpu.dot_dimension_numbers<[1], [0], [0], [1], [0, 0, 1, 1], [], []>} : vector<8x8xf32>, vector<8x256xf32>, vector<8x256xf32> -> vector<8x256xf32>
    %1026 = arith.mulf %900, %900 : vector<8x256xf32>
    %cst_564 = arith.constant dense<0.000000e+00> : vector<8x256xf32>
    %1027 = tpu.matmul %4, %1026, %cst_564 {dimension_numbers = #tpu.dot_dimension_numbers<[1], [0], [0], [1], [0, 0, 1, 1], [], []>} : vector<8x8xf32>, vector<8x256xf32>, vector<8x256xf32> -> vector<8x256xf32>
    %cst_565 = arith.constant dense<0.000000e+00> : vector<8xf32>
    %1028 = vector.multi_reduction <add>, %1025, %cst_565 [1] : vector<8x256xf32> to vector<8xf32>
    %1029 = vector.shape_cast %1028 : vector<8xf32> to vector<8x1xf32>
    %cst_566 = arith.constant 0.001953125 : f32
    %1030 = vector.broadcast %cst_566 : f32 to vector<8x1xf32>
    %1031 = arith.mulf %1029, %1030 : vector<8x1xf32>
    %cst_567 = arith.constant dense<0.000000e+00> : vector<8xf32>
    %1032 = vector.multi_reduction <add>, %1027, %cst_567 [1] : vector<8x256xf32> to vector<8xf32>
    %1033 = vector.shape_cast %1032 : vector<8xf32> to vector<8x1xf32>
    %cst_568 = arith.constant 0.001953125 : f32
    %1034 = vector.broadcast %cst_568 : f32 to vector<8x1xf32>
    %1035 = arith.mulf %1033, %1034 : vector<8x1xf32>
    %1036 = arith.mulf %1031, %1031 : vector<8x1xf32>
    %1037 = arith.subf %1035, %1036 : vector<8x1xf32>
    %cst_569 = arith.constant 9.99999974E-6 : f32
    %1038 = vector.broadcast %cst_569 : f32 to vector<8x1xf32>
    %1039 = arith.addf %1037, %1038 : vector<8x1xf32>
    %1040 = math.rsqrt %1039 : vector<8x1xf32>
    %c5_570 = arith.constant 5 : index
    %1041 = memref.load %arg1[%c5_570] : memref<8xf32, #tpu.memory_space<smem>>
    %1042 = vector.broadcast %1041 : f32 to vector<8x1xf32>
    %1043 = arith.mulf %1040, %1042 : vector<8x1xf32>
    %1044 = vector.broadcast %1043 : vector<8x1xf32> to vector<8x256xf32>
    %1045 = arith.mulf %900, %1044 : vector<8x256xf32>
    %1046 = arith.addf %1022, %1045 : vector<8x256xf32>
    %1047 = arith.mulf %1031, %1043 : vector<8x1xf32>
    %1048 = arith.subf %1024, %1047 : vector<8x1xf32>
    %cst_571 = arith.constant dense<0.000000e+00> : vector<8x256xf32>
    %1049 = tpu.matmul %4, %924, %cst_571 {dimension_numbers = #tpu.dot_dimension_numbers<[1], [0], [0], [1], [0, 0, 1, 1], [], []>} : vector<8x8xf32>, vector<8x256xf32>, vector<8x256xf32> -> vector<8x256xf32>
    %1050 = arith.mulf %924, %924 : vector<8x256xf32>
    %cst_572 = arith.constant dense<0.000000e+00> : vector<8x256xf32>
    %1051 = tpu.matmul %4, %1050, %cst_572 {dimension_numbers = #tpu.dot_dimension_numbers<[1], [0], [0], [1], [0, 0, 1, 1], [], []>} : vector<8x8xf32>, vector<8x256xf32>, vector<8x256xf32> -> vector<8x256xf32>
    %cst_573 = arith.constant dense<0.000000e+00> : vector<8xf32>
    %1052 = vector.multi_reduction <add>, %1049, %cst_573 [1] : vector<8x256xf32> to vector<8xf32>
    %1053 = vector.shape_cast %1052 : vector<8xf32> to vector<8x1xf32>
    %cst_574 = arith.constant 0.001953125 : f32
    %1054 = vector.broadcast %cst_574 : f32 to vector<8x1xf32>
    %1055 = arith.mulf %1053, %1054 : vector<8x1xf32>
    %cst_575 = arith.constant dense<0.000000e+00> : vector<8xf32>
    %1056 = vector.multi_reduction <add>, %1051, %cst_575 [1] : vector<8x256xf32> to vector<8xf32>
    %1057 = vector.shape_cast %1056 : vector<8xf32> to vector<8x1xf32>
    %cst_576 = arith.constant 0.001953125 : f32
    %1058 = vector.broadcast %cst_576 : f32 to vector<8x1xf32>
    %1059 = arith.mulf %1057, %1058 : vector<8x1xf32>
    %1060 = arith.mulf %1055, %1055 : vector<8x1xf32>
    %1061 = arith.subf %1059, %1060 : vector<8x1xf32>
    %cst_577 = arith.constant 9.99999974E-6 : f32
    %1062 = vector.broadcast %cst_577 : f32 to vector<8x1xf32>
    %1063 = arith.addf %1061, %1062 : vector<8x1xf32>
    %1064 = math.rsqrt %1063 : vector<8x1xf32>
    %c6_578 = arith.constant 6 : index
    %1065 = memref.load %arg1[%c6_578] : memref<8xf32, #tpu.memory_space<smem>>
    %1066 = vector.broadcast %1065 : f32 to vector<8x1xf32>
    %1067 = arith.mulf %1064, %1066 : vector<8x1xf32>
    %1068 = vector.broadcast %1067 : vector<8x1xf32> to vector<8x256xf32>
    %1069 = arith.mulf %924, %1068 : vector<8x256xf32>
    %1070 = arith.addf %1046, %1069 : vector<8x256xf32>
    %1071 = arith.mulf %1055, %1067 : vector<8x1xf32>
    %1072 = arith.subf %1048, %1071 : vector<8x1xf32>
    %cst_579 = arith.constant dense<0.000000e+00> : vector<8x256xf32>
    %1073 = tpu.matmul %4, %948, %cst_579 {dimension_numbers = #tpu.dot_dimension_numbers<[1], [0], [0], [1], [0, 0, 1, 1], [], []>} : vector<8x8xf32>, vector<8x256xf32>, vector<8x256xf32> -> vector<8x256xf32>
    %1074 = arith.mulf %948, %948 : vector<8x256xf32>
    %cst_580 = arith.constant dense<0.000000e+00> : vector<8x256xf32>
    %1075 = tpu.matmul %4, %1074, %cst_580 {dimension_numbers = #tpu.dot_dimension_numbers<[1], [0], [0], [1], [0, 0, 1, 1], [], []>} : vector<8x8xf32>, vector<8x256xf32>, vector<8x256xf32> -> vector<8x256xf32>
    %cst_581 = arith.constant dense<0.000000e+00> : vector<8xf32>
    %1076 = vector.multi_reduction <add>, %1073, %cst_581 [1] : vector<8x256xf32> to vector<8xf32>
    %1077 = vector.shape_cast %1076 : vector<8xf32> to vector<8x1xf32>
    %cst_582 = arith.constant 0.001953125 : f32
    %1078 = vector.broadcast %cst_582 : f32 to vector<8x1xf32>
    %1079 = arith.mulf %1077, %1078 : vector<8x1xf32>
    %cst_583 = arith.constant dense<0.000000e+00> : vector<8xf32>
    %1080 = vector.multi_reduction <add>, %1075, %cst_583 [1] : vector<8x256xf32> to vector<8xf32>
    %1081 = vector.shape_cast %1080 : vector<8xf32> to vector<8x1xf32>
    %cst_584 = arith.constant 0.001953125 : f32
    %1082 = vector.broadcast %cst_584 : f32 to vector<8x1xf32>
    %1083 = arith.mulf %1081, %1082 : vector<8x1xf32>
    %1084 = arith.mulf %1079, %1079 : vector<8x1xf32>
    %1085 = arith.subf %1083, %1084 : vector<8x1xf32>
    %cst_585 = arith.constant 9.99999974E-6 : f32
    %1086 = vector.broadcast %cst_585 : f32 to vector<8x1xf32>
    %1087 = arith.addf %1085, %1086 : vector<8x1xf32>
    %1088 = math.rsqrt %1087 : vector<8x1xf32>
    %c7_586 = arith.constant 7 : index
    %1089 = memref.load %arg1[%c7_586] : memref<8xf32, #tpu.memory_space<smem>>
    %1090 = vector.broadcast %1089 : f32 to vector<8x1xf32>
    %1091 = arith.mulf %1088, %1090 : vector<8x1xf32>
    %1092 = vector.broadcast %1091 : vector<8x1xf32> to vector<8x256xf32>
    %1093 = arith.mulf %948, %1092 : vector<8x256xf32>
    %1094 = arith.addf %1070, %1093 : vector<8x256xf32>
    %1095 = arith.mulf %1079, %1091 : vector<8x1xf32>
    %1096 = arith.subf %1072, %1095 : vector<8x1xf32>
    %1097 = vector.broadcast %1096 : vector<8x1xf32> to vector<8x256xf32>
    %1098 = arith.addf %1094, %1097 : vector<8x256xf32>
    %c0_587 = arith.constant 0 : index
    %c0_588 = arith.constant 0 : index
    %1099 = vector.load %arg18[%c0_587, %c0_588] : memref<8x256xf32, #tpu.memory_space<vmem>>, vector<8x256xf32>
    tpu.vector_store %arg18[%c0_587, %c0_588], %1098 {strides = array<i32>} : memref<8x256xf32, #tpu.memory_space<vmem>>, vector<8x256xf32>,
    return
  }
}

</mosaic_0001>

<llo_original>
// kernel: mixed_op_forward.1
$region0: #{mixed_op_forward.1}
  #allocation0 [shape = 'u32[]', space=smem, size = 0x4, offset = 0x4, fixed_abs, tag = 'smem constant byte address 0x4 - core index']
  #allocation1 [shape = 'u32[144,128]{1,0:T(1,128)}', space=vmem, size = 0x12000, scoped, tag = 'internal scratch']
  #allocation2 [shape = 'f32[8,512]{1,0:T(8,128)}', space=vmem, size = 0x4000, scoped, tag = 'scratch operand']
  %s0 = inlined_call_operand.vmem [shape: f32[8,256], index: 0, kind: input, shape index: {}]
  %s1 = inlined_call_operand.vmem [shape: f32[8], index: 1, kind: input, shape index: {}]
  %s2 = inlined_call_operand.vmem [shape: f32[41,256], index: 2, kind: input, shape index: {}]
  %s3 = inlined_call_operand.vmem [shape: f32[9,256], index: 3, kind: input, shape index: {}]
  %s4 = inlined_call_operand.vmem [shape: f32[1,256], index: 4, kind: input, shape index: {}]
  %s5 = inlined_call_operand.vmem [shape: f32[8,8], index: 5, kind: input, shape index: {}]
  %s6 = inlined_call_operand.vmem [shape: f32[8,9], index: 6, kind: input, shape index: {}]
  %s7 = inlined_call_operand.vmem [shape: f32[8,8], index: 7, kind: input, shape index: {}]
  %s8 = inlined_call_operand.vmem [shape: f32[8,9], index: 8, kind: input, shape index: {}]
  %s9 = inlined_call_operand.vmem [shape: f32[8,8], index: 9, kind: input, shape index: {}]
  %s10 = inlined_call_operand.vmem [shape: f32[8,25], index: 10, kind: input, shape index: {}]
  %s11 = inlined_call_operand.vmem [shape: f32[8,8], index: 11, kind: input, shape index: {}]
  %s12 = inlined_call_operand.vmem [shape: f32[8,25], index: 12, kind: input, shape index: {}]
  %s13 = inlined_call_operand.vmem [shape: f32[8,8], index: 13, kind: input, shape index: {}]
  %s14 = inlined_call_operand.vmem [shape: f32[8,9], index: 14, kind: input, shape index: {}]
  %s15 = inlined_call_operand.vmem [shape: f32[8,8], index: 15, kind: input, shape index: {}]
  %s16 = inlined_call_operand.vmem [shape: f32[8,25], index: 16, kind: input, shape index: {}]
  %s17 = inlined_call_operand.vmem [shape: f32[8,8], index: 17, kind: input, shape index: {}]
  %s18 = inlined_call_operand.vmem [shape: f32[8,256], index: 18, kind: output, shape index: {}]
  %s19 = sld [smem:[#allocation0]]
  $region86: #{mixed_op_forward.1} parent=0
    _
  %s21 = ssub.s32 1, %s19
  %s22 = scalar_select 0, %s21, %s19
  $region1: #{mixed_op_forward.1} parent=0
    #allocation3 [shape = 'u8[512]{0}', space=smem, size = 0x200, scoped, tag = 'input window, operand 1, single buffered']
    #allocation4 [shape = 's32[1]{0}', space=sflag, size = 0x4, scoped, tag = 'scoped memory for mixed_op_forward.1']
    %23 = vsyncpa [#allocation4], 0
    // Predicated region
    $region2: #{mixed_op_forward.1} parent=1 // pred_check
      _
    $region3: #{mixed_op_forward.1} parent=1 // pred_check_branch
      %25 = sbr.rel (0) target = $region5
    $region4: #{mixed_op_forward.1} parent=1 // pred_region
      _
    $region5: #{mixed_op_forward.1} parent=1 // pred_fallthru
      _
    // Predicated region
    $region6: #{mixed_op_forward.1} parent=1 // pred_check
      _
    $region7: #{mixed_op_forward.1} parent=1 // pred_check_branch
      %27 = sbr.rel (0) target = $region9
    $region8: #{mixed_op_forward.1} parent=1 // pred_region
      %s29 = ssub.s32 16, 16
      %30 = vsyncadd [#allocation4], %s29
      %s32 = sshll.u32 %s1, 4
      %s33 = int_to_ptr.vmem [resolvable:$true] %s32
      %35 = dma.vmem_to_smem %s33, 16, [#allocation3], [#allocation4]
    $region9: #{mixed_op_forward.1} parent=1 // pred_fallthru
      _
    // Predicated region
    $region10: #{mixed_op_forward.1} parent=1 // pred_check
      _
    $region11: #{mixed_op_forward.1} parent=1 // pred_check_branch
      %37 = sbr.rel (0) target = $region13
    $region12: #{mixed_op_forward.1} parent=1 // pred_region
      _
    $region13: #{mixed_op_forward.1} parent=1 // pred_fallthru
      _
    // Predicated region
    $region14: #{mixed_op_forward.1} parent=1 // pred_check
      _
    $region15: #{mixed_op_forward.1} parent=1 // pred_check_branch
      %39 = sbr.rel (0) target = $region17
    $region16: #{mixed_op_forward.1} parent=1 // pred_region
      _
    $region17: #{mixed_op_forward.1} parent=1 // pred_fallthru
      _
    // Predicated region
    $region18: #{mixed_op_forward.1} parent=1 // pred_check
      _
    $region19: #{mixed_op_forward.1} parent=1 // pred_check_branch
      %41 = sbr.rel (0) target = $region21
    $region20: #{mixed_op_forward.1} parent=1 // pred_region
      _
    $region21: #{mixed_op_forward.1} parent=1 // pred_fallthru
      _
    // Predicated region
    $region22: #{mixed_op_forward.1} parent=1 // pred_check
      _
    $region23: #{mixed_op_forward.1} parent=1 // pred_check_branch
      %43 = sbr.rel (0) target = $region25
    $region24: #{mixed_op_forward.1} parent=1 // pred_region
      _
    $region25: #{mixed_op_forward.1} parent=1 // pred_fallthru
      _
    // Predicated region
    $region26: #{mixed_op_forward.1} parent=1 // pred_check
      _
    $region27: #{mixed_op_forward.1} parent=1 // pred_check_branch
      %45 = sbr.rel (0) target = $region29
    $region28: #{mixed_op_forward.1} parent=1 // pred_region
      _
    $region29: #{mixed_op_forward.1} parent=1 // pred_fallthru
      _
    // Predicated region
    $region30: #{mixed_op_forward.1} parent=1 // pred_check
      _
    $region31: #{mixed_op_forward.1} parent=1 // pred_check_branch
      %47 = sbr.rel (0) target = $region33
    $region32: #{mixed_op_forward.1} parent=1 // pred_region
      _
    $region33: #{mixed_op_forward.1} parent=1 // pred_fallthru
      _
    // Predicated region
    $region34: #{mixed_op_forward.1} parent=1 // pred_check
      _
    $region35: #{mixed_op_forward.1} parent=1 // pred_check_branch
      %49 = sbr.rel (0) target = $region37
    $region36: #{mixed_op_forward.1} parent=1 // pred_region
      _
    $region37: #{mixed_op_forward.1} parent=1 // pred_fallthru
      _
    // Predicated region
    $region38: #{mixed_op_forward.1} parent=1 // pred_check
      _
    $region39: #{mixed_op_forward.1} parent=1 // pred_check_branch
      %51 = sbr.rel (0) target = $region41
    $region40: #{mixed_op_forward.1} parent=1 // pred_region
      _
    $region41: #{mixed_op_forward.1} parent=1 // pred_fallthru
      _
    // Predicated region
    $region42: #{mixed_op_forward.1} parent=1 // pred_check
      _
    $region43: #{mixed_op_forward.1} parent=1 // pred_check_branch
      %53 = sbr.rel (0) target = $region45
    $region44: #{mixed_op_forward.1} parent=1 // pred_region
      _
    $region45: #{mixed_op_forward.1} parent=1 // pred_fallthru
      _
    // Predicated region
    $region46: #{mixed_op_forward.1} parent=1 // pred_check
      _
    $region47: #{mixed_op_forward.1} parent=1 // pred_check_branch
      %55 = sbr.rel (0) target = $region49
    $region48: #{mixed_op_forward.1} parent=1 // pred_region
      _
    $region49: #{mixed_op_forward.1} parent=1 // pred_fallthru
      _
    // Predicated region
    $region50: #{mixed_op_forward.1} parent=1 // pred_check
      _
    $region51: #{mixed_op_forward.1} parent=1 // pred_check_branch
      %57 = sbr.rel (0) target = $region53
    $region52: #{mixed_op_forward.1} parent=1 // pred_region
      _
    $region53: #{mixed_op_forward.1} parent=1 // pred_fallthru
      _
    // Predicated region
    $region54: #{mixed_op_forward.1} parent=1 // pred_check
      _
    $region55: #{mixed_op_forward.1} parent=1 // pred_check_branch
      %59 = sbr.rel (0) target = $region57
    $region56: #{mixed_op_forward.1} parent=1 // pred_region
      _
    $region57: #{mixed_op_forward.1} parent=1 // pred_fallthru
      _
    // Predicated region
    $region58: #{mixed_op_forward.1} parent=1 // pred_check
      _
    $region59: #{mixed_op_forward.1} parent=1 // pred_check_branch
      %61 = sbr.rel (0) target = $region61
    $region60: #{mixed_op_forward.1} parent=1 // pred_region
      _
    $region61: #{mixed_op_forward.1} parent=1 // pred_fallthru
      _
    // Predicated region
    $region62: #{mixed_op_forward.1} parent=1 // pred_check
      _
    $region63: #{mixed_op_forward.1} parent=1 // pred_check_branch
      %63 = sbr.rel (0) target = $region65
    $region64: #{mixed_op_forward.1} parent=1 // pred_region
      _
    $region65: #{mixed_op_forward.1} parent=1 // pred_fallthru
      _
    // Predicated region
    $region66: #{mixed_op_forward.1} parent=1 // pred_check
      _
    $region67: #{mixed_op_forward.1} parent=1 // pred_check_branch
      %65 = sbr.rel (0) target = $region69
    $region68: #{mixed_op_forward.1} parent=1 // pred_region
      _
    $region69: #{mixed_op_forward.1} parent=1 // pred_fallthru
      _
    // Predicated region
    $region70: #{mixed_op_forward.1} parent=1 // pred_check
      _
    $region71: #{mixed_op_forward.1} parent=1 // pred_check_branch
      %67 = sbr.rel (0) target = $region73
    $region72: #{mixed_op_forward.1} parent=1 // pred_region
      _
    $region73: #{mixed_op_forward.1} parent=1 // pred_fallthru
      _
    // Predicated region
    $region74: #{mixed_op_forward.1} parent=1 // pred_check
      _
    $region75: #{mixed_op_forward.1} parent=1 // pred_check_branch
      %69 = sbr.rel (0) target = $region77
    $region76: #{mixed_op_forward.1} parent=1 // pred_region
      %70 = dma.done [#allocation4], 16
    $region77: #{mixed_op_forward.1} parent=1 // pred_fallthru
      _
    %71 = sfence
    %72 = vst [vmem:[#allocation2] sm:$0xff] 0.0
    %73 = vst [vmem:[#allocation2 + $0x18] sm:$0xff] 0.0
    %v74 = vld [vmem:[%s5] sm:$0xff]
    %v75 = vld [vmem:[%s0] sm:$0xff]
    %v76 = vld [vmem:[%s0 + $0x8] sm:$0xff]
    %77 = vst [vmem:[#allocation2 + $0x8] sm:$0xff] %v75
    %78 = vst [vmem:[#allocation2 + $0x10] sm:$0xff] %v76
    %v79 = vld [vmem:[#allocation2] sm:$0xff]
    %v80 = vld [vmem:[#allocation2 + $0x8] sm:$0xff]
    %v81 = vld [vmem:[#allocation2 + $0x10] sm:$0xff]
    %v82 = vld [vmem:[%s2] ss:$8 sm:$0x3]
    %v84 = vlaneseq
    %v85 = vshrl.u32 %v84, 7
    %v86 = vsub.s32 0, %v85
    %v87 = vrot.slane %v82, %v86
    %v88 = vlaneseq
    %v89 = vshrl.u32 %v88, 7
    %v90 = vsub.s32 1, %v89
    %v91 = vrot.slane %v82, %v90
    %92 = vrot.lane.b32.xlu0 %v87, 60
    %v93 = vpop.permute.xlu0 %92
    %94 = vrot.lane.b32.xlu0 %v91, 60
    %v95 = vpop.permute.xlu0 %94
    %vm96 = vcmask 490496
    %v97 = vsel %vm96, %v93, %v95
    %v101 = vmul.f32 %v79, %v93
    %v102 = vmul.f32 %v80, %v97
    %v103 = vmul.f32 %v81, %v95
    %v104 = vld [vmem:[%s16] sm:$0xff]
    %106 = vset.pattern.permute.xlu0 0
    %107 = vperm.xlu0 %106, %v104
    %v108 = vpop.permute.xlu0 %107
    %v110 = vmul.f32 %v101, %v108
    %v111 = vmul.f32 %v102, %v108
    %v112 = vmul.f32 %v103, %v108
    %v113 = vadd.f32 %v110, 0.0
    %v114 = vadd.f32 %v111, 0.0
    %v115 = vadd.f32 %v112, 0.0
    %s116 = scalar_lea.vmem %s2, 1
    %v117 = vld [vmem:[%s116] ss:$8 sm:$0x3]
    %v119 = vlaneseq
    %v120 = vshrl.u32 %v119, 7
    %v121 = vsub.s32 0, %v120
    %v122 = vrot.slane %v117, %v121
    %v123 = vlaneseq
    %v124 = vshrl.u32 %v123, 7
    %v125 = vsub.s32 1, %v124
    %v126 = vrot.slane %v117, %v125
    %127 = vrot.lane.b32.xlu0 %v122, 62
    %v128 = vpop.permute.xlu0 %127
    %129 = vrot.lane.b32.xlu0 %v126, 62
    %v130 = vpop.permute.xlu0 %129
    %vm131 = vcmask 506880
    %v132 = vsel %vm131, %v128, %v130
    %v136 = vmul.f32 %v79, %v128
    %v137 = vmul.f32 %v80, %v132
    %v138 = vmul.f32 %v81, %v130
    %139 = vset.pattern.permute.xlu0 1
    %140 = vperm.xlu0 %139, %v104
    %v141 = vpop.permute.xlu0 %140
    %v143 = vmul.f32 %v136, %v141
    %v144 = vmul.f32 %v137, %v141
    %v145 = vmul.f32 %v138, %v141
    %149 = vrot.lane.b32.xlu0 %v143, 126
    %v150 = vpop.permute.xlu0 %149
    %151 = vrot.lane.b32.xlu0 %v144, 126
    %v152 = vpop.permute.xlu0 %151
    %153 = vrot.lane.b32.xlu0 %v145, 126
    %v154 = vpop.permute.xlu0 %153
    %vm155 = vcmask 1031168
    %v156 = vsel %vm155, %v150, %v152
    %v157 = vsel %vm155, %v152, %v154
    %v161 = vadd.f32 %v113, %v156
    %v162 = vadd.f32 %v114, %v157
    %v163 = vadd.f32 %v115, %v154
    %s164 = scalar_lea.vmem %s2, 2
    %v165 = vld [vmem:[%s164] ss:$8 sm:$0x3]
    %v167 = vlaneseq
    %v168 = vshrl.u32 %v167, 7
    %v169 = vsub.s32 0, %v168
    %v170 = vrot.slane %v165, %v169
    %v171 = vlaneseq
    %v172 = vshrl.u32 %v171, 7
    %v173 = vsub.s32 1, %v172
    %v174 = vrot.slane %v165, %v173
    %175 = vrot.lane.b32.xlu0 %v170, 64
    %v176 = vpop.permute.xlu0 %175
    %177 = vrot.lane.b32.xlu0 %v174, 64
    %v178 = vpop.permute.xlu0 %177
    %vm179 = vcmask 523264
    %v180 = vsel %vm179, %v176, %v178
    %v184 = vmul.f32 %v79, %v176
    %v185 = vmul.f32 %v80, %v180
    %v186 = vmul.f32 %v81, %v178
    %187 = vset.pattern.permute.xlu0 2
    %188 = vperm.xlu0 %187, %v104
    %v189 = vpop.permute.xlu0 %188
    %v191 = vmul.f32 %v184, %v189
    %v192 = vmul.f32 %v185, %v189
    %v193 = vmul.f32 %v186, %v189
    %197 = vrot.lane.b32.xlu0 %v191, 124
    %v198 = vpop.permute.xlu0 %197
    %199 = vrot.lane.b32.xlu0 %v192, 124
    %v200 = vpop.permute.xlu0 %199
    %201 = vrot.lane.b32.xlu0 %v193, 124
    %v202 = vpop.permute.xlu0 %201
    %vm203 = vcmask 1014784
    %v204 = vsel %vm203, %v198, %v200
    %v205 = vsel %vm203, %v200, %v202
    %v209 = vadd.f32 %v161, %v204
    %v210 = vadd.f32 %v162, %v205
    %v211 = vadd.f32 %v163, %v202
    %s212 = scalar_lea.vmem %s2, 3
    %v213 = vld [vmem:[%s212] ss:$8 sm:$0x3]
    %v215 = vlaneseq
    %v216 = vshrl.u32 %v215, 7
    %v217 = vsub.s32 0, %v216
    %v218 = vrot.slane %v213, %v217
    %v219 = vlaneseq
    %v220 = vshrl.u32 %v219, 7
    %v221 = vsub.s32 1, %v220
    %v222 = vrot.slane %v213, %v221
    %223 = vrot.lane.b32.xlu0 %v218, 66
    %v224 = vpop.permute.xlu0 %223
    %225 = vrot.lane.b32.xlu0 %v222, 66
    %v226 = vpop.permute.xlu0 %225
    %vm227 = vcmask 539648
    %v228 = vsel %vm227, %v224, %v226
    %v232 = vmul.f32 %v79, %v224
    %v233 = vmul.f32 %v80, %v228
    %v234 = vmul.f32 %v81, %v226
    %235 = vset.pattern.permute.xlu0 3
    %236 = vperm.xlu0 %235, %v104
    %v237 = vpop.permute.xlu0 %236
    %v239 = vmul.f32 %v232, %v237
    %v240 = vmul.f32 %v233, %v237
    %v241 = vmul.f32 %v234, %v237
    %245 = vrot.lane.b32.xlu0 %v239, 122
    %v246 = vpop.permute.xlu0 %245
    %247 = vrot.lane.b32.xlu0 %v240, 122
    %v248 = vpop.permute.xlu0 %247
    %249 = vrot.lane.b32.xlu0 %v241, 122
    %v250 = vpop.permute.xlu0 %249
    %vm251 = vcmask 998400
    %v252 = vsel %vm251, %v246, %v248
    %v253 = vsel %vm251, %v248, %v250
    %v257 = vadd.f32 %v209, %v252
    %v258 = vadd.f32 %v210, %v253
    %v259 = vadd.f32 %v211, %v250
    %s260 = scalar_lea.vmem %s2, 4
    %v261 = vld [vmem:[%s260] ss:$8 sm:$0x3]
    %v263 = vlaneseq
    %v264 = vshrl.u32 %v263, 7
    %v265 = vsub.s32 0, %v264
    %v266 = vrot.slane %v261, %v265
    %v267 = vlaneseq
    %v268 = vshrl.u32 %v267, 7
    %v269 = vsub.s32 1, %v268
    %v270 = vrot.slane %v261, %v269
    %271 = vrot.lane.b32.xlu0 %v266, 68
    %v272 = vpop.permute.xlu0 %271
    %273 = vrot.lane.b32.xlu0 %v270, 68
    %v274 = vpop.permute.xlu0 %273
    %vm275 = vcmask 556032
    %v276 = vsel %vm275, %v272, %v274
    %v280 = vmul.f32 %v79, %v272
    %v281 = vmul.f32 %v80, %v276
    %v282 = vmul.f32 %v81, %v274
    %283 = vset.pattern.permute.xlu0 4
    %284 = vperm.xlu0 %283, %v104
    %v285 = vpop.permute.xlu0 %284
    %v287 = vmul.f32 %v280, %v285
    %v288 = vmul.f32 %v281, %v285
    %v289 = vmul.f32 %v282, %v285
    %293 = vrot.lane.b32.xlu0 %v287, 120
    %v294 = vpop.permute.xlu0 %293
    %295 = vrot.lane.b32.xlu0 %v288, 120
    %v296 = vpop.permute.xlu0 %295
    %297 = vrot.lane.b32.xlu0 %v289, 120
    %v298 = vpop.permute.xlu0 %297
    %vm299 = vcmask 982016
    %v300 = vsel %vm299, %v294, %v296
    %v301 = vsel %vm299, %v296, %v298
    %v305 = vadd.f32 %v257, %v300
    %v306 = vadd.f32 %v258, %v301
    %v307 = vadd.f32 %v259, %v298
    %s308 = scalar_lea.vmem %s2, 5
    %v309 = vld [vmem:[%s308] ss:$8 sm:$0x3]
    %v311 = vlaneseq
    %v312 = vshrl.u32 %v311, 7
    %v313 = vsub.s32 0, %v312
    %v314 = vrot.slane %v309, %v313
    %v315 = vlaneseq
    %v316 = vshrl.u32 %v315, 7
    %v317 = vsub.s32 1, %v316
    %v318 = vrot.slane %v309, %v317
    %319 = vrot.lane.b32.xlu0 %v314, 92
    %v320 = vpop.permute.xlu0 %319
    %321 = vrot.lane.b32.xlu0 %v318, 92
    %v322 = vpop.permute.xlu0 %321
    %vm323 = vcmask 752640
    %v324 = vsel %vm323, %v320, %v322
    %v328 = vmul.f32 %v79, %v320
    %v329 = vmul.f32 %v80, %v324
    %v330 = vmul.f32 %v81, %v322
    %331 = vset.pattern.permute.xlu0 5
    %332 = vperm.xlu0 %331, %v104
    %v333 = vpop.permute.xlu0 %332
    %v335 = vmul.f32 %v328, %v333
    %v336 = vmul.f32 %v329, %v333
    %v337 = vmul.f32 %v330, %v333
    %341 = vrot.lane.b32.xlu0 %v335, 96
    %v342 = vpop.permute.xlu0 %341
    %343 = vrot.lane.b32.xlu0 %v336, 96
    %v344 = vpop.permute.xlu0 %343
    %345 = vrot.lane.b32.xlu0 %v337, 96
    %v346 = vpop.permute.xlu0 %345
    %vm347 = vcmask 785408
    %v348 = vsel %vm347, %v342, %v344
    %v349 = vsel %vm347, %v344, %v346
    %v353 = vadd.f32 %v305, %v348
    %v354 = vadd.f32 %v306, %v349
    %v355 = vadd.f32 %v307, %v346
    %s356 = scalar_lea.vmem %s2, 6
    %v357 = vld [vmem:[%s356] ss:$8 sm:$0x3]
    %v359 = vlaneseq
    %v360 = vshrl.u32 %v359, 7
    %v361 = vsub.s32 0, %v360
    %v362 = vrot.slane %v357, %v361
    %v363 = vlaneseq
    %v364 = vshrl.u32 %v363, 7
    %v365 = vsub.s32 1, %v364
    %v366 = vrot.slane %v357, %v365
    %367 = vrot.lane.b32.xlu0 %v362, 94
    %v368 = vpop.permute.xlu0 %367
    %369 = vrot.lane.b32.xlu0 %v366, 94
    %v370 = vpop.permute.xlu0 %369
    %vm371 = vcmask 769024
    %v372 = vsel %vm371, %v368, %v370
    %v376 = vmul.f32 %v79, %v368
    %v377 = vmul.f32 %v80, %v372
    %v378 = vmul.f32 %v81, %v370
    %v379 = vld [vmem:[%s10] sm:$0xff]
    %381 = vset.pattern.permute.xlu0 0
    %382 = vperm.xlu0 %381, %v379
    %v383 = vpop.permute.xlu0 %382
    %v385 = vmul.f32 %v376, %v383
    %v386 = vmul.f32 %v377, %v383
    %v387 = vmul.f32 %v378, %v383
    %v388 = vadd.f32 %v385, 0.0
    %v389 = vadd.f32 %v386, 0.0
    %v390 = vadd.f32 %v387, 0.0
    %v391 = vld [vmem:[%s14] sm:$0xff]
    %393 = vset.pattern.permute.xlu0 0
    %394 = vperm.xlu0 %393, %v391
    %v395 = vpop.permute.xlu0 %394
    %v397 = vmul.f32 %v376, %v395
    %v398 = vmul.f32 %v377, %v395
    %v399 = vmul.f32 %v378, %v395
    %v400 = vadd.f32 %v397, 0.0
    %v401 = vadd.f32 %v398, 0.0
    %v402 = vadd.f32 %v399, 0.0
    %403 = vset.pattern.permute.xlu0 6
    %404 = vperm.xlu0 %403, %v104
    %v405 = vpop.permute.xlu0 %404
    %v407 = vmul.f32 %v376, %v405
    %v408 = vmul.f32 %v377, %v405
    %v409 = vmul.f32 %v378, %v405
    %413 = vrot.lane.b32.xlu0 %v407, 94
    %v414 = vpop.permute.xlu0 %413
    %415 = vrot.lane.b32.xlu0 %v408, 94
    %v416 = vpop.permute.xlu0 %415
    %417 = vrot.lane.b32.xlu0 %v409, 94
    %v418 = vpop.permute.xlu0 %417
    %v419 = vsel %vm371, %v414, %v416
    %v420 = vsel %vm371, %v416, %v418
    %v424 = vadd.f32 %v353, %v419
    %v425 = vadd.f32 %v354, %v420
    %v426 = vadd.f32 %v355, %v418
    %s427 = scalar_lea.vmem %s2, 7
    %v428 = vld [vmem:[%s427] ss:$8 sm:$0x3]
    %v430 = vlaneseq
    %v431 = vshrl.u32 %v430, 7
    %v432 = vsub.s32 0, %v431
    %v433 = vrot.slane %v428, %v432
    %v434 = vlaneseq
    %v435 = vshrl.u32 %v434, 7
    %v436 = vsub.s32 1, %v435
    %v437 = vrot.slane %v428, %v436
    %438 = vrot.lane.b32.xlu0 %v433, 95
    %v439 = vpop.permute.xlu0 %438
    %440 = vrot.lane.b32.xlu0 %v437, 95
    %v441 = vpop.permute.xlu0 %440
    %vm442 = vcmask 777216
    %v443 = vsel %vm442, %v439, %v441
    %v447 = vmul.f32 %v79, %v439
    %v448 = vmul.f32 %v80, %v443
    %v449 = vmul.f32 %v81, %v441
    %450 = vset.pattern.permute.xlu0 1
    %451 = vperm.xlu0 %450, %v379
    %v452 = vpop.permute.xlu0 %451
    %v454 = vmul.f32 %v447, %v452
    %v455 = vmul.f32 %v448, %v452
    %v456 = vmul.f32 %v449, %v452
    %460 = vrot.lane.b32.xlu0 %v454, 127
    %v461 = vpop.permute.xlu0 %460
    %462 = vrot.lane.b32.xlu0 %v455, 127
    %v463 = vpop.permute.xlu0 %462
    %464 = vrot.lane.b32.xlu0 %v456, 127
    %v465 = vpop.permute.xlu0 %464
    %vm466 = vcmask 1039360
    %v467 = vsel %vm466, %v461, %v463
    %v468 = vsel %vm466, %v463, %v465
    %v472 = vadd.f32 %v388, %v467
    %v473 = vadd.f32 %v389, %v468
    %v474 = vadd.f32 %v390, %v465
    %s475 = scalar_lea.vmem %s2, 16
    %v476 = vld [vmem:[%s475] ss:$8 sm:$0x3]
    %v478 = vlaneseq
    %v479 = vshrl.u32 %v478, 7
    %v480 = vsub.s32 0, %v479
    %v481 = vrot.slane %v476, %v480
    %v482 = vlaneseq
    %v483 = vshrl.u32 %v482, 7
    %v484 = vsub.s32 1, %v483
    %v485 = vrot.slane %v476, %v484
    %486 = vrot.lane.b32.xlu0 %v481, 96
    %v487 = vpop.permute.xlu0 %486
    %488 = vrot.lane.b32.xlu0 %v485, 96
    %v489 = vpop.permute.xlu0 %488
    %v490 = vsel %vm347, %v487, %v489
    %v494 = vmul.f32 %v79, %v487
    %v495 = vmul.f32 %v80, %v490
    %v496 = vmul.f32 %v81, %v489
    %497 = vset.pattern.permute.xlu0 2
    %498 = vperm.xlu0 %497, %v379
    %v499 = vpop.permute.xlu0 %498
    %v501 = vmul.f32 %v494, %v499
    %v502 = vmul.f32 %v495, %v499
    %v503 = vmul.f32 %v496, %v499
    %507 = vrot.lane.b32.xlu0 %v501, 126
    %v508 = vpop.permute.xlu0 %507
    %509 = vrot.lane.b32.xlu0 %v502, 126
    %v510 = vpop.permute.xlu0 %509
    %511 = vrot.lane.b32.xlu0 %v503, 126
    %v512 = vpop.permute.xlu0 %511
    %v513 = vsel %vm155, %v508, %v510
    %v514 = vsel %vm155, %v510, %v512
    %v518 = vadd.f32 %v472, %v513
    %v519 = vadd.f32 %v473, %v514
    %v520 = vadd.f32 %v474, %v512
    %521 = vset.pattern.permute.xlu0 1
    %522 = vperm.xlu0 %521, %v391
    %v523 = vpop.permute.xlu0 %522
    %v525 = vmul.f32 %v494, %v523
    %v526 = vmul.f32 %v495, %v523
    %v527 = vmul.f32 %v496, %v523
    %531 = vrot.lane.b32.xlu0 %v525, 126
    %v532 = vpop.permute.xlu0 %531
    %533 = vrot.lane.b32.xlu0 %v526, 126
    %v534 = vpop.permute.xlu0 %533
    %535 = vrot.lane.b32.xlu0 %v527, 126
    %v536 = vpop.permute.xlu0 %535
    %v537 = vsel %vm155, %v532, %v534
    %v538 = vsel %vm155, %v534, %v536
    %v542 = vadd.f32 %v400, %v537
    %v543 = vadd.f32 %v401, %v538
    %v544 = vadd.f32 %v402, %v536
    %545 = vset.pattern.permute.xlu0 7
    %546 = vperm.xlu0 %545, %v104
    %v547 = vpop.permute.xlu0 %546
    %v549 = vmul.f32 %v494, %v547
    %v550 = vmul.f32 %v495, %v547
    %v551 = vmul.f32 %v496, %v547
    %555 = vrot.lane.b32.xlu0 %v549, 92
    %v556 = vpop.permute.xlu0 %555
    %557 = vrot.lane.b32.xlu0 %v550, 92
    %v558 = vpop.permute.xlu0 %557
    %559 = vrot.lane.b32.xlu0 %v551, 92
    %v560 = vpop.permute.xlu0 %559
    %v561 = vsel %vm323, %v556, %v558
    %v562 = vsel %vm323, %v558, %v560
    %v566 = vadd.f32 %v424, %v561
    %v567 = vadd.f32 %v425, %v562
    %v568 = vadd.f32 %v426, %v560
    %s569 = scalar_lea.vmem %s2, 17
    %v570 = vld [vmem:[%s569] ss:$8 sm:$0x3]
    %v572 = vlaneseq
    %v573 = vshrl.u32 %v572, 7
    %v574 = vsub.s32 0, %v573
    %v575 = vrot.slane %v570, %v574
    %v576 = vlaneseq
    %v577 = vshrl.u32 %v576, 7
    %v578 = vsub.s32 1, %v577
    %v579 = vrot.slane %v570, %v578
    %580 = vrot.lane.b32.xlu0 %v575, 97
    %v581 = vpop.permute.xlu0 %580
    %582 = vrot.lane.b32.xlu0 %v579, 97
    %v583 = vpop.permute.xlu0 %582
    %vm584 = vcmask 793600
    %v585 = vsel %vm584, %v581, %v583
    %v589 = vmul.f32 %v79, %v581
    %v590 = vmul.f32 %v80, %v585
    %v591 = vmul.f32 %v81, %v583
    %592 = vset.pattern.permute.xlu0 3
    %593 = vperm.xlu0 %592, %v379
    %v594 = vpop.permute.xlu0 %593
    %v596 = vmul.f32 %v589, %v594
    %v597 = vmul.f32 %v590, %v594
    %v598 = vmul.f32 %v591, %v594
    %602 = vrot.lane.b32.xlu0 %v596, 125
    %v603 = vpop.permute.xlu0 %602
    %604 = vrot.lane.b32.xlu0 %v597, 125
    %v605 = vpop.permute.xlu0 %604
    %606 = vrot.lane.b32.xlu0 %v598, 125
    %v607 = vpop.permute.xlu0 %606
    %vm608 = vcmask 1022976
    %v609 = vsel %vm608, %v603, %v605
    %v610 = vsel %vm608, %v605, %v607
    %v614 = vadd.f32 %v518, %v609
    %v615 = vadd.f32 %v519, %v610
    %v616 = vadd.f32 %v520, %v607
    %s617 = scalar_lea.vmem %s2, 18
    %v618 = vld [vmem:[%s617] ss:$8 sm:$0x3]
    %v620 = vlaneseq
    %v621 = vshrl.u32 %v620, 7
    %v622 = vsub.s32 0, %v621
    %v623 = vrot.slane %v618, %v622
    %v624 = vlaneseq
    %v625 = vshrl.u32 %v624, 7
    %v626 = vsub.s32 1, %v625
    %v627 = vrot.slane %v618, %v626
    %628 = vrot.lane.b32.xlu0 %v623, 98
    %v629 = vpop.permute.xlu0 %628
    %630 = vrot.lane.b32.xlu0 %v627, 98
    %v631 = vpop.permute.xlu0 %630
    %vm632 = vcmask 801792
    %v633 = vsel %vm632, %v629, %v631
    %v637 = vmul.f32 %v79, %v629
    %v638 = vmul.f32 %v80, %v633
    %v639 = vmul.f32 %v81, %v631
    %640 = vset.pattern.permute.xlu0 4
    %641 = vperm.xlu0 %640, %v379
    %v642 = vpop.permute.xlu0 %641
    %v644 = vmul.f32 %v637, %v642
    %v645 = vmul.f32 %v638, %v642
    %v646 = vmul.f32 %v639, %v642
    %650 = vrot.lane.b32.xlu0 %v644, 124
    %v651 = vpop.permute.xlu0 %650
    %652 = vrot.lane.b32.xlu0 %v645, 124
    %v653 = vpop.permute.xlu0 %652
    %654 = vrot.lane.b32.xlu0 %v646, 124
    %v655 = vpop.permute.xlu0 %654
    %v656 = vsel %vm203, %v651, %v653
    %v657 = vsel %vm203, %v653, %v655
    %v661 = vadd.f32 %v614, %v656
    %v662 = vadd.f32 %v615, %v657
    %v663 = vadd.f32 %v616, %v655
    %664 = vset.pattern.permute.xlu0 2
    %665 = vperm.xlu0 %664, %v391
    %v666 = vpop.permute.xlu0 %665
    %v668 = vmul.f32 %v637, %v666
    %v669 = vmul.f32 %v638, %v666
    %v670 = vmul.f32 %v639, %v666
    %674 = vrot.lane.b32.xlu0 %v668, 124
    %v675 = vpop.permute.xlu0 %674
    %676 = vrot.lane.b32.xlu0 %v669, 124
    %v677 = vpop.permute.xlu0 %676
    %678 = vrot.lane.b32.xlu0 %v670, 124
    %v679 = vpop.permute.xlu0 %678
    %v680 = vsel %vm203, %v675, %v677
    %v681 = vsel %vm203, %v677, %v679
    %v685 = vadd.f32 %v542, %v680
    %v686 = vadd.f32 %v543, %v681
    %v687 = vadd.f32 %v544, %v679
    %688 = vset.pattern.permute.xlu0 8
    %689 = vperm.xlu0 %688, %v104
    %v690 = vpop.permute.xlu0 %689
    %v692 = vmul.f32 %v637, %v690
    %v693 = vmul.f32 %v638, %v690
    %v694 = vmul.f32 %v639, %v690
    %698 = vrot.lane.b32.xlu0 %v692, 90
    %v699 = vpop.permute.xlu0 %698
    %700 = vrot.lane.b32.xlu0 %v693, 90
    %v701 = vpop.permute.xlu0 %700
    %702 = vrot.lane.b32.xlu0 %v694, 90
    %v703 = vpop.permute.xlu0 %702
    %vm704 = vcmask 736256
    %v705 = vsel %vm704, %v699, %v701
    %v706 = vsel %vm704, %v701, %v703
    %v710 = vadd.f32 %v566, %v705
    %v711 = vadd.f32 %v567, %v706
    %v712 = vadd.f32 %v568, %v703
    %s713 = scalar_lea.vmem %s2, 19
    %v714 = vld [vmem:[%s713] ss:$8 sm:$0x3]
    %v716 = vlaneseq
    %v717 = vshrl.u32 %v716, 7
    %v718 = vsub.s32 0, %v717
    %v719 = vrot.slane %v714, %v718
    %v720 = vlaneseq
    %v721 = vshrl.u32 %v720, 7
    %v722 = vsub.s32 1, %v721
    %v723 = vrot.slane %v714, %v722
    %724 = vrot.lane.b32.xlu0 %v719, 100
    %v725 = vpop.permute.xlu0 %724
    %726 = vrot.lane.b32.xlu0 %v723, 100
    %v727 = vpop.permute.xlu0 %726
    %vm728 = vcmask 818176
    %v729 = vsel %vm728, %v725, %v727
    %v733 = vmul.f32 %v79, %v725
    %v734 = vmul.f32 %v80, %v729
    %v735 = vmul.f32 %v81, %v727
    %736 = vset.pattern.permute.xlu0 9
    %737 = vperm.xlu0 %736, %v104
    %v738 = vpop.permute.xlu0 %737
    %v740 = vmul.f32 %v733, %v738
    %v741 = vmul.f32 %v734, %v738
    %v742 = vmul.f32 %v735, %v738
    %746 = vrot.lane.b32.xlu0 %v740, 88
    %v747 = vpop.permute.xlu0 %746
    %748 = vrot.lane.b32.xlu0 %v741, 88
    %v749 = vpop.permute.xlu0 %748
    %750 = vrot.lane.b32.xlu0 %v742, 88
    %v751 = vpop.permute.xlu0 %750
    %vm752 = vcmask 719872
    %v753 = vsel %vm752, %v747, %v749
    %v754 = vsel %vm752, %v749, %v751
    %v758 = vadd.f32 %v710, %v753
    %v759 = vadd.f32 %v711, %v754
    %v760 = vadd.f32 %v712, %v751
    %s761 = scalar_lea.vmem %s2, 20
    %v762 = vld [vmem:[%s761] ss:$8 sm:$0x3]
    %v764 = vlaneseq
    %v765 = vshrl.u32 %v764, 7
    %v766 = vsub.s32 0, %v765
    %v767 = vrot.slane %v762, %v766
    %v768 = vlaneseq
    %v769 = vshrl.u32 %v768, 7
    %v770 = vsub.s32 1, %v769
    %v771 = vrot.slane %v762, %v770
    %772 = vrot.lane.b32.xlu0 %v767, 110
    %v773 = vpop.permute.xlu0 %772
    %774 = vrot.lane.b32.xlu0 %v771, 110
    %v775 = vpop.permute.xlu0 %774
    %vm776 = vcmask 900096
    %v777 = vsel %vm776, %v773, %v775
    %v781 = vmul.f32 %v79, %v773
    %v782 = vmul.f32 %v80, %v777
    %v783 = vmul.f32 %v81, %v775
    %784 = vset.pattern.permute.xlu0 5
    %785 = vperm.xlu0 %784, %v379
    %v786 = vpop.permute.xlu0 %785
    %v788 = vmul.f32 %v781, %v786
    %v789 = vmul.f32 %v782, %v786
    %v790 = vmul.f32 %v783, %v786
    %794 = vrot.lane.b32.xlu0 %v788, 112
    %v795 = vpop.permute.xlu0 %794
    %796 = vrot.lane.b32.xlu0 %v789, 112
    %v797 = vpop.permute.xlu0 %796
    %798 = vrot.lane.b32.xlu0 %v790, 112
    %v799 = vpop.permute.xlu0 %798
    %vm800 = vcmask 916480
    %v801 = vsel %vm800, %v795, %v797
    %v802 = vsel %vm800, %v797, %v799
    %v806 = vadd.f32 %v661, %v801
    %v807 = vadd.f32 %v662, %v802
    %v808 = vadd.f32 %v663, %v799
    %s809 = scalar_lea.vmem %s2, 21
    %v810 = vld [vmem:[%s809] ss:$8 sm:$0x3]
    %v812 = vlaneseq
    %v813 = vshrl.u32 %v812, 7
    %v814 = vsub.s32 0, %v813
    %v815 = vrot.slane %v810, %v814
    %v816 = vlaneseq
    %v817 = vshrl.u32 %v816, 7
    %v818 = vsub.s32 1, %v817
    %v819 = vrot.slane %v810, %v818
    %820 = vrot.lane.b32.xlu0 %v815, 111
    %v821 = vpop.permute.xlu0 %820
    %822 = vrot.lane.b32.xlu0 %v819, 111
    %v823 = vpop.permute.xlu0 %822
    %vm824 = vcmask 908288
    %v825 = vsel %vm824, %v821, %v823
    %v829 = vmul.f32 %v79, %v821
    %v830 = vmul.f32 %v80, %v825
    %v831 = vmul.f32 %v81, %v823
    %v832 = vld [vmem:[%s3] ss:$8 sm:$0x3]
    %v834 = vlaneseq
    %v835 = vshrl.u32 %v834, 7
    %v836 = vsub.s32 0, %v835
    %v837 = vrot.slane %v832, %v836
    %v838 = vlaneseq
    %v839 = vshrl.u32 %v838, 7
    %v840 = vsub.s32 1, %v839
    %v841 = vrot.slane %v832, %v840
    %842 = vrot.lane.b32.xlu0 %v837, 111
    %v843 = vpop.permute.xlu0 %842
    %844 = vrot.lane.b32.xlu0 %v841, 111
    %v845 = vpop.permute.xlu0 %844
    %v846 = vsel %vm824, %v843, %v845
    %v850 = vadd.f32 %v829, %v843
    %v851 = vadd.f32 %v830, %v846
    %v852 = vadd.f32 %v831, %v845
    %v853 = vadd.f32 %v829, 0.0
    %v854 = vadd.f32 %v830, 0.0
    %v855 = vadd.f32 %v831, 0.0
    %v856 = vld [vmem:[%s6] sm:$0xff]
    %858 = vset.pattern.permute.xlu0 0
    %859 = vperm.xlu0 %858, %v856
    %v860 = vpop.permute.xlu0 %859
    %v862 = vmul.f32 %v829, %v860
    %v863 = vmul.f32 %v830, %v860
    %v864 = vmul.f32 %v831, %v860
    %v865 = vadd.f32 %v862, 0.0
    %v866 = vadd.f32 %v863, 0.0
    %v867 = vadd.f32 %v864, 0.0
    %868 = vset.pattern.permute.xlu0 6
    %869 = vperm.xlu0 %868, %v379
    %v870 = vpop.permute.xlu0 %869
    %v872 = vmul.f32 %v829, %v870
    %v873 = vmul.f32 %v830, %v870
    %v874 = vmul.f32 %v831, %v870
    %878 = vrot.lane.b32.xlu0 %v872, 111
    %v879 = vpop.permute.xlu0 %878
    %880 = vrot.lane.b32.xlu0 %v873, 111
    %v881 = vpop.permute.xlu0 %880
    %882 = vrot.lane.b32.xlu0 %v874, 111
    %v883 = vpop.permute.xlu0 %882
    %v884 = vsel %vm824, %v879, %v881
    %v885 = vsel %vm824, %v881, %v883
    %v889 = vadd.f32 %v806, %v884
    %v890 = vadd.f32 %v807, %v885
    %v891 = vadd.f32 %v808, %v883
    %s892 = scalar_lea.vmem %s2, 22
    %v893 = vld [vmem:[%s892] ss:$8 sm:$0x3]
    %v895 = vlaneseq
    %v896 = vshrl.u32 %v895, 7
    %v897 = vsub.s32 0, %v896
    %v898 = vrot.slane %v893, %v897
    %v899 = vlaneseq
    %v900 = vshrl.u32 %v899, 7
    %v901 = vsub.s32 1, %v900
    %v902 = vrot.slane %v893, %v901
    %903 = vrot.lane.b32.xlu0 %v898, 112
    %v904 = vpop.permute.xlu0 %903
    %905 = vrot.lane.b32.xlu0 %v902, 112
    %v906 = vpop.permute.xlu0 %905
    %v907 = vsel %vm800, %v904, %v906
    %v911 = vmul.f32 %v79, %v904
    %v912 = vmul.f32 %v80, %v907
    %v913 = vmul.f32 %v81, %v906
    %s914 = scalar_lea.vmem %s3, 1
    %v915 = vld [vmem:[%s914] ss:$8 sm:$0x3]
    %v917 = vlaneseq
    %v918 = vshrl.u32 %v917, 7
    %v919 = vsub.s32 0, %v918
    %v920 = vrot.slane %v915, %v919
    %v921 = vlaneseq
    %v922 = vshrl.u32 %v921, 7
    %v923 = vsub.s32 1, %v922
    %v924 = vrot.slane %v915, %v923
    %925 = vrot.lane.b32.xlu0 %v920, 112
    %v926 = vpop.permute.xlu0 %925
    %927 = vrot.lane.b32.xlu0 %v924, 112
    %v928 = vpop.permute.xlu0 %927
    %v929 = vsel %vm800, %v926, %v928
    %v933 = vadd.f32 %v911, %v926
    %v934 = vadd.f32 %v912, %v929
    %v935 = vadd.f32 %v913, %v928
    %939 = vrot.lane.b32.xlu0 %v933, 127
    %v940 = vpop.permute.xlu0 %939
    %941 = vrot.lane.b32.xlu0 %v934, 127
    %v942 = vpop.permute.xlu0 %941
    %943 = vrot.lane.b32.xlu0 %v935, 127
    %v944 = vpop.permute.xlu0 %943
    %v945 = vsel %vm466, %v940, %v942
    %v946 = vsel %vm466, %v942, %v944
    %v950 = vmax.f32 %v850, %v945
    %v951 = vmax.f32 %v851, %v946
    %v952 = vmax.f32 %v852, %v944
    %956 = vrot.lane.b32.xlu0 %v911, 127
    %v957 = vpop.permute.xlu0 %956
    %958 = vrot.lane.b32.xlu0 %v912, 127
    %v959 = vpop.permute.xlu0 %958
    %960 = vrot.lane.b32.xlu0 %v913, 127
    %v961 = vpop.permute.xlu0 %960
    %v962 = vsel %vm466, %v957, %v959
    %v963 = vsel %vm466, %v959, %v961
    %v967 = vadd.f32 %v853, %v962
    %v968 = vadd.f32 %v854, %v963
    %v969 = vadd.f32 %v855, %v961
    %970 = vset.pattern.permute.xlu0 1
    %971 = vperm.xlu0 %970, %v856
    %v972 = vpop.permute.xlu0 %971
    %v974 = vmul.f32 %v911, %v972
    %v975 = vmul.f32 %v912, %v972
    %v976 = vmul.f32 %v913, %v972
    %980 = vrot.lane.b32.xlu0 %v974, 127
    %v981 = vpop.permute.xlu0 %980
    %982 = vrot.lane.b32.xlu0 %v975, 127
    %v983 = vpop.permute.xlu0 %982
    %984 = vrot.lane.b32.xlu0 %v976, 127
    %v985 = vpop.permute.xlu0 %984
    %v986 = vsel %vm466, %v981, %v983
    %v987 = vsel %vm466, %v983, %v985
    %v991 = vadd.f32 %v865, %v986
    %v992 = vadd.f32 %v866, %v987
    %v993 = vadd.f32 %v867, %v985
    %994 = vset.pattern.permute.xlu0 7
    %995 = vperm.xlu0 %994, %v379
    %v996 = vpop.permute.xlu0 %995
    %v998 = vmul.f32 %v911, %v996
    %v999 = vmul.f32 %v912, %v996
    %v1000 = vmul.f32 %v913, %v996
    %1004 = vrot.lane.b32.xlu0 %v998, 110
    %v1005 = vpop.permute.xlu0 %1004
    %1006 = vrot.lane.b32.xlu0 %v999, 110
    %v1007 = vpop.permute.xlu0 %1006
    %1008 = vrot.lane.b32.xlu0 %v1000, 110
    %v1009 = vpop.permute.xlu0 %1008
    %v1010 = vsel %vm776, %v1005, %v1007
    %v1011 = vsel %vm776, %v1007, %v1009
    %v1015 = vadd.f32 %v889, %v1010
    %v1016 = vadd.f32 %v890, %v1011
    %v1017 = vadd.f32 %v891, %v1009
    %s1018 = scalar_lea.vmem %s2, 23
    %v1019 = vld [vmem:[%s1018] ss:$8 sm:$0x3]
    %v1021 = vlaneseq
    %v1022 = vshrl.u32 %v1021, 7
    %v1023 = vsub.s32 0, %v1022
    %v1024 = vrot.slane %v1019, %v1023
    %v1025 = vlaneseq
    %v1026 = vshrl.u32 %v1025, 7
    %v1027 = vsub.s32 1, %v1026
    %v1028 = vrot.slane %v1019, %v1027
    %1029 = vrot.lane.b32.xlu0 %v1024, 113
    %v1030 = vpop.permute.xlu0 %1029
    %1031 = vrot.lane.b32.xlu0 %v1028, 113
    %v1032 = vpop.permute.xlu0 %1031
    %vm1033 = vcmask 924672
    %v1034 = vsel %vm1033, %v1030, %v1032
    %v1038 = vmul.f32 %v79, %v1030
    %v1039 = vmul.f32 %v80, %v1034
    %v1040 = vmul.f32 %v81, %v1032
    %s1041 = scalar_lea.vmem %s3, 2
    %v1042 = vld [vmem:[%s1041] ss:$8 sm:$0x3]
    %v1044 = vlaneseq
    %v1045 = vshrl.u32 %v1044, 7
    %v1046 = vsub.s32 0, %v1045
    %v1047 = vrot.slane %v1042, %v1046
    %v1048 = vlaneseq
    %v1049 = vshrl.u32 %v1048, 7
    %v1050 = vsub.s32 1, %v1049
    %v1051 = vrot.slane %v1042, %v1050
    %1052 = vrot.lane.b32.xlu0 %v1047, 113
    %v1053 = vpop.permute.xlu0 %1052
    %1054 = vrot.lane.b32.xlu0 %v1051, 113
    %v1055 = vpop.permute.xlu0 %1054
    %v1056 = vsel %vm1033, %v1053, %v1055
    %v1060 = vadd.f32 %v1038, %v1053
    %v1061 = vadd.f32 %v1039, %v1056
    %v1062 = vadd.f32 %v1040, %v1055
    %1066 = vrot.lane.b32.xlu0 %v1060, 126
    %v1067 = vpop.permute.xlu0 %1066
    %1068 = vrot.lane.b32.xlu0 %v1061, 126
    %v1069 = vpop.permute.xlu0 %1068
    %1070 = vrot.lane.b32.xlu0 %v1062, 126
    %v1071 = vpop.permute.xlu0 %1070
    %v1072 = vsel %vm155, %v1067, %v1069
    %v1073 = vsel %vm155, %v1069, %v1071
    %v1077 = vmax.f32 %v950, %v1072
    %v1078 = vmax.f32 %v951, %v1073
    %v1079 = vmax.f32 %v952, %v1071
    %1083 = vrot.lane.b32.xlu0 %v1038, 126
    %v1084 = vpop.permute.xlu0 %1083
    %1085 = vrot.lane.b32.xlu0 %v1039, 126
    %v1086 = vpop.permute.xlu0 %1085
    %1087 = vrot.lane.b32.xlu0 %v1040, 126
    %v1088 = vpop.permute.xlu0 %1087
    %v1089 = vsel %vm155, %v1084, %v1086
    %v1090 = vsel %vm155, %v1086, %v1088
    %v1094 = vadd.f32 %v967, %v1089
    %v1095 = vadd.f32 %v968, %v1090
    %v1096 = vadd.f32 %v969, %v1088
    %1097 = vset.pattern.permute.xlu0 2
    %1098 = vperm.xlu0 %1097, %v856
    %v1099 = vpop.permute.xlu0 %1098
    %v1101 = vmul.f32 %v1038, %v1099
    %v1102 = vmul.f32 %v1039, %v1099
    %v1103 = vmul.f32 %v1040, %v1099
    %1107 = vrot.lane.b32.xlu0 %v1101, 126
    %v1108 = vpop.permute.xlu0 %1107
    %1109 = vrot.lane.b32.xlu0 %v1102, 126
    %v1110 = vpop.permute.xlu0 %1109
    %1111 = vrot.lane.b32.xlu0 %v1103, 126
    %v1112 = vpop.permute.xlu0 %1111
    %v1113 = vsel %vm155, %v1108, %v1110
    %v1114 = vsel %vm155, %v1110, %v1112
    %v1118 = vadd.f32 %v991, %v1113
    %v1119 = vadd.f32 %v992, %v1114
    %v1120 = vadd.f32 %v993, %v1112
    %1121 = vset.pattern.permute.xlu0 8
    %1122 = vperm.xlu0 %1121, %v379
    %v1123 = vpop.permute.xlu0 %1122
    %v1125 = vmul.f32 %v1038, %v1123
    %v1126 = vmul.f32 %v1039, %v1123
    %v1127 = vmul.f32 %v1040, %v1123
    %1131 = vrot.lane.b32.xlu0 %v1125, 109
    %v1132 = vpop.permute.xlu0 %1131
    %1133 = vrot.lane.b32.xlu0 %v1126, 109
    %v1134 = vpop.permute.xlu0 %1133
    %1135 = vrot.lane.b32.xlu0 %v1127, 109
    %v1136 = vpop.permute.xlu0 %1135
    %vm1137 = vcmask 891904
    %v1138 = vsel %vm1137, %v1132, %v1134
    %v1139 = vsel %vm1137, %v1134, %v1136
    %v1143 = vadd.f32 %v1015, %v1138
    %v1144 = vadd.f32 %v1016, %v1139
    %v1145 = vadd.f32 %v1017, %v1136
    %s1146 = scalar_lea.vmem %s2, 32
    %v1147 = vld [vmem:[%s1146] ss:$8 sm:$0x3]
    %v1149 = vlaneseq
    %v1150 = vshrl.u32 %v1149, 7
    %v1151 = vsub.s32 0, %v1150
    %v1152 = vrot.slane %v1147, %v1151
    %v1153 = vlaneseq
    %v1154 = vshrl.u32 %v1153, 7
    %v1155 = vsub.s32 1, %v1154
    %v1156 = vrot.slane %v1147, %v1155
    %1157 = vrot.lane.b32.xlu0 %v1152, 114
    %v1158 = vpop.permute.xlu0 %1157
    %1159 = vrot.lane.b32.xlu0 %v1156, 114
    %v1160 = vpop.permute.xlu0 %1159
    %vm1161 = vcmask 932864
    %v1162 = vsel %vm1161, %v1158, %v1160
    %v1166 = vmul.f32 %v79, %v1158
    %v1167 = vmul.f32 %v80, %v1162
    %v1168 = vmul.f32 %v81, %v1160
    %1169 = vset.pattern.permute.xlu0 9
    %1170 = vperm.xlu0 %1169, %v379
    %v1171 = vpop.permute.xlu0 %1170
    %v1173 = vmul.f32 %v1166, %v1171
    %v1174 = vmul.f32 %v1167, %v1171
    %v1175 = vmul.f32 %v1168, %v1171
    %1179 = vrot.lane.b32.xlu0 %v1173, 108
    %v1180 = vpop.permute.xlu0 %1179
    %1181 = vrot.lane.b32.xlu0 %v1174, 108
    %v1182 = vpop.permute.xlu0 %1181
    %1183 = vrot.lane.b32.xlu0 %v1175, 108
    %v1184 = vpop.permute.xlu0 %1183
    %vm1185 = vcmask 883712
    %v1186 = vsel %vm1185, %v1180, %v1182
    %v1187 = vsel %vm1185, %v1182, %v1184
    %v1191 = vadd.f32 %v1143, %v1186
    %v1192 = vadd.f32 %v1144, %v1187
    %v1193 = vadd.f32 %v1145, %v1184
    %s1194 = scalar_lea.vmem %s2, 33
    %v1195 = vld [vmem:[%s1194] ss:$8 sm:$0x3]
    %v1197 = vlaneseq
    %v1198 = vshrl.u32 %v1197, 7
    %v1199 = vsub.s32 0, %v1198
    %v1200 = vrot.slane %v1195, %v1199
    %v1201 = vlaneseq
    %v1202 = vshrl.u32 %v1201, 7
    %v1203 = vsub.s32 1, %v1202
    %v1204 = vrot.slane %v1195, %v1203
    %1205 = vrot.lane.b32.xlu0 %v1200, 124
    %v1206 = vpop.permute.xlu0 %1205
    %1207 = vrot.lane.b32.xlu0 %v1204, 124
    %v1208 = vpop.permute.xlu0 %1207
    %v1209 = vsel %vm203, %v1206, %v1208
    %v1213 = vmul.f32 %v79, %v1206
    %v1214 = vmul.f32 %v80, %v1209
    %v1215 = vmul.f32 %v81, %v1208
    %1216 = vset.pattern.permute.xlu0 10
    %1217 = vperm.xlu0 %1216, %v104
    %v1218 = vpop.permute.xlu0 %1217
    %v1220 = vmul.f32 %v1213, %v1218
    %v1221 = vmul.f32 %v1214, %v1218
    %v1222 = vmul.f32 %v1215, %v1218
    %1226 = vrot.lane.b32.xlu0 %v1220, 64
    %v1227 = vpop.permute.xlu0 %1226
    %1228 = vrot.lane.b32.xlu0 %v1221, 64
    %v1229 = vpop.permute.xlu0 %1228
    %1230 = vrot.lane.b32.xlu0 %v1222, 64
    %v1231 = vpop.permute.xlu0 %1230
    %v1232 = vsel %vm179, %v1227, %v1229
    %v1233 = vsel %vm179, %v1229, %v1231
    %v1237 = vadd.f32 %v758, %v1232
    %v1238 = vadd.f32 %v759, %v1233
    %v1239 = vadd.f32 %v760, %v1231
    %s1240 = scalar_lea.vmem %s2, 34
    %v1241 = vld [vmem:[%s1240] ss:$8 sm:$0x3]
    %v1243 = vlaneseq
    %v1244 = vshrl.u32 %v1243, 7
    %v1245 = vsub.s32 0, %v1244
    %v1246 = vrot.slane %v1241, %v1245
    %v1247 = vlaneseq
    %v1248 = vshrl.u32 %v1247, 7
    %v1249 = vsub.s32 1, %v1248
    %v1250 = vrot.slane %v1241, %v1249
    %1251 = vrot.lane.b32.xlu0 %v1246, 126
    %v1252 = vpop.permute.xlu0 %1251
    %1253 = vrot.lane.b32.xlu0 %v1250, 126
    %v1254 = vpop.permute.xlu0 %1253
    %v1255 = vsel %vm155, %v1252, %v1254
    %v1259 = vmul.f32 %v79, %v1252
    %v1260 = vmul.f32 %v80, %v1255
    %v1261 = vmul.f32 %v81, %v1254
    %1262 = vset.pattern.permute.xlu0 10
    %1263 = vperm.xlu0 %1262, %v379
    %v1264 = vpop.permute.xlu0 %1263
    %v1266 = vmul.f32 %v1259, %v1264
    %v1267 = vmul.f32 %v1260, %v1264
    %v1268 = vmul.f32 %v1261, %v1264
    %1272 = vrot.lane.b32.xlu0 %v1266, 96
    %v1273 = vpop.permute.xlu0 %1272
    %1274 = vrot.lane.b32.xlu0 %v1267, 96
    %v1275 = vpop.permute.xlu0 %1274
    %1276 = vrot.lane.b32.xlu0 %v1268, 96
    %v1277 = vpop.permute.xlu0 %1276
    %v1278 = vsel %vm347, %v1273, %v1275
    %v1279 = vsel %vm347, %v1275, %v1277
    %v1283 = vadd.f32 %v1191, %v1278
    %v1284 = vadd.f32 %v1192, %v1279
    %v1285 = vadd.f32 %v1193, %v1277
    %1286 = vset.pattern.permute.xlu0 3
    %1287 = vperm.xlu0 %1286, %v391
    %v1288 = vpop.permute.xlu0 %1287
    %v1290 = vmul.f32 %v1259, %v1288
    %v1291 = vmul.f32 %v1260, %v1288
    %v1292 = vmul.f32 %v1261, %v1288
    %1296 = vrot.lane.b32.xlu0 %v1290, 96
    %v1297 = vpop.permute.xlu0 %1296
    %1298 = vrot.lane.b32.xlu0 %v1291, 96
    %v1299 = vpop.permute.xlu0 %1298
    %1300 = vrot.lane.b32.xlu0 %v1292, 96
    %v1301 = vpop.permute.xlu0 %1300
    %v1302 = vsel %vm347, %v1297, %v1299
    %v1303 = vsel %vm347, %v1299, %v1301
    %v1307 = vadd.f32 %v685, %v1302
    %v1308 = vadd.f32 %v686, %v1303
    %v1309 = vadd.f32 %v687, %v1301
    %1310 = vset.pattern.permute.xlu0 11
    %1311 = vperm.xlu0 %1310, %v104
    %v1312 = vpop.permute.xlu0 %1311
    %v1314 = vmul.f32 %v1259, %v1312
    %v1315 = vmul.f32 %v1260, %v1312
    %v1316 = vmul.f32 %v1261, %v1312
    %1320 = vrot.lane.b32.xlu0 %v1314, 62
    %v1321 = vpop.permute.xlu0 %1320
    %1322 = vrot.lane.b32.xlu0 %v1315, 62
    %v1323 = vpop.permute.xlu0 %1322
    %1324 = vrot.lane.b32.xlu0 %v1316, 62
    %v1325 = vpop.permute.xlu0 %1324
    %v1326 = vsel %vm131, %v1321, %v1323
    %v1327 = vsel %vm131, %v1323, %v1325
    %v1331 = vadd.f32 %v1237, %v1326
    %v1332 = vadd.f32 %v1238, %v1327
    %v1333 = vadd.f32 %v1239, %v1325
    %s1334 = scalar_lea.vmem %s2, 35
    %v1335 = vld [vmem:[%s1334] ss:$8 sm:$0x3]
    %v1337 = vlaneseq
    %v1338 = vshrl.u32 %v1337, 7
    %v1339 = vsub.s32 0, %v1338
    %v1340 = vrot.slane %v1335, %v1339
    %v1341 = vlaneseq
    %v1342 = vshrl.u32 %v1341, 7
    %v1343 = vsub.s32 1, %v1342
    %v1344 = vrot.slane %v1335, %v1343
    %1345 = vrot.lane.b32.xlu0 %v1340, 127
    %v1346 = vpop.permute.xlu0 %1345
    %1347 = vrot.lane.b32.xlu0 %v1344, 127
    %v1348 = vpop.permute.xlu0 %1347
    %v1349 = vsel %vm466, %v1346, %v1348
    %v1353 = vmul.f32 %v79, %v1346
    %v1354 = vmul.f32 %v80, %v1349
    %v1355 = vmul.f32 %v81, %v1348
    %s1356 = scalar_lea.vmem %s3, 3
    %v1357 = vld [vmem:[%s1356] ss:$8 sm:$0x3]
    %v1359 = vlaneseq
    %v1360 = vshrl.u32 %v1359, 7
    %v1361 = vsub.s32 0, %v1360
    %v1362 = vrot.slane %v1357, %v1361
    %v1363 = vlaneseq
    %v1364 = vshrl.u32 %v1363, 7
    %v1365 = vsub.s32 1, %v1364
    %v1366 = vrot.slane %v1357, %v1365
    %1367 = vrot.lane.b32.xlu0 %v1362, 127
    %v1368 = vpop.permute.xlu0 %1367
    %1369 = vrot.lane.b32.xlu0 %v1366, 127
    %v1370 = vpop.permute.xlu0 %1369
    %v1371 = vsel %vm466, %v1368, %v1370
    %v1375 = vadd.f32 %v1353, %v1368
    %v1376 = vadd.f32 %v1354, %v1371
    %v1377 = vadd.f32 %v1355, %v1370
    %1381 = vrot.lane.b32.xlu0 %v1375, 112
    %v1382 = vpop.permute.xlu0 %1381
    %1383 = vrot.lane.b32.xlu0 %v1376, 112
    %v1384 = vpop.permute.xlu0 %1383
    %1385 = vrot.lane.b32.xlu0 %v1377, 112
    %v1386 = vpop.permute.xlu0 %1385
    %v1387 = vsel %vm800, %v1382, %v1384
    %v1388 = vsel %vm800, %v1384, %v1386
    %v1392 = vmax.f32 %v1077, %v1387
    %v1393 = vmax.f32 %v1078, %v1388
    %v1394 = vmax.f32 %v1079, %v1386
    %1398 = vrot.lane.b32.xlu0 %v1353, 112
    %v1399 = vpop.permute.xlu0 %1398
    %1400 = vrot.lane.b32.xlu0 %v1354, 112
    %v1401 = vpop.permute.xlu0 %1400
    %1402 = vrot.lane.b32.xlu0 %v1355, 112
    %v1403 = vpop.permute.xlu0 %1402
    %v1404 = vsel %vm800, %v1399, %v1401
    %v1405 = vsel %vm800, %v1401, %v1403
    %v1409 = vadd.f32 %v1094, %v1404
    %v1410 = vadd.f32 %v1095, %v1405
    %v1411 = vadd.f32 %v1096, %v1403
    %1412 = vset.pattern.permute.xlu0 3
    %1413 = vperm.xlu0 %1412, %v856
    %v1414 = vpop.permute.xlu0 %1413
    %v1416 = vmul.f32 %v1353, %v1414
    %v1417 = vmul.f32 %v1354, %v1414
    %v1418 = vmul.f32 %v1355, %v1414
    %1422 = vrot.lane.b32.xlu0 %v1416, 112
    %v1423 = vpop.permute.xlu0 %1422
    %1424 = vrot.lane.b32.xlu0 %v1417, 112
    %v1425 = vpop.permute.xlu0 %1424
    %1426 = vrot.lane.b32.xlu0 %v1418, 112
    %v1427 = vpop.permute.xlu0 %1426
    %v1428 = vsel %vm800, %v1423, %v1425
    %v1429 = vsel %vm800, %v1425, %v1427
    %v1433 = vadd.f32 %v1118, %v1428
    %v1434 = vadd.f32 %v1119, %v1429
    %v1435 = vadd.f32 %v1120, %v1427
    %1436 = vset.pattern.permute.xlu0 11
    %1437 = vperm.xlu0 %1436, %v379
    %v1438 = vpop.permute.xlu0 %1437
    %v1440 = vmul.f32 %v1353, %v1438
    %v1441 = vmul.f32 %v1354, %v1438
    %v1442 = vmul.f32 %v1355, %v1438
    %1446 = vrot.lane.b32.xlu0 %v1440, 95
    %v1447 = vpop.permute.xlu0 %1446
    %1448 = vrot.lane.b32.xlu0 %v1441, 95
    %v1449 = vpop.permute.xlu0 %1448
    %1450 = vrot.lane.b32.xlu0 %v1442, 95
    %v1451 = vpop.permute.xlu0 %1450
    %v1452 = vsel %vm442, %v1447, %v1449
    %v1453 = vsel %vm442, %v1449, %v1451
    %v1457 = vadd.f32 %v1283, %v1452
    %v1458 = vadd.f32 %v1284, %v1453
    %v1459 = vadd.f32 %v1285, %v1451
    %s1460 = scalar_lea.vmem %s2, 36
    %v1461 = vld [vmem:[%s1460] ss:$8 sm:$0x3]
    %v1463 = vlaneseq
    %v1464 = vshrl.u32 %v1463, 7
    %v1465 = vsub.s32 0, %v1464
    %v1466 = vrot.slane %v1461, %v1465
    %v1467 = vlaneseq
    %v1468 = vshrl.u32 %v1467, 7
    %v1469 = vsub.s32 1, %v1468
    %v1470 = vrot.slane %v1461, %v1469
    %v1473 = vmul.f32 %v80, %v1466
    %v1474 = vmul.f32 %v81, %v1470
    %s1475 = scalar_lea.vmem %s3, 4
    %v1476 = vld [vmem:[%s1475] ss:$8 sm:$0x3]
    %v1478 = vlaneseq
    %v1479 = vshrl.u32 %v1478, 7
    %v1480 = vsub.s32 0, %v1479
    %v1481 = vrot.slane %v1476, %v1480
    %v1482 = vlaneseq
    %v1483 = vshrl.u32 %v1482, 7
    %v1484 = vsub.s32 1, %v1483
    %v1485 = vrot.slane %v1476, %v1484
    %v1488 = vadd.f32 %v1473, %v1481
    %v1489 = vadd.f32 %v1474, %v1485
    %1492 = vrot.lane.b32.xlu0 %v1488, 111
    %v1493 = vpop.permute.xlu0 %1492
    %1494 = vrot.lane.b32.xlu0 %v1489, 111
    %v1495 = vpop.permute.xlu0 %1494
    %v1496 = vsel %vm824, %v1493, %v1495
    %v1500 = vmax.f32 %v1392, %v1493
    %v1501 = vmax.f32 %v1393, %v1496
    %v1502 = vmax.f32 %v1394, %v1495
    %1505 = vrot.lane.b32.xlu0 %v1473, 111
    %v1506 = vpop.permute.xlu0 %1505
    %1507 = vrot.lane.b32.xlu0 %v1474, 111
    %v1508 = vpop.permute.xlu0 %1507
    %v1509 = vsel %vm824, %v1506, %v1508
    %v1513 = vadd.f32 %v1409, %v1506
    %v1514 = vadd.f32 %v1410, %v1509
    %v1515 = vadd.f32 %v1411, %v1508
    %1516 = vset.pattern.permute.xlu0 4
    %1517 = vperm.xlu0 %1516, %v856
    %v1518 = vpop.permute.xlu0 %1517
    %v1520 = vmul.f32 %v1473, %v1518
    %v1521 = vmul.f32 %v1474, %v1518
    %1524 = vrot.lane.b32.xlu0 %v1520, 111
    %v1525 = vpop.permute.xlu0 %1524
    %1526 = vrot.lane.b32.xlu0 %v1521, 111
    %v1527 = vpop.permute.xlu0 %1526
    %v1528 = vsel %vm824, %v1525, %v1527
    %v1532 = vadd.f32 %v1433, %v1525
    %v1533 = vadd.f32 %v1434, %v1528
    %v1534 = vadd.f32 %v1435, %v1527
    %1535 = vset.pattern.permute.xlu0 12
    %1536 = vperm.xlu0 %1535, %v379
    %v1537 = vpop.permute.xlu0 %1536
    %v1539 = vmul.f32 %v1473, %v1537
    %v1540 = vmul.f32 %v1474, %v1537
    %1543 = vrot.lane.b32.xlu0 %v1539, 94
    %v1544 = vpop.permute.xlu0 %1543
    %1545 = vrot.lane.b32.xlu0 %v1540, 94
    %v1546 = vpop.permute.xlu0 %1545
    %v1547 = vsel %vm371, %v1544, %v1546
    %v1551 = vadd.f32 %v1457, %v1544
    %v1552 = vadd.f32 %v1458, %v1547
    %v1553 = vadd.f32 %v1459, %v1546
    %1554 = vset.pattern.permute.xlu0 4
    %1555 = vperm.xlu0 %1554, %v391
    %v1556 = vpop.permute.xlu0 %1555
    %v1558 = vmul.f32 %v1473, %v1556
    %v1559 = vmul.f32 %v1474, %v1556
    %1562 = vrot.lane.b32.xlu0 %v1558, 94
    %v1563 = vpop.permute.xlu0 %1562
    %1564 = vrot.lane.b32.xlu0 %v1559, 94
    %v1565 = vpop.permute.xlu0 %1564
    %v1566 = vsel %vm371, %v1563, %v1565
    %v1570 = vadd.f32 %v1307, %v1563
    %v1571 = vadd.f32 %v1308, %v1566
    %v1572 = vadd.f32 %v1309, %v1565
    %1573 = vset.pattern.permute.xlu0 12
    %1574 = vperm.xlu0 %1573, %v104
    %v1575 = vpop.permute.xlu0 %1574
    %v1577 = vmul.f32 %v1473, %v1575
    %v1578 = vmul.f32 %v1474, %v1575
    %1581 = vrot.lane.b32.xlu0 %v1577, 60
    %v1582 = vpop.permute.xlu0 %1581
    %1583 = vrot.lane.b32.xlu0 %v1578, 60
    %v1584 = vpop.permute.xlu0 %1583
    %v1585 = vsel %vm96, %v1582, %v1584
    %v1589 = vadd.f32 %v1331, %v1582
    %v1590 = vadd.f32 %v1332, %v1585
    %v1591 = vadd.f32 %v1333, %v1584
    %v1592 = vld [vmem:[#allocation2 + $0x8] sm:$0xff]
    %v1593 = vld [vmem:[#allocation2 + $0x10] sm:$0xff]
    %v1594 = vld [vmem:[#allocation2 + $0x18] sm:$0xff]
    %s1595 = scalar_lea.vmem %s2, 37
    %v1596 = vld [vmem:[%s1595] ss:$8 sm:$0x3]
    %v1598 = vlaneseq
    %v1599 = vshrl.u32 %v1598, 7
    %v1600 = vsub.s32 0, %v1599
    %v1601 = vrot.slane %v1596, %v1600
    %v1602 = vlaneseq
    %v1603 = vshrl.u32 %v1602, 7
    %v1604 = vsub.s32 1, %v1603
    %v1605 = vrot.slane %v1596, %v1604
    %1606 = vrot.lane.b32.xlu0 %v1601, 1
    %v1607 = vpop.permute.xlu0 %1606
    %1608 = vrot.lane.b32.xlu0 %v1605, 1
    %v1609 = vpop.permute.xlu0 %1608
    %vm1610 = vcmask 7168
    %v1611 = vsel %vm1610, %v1607, %v1609
    %v1615 = vmul.f32 %v1592, %v1607
    %v1616 = vmul.f32 %v1593, %v1611
    %v1617 = vmul.f32 %v1594, %v1609
    %s1618 = scalar_lea.vmem %s3, 5
    %v1619 = vld [vmem:[%s1618] ss:$8 sm:$0x3]
    %v1621 = vlaneseq
    %v1622 = vshrl.u32 %v1621, 7
    %v1623 = vsub.s32 0, %v1622
    %v1624 = vrot.slane %v1619, %v1623
    %v1625 = vlaneseq
    %v1626 = vshrl.u32 %v1625, 7
    %v1627 = vsub.s32 1, %v1626
    %v1628 = vrot.slane %v1619, %v1627
    %1629 = vrot.lane.b32.xlu0 %v1624, 1
    %v1630 = vpop.permute.xlu0 %1629
    %1631 = vrot.lane.b32.xlu0 %v1628, 1
    %v1632 = vpop.permute.xlu0 %1631
    %v1633 = vsel %vm1610, %v1630, %v1632
    %v1637 = vadd.f32 %v1615, %v1630
    %v1638 = vadd.f32 %v1616, %v1633
    %v1639 = vadd.f32 %v1617, %v1632
    %1643 = vrot.lane.b32.xlu0 %v1637, 110
    %v1644 = vpop.permute.xlu0 %1643
    %1645 = vrot.lane.b32.xlu0 %v1638, 110
    %v1646 = vpop.permute.xlu0 %1645
    %1647 = vrot.lane.b32.xlu0 %v1639, 110
    %v1648 = vpop.permute.xlu0 %1647
    %v1649 = vsel %vm776, %v1644, %v1646
    %v1650 = vsel %vm776, %v1646, %v1648
    %v1654 = vmax.f32 %v1500, %v1644
    %v1655 = vmax.f32 %v1501, %v1649
    %v1656 = vmax.f32 %v1502, %v1650
    %1660 = vrot.lane.b32.xlu0 %v1615, 110
    %v1661 = vpop.permute.xlu0 %1660
    %1662 = vrot.lane.b32.xlu0 %v1616, 110
    %v1663 = vpop.permute.xlu0 %1662
    %1664 = vrot.lane.b32.xlu0 %v1617, 110
    %v1665 = vpop.permute.xlu0 %1664
    %v1666 = vsel %vm776, %v1661, %v1663
    %v1667 = vsel %vm776, %v1663, %v1665
    %v1671 = vadd.f32 %v1513, %v1661
    %v1672 = vadd.f32 %v1514, %v1666
    %v1673 = vadd.f32 %v1515, %v1667
    %1674 = vset.pattern.permute.xlu0 5
    %1675 = vperm.xlu0 %1674, %v856
    %v1676 = vpop.permute.xlu0 %1675
    %v1678 = vmul.f32 %v1615, %v1676
    %v1679 = vmul.f32 %v1616, %v1676
    %v1680 = vmul.f32 %v1617, %v1676
    %1684 = vrot.lane.b32.xlu0 %v1678, 110
    %v1685 = vpop.permute.xlu0 %1684
    %1686 = vrot.lane.b32.xlu0 %v1679, 110
    %v1687 = vpop.permute.xlu0 %1686
    %1688 = vrot.lane.b32.xlu0 %v1680, 110
    %v1689 = vpop.permute.xlu0 %1688
    %v1690 = vsel %vm776, %v1685, %v1687
    %v1691 = vsel %vm776, %v1687, %v1689
    %v1695 = vadd.f32 %v1532, %v1685
    %v1696 = vadd.f32 %v1533, %v1690
    %v1697 = vadd.f32 %v1534, %v1691
    %1698 = vset.pattern.permute.xlu0 13
    %1699 = vperm.xlu0 %1698, %v379
    %v1700 = vpop.permute.xlu0 %1699
    %v1702 = vmul.f32 %v1615, %v1700
    %v1703 = vmul.f32 %v1616, %v1700
    %v1704 = vmul.f32 %v1617, %v1700
    %1708 = vrot.lane.b32.xlu0 %v1702, 93
    %v1709 = vpop.permute.xlu0 %1708
    %1710 = vrot.lane.b32.xlu0 %v1703, 93
    %v1711 = vpop.permute.xlu0 %1710
    %1712 = vrot.lane.b32.xlu0 %v1704, 93
    %v1713 = vpop.permute.xlu0 %1712
    %vm1714 = vcmask 760832
    %v1715 = vsel %vm1714, %v1709, %v1711
    %v1716 = vsel %vm1714, %v1711, %v1713
    %v1720 = vadd.f32 %v1551, %v1709
    %v1721 = vadd.f32 %v1552, %v1715
    %v1722 = vadd.f32 %v1553, %v1716
    %s1723 = scalar_lea.vmem %s2, 38
    %v1724 = vld [vmem:[%s1723] ss:$8 sm:$0x3]
    %v1726 = vlaneseq
    %v1727 = vshrl.u32 %v1726, 7
    %v1728 = vsub.s32 0, %v1727
    %v1729 = vrot.slane %v1724, %v1728
    %v1730 = vlaneseq
    %v1731 = vshrl.u32 %v1730, 7
    %v1732 = vsub.s32 1, %v1731
    %v1733 = vrot.slane %v1724, %v1732
    %1734 = vrot.lane.b32.xlu0 %v1729, 2
    %v1735 = vpop.permute.xlu0 %1734
    %1736 = vrot.lane.b32.xlu0 %v1733, 2
    %v1737 = vpop.permute.xlu0 %1736
    %vm1738 = vcmask 15360
    %v1739 = vsel %vm1738, %v1735, %v1737
    %v1743 = vmul.f32 %v1592, %v1735
    %v1744 = vmul.f32 %v1593, %v1739
    %v1745 = vmul.f32 %v1594, %v1737
    %1746 = vset.pattern.permute.xlu0 14
    %1747 = vperm.xlu0 %1746, %v379
    %v1748 = vpop.permute.xlu0 %1747
    %v1750 = vmul.f32 %v1743, %v1748
    %v1751 = vmul.f32 %v1744, %v1748
    %v1752 = vmul.f32 %v1745, %v1748
    %1756 = vrot.lane.b32.xlu0 %v1750, 92
    %v1757 = vpop.permute.xlu0 %1756
    %1758 = vrot.lane.b32.xlu0 %v1751, 92
    %v1759 = vpop.permute.xlu0 %1758
    %1760 = vrot.lane.b32.xlu0 %v1752, 92
    %v1761 = vpop.permute.xlu0 %1760
    %v1762 = vsel %vm323, %v1757, %v1759
    %v1763 = vsel %vm323, %v1759, %v1761
    %v1767 = vadd.f32 %v1720, %v1757
    %v1768 = vadd.f32 %v1721, %v1762
    %v1769 = vadd.f32 %v1722, %v1763
    %1770 = vset.pattern.permute.xlu0 5
    %1771 = vperm.xlu0 %1770, %v391
    %v1772 = vpop.permute.xlu0 %1771
    %v1774 = vmul.f32 %v1743, %v1772
    %v1775 = vmul.f32 %v1744, %v1772
    %v1776 = vmul.f32 %v1745, %v1772
    %1780 = vrot.lane.b32.xlu0 %v1774, 92
    %v1781 = vpop.permute.xlu0 %1780
    %1782 = vrot.lane.b32.xlu0 %v1775, 92
    %v1783 = vpop.permute.xlu0 %1782
    %1784 = vrot.lane.b32.xlu0 %v1776, 92
    %v1785 = vpop.permute.xlu0 %1784
    %v1786 = vsel %vm323, %v1781, %v1783
    %v1787 = vsel %vm323, %v1783, %v1785
    %v1791 = vadd.f32 %v1570, %v1781
    %v1792 = vadd.f32 %v1571, %v1786
    %v1793 = vadd.f32 %v1572, %v1787
    %1794 = vset.pattern.permute.xlu0 13
    %1795 = vperm.xlu0 %1794, %v104
    %v1796 = vpop.permute.xlu0 %1795
    %v1798 = vmul.f32 %v1743, %v1796
    %v1799 = vmul.f32 %v1744, %v1796
    %v1800 = vmul.f32 %v1745, %v1796
    %1804 = vrot.lane.b32.xlu0 %v1798, 58
    %v1805 = vpop.permute.xlu0 %1804
    %1806 = vrot.lane.b32.xlu0 %v1799, 58
    %v1807 = vpop.permute.xlu0 %1806
    %1808 = vrot.lane.b32.xlu0 %v1800, 58
    %v1809 = vpop.permute.xlu0 %1808
    %vm1810 = vcmask 474112
    %v1811 = vsel %vm1810, %v1805, %v1807
    %v1812 = vsel %vm1810, %v1807, %v1809
    %v1816 = vadd.f32 %v1589, %v1805
    %v1817 = vadd.f32 %v1590, %v1811
    %v1818 = vadd.f32 %v1591, %v1812
    %s1819 = scalar_lea.vmem %s2, 39
    %v1820 = vld [vmem:[%s1819] ss:$8 sm:$0x3]
    %v1822 = vlaneseq
    %v1823 = vshrl.u32 %v1822, 7
    %v1824 = vsub.s32 0, %v1823
    %v1825 = vrot.slane %v1820, %v1824
    %v1826 = vlaneseq
    %v1827 = vshrl.u32 %v1826, 7
    %v1828 = vsub.s32 1, %v1827
    %v1829 = vrot.slane %v1820, %v1828
    %1830 = vrot.lane.b32.xlu0 %v1825, 4
    %v1831 = vpop.permute.xlu0 %1830
    %1832 = vrot.lane.b32.xlu0 %v1829, 4
    %v1833 = vpop.permute.xlu0 %1832
    %vm1834 = vcmask 31744
    %v1835 = vsel %vm1834, %v1831, %v1833
    %v1839 = vmul.f32 %v1592, %v1831
    %v1840 = vmul.f32 %v1593, %v1835
    %v1841 = vmul.f32 %v1594, %v1833
    %1842 = vset.pattern.permute.xlu0 14
    %1843 = vperm.xlu0 %1842, %v104
    %v1844 = vpop.permute.xlu0 %1843
    %v1846 = vmul.f32 %v1839, %v1844
    %v1847 = vmul.f32 %v1840, %v1844
    %v1848 = vmul.f32 %v1841, %v1844
    %1852 = vrot.lane.b32.xlu0 %v1846, 56
    %v1853 = vpop.permute.xlu0 %1852
    %1854 = vrot.lane.b32.xlu0 %v1847, 56
    %v1855 = vpop.permute.xlu0 %1854
    %1856 = vrot.lane.b32.xlu0 %v1848, 56
    %v1857 = vpop.permute.xlu0 %1856
    %vm1858 = vcmask 457728
    %v1859 = vsel %vm1858, %v1853, %v1855
    %v1860 = vsel %vm1858, %v1855, %v1857
    %v1864 = vadd.f32 %v1816, %v1853
    %v1865 = vadd.f32 %v1817, %v1859
    %v1866 = vadd.f32 %v1818, %v1860
    %s1867 = scalar_lea.vmem %s2, 48
    %v1868 = vld [vmem:[%s1867] ss:$8 sm:$0x3]
    %v1870 = vlaneseq
    %v1871 = vshrl.u32 %v1870, 7
    %v1872 = vsub.s32 0, %v1871
    %v1873 = vrot.slane %v1868, %v1872
    %v1874 = vlaneseq
    %v1875 = vshrl.u32 %v1874, 7
    %v1876 = vsub.s32 1, %v1875
    %v1877 = vrot.slane %v1868, %v1876
    %1878 = vrot.lane.b32.xlu0 %v1873, 14
    %v1879 = vpop.permute.xlu0 %1878
    %1880 = vrot.lane.b32.xlu0 %v1877, 14
    %v1881 = vpop.permute.xlu0 %1880
    %vm1882 = vcmask 113664
    %v1883 = vsel %vm1882, %v1879, %v1881
    %v1887 = vmul.f32 %v1592, %v1879
    %v1888 = vmul.f32 %v1593, %v1883
    %v1889 = vmul.f32 %v1594, %v1881
    %1890 = vset.pattern.permute.xlu0 15
    %1891 = vperm.xlu0 %1890, %v379
    %v1892 = vpop.permute.xlu0 %1891
    %v1894 = vmul.f32 %v1887, %v1892
    %v1895 = vmul.f32 %v1888, %v1892
    %v1896 = vmul.f32 %v1889, %v1892
    %1900 = vrot.lane.b32.xlu0 %v1894, 80
    %v1901 = vpop.permute.xlu0 %1900
    %1902 = vrot.lane.b32.xlu0 %v1895, 80
    %v1903 = vpop.permute.xlu0 %1902
    %1904 = vrot.lane.b32.xlu0 %v1896, 80
    %v1905 = vpop.permute.xlu0 %1904
    %vm1906 = vcmask 654336
    %v1907 = vsel %vm1906, %v1901, %v1903
    %v1908 = vsel %vm1906, %v1903, %v1905
    %v1912 = vadd.f32 %v1767, %v1901
    %v1913 = vadd.f32 %v1768, %v1907
    %v1914 = vadd.f32 %v1769, %v1908
    %s1915 = scalar_lea.vmem %s2, 49
    %v1916 = vld [vmem:[%s1915] ss:$8 sm:$0x3]
    %v1918 = vlaneseq
    %v1919 = vshrl.u32 %v1918, 7
    %v1920 = vsub.s32 0, %v1919
    %v1921 = vrot.slane %v1916, %v1920
    %v1922 = vlaneseq
    %v1923 = vshrl.u32 %v1922, 7
    %v1924 = vsub.s32 1, %v1923
    %v1925 = vrot.slane %v1916, %v1924
    %1926 = vrot.lane.b32.xlu0 %v1921, 15
    %v1927 = vpop.permute.xlu0 %1926
    %1928 = vrot.lane.b32.xlu0 %v1925, 15
    %v1929 = vpop.permute.xlu0 %1928
    %vm1930 = vcmask 121856
    %v1931 = vsel %vm1930, %v1927, %v1929
    %v1935 = vmul.f32 %v1592, %v1927
    %v1936 = vmul.f32 %v1593, %v1931
    %v1937 = vmul.f32 %v1594, %v1929
    %s1938 = scalar_lea.vmem %s3, 6
    %v1939 = vld [vmem:[%s1938] ss:$8 sm:$0x3]
    %v1941 = vlaneseq
    %v1942 = vshrl.u32 %v1941, 7
    %v1943 = vsub.s32 0, %v1942
    %v1944 = vrot.slane %v1939, %v1943
    %v1945 = vlaneseq
    %v1946 = vshrl.u32 %v1945, 7
    %v1947 = vsub.s32 1, %v1946
    %v1948 = vrot.slane %v1939, %v1947
    %1949 = vrot.lane.b32.xlu0 %v1944, 15
    %v1950 = vpop.permute.xlu0 %1949
    %1951 = vrot.lane.b32.xlu0 %v1948, 15
    %v1952 = vpop.permute.xlu0 %1951
    %v1953 = vsel %vm1930, %v1950, %v1952
    %v1957 = vadd.f32 %v1935, %v1950
    %v1958 = vadd.f32 %v1936, %v1953
    %v1959 = vadd.f32 %v1937, %v1952
    %1963 = vrot.lane.b32.xlu0 %v1957, 96
    %v1964 = vpop.permute.xlu0 %1963
    %1965 = vrot.lane.b32.xlu0 %v1958, 96
    %v1966 = vpop.permute.xlu0 %1965
    %1967 = vrot.lane.b32.xlu0 %v1959, 96
    %v1968 = vpop.permute.xlu0 %1967
    %v1969 = vsel %vm347, %v1964, %v1966
    %v1970 = vsel %vm347, %v1966, %v1968
    %v1974 = vmax.f32 %v1654, %v1964
    %v1975 = vmax.f32 %v1655, %v1969
    %v1976 = vmax.f32 %v1656, %v1970
    %1980 = vrot.lane.b32.xlu0 %v1935, 96
    %v1981 = vpop.permute.xlu0 %1980
    %1982 = vrot.lane.b32.xlu0 %v1936, 96
    %v1983 = vpop.permute.xlu0 %1982
    %1984 = vrot.lane.b32.xlu0 %v1937, 96
    %v1985 = vpop.permute.xlu0 %1984
    %v1986 = vsel %vm347, %v1981, %v1983
    %v1987 = vsel %vm347, %v1983, %v1985
    %v1991 = vadd.f32 %v1671, %v1981
    %v1992 = vadd.f32 %v1672, %v1986
    %v1993 = vadd.f32 %v1673, %v1987
    %1994 = vset.pattern.permute.xlu0 6
    %1995 = vperm.xlu0 %1994, %v856
    %v1996 = vpop.permute.xlu0 %1995
    %v1998 = vmul.f32 %v1935, %v1996
    %v1999 = vmul.f32 %v1936, %v1996
    %v2000 = vmul.f32 %v1937, %v1996
    %2004 = vrot.lane.b32.xlu0 %v1998, 96
    %v2005 = vpop.permute.xlu0 %2004
    %2006 = vrot.lane.b32.xlu0 %v1999, 96
    %v2007 = vpop.permute.xlu0 %2006
    %2008 = vrot.lane.b32.xlu0 %v2000, 96
    %v2009 = vpop.permute.xlu0 %2008
    %v2010 = vsel %vm347, %v2005, %v2007
    %v2011 = vsel %vm347, %v2007, %v2009
    %v2015 = vadd.f32 %v1695, %v2005
    %v2016 = vadd.f32 %v1696, %v2010
    %v2017 = vadd.f32 %v1697, %v2011
    %2018 = vset.pattern.permute.xlu0 16
    %2019 = vperm.xlu0 %2018, %v379
    %v2020 = vpop.permute.xlu0 %2019
    %v2022 = vmul.f32 %v1935, %v2020
    %v2023 = vmul.f32 %v1936, %v2020
    %v2024 = vmul.f32 %v1937, %v2020
    %2028 = vrot.lane.b32.xlu0 %v2022, 79
    %v2029 = vpop.permute.xlu0 %2028
    %2030 = vrot.lane.b32.xlu0 %v2023, 79
    %v2031 = vpop.permute.xlu0 %2030
    %2032 = vrot.lane.b32.xlu0 %v2024, 79
    %v2033 = vpop.permute.xlu0 %2032
    %vm2034 = vcmask 646144
    %v2035 = vsel %vm2034, %v2029, %v2031
    %v2036 = vsel %vm2034, %v2031, %v2033
    %v2040 = vadd.f32 %v1912, %v2029
    %v2041 = vadd.f32 %v1913, %v2035
    %v2042 = vadd.f32 %v1914, %v2036
    %s2043 = scalar_lea.vmem %s2, 50
    %v2044 = vld [vmem:[%s2043] ss:$8 sm:$0x3]
    %v2046 = vlaneseq
    %v2047 = vshrl.u32 %v2046, 7
    %v2048 = vsub.s32 0, %v2047
    %v2049 = vrot.slane %v2044, %v2048
    %v2050 = vlaneseq
    %v2051 = vshrl.u32 %v2050, 7
    %v2052 = vsub.s32 1, %v2051
    %v2053 = vrot.slane %v2044, %v2052
    %2054 = vrot.lane.b32.xlu0 %v2049, 16
    %v2055 = vpop.permute.xlu0 %2054
    %2056 = vrot.lane.b32.xlu0 %v2053, 16
    %v2057 = vpop.permute.xlu0 %2056
    %vm2058 = vcmask 130048
    %v2059 = vsel %vm2058, %v2055, %v2057
    %v2063 = vmul.f32 %v1592, %v2055
    %v2064 = vmul.f32 %v1593, %v2059
    %v2065 = vmul.f32 %v1594, %v2057
    %s2066 = scalar_lea.vmem %s3, 7
    %v2067 = vld [vmem:[%s2066] ss:$8 sm:$0x3]
    %v2069 = vlaneseq
    %v2070 = vshrl.u32 %v2069, 7
    %v2071 = vsub.s32 0, %v2070
    %v2072 = vrot.slane %v2067, %v2071
    %v2073 = vlaneseq
    %v2074 = vshrl.u32 %v2073, 7
    %v2075 = vsub.s32 1, %v2074
    %v2076 = vrot.slane %v2067, %v2075
    %2077 = vrot.lane.b32.xlu0 %v2072, 16
    %v2078 = vpop.permute.xlu0 %2077
    %2079 = vrot.lane.b32.xlu0 %v2076, 16
    %v2080 = vpop.permute.xlu0 %2079
    %v2081 = vsel %vm2058, %v2078, %v2080
    %v2085 = vadd.f32 %v2063, %v2078
    %v2086 = vadd.f32 %v2064, %v2081
    %v2087 = vadd.f32 %v2065, %v2080
    %2091 = vrot.lane.b32.xlu0 %v2085, 95
    %v2092 = vpop.permute.xlu0 %2091
    %2093 = vrot.lane.b32.xlu0 %v2086, 95
    %v2094 = vpop.permute.xlu0 %2093
    %2095 = vrot.lane.b32.xlu0 %v2087, 95
    %v2096 = vpop.permute.xlu0 %2095
    %v2097 = vsel %vm442, %v2092, %v2094
    %v2098 = vsel %vm442, %v2094, %v2096
    %v2102 = vmax.f32 %v1974, %v2092
    %v2103 = vmax.f32 %v1975, %v2097
    %v2104 = vmax.f32 %v1976, %v2098
    %2108 = vrot.lane.b32.xlu0 %v2063, 95
    %v2109 = vpop.permute.xlu0 %2108
    %2110 = vrot.lane.b32.xlu0 %v2064, 95
    %v2111 = vpop.permute.xlu0 %2110
    %2112 = vrot.lane.b32.xlu0 %v2065, 95
    %v2113 = vpop.permute.xlu0 %2112
    %v2114 = vsel %vm442, %v2109, %v2111
    %v2115 = vsel %vm442, %v2111, %v2113
    %v2119 = vadd.f32 %v1991, %v2109
    %v2120 = vadd.f32 %v1992, %v2114
    %v2121 = vadd.f32 %v1993, %v2115
    %2122 = vset.pattern.permute.xlu0 7
    %2123 = vperm.xlu0 %2122, %v856
    %v2124 = vpop.permute.xlu0 %2123
    %v2126 = vmul.f32 %v2063, %v2124
    %v2127 = vmul.f32 %v2064, %v2124
    %v2128 = vmul.f32 %v2065, %v2124
    %2132 = vrot.lane.b32.xlu0 %v2126, 95
    %v2133 = vpop.permute.xlu0 %2132
    %2134 = vrot.lane.b32.xlu0 %v2127, 95
    %v2135 = vpop.permute.xlu0 %2134
    %2136 = vrot.lane.b32.xlu0 %v2128, 95
    %v2137 = vpop.permute.xlu0 %2136
    %v2138 = vsel %vm442, %v2133, %v2135
    %v2139 = vsel %vm442, %v2135, %v2137
    %v2143 = vadd.f32 %v2015, %v2133
    %v2144 = vadd.f32 %v2016, %v2138
    %v2145 = vadd.f32 %v2017, %v2139
    %2146 = vset.pattern.permute.xlu0 17
    %2147 = vperm.xlu0 %2146, %v379
    %v2148 = vpop.permute.xlu0 %2147
    %v2150 = vmul.f32 %v2063, %v2148
    %v2151 = vmul.f32 %v2064, %v2148
    %v2152 = vmul.f32 %v2065, %v2148
    %2156 = vrot.lane.b32.xlu0 %v2150, 78
    %v2157 = vpop.permute.xlu0 %2156
    %2158 = vrot.lane.b32.xlu0 %v2151, 78
    %v2159 = vpop.permute.xlu0 %2158
    %2160 = vrot.lane.b32.xlu0 %v2152, 78
    %v2161 = vpop.permute.xlu0 %2160
    %vm2162 = vcmask 637952
    %v2163 = vsel %vm2162, %v2157, %v2159
    %v2164 = vsel %vm2162, %v2159, %v2161
    %v2168 = vadd.f32 %v2040, %v2157
    %v2169 = vadd.f32 %v2041, %v2163
    %v2170 = vadd.f32 %v2042, %v2164
    %s2171 = scalar_lea.vmem %s2, 51
    %v2172 = vld [vmem:[%s2171] ss:$8 sm:$0x3]
    %v2174 = vlaneseq
    %v2175 = vshrl.u32 %v2174, 7
    %v2176 = vsub.s32 0, %v2175
    %v2177 = vrot.slane %v2172, %v2176
    %v2178 = vlaneseq
    %v2179 = vshrl.u32 %v2178, 7
    %v2180 = vsub.s32 1, %v2179
    %v2181 = vrot.slane %v2172, %v2180
    %2182 = vrot.lane.b32.xlu0 %v2177, 17
    %v2183 = vpop.permute.xlu0 %2182
    %2184 = vrot.lane.b32.xlu0 %v2181, 17
    %v2185 = vpop.permute.xlu0 %2184
    %vm2186 = vcmask 138240
    %v2187 = vsel %vm2186, %v2183, %v2185
    %v2191 = vmul.f32 %v1592, %v2183
    %v2192 = vmul.f32 %v1593, %v2187
    %v2193 = vmul.f32 %v1594, %v2185
    %s2194 = scalar_lea.vmem %s3, 16
    %v2195 = vld [vmem:[%s2194] ss:$8 sm:$0x3]
    %v2197 = vlaneseq
    %v2198 = vshrl.u32 %v2197, 7
    %v2199 = vsub.s32 0, %v2198
    %v2200 = vrot.slane %v2195, %v2199
    %v2201 = vlaneseq
    %v2202 = vshrl.u32 %v2201, 7
    %v2203 = vsub.s32 1, %v2202
    %v2204 = vrot.slane %v2195, %v2203
    %2205 = vrot.lane.b32.xlu0 %v2200, 17
    %v2206 = vpop.permute.xlu0 %2205
    %2207 = vrot.lane.b32.xlu0 %v2204, 17
    %v2208 = vpop.permute.xlu0 %2207
    %v2209 = vsel %vm2186, %v2206, %v2208
    %v2213 = vadd.f32 %v2191, %v2206
    %v2214 = vadd.f32 %v2192, %v2209
    %v2215 = vadd.f32 %v2193, %v2208
    %2219 = vrot.lane.b32.xlu0 %v2213, 94
    %v2220 = vpop.permute.xlu0 %2219
    %2221 = vrot.lane.b32.xlu0 %v2214, 94
    %v2222 = vpop.permute.xlu0 %2221
    %2223 = vrot.lane.b32.xlu0 %v2215, 94
    %v2224 = vpop.permute.xlu0 %2223
    %v2225 = vsel %vm371, %v2220, %v2222
    %v2226 = vsel %vm371, %v2222, %v2224
    %v2230 = vmax.f32 %v2102, %v2220
    %v2231 = vmax.f32 %v2103, %v2225
    %v2232 = vmax.f32 %v2104, %v2226
    %2236 = vrot.lane.b32.xlu0 %v2191, 94
    %v2237 = vpop.permute.xlu0 %2236
    %2238 = vrot.lane.b32.xlu0 %v2192, 94
    %v2239 = vpop.permute.xlu0 %2238
    %2240 = vrot.lane.b32.xlu0 %v2193, 94
    %v2241 = vpop.permute.xlu0 %2240
    %v2242 = vsel %vm371, %v2237, %v2239
    %v2243 = vsel %vm371, %v2239, %v2241
    %v2247 = vadd.f32 %v2119, %v2237
    %v2248 = vadd.f32 %v2120, %v2242
    %v2249 = vadd.f32 %v2121, %v2243
    %2250 = vset.pattern.permute.xlu0 8
    %2251 = vperm.xlu0 %2250, %v856
    %v2252 = vpop.permute.xlu0 %2251
    %v2254 = vmul.f32 %v2191, %v2252
    %v2255 = vmul.f32 %v2192, %v2252
    %v2256 = vmul.f32 %v2193, %v2252
    %2260 = vrot.lane.b32.xlu0 %v2254, 94
    %v2261 = vpop.permute.xlu0 %2260
    %2262 = vrot.lane.b32.xlu0 %v2255, 94
    %v2263 = vpop.permute.xlu0 %2262
    %2264 = vrot.lane.b32.xlu0 %v2256, 94
    %v2265 = vpop.permute.xlu0 %2264
    %v2266 = vsel %vm371, %v2261, %v2263
    %v2267 = vsel %vm371, %v2263, %v2265
    %v2271 = vadd.f32 %v2143, %v2261
    %v2272 = vadd.f32 %v2144, %v2266
    %v2273 = vadd.f32 %v2145, %v2267
    %2274 = vset.pattern.permute.xlu0 18
    %2275 = vperm.xlu0 %2274, %v379
    %v2276 = vpop.permute.xlu0 %2275
    %v2278 = vmul.f32 %v2191, %v2276
    %v2279 = vmul.f32 %v2192, %v2276
    %v2280 = vmul.f32 %v2193, %v2276
    %2284 = vrot.lane.b32.xlu0 %v2278, 77
    %v2285 = vpop.permute.xlu0 %2284
    %2286 = vrot.lane.b32.xlu0 %v2279, 77
    %v2287 = vpop.permute.xlu0 %2286
    %2288 = vrot.lane.b32.xlu0 %v2280, 77
    %v2289 = vpop.permute.xlu0 %2288
    %vm2290 = vcmask 629760
    %v2291 = vsel %vm2290, %v2285, %v2287
    %v2292 = vsel %vm2290, %v2287, %v2289
    %v2296 = vadd.f32 %v2168, %v2285
    %v2297 = vadd.f32 %v2169, %v2291
    %v2298 = vadd.f32 %v2170, %v2292
    %s2299 = scalar_lea.vmem %s2, 52
    %v2300 = vld [vmem:[%s2299] ss:$8 sm:$0x3]
    %v2302 = vlaneseq
    %v2303 = vshrl.u32 %v2302, 7
    %v2304 = vsub.s32 0, %v2303
    %v2305 = vrot.slane %v2300, %v2304
    %v2306 = vlaneseq
    %v2307 = vshrl.u32 %v2306, 7
    %v2308 = vsub.s32 1, %v2307
    %v2309 = vrot.slane %v2300, %v2308
    %2310 = vrot.lane.b32.xlu0 %v2305, 18
    %v2311 = vpop.permute.xlu0 %2310
    %2312 = vrot.lane.b32.xlu0 %v2309, 18
    %v2313 = vpop.permute.xlu0 %2312
    %vm2314 = vcmask 146432
    %v2315 = vsel %vm2314, %v2311, %v2313
    %v2319 = vmul.f32 %v1592, %v2311
    %v2320 = vmul.f32 %v1593, %v2315
    %v2321 = vmul.f32 %v1594, %v2313
    %2322 = vset.pattern.permute.xlu0 19
    %2323 = vperm.xlu0 %2322, %v379
    %v2324 = vpop.permute.xlu0 %2323
    %v2326 = vmul.f32 %v2319, %v2324
    %v2327 = vmul.f32 %v2320, %v2324
    %v2328 = vmul.f32 %v2321, %v2324
    %2332 = vrot.lane.b32.xlu0 %v2326, 76
    %v2333 = vpop.permute.xlu0 %2332
    %2334 = vrot.lane.b32.xlu0 %v2327, 76
    %v2335 = vpop.permute.xlu0 %2334
    %2336 = vrot.lane.b32.xlu0 %v2328, 76
    %v2337 = vpop.permute.xlu0 %2336
    %vm2338 = vcmask 621568
    %v2339 = vsel %vm2338, %v2333, %v2335
    %v2340 = vsel %vm2338, %v2335, %v2337
    %v2344 = vadd.f32 %v2296, %v2333
    %v2345 = vadd.f32 %v2297, %v2339
    %v2346 = vadd.f32 %v2298, %v2340
    %s2347 = scalar_lea.vmem %s2, 53
    %v2348 = vld [vmem:[%s2347] ss:$8 sm:$0x3]
    %v2350 = vlaneseq
    %v2351 = vshrl.u32 %v2350, 7
    %v2352 = vsub.s32 0, %v2351
    %v2353 = vrot.slane %v2348, %v2352
    %v2354 = vlaneseq
    %v2355 = vshrl.u32 %v2354, 7
    %v2356 = vsub.s32 1, %v2355
    %v2357 = vrot.slane %v2348, %v2356
    %2358 = vrot.lane.b32.xlu0 %v2353, 28
    %v2359 = vpop.permute.xlu0 %2358
    %2360 = vrot.lane.b32.xlu0 %v2357, 28
    %v2361 = vpop.permute.xlu0 %2360
    %vm2362 = vcmask 228352
    %v2363 = vsel %vm2362, %v2359, %v2361
    %v2367 = vmul.f32 %v1592, %v2359
    %v2368 = vmul.f32 %v1593, %v2363
    %v2369 = vmul.f32 %v1594, %v2361
    %2370 = vset.pattern.permute.xlu0 15
    %2371 = vperm.xlu0 %2370, %v104
    %v2372 = vpop.permute.xlu0 %2371
    %v2374 = vmul.f32 %v2367, %v2372
    %v2375 = vmul.f32 %v2368, %v2372
    %v2376 = vmul.f32 %v2369, %v2372
    %2380 = vrot.lane.b32.xlu0 %v2374, 32
    %v2381 = vpop.permute.xlu0 %2380
    %2382 = vrot.lane.b32.xlu0 %v2375, 32
    %v2383 = vpop.permute.xlu0 %2382
    %2384 = vrot.lane.b32.xlu0 %v2376, 32
    %v2385 = vpop.permute.xlu0 %2384
    %vm2386 = vcmask 261120
    %v2387 = vsel %vm2386, %v2381, %v2383
    %v2388 = vsel %vm2386, %v2383, %v2385
    %v2392 = vadd.f32 %v1864, %v2381
    %v2393 = vadd.f32 %v1865, %v2387
    %v2394 = vadd.f32 %v1866, %v2388
    %s2395 = scalar_lea.vmem %s2, 54
    %v2396 = vld [vmem:[%s2395] ss:$8 sm:$0x3]
    %v2398 = vlaneseq
    %v2399 = vshrl.u32 %v2398, 7
    %v2400 = vsub.s32 0, %v2399
    %v2401 = vrot.slane %v2396, %v2400
    %v2402 = vlaneseq
    %v2403 = vshrl.u32 %v2402, 7
    %v2404 = vsub.s32 1, %v2403
    %v2405 = vrot.slane %v2396, %v2404
    %2406 = vrot.lane.b32.xlu0 %v2401, 30
    %v2407 = vpop.permute.xlu0 %2406
    %2408 = vrot.lane.b32.xlu0 %v2405, 30
    %v2409 = vpop.permute.xlu0 %2408
    %vm2410 = vcmask 244736
    %v2411 = vsel %vm2410, %v2407, %v2409
    %v2415 = vmul.f32 %v1592, %v2407
    %v2416 = vmul.f32 %v1593, %v2411
    %v2417 = vmul.f32 %v1594, %v2409
    %2418 = vset.pattern.permute.xlu0 20
    %2419 = vperm.xlu0 %2418, %v379
    %v2420 = vpop.permute.xlu0 %2419
    %v2422 = vmul.f32 %v2415, %v2420
    %v2423 = vmul.f32 %v2416, %v2420
    %v2424 = vmul.f32 %v2417, %v2420
    %2428 = vrot.lane.b32.xlu0 %v2422, 64
    %v2429 = vpop.permute.xlu0 %2428
    %2430 = vrot.lane.b32.xlu0 %v2423, 64
    %v2431 = vpop.permute.xlu0 %2430
    %2432 = vrot.lane.b32.xlu0 %v2424, 64
    %v2433 = vpop.permute.xlu0 %2432
    %v2434 = vsel %vm179, %v2429, %v2431
    %v2435 = vsel %vm179, %v2431, %v2433
    %v2439 = vadd.f32 %v2344, %v2429
    %v2440 = vadd.f32 %v2345, %v2434
    %v2441 = vadd.f32 %v2346, %v2435
    %2442 = vset.pattern.permute.xlu0 6
    %2443 = vperm.xlu0 %2442, %v391
    %v2444 = vpop.permute.xlu0 %2443
    %v2446 = vmul.f32 %v2415, %v2444
    %v2447 = vmul.f32 %v2416, %v2444
    %v2448 = vmul.f32 %v2417, %v2444
    %2452 = vrot.lane.b32.xlu0 %v2446, 64
    %v2453 = vpop.permute.xlu0 %2452
    %2454 = vrot.lane.b32.xlu0 %v2447, 64
    %v2455 = vpop.permute.xlu0 %2454
    %2456 = vrot.lane.b32.xlu0 %v2448, 64
    %v2457 = vpop.permute.xlu0 %2456
    %v2458 = vsel %vm179, %v2453, %v2455
    %v2459 = vsel %vm179, %v2455, %v2457
    %v2463 = vadd.f32 %v1791, %v2453
    %v2464 = vadd.f32 %v1792, %v2458
    %v2465 = vadd.f32 %v1793, %v2459
    %2466 = vset.pattern.permute.xlu0 16
    %2467 = vperm.xlu0 %2466, %v104
    %v2468 = vpop.permute.xlu0 %2467
    %v2470 = vmul.f32 %v2415, %v2468
    %v2471 = vmul.f32 %v2416, %v2468
    %v2472 = vmul.f32 %v2417, %v2468
    %2476 = vrot.lane.b32.xlu0 %v2470, 30
    %v2477 = vpop.permute.xlu0 %2476
    %2478 = vrot.lane.b32.xlu0 %v2471, 30
    %v2479 = vpop.permute.xlu0 %2478
    %2480 = vrot.lane.b32.xlu0 %v2472, 30
    %v2481 = vpop.permute.xlu0 %2480
    %v2482 = vsel %vm2410, %v2477, %v2479
    %v2483 = vsel %vm2410, %v2479, %v2481
    %v2487 = vadd.f32 %v2392, %v2477
    %v2488 = vadd.f32 %v2393, %v2482
    %v2489 = vadd.f32 %v2394, %v2483
    %s2490 = scalar_lea.vmem %s2, 55
    %v2491 = vld [vmem:[%s2490] ss:$8 sm:$0x3]
    %v2493 = vlaneseq
    %v2494 = vshrl.u32 %v2493, 7
    %v2495 = vsub.s32 0, %v2494
    %v2496 = vrot.slane %v2491, %v2495
    %v2497 = vlaneseq
    %v2498 = vshrl.u32 %v2497, 7
    %v2499 = vsub.s32 1, %v2498
    %v2500 = vrot.slane %v2491, %v2499
    %2501 = vrot.lane.b32.xlu0 %v2496, 31
    %v2502 = vpop.permute.xlu0 %2501
    %2503 = vrot.lane.b32.xlu0 %v2500, 31
    %v2504 = vpop.permute.xlu0 %2503
    %vm2505 = vcmask 252928
    %v2506 = vsel %vm2505, %v2502, %v2504
    %v2510 = vmul.f32 %v1592, %v2502
    %v2511 = vmul.f32 %v1593, %v2506
    %v2512 = vmul.f32 %v1594, %v2504
    %2513 = vset.pattern.permute.xlu0 21
    %2514 = vperm.xlu0 %2513, %v379
    %v2515 = vpop.permute.xlu0 %2514
    %v2517 = vmul.f32 %v2510, %v2515
    %v2518 = vmul.f32 %v2511, %v2515
    %v2519 = vmul.f32 %v2512, %v2515
    %2523 = vrot.lane.b32.xlu0 %v2517, 63
    %v2524 = vpop.permute.xlu0 %2523
    %2525 = vrot.lane.b32.xlu0 %v2518, 63
    %v2526 = vpop.permute.xlu0 %2525
    %2527 = vrot.lane.b32.xlu0 %v2519, 63
    %v2528 = vpop.permute.xlu0 %2527
    %vm2529 = vcmask 515072
    %v2530 = vsel %vm2529, %v2524, %v2526
    %v2531 = vsel %vm2529, %v2526, %v2528
    %v2535 = vadd.f32 %v2439, %v2524
    %v2536 = vadd.f32 %v2440, %v2530
    %v2537 = vadd.f32 %v2441, %v2531
    %s2538 = scalar_lea.vmem %s2, 64
    %v2539 = vld [vmem:[%s2538] ss:$8 sm:$0x3]
    %v2541 = vlaneseq
    %v2542 = vshrl.u32 %v2541, 7
    %v2543 = vsub.s32 0, %v2542
    %v2544 = vrot.slane %v2539, %v2543
    %v2545 = vlaneseq
    %v2546 = vshrl.u32 %v2545, 7
    %v2547 = vsub.s32 1, %v2546
    %v2548 = vrot.slane %v2539, %v2547
    %2549 = vrot.lane.b32.xlu0 %v2544, 32
    %v2550 = vpop.permute.xlu0 %2549
    %2551 = vrot.lane.b32.xlu0 %v2548, 32
    %v2552 = vpop.permute.xlu0 %2551
    %v2553 = vsel %vm2386, %v2550, %v2552
    %v2557 = vmul.f32 %v1592, %v2550
    %v2558 = vmul.f32 %v1593, %v2553
    %v2559 = vmul.f32 %v1594, %v2552
    %2560 = vset.pattern.permute.xlu0 22
    %2561 = vperm.xlu0 %2560, %v379
    %v2562 = vpop.permute.xlu0 %2561
    %v2564 = vmul.f32 %v2557, %v2562
    %v2565 = vmul.f32 %v2558, %v2562
    %v2566 = vmul.f32 %v2559, %v2562
    %2570 = vrot.lane.b32.xlu0 %v2564, 62
    %v2571 = vpop.permute.xlu0 %2570
    %2572 = vrot.lane.b32.xlu0 %v2565, 62
    %v2573 = vpop.permute.xlu0 %2572
    %2574 = vrot.lane.b32.xlu0 %v2566, 62
    %v2575 = vpop.permute.xlu0 %2574
    %v2576 = vsel %vm131, %v2571, %v2573
    %v2577 = vsel %vm131, %v2573, %v2575
    %v2581 = vadd.f32 %v2535, %v2571
    %v2582 = vadd.f32 %v2536, %v2576
    %v2583 = vadd.f32 %v2537, %v2577
    %2584 = vset.pattern.permute.xlu0 7
    %2585 = vperm.xlu0 %2584, %v391
    %v2586 = vpop.permute.xlu0 %2585
    %v2588 = vmul.f32 %v2557, %v2586
    %v2589 = vmul.f32 %v2558, %v2586
    %v2590 = vmul.f32 %v2559, %v2586
    %2594 = vrot.lane.b32.xlu0 %v2588, 62
    %v2595 = vpop.permute.xlu0 %2594
    %2596 = vrot.lane.b32.xlu0 %v2589, 62
    %v2597 = vpop.permute.xlu0 %2596
    %2598 = vrot.lane.b32.xlu0 %v2590, 62
    %v2599 = vpop.permute.xlu0 %2598
    %v2600 = vsel %vm131, %v2595, %v2597
    %v2601 = vsel %vm131, %v2597, %v2599
    %v2605 = vadd.f32 %v2463, %v2595
    %v2606 = vadd.f32 %v2464, %v2600
    %v2607 = vadd.f32 %v2465, %v2601
    %2608 = vset.pattern.permute.xlu0 17
    %2609 = vperm.xlu0 %2608, %v104
    %v2610 = vpop.permute.xlu0 %2609
    %v2612 = vmul.f32 %v2557, %v2610
    %v2613 = vmul.f32 %v2558, %v2610
    %v2614 = vmul.f32 %v2559, %v2610
    %2618 = vrot.lane.b32.xlu0 %v2612, 28
    %v2619 = vpop.permute.xlu0 %2618
    %2620 = vrot.lane.b32.xlu0 %v2613, 28
    %v2621 = vpop.permute.xlu0 %2620
    %2622 = vrot.lane.b32.xlu0 %v2614, 28
    %v2623 = vpop.permute.xlu0 %2622
    %v2624 = vsel %vm2362, %v2619, %v2621
    %v2625 = vsel %vm2362, %v2621, %v2623
    %v2629 = vadd.f32 %v2487, %v2619
    %v2630 = vadd.f32 %v2488, %v2624
    %v2631 = vadd.f32 %v2489, %v2625
    %s2632 = scalar_lea.vmem %s2, 65
    %v2633 = vld [vmem:[%s2632] ss:$8 sm:$0x3]
    %v2635 = vlaneseq
    %v2636 = vshrl.u32 %v2635, 7
    %v2637 = vsub.s32 0, %v2636
    %v2638 = vrot.slane %v2633, %v2637
    %v2639 = vlaneseq
    %v2640 = vshrl.u32 %v2639, 7
    %v2641 = vsub.s32 1, %v2640
    %v2642 = vrot.slane %v2633, %v2641
    %2643 = vrot.lane.b32.xlu0 %v2638, 33
    %v2644 = vpop.permute.xlu0 %2643
    %2645 = vrot.lane.b32.xlu0 %v2642, 33
    %v2646 = vpop.permute.xlu0 %2645
    %vm2647 = vcmask 269312
    %v2648 = vsel %vm2647, %v2644, %v2646
    %v2652 = vmul.f32 %v1592, %v2644
    %v2653 = vmul.f32 %v1593, %v2648
    %v2654 = vmul.f32 %v1594, %v2646
    %2655 = vset.pattern.permute.xlu0 23
    %2656 = vperm.xlu0 %2655, %v379
    %v2657 = vpop.permute.xlu0 %2656
    %v2659 = vmul.f32 %v2652, %v2657
    %v2660 = vmul.f32 %v2653, %v2657
    %v2661 = vmul.f32 %v2654, %v2657
    %2665 = vrot.lane.b32.xlu0 %v2659, 61
    %v2666 = vpop.permute.xlu0 %2665
    %2667 = vrot.lane.b32.xlu0 %v2660, 61
    %v2668 = vpop.permute.xlu0 %2667
    %2669 = vrot.lane.b32.xlu0 %v2661, 61
    %v2670 = vpop.permute.xlu0 %2669
    %vm2671 = vcmask 498688
    %v2672 = vsel %vm2671, %v2666, %v2668
    %v2673 = vsel %vm2671, %v2668, %v2670
    %v2677 = vadd.f32 %v2581, %v2666
    %v2678 = vadd.f32 %v2582, %v2672
    %v2679 = vadd.f32 %v2583, %v2673
    %s2680 = scalar_lea.vmem %s2, 66
    %v2681 = vld [vmem:[%s2680] ss:$8 sm:$0x3]
    %v2683 = vlaneseq
    %v2684 = vshrl.u32 %v2683, 7
    %v2685 = vsub.s32 0, %v2684
    %v2686 = vrot.slane %v2681, %v2685
    %v2687 = vlaneseq
    %v2688 = vshrl.u32 %v2687, 7
    %v2689 = vsub.s32 1, %v2688
    %v2690 = vrot.slane %v2681, %v2689
    %2691 = vrot.lane.b32.xlu0 %v2686, 34
    %v2692 = vpop.permute.xlu0 %2691
    %2693 = vrot.lane.b32.xlu0 %v2690, 34
    %v2694 = vpop.permute.xlu0 %2693
    %vm2695 = vcmask 277504
    %v2696 = vsel %vm2695, %v2692, %v2694
    %v2700 = vmul.f32 %v1592, %v2692
    %v2701 = vmul.f32 %v1593, %v2696
    %v2702 = vmul.f32 %v1594, %v2694
    %2703 = vset.pattern.permute.xlu0 24
    %2704 = vperm.xlu0 %2703, %v379
    %v2705 = vpop.permute.xlu0 %2704
    %v2707 = vmul.f32 %v2700, %v2705
    %v2708 = vmul.f32 %v2701, %v2705
    %v2709 = vmul.f32 %v2702, %v2705
    %2713 = vrot.lane.b32.xlu0 %v2707, 60
    %v2714 = vpop.permute.xlu0 %2713
    %2715 = vrot.lane.b32.xlu0 %v2708, 60
    %v2716 = vpop.permute.xlu0 %2715
    %2717 = vrot.lane.b32.xlu0 %v2709, 60
    %v2718 = vpop.permute.xlu0 %2717
    %v2719 = vsel %vm96, %v2714, %v2716
    %v2720 = vsel %vm96, %v2716, %v2718
    %v2724 = vadd.f32 %v2677, %v2714
    %v2725 = vadd.f32 %v2678, %v2719
    %v2726 = vadd.f32 %v2679, %v2720
    %2727 = vset.pattern.permute.xlu0 8
    %2728 = vperm.xlu0 %2727, %v391
    %v2729 = vpop.permute.xlu0 %2728
    %v2731 = vmul.f32 %v2700, %v2729
    %v2732 = vmul.f32 %v2701, %v2729
    %v2733 = vmul.f32 %v2702, %v2729
    %2737 = vrot.lane.b32.xlu0 %v2731, 60
    %v2738 = vpop.permute.xlu0 %2737
    %2739 = vrot.lane.b32.xlu0 %v2732, 60
    %v2740 = vpop.permute.xlu0 %2739
    %2741 = vrot.lane.b32.xlu0 %v2733, 60
    %v2742 = vpop.permute.xlu0 %2741
    %v2743 = vsel %vm96, %v2738, %v2740
    %v2744 = vsel %vm96, %v2740, %v2742
    %v2748 = vadd.f32 %v2605, %v2738
    %v2749 = vadd.f32 %v2606, %v2743
    %v2750 = vadd.f32 %v2607, %v2744
    %2751 = vset.pattern.permute.xlu0 18
    %2752 = vperm.xlu0 %2751, %v104
    %v2753 = vpop.permute.xlu0 %2752
    %v2755 = vmul.f32 %v2700, %v2753
    %v2756 = vmul.f32 %v2701, %v2753
    %v2757 = vmul.f32 %v2702, %v2753
    %2761 = vrot.lane.b32.xlu0 %v2755, 26
    %v2762 = vpop.permute.xlu0 %2761
    %2763 = vrot.lane.b32.xlu0 %v2756, 26
    %v2764 = vpop.permute.xlu0 %2763
    %2765 = vrot.lane.b32.xlu0 %v2757, 26
    %v2766 = vpop.permute.xlu0 %2765
    %vm2767 = vcmask 211968
    %v2768 = vsel %vm2767, %v2762, %v2764
    %v2769 = vsel %vm2767, %v2764, %v2766
    %v2773 = vadd.f32 %v2629, %v2762
    %v2774 = vadd.f32 %v2630, %v2768
    %v2775 = vadd.f32 %v2631, %v2769
    %s2776 = scalar_lea.vmem %s2, 67
    %v2777 = vld [vmem:[%s2776] ss:$8 sm:$0x3]
    %v2779 = vlaneseq
    %v2780 = vshrl.u32 %v2779, 7
    %v2781 = vsub.s32 0, %v2780
    %v2782 = vrot.slane %v2777, %v2781
    %v2783 = vlaneseq
    %v2784 = vshrl.u32 %v2783, 7
    %v2785 = vsub.s32 1, %v2784
    %v2786 = vrot.slane %v2777, %v2785
    %2787 = vrot.lane.b32.xlu0 %v2782, 36
    %v2788 = vpop.permute.xlu0 %2787
    %2789 = vrot.lane.b32.xlu0 %v2786, 36
    %v2790 = vpop.permute.xlu0 %2789
    %vm2791 = vcmask 293888
    %v2792 = vsel %vm2791, %v2788, %v2790
    %v2796 = vmul.f32 %v1592, %v2788
    %v2797 = vmul.f32 %v1593, %v2792
    %v2798 = vmul.f32 %v1594, %v2790
    %2799 = vset.pattern.permute.xlu0 19
    %2800 = vperm.xlu0 %2799, %v104
    %v2801 = vpop.permute.xlu0 %2800
    %v2803 = vmul.f32 %v2796, %v2801
    %v2804 = vmul.f32 %v2797, %v2801
    %v2805 = vmul.f32 %v2798, %v2801
    %2809 = vrot.lane.b32.xlu0 %v2803, 24
    %v2810 = vpop.permute.xlu0 %2809
    %2811 = vrot.lane.b32.xlu0 %v2804, 24
    %v2812 = vpop.permute.xlu0 %2811
    %2813 = vrot.lane.b32.xlu0 %v2805, 24
    %v2814 = vpop.permute.xlu0 %2813
    %vm2815 = vcmask 195584
    %v2816 = vsel %vm2815, %v2810, %v2812
    %v2817 = vsel %vm2815, %v2812, %v2814
    %v2821 = vadd.f32 %v2773, %v2810
    %v2822 = vadd.f32 %v2774, %v2816
    %v2823 = vadd.f32 %v2775, %v2817
    %s2824 = scalar_lea.vmem %s2, 68
    %v2825 = vld [vmem:[%s2824] ss:$8 sm:$0x3]
    %v2827 = vlaneseq
    %v2828 = vshrl.u32 %v2827, 7
    %v2829 = vsub.s32 0, %v2828
    %v2830 = vrot.slane %v2825, %v2829
    %v2831 = vlaneseq
    %v2832 = vshrl.u32 %v2831, 7
    %v2833 = vsub.s32 1, %v2832
    %v2834 = vrot.slane %v2825, %v2833
    %2835 = vrot.lane.b32.xlu0 %v2830, 60
    %v2836 = vpop.permute.xlu0 %2835
    %2837 = vrot.lane.b32.xlu0 %v2834, 60
    %v2838 = vpop.permute.xlu0 %2837
    %v2839 = vsel %vm96, %v2836, %v2838
    %v2843 = vmul.f32 %v1592, %v2836
    %v2844 = vmul.f32 %v1593, %v2839
    %v2845 = vmul.f32 %v1594, %v2838
    %2846 = vset.pattern.permute.xlu0 20
    %2847 = vperm.xlu0 %2846, %v104
    %v2848 = vpop.permute.xlu0 %2847
    %v2850 = vmul.f32 %v2843, %v2848
    %v2851 = vmul.f32 %v2844, %v2848
    %v2852 = vmul.f32 %v2845, %v2848
    %v2853 = vadd.f32 %v2821, %v2850
    %v2854 = vadd.f32 %v2822, %v2851
    %v2855 = vadd.f32 %v2823, %v2852
    %s2856 = scalar_lea.vmem %s2, 69
    %v2857 = vld [vmem:[%s2856] ss:$8 sm:$0x3]
    %v2859 = vlaneseq
    %v2860 = vshrl.u32 %v2859, 7
    %v2861 = vsub.s32 0, %v2860
    %v2862 = vrot.slane %v2857, %v2861
    %v2863 = vlaneseq
    %v2864 = vshrl.u32 %v2863, 7
    %v2865 = vsub.s32 1, %v2864
    %v2866 = vrot.slane %v2857, %v2865
    %2867 = vrot.lane.b32.xlu0 %v2862, 62
    %v2868 = vpop.permute.xlu0 %2867
    %2869 = vrot.lane.b32.xlu0 %v2866, 62
    %v2870 = vpop.permute.xlu0 %2869
    %v2871 = vsel %vm131, %v2868, %v2870
    %v2875 = vmul.f32 %v1592, %v2868
    %v2876 = vmul.f32 %v1593, %v2871
    %v2877 = vmul.f32 %v1594, %v2870
    %2878 = vset.pattern.permute.xlu0 21
    %2879 = vperm.xlu0 %2878, %v104
    %v2880 = vpop.permute.xlu0 %2879
    %v2882 = vmul.f32 %v2875, %v2880
    %v2883 = vmul.f32 %v2876, %v2880
    %v2884 = vmul.f32 %v2877, %v2880
    %2888 = vrot.lane.b32.xlu0 %v2882, 126
    %v2889 = vpop.permute.xlu0 %2888
    %2890 = vrot.lane.b32.xlu0 %v2883, 126
    %v2891 = vpop.permute.xlu0 %2890
    %2892 = vrot.lane.b32.xlu0 %v2884, 126
    %v2893 = vpop.permute.xlu0 %2892
    %v2894 = vsel %vm155, %v2889, %v2891
    %v2895 = vsel %vm155, %v2891, %v2893
    %v2899 = vadd.f32 %v2853, %v2894
    %v2900 = vadd.f32 %v2854, %v2895
    %v2901 = vadd.f32 %v2855, %v2893
    %s2902 = scalar_lea.vmem %s2, 70
    %v2903 = vld [vmem:[%s2902] ss:$8 sm:$0x3]
    %v2905 = vlaneseq
    %v2906 = vshrl.u32 %v2905, 7
    %v2907 = vsub.s32 0, %v2906
    %v2908 = vrot.slane %v2903, %v2907
    %v2909 = vlaneseq
    %v2910 = vshrl.u32 %v2909, 7
    %v2911 = vsub.s32 1, %v2910
    %v2912 = vrot.slane %v2903, %v2911
    %2913 = vrot.lane.b32.xlu0 %v2908, 64
    %v2914 = vpop.permute.xlu0 %2913
    %2915 = vrot.lane.b32.xlu0 %v2912, 64
    %v2916 = vpop.permute.xlu0 %2915
    %v2917 = vsel %vm179, %v2914, %v2916
    %v2921 = vmul.f32 %v1592, %v2914
    %v2922 = vmul.f32 %v1593, %v2917
    %v2923 = vmul.f32 %v1594, %v2916
    %2924 = vset.pattern.permute.xlu0 22
    %2925 = vperm.xlu0 %2924, %v104
    %v2926 = vpop.permute.xlu0 %2925
    %v2928 = vmul.f32 %v2921, %v2926
    %v2929 = vmul.f32 %v2922, %v2926
    %v2930 = vmul.f32 %v2923, %v2926
    %2934 = vrot.lane.b32.xlu0 %v2928, 124
    %v2935 = vpop.permute.xlu0 %2934
    %2936 = vrot.lane.b32.xlu0 %v2929, 124
    %v2937 = vpop.permute.xlu0 %2936
    %2938 = vrot.lane.b32.xlu0 %v2930, 124
    %v2939 = vpop.permute.xlu0 %2938
    %v2940 = vsel %vm203, %v2935, %v2937
    %v2941 = vsel %vm203, %v2937, %v2939
    %v2945 = vadd.f32 %v2899, %v2940
    %v2946 = vadd.f32 %v2900, %v2941
    %v2947 = vadd.f32 %v2901, %v2939
    %s2948 = scalar_lea.vmem %s2, 71
    %v2949 = vld [vmem:[%s2948] ss:$8 sm:$0x3]
    %v2951 = vlaneseq
    %v2952 = vshrl.u32 %v2951, 7
    %v2953 = vsub.s32 0, %v2952
    %v2954 = vrot.slane %v2949, %v2953
    %v2955 = vlaneseq
    %v2956 = vshrl.u32 %v2955, 7
    %v2957 = vsub.s32 1, %v2956
    %v2958 = vrot.slane %v2949, %v2957
    %2959 = vrot.lane.b32.xlu0 %v2954, 66
    %v2960 = vpop.permute.xlu0 %2959
    %2961 = vrot.lane.b32.xlu0 %v2958, 66
    %v2962 = vpop.permute.xlu0 %2961
    %v2963 = vsel %vm227, %v2960, %v2962
    %v2967 = vmul.f32 %v1592, %v2960
    %v2968 = vmul.f32 %v1593, %v2963
    %v2969 = vmul.f32 %v1594, %v2962
    %2970 = vset.pattern.permute.xlu0 23
    %2971 = vperm.xlu0 %2970, %v104
    %v2972 = vpop.permute.xlu0 %2971
    %v2974 = vmul.f32 %v2967, %v2972
    %v2975 = vmul.f32 %v2968, %v2972
    %v2976 = vmul.f32 %v2969, %v2972
    %2980 = vrot.lane.b32.xlu0 %v2974, 122
    %v2981 = vpop.permute.xlu0 %2980
    %2982 = vrot.lane.b32.xlu0 %v2975, 122
    %v2983 = vpop.permute.xlu0 %2982
    %2984 = vrot.lane.b32.xlu0 %v2976, 122
    %v2985 = vpop.permute.xlu0 %2984
    %v2986 = vsel %vm251, %v2981, %v2983
    %v2987 = vsel %vm251, %v2983, %v2985
    %v2991 = vadd.f32 %v2945, %v2986
    %v2992 = vadd.f32 %v2946, %v2987
    %v2993 = vadd.f32 %v2947, %v2985
    %s2994 = scalar_lea.vmem %s2, 80
    %v2995 = vld [vmem:[%s2994] ss:$8 sm:$0x3]
    %v2997 = vlaneseq
    %v2998 = vshrl.u32 %v2997, 7
    %v2999 = vsub.s32 0, %v2998
    %v3000 = vrot.slane %v2995, %v2999
    %v3001 = vlaneseq
    %v3002 = vshrl.u32 %v3001, 7
    %v3003 = vsub.s32 1, %v3002
    %v3004 = vrot.slane %v2995, %v3003
    %3005 = vrot.lane.b32.xlu0 %v3000, 68
    %v3006 = vpop.permute.xlu0 %3005
    %3007 = vrot.lane.b32.xlu0 %v3004, 68
    %v3008 = vpop.permute.xlu0 %3007
    %v3009 = vsel %vm275, %v3006, %v3008
    %v3013 = vmul.f32 %v1592, %v3006
    %v3014 = vmul.f32 %v1593, %v3009
    %v3015 = vmul.f32 %v1594, %v3008
    %3016 = vset.pattern.permute.xlu0 24
    %3017 = vperm.xlu0 %3016, %v104
    %v3018 = vpop.permute.xlu0 %3017
    %v3020 = vmul.f32 %v3013, %v3018
    %v3021 = vmul.f32 %v3014, %v3018
    %v3022 = vmul.f32 %v3015, %v3018
    %3026 = vrot.lane.b32.xlu0 %v3020, 120
    %v3027 = vpop.permute.xlu0 %3026
    %3028 = vrot.lane.b32.xlu0 %v3021, 120
    %v3029 = vpop.permute.xlu0 %3028
    %3030 = vrot.lane.b32.xlu0 %v3022, 120
    %v3031 = vpop.permute.xlu0 %3030
    %v3032 = vsel %vm299, %v3027, %v3029
    %v3033 = vsel %vm299, %v3029, %v3031
    %v3037 = vadd.f32 %v2991, %v3032
    %v3038 = vadd.f32 %v2992, %v3033
    %v3039 = vadd.f32 %v2993, %v3031
    %v3040 = vld [vmem:[%s4] sm:$0x3]
    %v3042 = vlaneseq
    %v3043 = vshrl.u32 %v3042, 7
    %v3044 = vsub.s32 0, %v3043
    %v3045 = vrot.slane %v3040, %v3044
    %v3046 = vlaneseq
    %v3047 = vshrl.u32 %v3046, 7
    %v3048 = vsub.s32 1, %v3047
    %v3049 = vrot.slane %v3040, %v3048
    %3050 = vrot.lane.b32.xlu0 %v3045, 111
    %v3051 = vpop.permute.xlu0 %3050
    %3052 = vrot.lane.b32.xlu0 %v3049, 111
    %v3053 = vpop.permute.xlu0 %3052
    %v3054 = vsel %vm824, %v3051, %v3053
    %v3058 = vmul.f32 %v2247, %v3051
    %v3059 = vmul.f32 %v2248, %v3054
    %v3060 = vmul.f32 %v2249, %v3053
    %3064 = vrot.lane.b32.xlu0 %v2271, 17
    %v3065 = vpop.permute.xlu0 %3064
    %3066 = vrot.lane.b32.xlu0 %v2272, 17
    %v3067 = vpop.permute.xlu0 %3066
    %3068 = vrot.lane.b32.xlu0 %v2273, 17
    %v3069 = vpop.permute.xlu0 %3068
    %v3070 = vsel %vm2186, %v3065, %v3067
    %v3071 = vsel %vm2186, %v3067, %v3069
    %vm3074 = vcmask 64512
    %v3076 = vsel %vm3074, %v74, 0
    %3078 = vmatprep.subr.mxu0 0.0
    %3079 = vmatpush1.msra.mxu0 0.0
    %3080 = vmatprep.subr.mxu0 0.0
    %3081 = vmatpush1.msra.mxu0 0.0
    %3082 = vmatprep.subr.mxu0 0.0
    %3083 = vmatpush1.msra.mxu0 0.0
    %3084 = vmatprep.subr.mxu0 0.0
    %3085 = vmatpush1.msra.mxu0 0.0
    %3086 = vmatprep.subr.mxu0 0.0
    %3087 = vmatpush1.msra.mxu0 0.0
    %3088 = vmatprep.subr.mxu0 0.0
    %3089 = vmatpush1.msra.mxu0 0.0
    %3090 = vmatprep.subr.mxu0 0.0
    %3091 = vmatpush1.msra.mxu0 0.0
    %3092 = vmatprep.subr.mxu0 0.0
    %3093 = vmatpush1.msra.mxu0 0.0
    %3094 = vmatprep.subr.mxu0 0.0
    %3095 = vmatpush1.msra.mxu0 0.0
    %3096 = vmatprep.subr.mxu0 0.0
    %3097 = vmatpush1.msra.mxu0 0.0
    %3098 = vmatprep.subr.mxu0 0.0
    %3099 = vmatpush1.msra.mxu0 0.0
    %3100 = vmatprep.subr.mxu0 0.0
    %3101 = vmatpush1.msra.mxu0 0.0
    %3102 = vmatprep.subr.mxu0 0.0
    %3103 = vmatpush1.msra.mxu0 0.0
    %3104 = vmatprep.subr.mxu0 0.0
    %3105 = vmatpush1.msra.mxu0 0.0
    %3106 = vmatprep.subr.mxu0 0.0
    %3107 = vmatpush1.msra.mxu0 0.0
    %3108 = vmatprep.subr.mxu0 %v3071
    %3109 = vmatpush1.msra.mxu0 %v3070
    %3110 = vmatprep.subr.mxu0 0.0
    %3111 = vmatpush2.msra.mxu0 0.0
    %3112 = vmatprep.subr.mxu0 0.0
    %3113 = vmatpush2.msra.mxu0 0.0
    %3114 = vmatprep.subr.mxu0 0.0
    %3115 = vmatpush2.msra.mxu0 0.0
    %3116 = vmatprep.subr.mxu0 0.0
    %3117 = vmatpush2.msra.mxu0 0.0
    %3118 = vmatprep.subr.mxu0 0.0
    %3119 = vmatpush2.msra.mxu0 0.0
    %3120 = vmatprep.subr.mxu0 0.0
    %3121 = vmatpush2.msra.mxu0 0.0
    %3122 = vmatprep.subr.mxu0 0.0
    %3123 = vmatpush2.msra.mxu0 0.0
    %3124 = vmatprep.subr.mxu0 0.0
    %3125 = vmatpush2.msra.mxu0 0.0
    %3126 = vmatprep.subr.mxu0 0.0
    %3127 = vmatpush2.msra.mxu0 0.0
    %3128 = vmatprep.subr.mxu0 0.0
    %3129 = vmatpush2.msra.mxu0 0.0
    %3130 = vmatprep.subr.mxu0 0.0
    %3131 = vmatpush2.msra.mxu0 0.0
    %3132 = vmatprep.subr.mxu0 0.0
    %3133 = vmatpush2.msra.mxu0 0.0
    %3134 = vmatprep.subr.mxu0 0.0
    %3135 = vmatpush2.msra.mxu0 0.0
    %3136 = vmatprep.subr.mxu0 0.0
    %3137 = vmatpush2.msra.mxu0 0.0
    %3138 = vmatprep.subr.mxu0 0.0
    %3139 = vmatpush2.msra.mxu0 0.0
    %3140 = vmatprep.subr.mxu0 0.0
    %3141 = vmatpush2.msra.mxu0 0.0
    %3142 = vmatprep.mubr.f32.mxu0 0.0
    %3143 = vmatmul.mubr.f32.gmra.mxu0 %v3076
    %v3144 = vpop.f32.mrf.mxu0
    %v3145 = vadd.f32 0.0, %v3144
    %v3146 = vpop.f32.mrf.mxu0
    %v3147 = vadd.f32 0.0, %v3146
    %3148 = vdwg.mxu0
    %v3149 = vmul.f32 %v2271, %v2271
    %v3150 = vmul.f32 %v2272, %v2272
    %v3151 = vmul.f32 %v2273, %v2273
    %3155 = vrot.lane.b32.xlu0 %v3149, 17
    %v3156 = vpop.permute.xlu0 %3155
    %3157 = vrot.lane.b32.xlu0 %v3150, 17
    %v3158 = vpop.permute.xlu0 %3157
    %3159 = vrot.lane.b32.xlu0 %v3151, 17
    %v3160 = vpop.permute.xlu0 %3159
    %v3161 = vsel %vm2186, %v3156, %v3158
    %v3162 = vsel %vm2186, %v3158, %v3160
    %3165 = vmatprep.subr.mxu0 0.0
    %3166 = vmatpush1.msra.mxu0 0.0
    %3167 = vmatprep.subr.mxu0 0.0
    %3168 = vmatpush1.msra.mxu0 0.0
    %3169 = vmatprep.subr.mxu0 0.0
    %3170 = vmatpush1.msra.mxu0 0.0
    %3171 = vmatprep.subr.mxu0 0.0
    %3172 = vmatpush1.msra.mxu0 0.0
    %3173 = vmatprep.subr.mxu0 0.0
    %3174 = vmatpush1.msra.mxu0 0.0
    %3175 = vmatprep.subr.mxu0 0.0
    %3176 = vmatpush1.msra.mxu0 0.0
    %3177 = vmatprep.subr.mxu0 0.0
    %3178 = vmatpush1.msra.mxu0 0.0
    %3179 = vmatprep.subr.mxu0 0.0
    %3180 = vmatpush1.msra.mxu0 0.0
    %3181 = vmatprep.subr.mxu0 0.0
    %3182 = vmatpush1.msra.mxu0 0.0
    %3183 = vmatprep.subr.mxu0 0.0
    %3184 = vmatpush1.msra.mxu0 0.0
    %3185 = vmatprep.subr.mxu0 0.0
    %3186 = vmatpush1.msra.mxu0 0.0
    %3187 = vmatprep.subr.mxu0 0.0
    %3188 = vmatpush1.msra.mxu0 0.0
    %3189 = vmatprep.subr.mxu0 0.0
    %3190 = vmatpush1.msra.mxu0 0.0
    %3191 = vmatprep.subr.mxu0 0.0
    %3192 = vmatpush1.msra.mxu0 0.0
    %3193 = vmatprep.subr.mxu0 0.0
    %3194 = vmatpush1.msra.mxu0 0.0
    %3195 = vmatprep.subr.mxu0 %v3162
    %3196 = vmatpush1.msra.mxu0 %v3161
    %3197 = vmatprep.subr.mxu0 0.0
    %3198 = vmatpush2.msra.mxu0 0.0
    %3199 = vmatprep.subr.mxu0 0.0
    %3200 = vmatpush2.msra.mxu0 0.0
    %3201 = vmatprep.subr.mxu0 0.0
    %3202 = vmatpush2.msra.mxu0 0.0
    %3203 = vmatprep.subr.mxu0 0.0
    %3204 = vmatpush2.msra.mxu0 0.0
    %3205 = vmatprep.subr.mxu0 0.0
    %3206 = vmatpush2.msra.mxu0 0.0
    %3207 = vmatprep.subr.mxu0 0.0
    %3208 = vmatpush2.msra.mxu0 0.0
    %3209 = vmatprep.subr.mxu0 0.0
    %3210 = vmatpush2.msra.mxu0 0.0
    %3211 = vmatprep.subr.mxu0 0.0
    %3212 = vmatpush2.msra.mxu0 0.0
    %3213 = vmatprep.subr.mxu0 0.0
    %3214 = vmatpush2.msra.mxu0 0.0
    %3215 = vmatprep.subr.mxu0 0.0
    %3216 = vmatpush2.msra.mxu0 0.0
    %3217 = vmatprep.subr.mxu0 0.0
    %3218 = vmatpush2.msra.mxu0 0.0
    %3219 = vmatprep.subr.mxu0 0.0
    %3220 = vmatpush2.msra.mxu0 0.0
    %3221 = vmatprep.subr.mxu0 0.0
    %3222 = vmatpush2.msra.mxu0 0.0
    %3223 = vmatprep.subr.mxu0 0.0
    %3224 = vmatpush2.msra.mxu0 0.0
    %3225 = vmatprep.subr.mxu0 0.0
    %3226 = vmatpush2.msra.mxu0 0.0
    %3227 = vmatprep.subr.mxu0 0.0
    %3228 = vmatpush2.msra.mxu0 0.0
    %3229 = vmatprep.mubr.f32.mxu0 0.0
    %3230 = vmatmul.mubr.f32.gmra.mxu0 %v3076
    %v3231 = vpop.f32.mrf.mxu0
    %v3232 = vadd.f32 0.0, %v3231
    %v3233 = vpop.f32.mrf.mxu0
    %v3234 = vadd.f32 0.0, %v3233
    %3235 = vdwg.mxu0
    %v3236 = vadd.f32 %v3145, %v3147
    %3237 = vadd.xlane.f32.xlu0 %v3236
    %v3238 = vpop.xlane.xlu0 %3237
    %v3239 = vmul.f32 %v3238, 0.001953125
    %v3240 = vadd.f32 %v3232, %v3234
    %3241 = vadd.xlane.f32.xlu0 %v3240
    %v3242 = vpop.xlane.xlu0 %3241
    %v3243 = vmul.f32 %v3242, 0.001953125
    %v3244 = vmul.f32 %v3239, %v3239
    %v3245 = vsub.f32 %v3243, %v3244
    %v3246 = vadd.f32 %v3245, 1e-05
    %v3247 = vrsqrt.pop %v3246
    %v3248 = vsub.f32 %v2271, %v3239
    %v3249 = vsub.f32 %v2272, %v3239
    %v3250 = vsub.f32 %v2273, %v3239
    %v3251 = vmul.f32 %v3248, %v3247
    %v3252 = vmul.f32 %v3249, %v3247
    %v3253 = vmul.f32 %v3250, %v3247
    %v3254 = vmax.f32 %v3251, 0.0
    %v3255 = vmax.f32 %v3252, 0.0
    %v3256 = vmax.f32 %v3253, 0.0
    %v3257 = vld [vmem:[%s7] sm:$0xff]
    %3261 = vrot.lane.b32.xlu0 %v3254, 17
    %v3262 = vpop.permute.xlu0 %3261
    %3263 = vrot.lane.b32.xlu0 %v3255, 17
    %v3264 = vpop.permute.xlu0 %3263
    %3265 = vrot.lane.b32.xlu0 %v3256, 17
    %v3266 = vpop.permute.xlu0 %3265
    %v3267 = vsel %vm2186, %v3262, %v3264
    %v3268 = vsel %vm2186, %v3264, %v3266
    %v3272 = vsel %vm3074, %v3257, 0
    %3274 = vmatprep.subr.mxu0 0.0
    %3275 = vmatpush1.msra.mxu0 0.0
    %3276 = vmatprep.subr.mxu0 0.0
    %3277 = vmatpush1.msra.mxu0 0.0
    %3278 = vmatprep.subr.mxu0 0.0
    %3279 = vmatpush1.msra.mxu0 0.0
    %3280 = vmatprep.subr.mxu0 0.0
    %3281 = vmatpush1.msra.mxu0 0.0
    %3282 = vmatprep.subr.mxu0 0.0
    %3283 = vmatpush1.msra.mxu0 0.0
    %3284 = vmatprep.subr.mxu0 0.0
    %3285 = vmatpush1.msra.mxu0 0.0
    %3286 = vmatprep.subr.mxu0 0.0
    %3287 = vmatpush1.msra.mxu0 0.0
    %3288 = vmatprep.subr.mxu0 0.0
    %3289 = vmatpush1.msra.mxu0 0.0
    %3290 = vmatprep.subr.mxu0 0.0
    %3291 = vmatpush1.msra.mxu0 0.0
    %3292 = vmatprep.subr.mxu0 0.0
    %3293 = vmatpush1.msra.mxu0 0.0
    %3294 = vmatprep.subr.mxu0 0.0
    %3295 = vmatpush1.msra.mxu0 0.0
    %3296 = vmatprep.subr.mxu0 0.0
    %3297 = vmatpush1.msra.mxu0 0.0
    %3298 = vmatprep.subr.mxu0 0.0
    %3299 = vmatpush1.msra.mxu0 0.0
    %3300 = vmatprep.subr.mxu0 0.0
    %3301 = vmatpush1.msra.mxu0 0.0
    %3302 = vmatprep.subr.mxu0 0.0
    %3303 = vmatpush1.msra.mxu0 0.0
    %3304 = vmatprep.subr.mxu0 %v3268
    %3305 = vmatpush1.msra.mxu0 %v3267
    %3306 = vmatprep.subr.mxu0 0.0
    %3307 = vmatpush2.msra.mxu0 0.0
    %3308 = vmatprep.subr.mxu0 0.0
    %3309 = vmatpush2.msra.mxu0 0.0
    %3310 = vmatprep.subr.mxu0 0.0
    %3311 = vmatpush2.msra.mxu0 0.0
    %3312 = vmatprep.subr.mxu0 0.0
    %3313 = vmatpush2.msra.mxu0 0.0
    %3314 = vmatprep.subr.mxu0 0.0
    %3315 = vmatpush2.msra.mxu0 0.0
    %3316 = vmatprep.subr.mxu0 0.0
    %3317 = vmatpush2.msra.mxu0 0.0
    %3318 = vmatprep.subr.mxu0 0.0
    %3319 = vmatpush2.msra.mxu0 0.0
    %3320 = vmatprep.subr.mxu0 0.0
    %3321 = vmatpush2.msra.mxu0 0.0
    %3322 = vmatprep.subr.mxu0 0.0
    %3323 = vmatpush2.msra.mxu0 0.0
    %3324 = vmatprep.subr.mxu0 0.0
    %3325 = vmatpush2.msra.mxu0 0.0
    %3326 = vmatprep.subr.mxu0 0.0
    %3327 = vmatpush2.msra.mxu0 0.0
    %3328 = vmatprep.subr.mxu0 0.0
    %3329 = vmatpush2.msra.mxu0 0.0
    %3330 = vmatprep.subr.mxu0 0.0
    %3331 = vmatpush2.msra.mxu0 0.0
    %3332 = vmatprep.subr.mxu0 0.0
    %3333 = vmatpush2.msra.mxu0 0.0
    %3334 = vmatprep.subr.mxu0 0.0
    %3335 = vmatpush2.msra.mxu0 0.0
    %3336 = vmatprep.subr.mxu0 0.0
    %3337 = vmatpush2.msra.mxu0 0.0
    %3338 = vmatprep.mubr.f32.mxu0 0.0
    %3339 = vmatmul.mubr.f32.gmra.mxu0 %v3272
    %v3340 = vpop.f32.mrf.mxu0
    %v3341 = vadd.f32 0.0, %v3340
    %v3342 = vpop.f32.mrf.mxu0
    %v3343 = vadd.f32 0.0, %v3342
    %3344 = vdwg.mxu0
    %3345 = vmatprep.subr.mxu0 0.0
    %3346 = vmatpush1.msra.mxu0 0.0
    %3347 = vmatprep.subr.mxu0 0.0
    %3348 = vmatpush1.msra.mxu0 0.0
    %3349 = vmatprep.subr.mxu0 0.0
    %3350 = vmatpush1.msra.mxu0 0.0
    %3351 = vmatprep.subr.mxu0 0.0
    %3352 = vmatpush1.msra.mxu0 0.0
    %3353 = vmatprep.subr.mxu0 0.0
    %3354 = vmatpush1.msra.mxu0 0.0
    %3355 = vmatprep.subr.mxu0 0.0
    %3356 = vmatpush1.msra.mxu0 0.0
    %3357 = vmatprep.subr.mxu0 0.0
    %3358 = vmatpush1.msra.mxu0 0.0
    %3359 = vmatprep.subr.mxu0 0.0
    %3360 = vmatpush1.msra.mxu0 0.0
    %3361 = vmatprep.subr.mxu0 0.0
    %3362 = vmatpush1.msra.mxu0 0.0
    %3363 = vmatprep.subr.mxu0 0.0
    %3364 = vmatpush1.msra.mxu0 0.0
    %3365 = vmatprep.subr.mxu0 0.0
    %3366 = vmatpush1.msra.mxu0 0.0
    %3367 = vmatprep.subr.mxu0 0.0
    %3368 = vmatpush1.msra.mxu0 0.0
    %3369 = vmatprep.subr.mxu0 0.0
    %3370 = vmatpush1.msra.mxu0 0.0
    %3371 = vmatprep.subr.mxu0 0.0
    %3372 = vmatpush1.msra.mxu0 0.0
    %3373 = vmatprep.subr.mxu0 0.0
    %3374 = vmatpush1.msra.mxu0 0.0
    %3375 = vmatprep.subr.mxu0 %v3343
    %3376 = vmatpush1.msra.mxu0 %v3341
    %3377 = vmatprep.subr.mxu0 0.0
    %3378 = vmatpush2.msra.mxu0 0.0
    %3379 = vmatprep.subr.mxu0 0.0
    %3380 = vmatpush2.msra.mxu0 0.0
    %3381 = vmatprep.subr.mxu0 0.0
    %3382 = vmatpush2.msra.mxu0 0.0
    %3383 = vmatprep.subr.mxu0 0.0
    %3384 = vmatpush2.msra.mxu0 0.0
    %3385 = vmatprep.subr.mxu0 0.0
    %3386 = vmatpush2.msra.mxu0 0.0
    %3387 = vmatprep.subr.mxu0 0.0
    %3388 = vmatpush2.msra.mxu0 0.0
    %3389 = vmatprep.subr.mxu0 0.0
    %3390 = vmatpush2.msra.mxu0 0.0
    %3391 = vmatprep.subr.mxu0 0.0
    %3392 = vmatpush2.msra.mxu0 0.0
    %3393 = vmatprep.subr.mxu0 0.0
    %3394 = vmatpush2.msra.mxu0 0.0
    %3395 = vmatprep.subr.mxu0 0.0
    %3396 = vmatpush2.msra.mxu0 0.0
    %3397 = vmatprep.subr.mxu0 0.0
    %3398 = vmatpush2.msra.mxu0 0.0
    %3399 = vmatprep.subr.mxu0 0.0
    %3400 = vmatpush2.msra.mxu0 0.0
    %3401 = vmatprep.subr.mxu0 0.0
    %3402 = vmatpush2.msra.mxu0 0.0
    %3403 = vmatprep.subr.mxu0 0.0
    %3404 = vmatpush2.msra.mxu0 0.0
    %3405 = vmatprep.subr.mxu0 0.0
    %3406 = vmatpush2.msra.mxu0 0.0
    %3407 = vmatprep.subr.mxu0 0.0
    %3408 = vmatpush2.msra.mxu0 0.0
    %3409 = vmatprep.mubr.f32.mxu0 0.0
    %3410 = vmatmul.mubr.f32.gmra.mxu0 %v3076
    %v3411 = vpop.f32.mrf.mxu0
    %v3412 = vadd.f32 0.0, %v3411
    %v3413 = vpop.f32.mrf.mxu0
    %v3414 = vadd.f32 0.0, %v3413
    %3415 = vdwg.mxu0
    %v3416 = vmul.f32 %v3341, %v3341
    %v3417 = vmul.f32 %v3343, %v3343
    %3418 = vmatprep.subr.mxu0 0.0
    %3419 = vmatpush1.msra.mxu0 0.0
    %3420 = vmatprep.subr.mxu0 0.0
    %3421 = vmatpush1.msra.mxu0 0.0
    %3422 = vmatprep.subr.mxu0 0.0
    %3423 = vmatpush1.msra.mxu0 0.0
    %3424 = vmatprep.subr.mxu0 0.0
    %3425 = vmatpush1.msra.mxu0 0.0
    %3426 = vmatprep.subr.mxu0 0.0
    %3427 = vmatpush1.msra.mxu0 0.0
    %3428 = vmatprep.subr.mxu0 0.0
    %3429 = vmatpush1.msra.mxu0 0.0
    %3430 = vmatprep.subr.mxu0 0.0
    %3431 = vmatpush1.msra.mxu0 0.0
    %3432 = vmatprep.subr.mxu0 0.0
    %3433 = vmatpush1.msra.mxu0 0.0
    %3434 = vmatprep.subr.mxu0 0.0
    %3435 = vmatpush1.msra.mxu0 0.0
    %3436 = vmatprep.subr.mxu0 0.0
    %3437 = vmatpush1.msra.mxu0 0.0
    %3438 = vmatprep.subr.mxu0 0.0
    %3439 = vmatpush1.msra.mxu0 0.0
    %3440 = vmatprep.subr.mxu0 0.0
    %3441 = vmatpush1.msra.mxu0 0.0
    %3442 = vmatprep.subr.mxu0 0.0
    %3443 = vmatpush1.msra.mxu0 0.0
    %3444 = vmatprep.subr.mxu0 0.0
    %3445 = vmatpush1.msra.mxu0 0.0
    %3446 = vmatprep.subr.mxu0 0.0
    %3447 = vmatpush1.msra.mxu0 0.0
    %3448 = vmatprep.subr.mxu0 %v3417
    %3449 = vmatpush1.msra.mxu0 %v3416
    %3450 = vmatprep.subr.mxu0 0.0
    %3451 = vmatpush2.msra.mxu0 0.0
    %3452 = vmatprep.subr.mxu0 0.0
    %3453 = vmatpush2.msra.mxu0 0.0
    %3454 = vmatprep.subr.mxu0 0.0
    %3455 = vmatpush2.msra.mxu0 0.0
    %3456 = vmatprep.subr.mxu0 0.0
    %3457 = vmatpush2.msra.mxu0 0.0
    %3458 = vmatprep.subr.mxu0 0.0
    %3459 = vmatpush2.msra.mxu0 0.0
    %3460 = vmatprep.subr.mxu0 0.0
    %3461 = vmatpush2.msra.mxu0 0.0
    %3462 = vmatprep.subr.mxu0 0.0
    %3463 = vmatpush2.msra.mxu0 0.0
    %3464 = vmatprep.subr.mxu0 0.0
    %3465 = vmatpush2.msra.mxu0 0.0
    %3466 = vmatprep.subr.mxu0 0.0
    %3467 = vmatpush2.msra.mxu0 0.0
    %3468 = vmatprep.subr.mxu0 0.0
    %3469 = vmatpush2.msra.mxu0 0.0
    %3470 = vmatprep.subr.mxu0 0.0
    %3471 = vmatpush2.msra.mxu0 0.0
    %3472 = vmatprep.subr.mxu0 0.0
    %3473 = vmatpush2.msra.mxu0 0.0
    %3474 = vmatprep.subr.mxu0 0.0
    %3475 = vmatpush2.msra.mxu0 0.0
    %3476 = vmatprep.subr.mxu0 0.0
    %3477 = vmatpush2.msra.mxu0 0.0
    %3478 = vmatprep.subr.mxu0 0.0
    %3479 = vmatpush2.msra.mxu0 0.0
    %3480 = vmatprep.subr.mxu0 0.0
    %3481 = vmatpush2.msra.mxu0 0.0
    %3482 = vmatprep.mubr.f32.mxu0 0.0
    %3483 = vmatmul.mubr.f32.gmra.mxu0 %v3076
    %v3484 = vpop.f32.mrf.mxu0
    %v3485 = vadd.f32 0.0, %v3484
    %v3486 = vpop.f32.mrf.mxu0
    %v3487 = vadd.f32 0.0, %v3486
    %3488 = vdwg.mxu0
    %v3489 = vadd.f32 %v3412, %v3414
    %3490 = vadd.xlane.f32.xlu0 %v3489
    %v3491 = vpop.xlane.xlu0 %3490
    %v3492 = vmul.f32 %v3491, 0.001953125
    %v3493 = vadd.f32 %v3485, %v3487
    %3494 = vadd.xlane.f32.xlu0 %v3493
    %v3495 = vpop.xlane.xlu0 %3494
    %v3496 = vmul.f32 %v3495, 0.001953125
    %v3497 = vmul.f32 %v3492, %v3492
    %v3498 = vsub.f32 %v3496, %v3497
    %v3499 = vadd.f32 %v3498, 1e-05
    %v3500 = vrsqrt.pop %v3499
    %v3501 = vsub.f32 %v3341, %v3492
    %v3502 = vsub.f32 %v3343, %v3492
    %v3503 = vmul.f32 %v3501, %v3500
    %v3504 = vmul.f32 %v3502, %v3500
    %3505 = vst [vmem:[#allocation2 + $0x8] sm:$0xff] %v3503
    %3506 = vst [vmem:[#allocation2 + $0x10] sm:$0xff] %v3504
    %v3507 = vld [vmem:[#allocation2] sm:$0xff]
    %v3508 = vld [vmem:[#allocation2 + $0x8] sm:$0xff]
    %v3509 = vld [vmem:[#allocation2 + $0x10] sm:$0xff]
    %v3510 = vld [vmem:[%s809] ss:$8 sm:$0x3]
    %v3512 = vlaneseq
    %v3513 = vshrl.u32 %v3512, 7
    %v3514 = vsub.s32 0, %v3513
    %v3515 = vrot.slane %v3510, %v3514
    %v3516 = vlaneseq
    %v3517 = vshrl.u32 %v3516, 7
    %v3518 = vsub.s32 1, %v3517
    %v3519 = vrot.slane %v3510, %v3518
    %3520 = vrot.lane.b32.xlu0 %v3515, 111
    %v3521 = vpop.permute.xlu0 %3520
    %3522 = vrot.lane.b32.xlu0 %v3519, 111
    %v3523 = vpop.permute.xlu0 %3522
    %v3524 = vsel %vm824, %v3521, %v3523
    %v3528 = vmul.f32 %v3507, %v3521
    %v3529 = vmul.f32 %v3508, %v3524
    %v3530 = vmul.f32 %v3509, %v3523
    %v3531 = vld [vmem:[%s8] sm:$0xff]
    %3533 = vset.pattern.permute.xlu0 0
    %3534 = vperm.xlu0 %3533, %v3531
    %v3535 = vpop.permute.xlu0 %3534
    %v3537 = vmul.f32 %v3528, %v3535
    %v3538 = vmul.f32 %v3529, %v3535
    %v3539 = vmul.f32 %v3530, %v3535
    %v3540 = vadd.f32 %v3537, 0.0
    %v3541 = vadd.f32 %v3538, 0.0
    %v3542 = vadd.f32 %v3539, 0.0
    %v3543 = vld [vmem:[%s892] ss:$8 sm:$0x3]
    %v3545 = vlaneseq
    %v3546 = vshrl.u32 %v3545, 7
    %v3547 = vsub.s32 0, %v3546
    %v3548 = vrot.slane %v3543, %v3547
    %v3549 = vlaneseq
    %v3550 = vshrl.u32 %v3549, 7
    %v3551 = vsub.s32 1, %v3550
    %v3552 = vrot.slane %v3543, %v3551
    %3553 = vrot.lane.b32.xlu0 %v3548, 112
    %v3554 = vpop.permute.xlu0 %3553
    %3555 = vrot.lane.b32.xlu0 %v3552, 112
    %v3556 = vpop.permute.xlu0 %3555
    %v3557 = vsel %vm800, %v3554, %v3556
    %v3561 = vmul.f32 %v3507, %v3554
    %v3562 = vmul.f32 %v3508, %v3557
    %v3563 = vmul.f32 %v3509, %v3556
    %3564 = vset.pattern.permute.xlu0 1
    %3565 = vperm.xlu0 %3564, %v3531
    %v3566 = vpop.permute.xlu0 %3565
    %v3568 = vmul.f32 %v3561, %v3566
    %v3569 = vmul.f32 %v3562, %v3566
    %v3570 = vmul.f32 %v3563, %v3566
    %3574 = vrot.lane.b32.xlu0 %v3568, 127
    %v3575 = vpop.permute.xlu0 %3574
    %3576 = vrot.lane.b32.xlu0 %v3569, 127
    %v3577 = vpop.permute.xlu0 %3576
    %3578 = vrot.lane.b32.xlu0 %v3570, 127
    %v3579 = vpop.permute.xlu0 %3578
    %v3580 = vsel %vm466, %v3575, %v3577
    %v3581 = vsel %vm466, %v3577, %v3579
    %v3585 = vadd.f32 %v3540, %v3580
    %v3586 = vadd.f32 %v3541, %v3581
    %v3587 = vadd.f32 %v3542, %v3579
    %v3588 = vld [vmem:[%s1018] ss:$8 sm:$0x3]
    %v3590 = vlaneseq
    %v3591 = vshrl.u32 %v3590, 7
    %v3592 = vsub.s32 0, %v3591
    %v3593 = vrot.slane %v3588, %v3592
    %v3594 = vlaneseq
    %v3595 = vshrl.u32 %v3594, 7
    %v3596 = vsub.s32 1, %v3595
    %v3597 = vrot.slane %v3588, %v3596
    %3598 = vrot.lane.b32.xlu0 %v3593, 113
    %v3599 = vpop.permute.xlu0 %3598
    %3600 = vrot.lane.b32.xlu0 %v3597, 113
    %v3601 = vpop.permute.xlu0 %3600
    %v3602 = vsel %vm1033, %v3599, %v3601
    %v3606 = vmul.f32 %v3507, %v3599
    %v3607 = vmul.f32 %v3508, %v3602
    %v3608 = vmul.f32 %v3509, %v3601
    %3609 = vset.pattern.permute.xlu0 2
    %3610 = vperm.xlu0 %3609, %v3531
    %v3611 = vpop.permute.xlu0 %3610
    %v3613 = vmul.f32 %v3606, %v3611
    %v3614 = vmul.f32 %v3607, %v3611
    %v3615 = vmul.f32 %v3608, %v3611
    %3619 = vrot.lane.b32.xlu0 %v3613, 126
    %v3620 = vpop.permute.xlu0 %3619
    %3621 = vrot.lane.b32.xlu0 %v3614, 126
    %v3622 = vpop.permute.xlu0 %3621
    %3623 = vrot.lane.b32.xlu0 %v3615, 126
    %v3624 = vpop.permute.xlu0 %3623
    %v3625 = vsel %vm155, %v3620, %v3622
    %v3626 = vsel %vm155, %v3622, %v3624
    %v3630 = vadd.f32 %v3585, %v3625
    %v3631 = vadd.f32 %v3586, %v3626
    %v3632 = vadd.f32 %v3587, %v3624
    %v3633 = vld [vmem:[%s1334] ss:$8 sm:$0x3]
    %v3635 = vlaneseq
    %v3636 = vshrl.u32 %v3635, 7
    %v3637 = vsub.s32 0, %v3636
    %v3638 = vrot.slane %v3633, %v3637
    %v3639 = vlaneseq
    %v3640 = vshrl.u32 %v3639, 7
    %v3641 = vsub.s32 1, %v3640
    %v3642 = vrot.slane %v3633, %v3641
    %3643 = vrot.lane.b32.xlu0 %v3638, 127
    %v3644 = vpop.permute.xlu0 %3643
    %3645 = vrot.lane.b32.xlu0 %v3642, 127
    %v3646 = vpop.permute.xlu0 %3645
    %v3647 = vsel %vm466, %v3644, %v3646
    %v3651 = vmul.f32 %v3507, %v3644
    %v3652 = vmul.f32 %v3508, %v3647
    %v3653 = vmul.f32 %v3509, %v3646
    %3654 = vset.pattern.permute.xlu0 3
    %3655 = vperm.xlu0 %3654, %v3531
    %v3656 = vpop.permute.xlu0 %3655
    %v3658 = vmul.f32 %v3651, %v3656
    %v3659 = vmul.f32 %v3652, %v3656
    %v3660 = vmul.f32 %v3653, %v3656
    %3664 = vrot.lane.b32.xlu0 %v3658, 112
    %v3665 = vpop.permute.xlu0 %3664
    %3666 = vrot.lane.b32.xlu0 %v3659, 112
    %v3667 = vpop.permute.xlu0 %3666
    %3668 = vrot.lane.b32.xlu0 %v3660, 112
    %v3669 = vpop.permute.xlu0 %3668
    %v3670 = vsel %vm800, %v3665, %v3667
    %v3671 = vsel %vm800, %v3667, %v3669
    %v3675 = vadd.f32 %v3630, %v3670
    %v3676 = vadd.f32 %v3631, %v3671
    %v3677 = vadd.f32 %v3632, %v3669
    %v3678 = vld [vmem:[%s1460] ss:$8 sm:$0x3]
    %v3680 = vlaneseq
    %v3681 = vshrl.u32 %v3680, 7
    %v3682 = vsub.s32 0, %v3681
    %v3683 = vrot.slane %v3678, %v3682
    %v3684 = vlaneseq
    %v3685 = vshrl.u32 %v3684, 7
    %v3686 = vsub.s32 1, %v3685
    %v3687 = vrot.slane %v3678, %v3686
    %v3690 = vmul.f32 %v3508, %v3683
    %v3691 = vmul.f32 %v3509, %v3687
    %3692 = vset.pattern.permute.xlu0 4
    %3693 = vperm.xlu0 %3692, %v3531
    %v3694 = vpop.permute.xlu0 %3693
    %v3696 = vmul.f32 %v3690, %v3694
    %v3697 = vmul.f32 %v3691, %v3694
    %3700 = vrot.lane.b32.xlu0 %v3696, 111
    %v3701 = vpop.permute.xlu0 %3700
    %3702 = vrot.lane.b32.xlu0 %v3697, 111
    %v3703 = vpop.permute.xlu0 %3702
    %v3704 = vsel %vm824, %v3701, %v3703
    %v3708 = vadd.f32 %v3675, %v3701
    %v3709 = vadd.f32 %v3676, %v3704
    %v3710 = vadd.f32 %v3677, %v3703
    %v3711 = vld [vmem:[#allocation2 + $0x8] sm:$0xff]
    %v3712 = vld [vmem:[#allocation2 + $0x10] sm:$0xff]
    %v3713 = vld [vmem:[#allocation2 + $0x18] sm:$0xff]
    %v3714 = vld [vmem:[%s1595] ss:$8 sm:$0x3]
    %v3716 = vlaneseq
    %v3717 = vshrl.u32 %v3716, 7
    %v3718 = vsub.s32 0, %v3717
    %v3719 = vrot.slane %v3714, %v3718
    %v3720 = vlaneseq
    %v3721 = vshrl.u32 %v3720, 7
    %v3722 = vsub.s32 1, %v3721
    %v3723 = vrot.slane %v3714, %v3722
    %3724 = vrot.lane.b32.xlu0 %v3719, 1
    %v3725 = vpop.permute.xlu0 %3724
    %3726 = vrot.lane.b32.xlu0 %v3723, 1
    %v3727 = vpop.permute.xlu0 %3726
    %v3728 = vsel %vm1610, %v3725, %v3727
    %v3732 = vmul.f32 %v3711, %v3725
    %v3733 = vmul.f32 %v3712, %v3728
    %v3734 = vmul.f32 %v3713, %v3727
    %3735 = vset.pattern.permute.xlu0 5
    %3736 = vperm.xlu0 %3735, %v3531
    %v3737 = vpop.permute.xlu0 %3736
    %v3739 = vmul.f32 %v3732, %v3737
    %v3740 = vmul.f32 %v3733, %v3737
    %v3741 = vmul.f32 %v3734, %v3737
    %3745 = vrot.lane.b32.xlu0 %v3739, 110
    %v3746 = vpop.permute.xlu0 %3745
    %3747 = vrot.lane.b32.xlu0 %v3740, 110
    %v3748 = vpop.permute.xlu0 %3747
    %3749 = vrot.lane.b32.xlu0 %v3741, 110
    %v3750 = vpop.permute.xlu0 %3749
    %v3751 = vsel %vm776, %v3746, %v3748
    %v3752 = vsel %vm776, %v3748, %v3750
    %v3756 = vadd.f32 %v3708, %v3746
    %v3757 = vadd.f32 %v3709, %v3751
    %v3758 = vadd.f32 %v3710, %v3752
    %v3759 = vld [vmem:[%s1915] ss:$8 sm:$0x3]
    %v3761 = vlaneseq
    %v3762 = vshrl.u32 %v3761, 7
    %v3763 = vsub.s32 0, %v3762
    %v3764 = vrot.slane %v3759, %v3763
    %v3765 = vlaneseq
    %v3766 = vshrl.u32 %v3765, 7
    %v3767 = vsub.s32 1, %v3766
    %v3768 = vrot.slane %v3759, %v3767
    %3769 = vrot.lane.b32.xlu0 %v3764, 15
    %v3770 = vpop.permute.xlu0 %3769
    %3771 = vrot.lane.b32.xlu0 %v3768, 15
    %v3772 = vpop.permute.xlu0 %3771
    %v3773 = vsel %vm1930, %v3770, %v3772
    %v3777 = vmul.f32 %v3711, %v3770
    %v3778 = vmul.f32 %v3712, %v3773
    %v3779 = vmul.f32 %v3713, %v3772
    %3780 = vset.pattern.permute.xlu0 6
    %3781 = vperm.xlu0 %3780, %v3531
    %v3782 = vpop.permute.xlu0 %3781
    %v3784 = vmul.f32 %v3777, %v3782
    %v3785 = vmul.f32 %v3778, %v3782
    %v3786 = vmul.f32 %v3779, %v3782
    %3790 = vrot.lane.b32.xlu0 %v3784, 96
    %v3791 = vpop.permute.xlu0 %3790
    %3792 = vrot.lane.b32.xlu0 %v3785, 96
    %v3793 = vpop.permute.xlu0 %3792
    %3794 = vrot.lane.b32.xlu0 %v3786, 96
    %v3795 = vpop.permute.xlu0 %3794
    %v3796 = vsel %vm347, %v3791, %v3793
    %v3797 = vsel %vm347, %v3793, %v3795
    %v3801 = vadd.f32 %v3756, %v3791
    %v3802 = vadd.f32 %v3757, %v3796
    %v3803 = vadd.f32 %v3758, %v3797
    %v3804 = vld [vmem:[%s2043] ss:$8 sm:$0x3]
    %v3806 = vlaneseq
    %v3807 = vshrl.u32 %v3806, 7
    %v3808 = vsub.s32 0, %v3807
    %v3809 = vrot.slane %v3804, %v3808
    %v3810 = vlaneseq
    %v3811 = vshrl.u32 %v3810, 7
    %v3812 = vsub.s32 1, %v3811
    %v3813 = vrot.slane %v3804, %v3812
    %3814 = vrot.lane.b32.xlu0 %v3809, 16
    %v3815 = vpop.permute.xlu0 %3814
    %3816 = vrot.lane.b32.xlu0 %v3813, 16
    %v3817 = vpop.permute.xlu0 %3816
    %v3818 = vsel %vm2058, %v3815, %v3817
    %v3822 = vmul.f32 %v3711, %v3815
    %v3823 = vmul.f32 %v3712, %v3818
    %v3824 = vmul.f32 %v3713, %v3817
    %3825 = vset.pattern.permute.xlu0 7
    %3826 = vperm.xlu0 %3825, %v3531
    %v3827 = vpop.permute.xlu0 %3826
    %v3829 = vmul.f32 %v3822, %v3827
    %v3830 = vmul.f32 %v3823, %v3827
    %v3831 = vmul.f32 %v3824, %v3827
    %3835 = vrot.lane.b32.xlu0 %v3829, 95
    %v3836 = vpop.permute.xlu0 %3835
    %3837 = vrot.lane.b32.xlu0 %v3830, 95
    %v3838 = vpop.permute.xlu0 %3837
    %3839 = vrot.lane.b32.xlu0 %v3831, 95
    %v3840 = vpop.permute.xlu0 %3839
    %v3841 = vsel %vm442, %v3836, %v3838
    %v3842 = vsel %vm442, %v3838, %v3840
    %v3846 = vadd.f32 %v3801, %v3836
    %v3847 = vadd.f32 %v3802, %v3841
    %v3848 = vadd.f32 %v3803, %v3842
    %v3849 = vld [vmem:[%s2171] ss:$8 sm:$0x3]
    %v3851 = vlaneseq
    %v3852 = vshrl.u32 %v3851, 7
    %v3853 = vsub.s32 0, %v3852
    %v3854 = vrot.slane %v3849, %v3853
    %v3855 = vlaneseq
    %v3856 = vshrl.u32 %v3855, 7
    %v3857 = vsub.s32 1, %v3856
    %v3858 = vrot.slane %v3849, %v3857
    %3859 = vrot.lane.b32.xlu0 %v3854, 17
    %v3860 = vpop.permute.xlu0 %3859
    %3861 = vrot.lane.b32.xlu0 %v3858, 17
    %v3862 = vpop.permute.xlu0 %3861
    %v3863 = vsel %vm2186, %v3860, %v3862
    %v3867 = vmul.f32 %v3711, %v3860
    %v3868 = vmul.f32 %v3712, %v3863
    %v3869 = vmul.f32 %v3713, %v3862
    %3870 = vset.pattern.permute.xlu0 8
    %3871 = vperm.xlu0 %3870, %v3531
    %v3872 = vpop.permute.xlu0 %3871
    %v3874 = vmul.f32 %v3867, %v3872
    %v3875 = vmul.f32 %v3868, %v3872
    %v3876 = vmul.f32 %v3869, %v3872
    %3880 = vrot.lane.b32.xlu0 %v3874, 94
    %v3881 = vpop.permute.xlu0 %3880
    %3882 = vrot.lane.b32.xlu0 %v3875, 94
    %v3883 = vpop.permute.xlu0 %3882
    %3884 = vrot.lane.b32.xlu0 %v3876, 94
    %v3885 = vpop.permute.xlu0 %3884
    %v3886 = vsel %vm371, %v3881, %v3883
    %v3887 = vsel %vm371, %v3883, %v3885
    %v3891 = vadd.f32 %v3846, %v3881
    %v3892 = vadd.f32 %v3847, %v3886
    %v3893 = vadd.f32 %v3848, %v3887
    %3897 = vrot.lane.b32.xlu0 %v3891, 17
    %v3898 = vpop.permute.xlu0 %3897
    %3899 = vrot.lane.b32.xlu0 %v3892, 17
    %v3900 = vpop.permute.xlu0 %3899
    %3901 = vrot.lane.b32.xlu0 %v3893, 17
    %v3902 = vpop.permute.xlu0 %3901
    %v3903 = vsel %vm2186, %v3898, %v3900
    %v3904 = vsel %vm2186, %v3900, %v3902
    %3907 = vmatprep.subr.mxu0 0.0
    %3908 = vmatpush1.msra.mxu0 0.0
    %3909 = vmatprep.subr.mxu0 0.0
    %3910 = vmatpush1.msra.mxu0 0.0
    %3911 = vmatprep.subr.mxu0 0.0
    %3912 = vmatpush1.msra.mxu0 0.0
    %3913 = vmatprep.subr.mxu0 0.0
    %3914 = vmatpush1.msra.mxu0 0.0
    %3915 = vmatprep.subr.mxu0 0.0
    %3916 = vmatpush1.msra.mxu0 0.0
    %3917 = vmatprep.subr.mxu0 0.0
    %3918 = vmatpush1.msra.mxu0 0.0
    %3919 = vmatprep.subr.mxu0 0.0
    %3920 = vmatpush1.msra.mxu0 0.0
    %3921 = vmatprep.subr.mxu0 0.0
    %3922 = vmatpush1.msra.mxu0 0.0
    %3923 = vmatprep.subr.mxu0 0.0
    %3924 = vmatpush1.msra.mxu0 0.0
    %3925 = vmatprep.subr.mxu0 0.0
    %3926 = vmatpush1.msra.mxu0 0.0
    %3927 = vmatprep.subr.mxu0 0.0
    %3928 = vmatpush1.msra.mxu0 0.0
    %3929 = vmatprep.subr.mxu0 0.0
    %3930 = vmatpush1.msra.mxu0 0.0
    %3931 = vmatprep.subr.mxu0 0.0
    %3932 = vmatpush1.msra.mxu0 0.0
    %3933 = vmatprep.subr.mxu0 0.0
    %3934 = vmatpush1.msra.mxu0 0.0
    %3935 = vmatprep.subr.mxu0 0.0
    %3936 = vmatpush1.msra.mxu0 0.0
    %3937 = vmatprep.subr.mxu0 %v3904
    %3938 = vmatpush1.msra.mxu0 %v3903
    %3939 = vmatprep.subr.mxu0 0.0
    %3940 = vmatpush2.msra.mxu0 0.0
    %3941 = vmatprep.subr.mxu0 0.0
    %3942 = vmatpush2.msra.mxu0 0.0
    %3943 = vmatprep.subr.mxu0 0.0
    %3944 = vmatpush2.msra.mxu0 0.0
    %3945 = vmatprep.subr.mxu0 0.0
    %3946 = vmatpush2.msra.mxu0 0.0
    %3947 = vmatprep.subr.mxu0 0.0
    %3948 = vmatpush2.msra.mxu0 0.0
    %3949 = vmatprep.subr.mxu0 0.0
    %3950 = vmatpush2.msra.mxu0 0.0
    %3951 = vmatprep.subr.mxu0 0.0
    %3952 = vmatpush2.msra.mxu0 0.0
    %3953 = vmatprep.subr.mxu0 0.0
    %3954 = vmatpush2.msra.mxu0 0.0
    %3955 = vmatprep.subr.mxu0 0.0
    %3956 = vmatpush2.msra.mxu0 0.0
    %3957 = vmatprep.subr.mxu0 0.0
    %3958 = vmatpush2.msra.mxu0 0.0
    %3959 = vmatprep.subr.mxu0 0.0
    %3960 = vmatpush2.msra.mxu0 0.0
    %3961 = vmatprep.subr.mxu0 0.0
    %3962 = vmatpush2.msra.mxu0 0.0
    %3963 = vmatprep.subr.mxu0 0.0
    %3964 = vmatpush2.msra.mxu0 0.0
    %3965 = vmatprep.subr.mxu0 0.0
    %3966 = vmatpush2.msra.mxu0 0.0
    %3967 = vmatprep.subr.mxu0 0.0
    %3968 = vmatpush2.msra.mxu0 0.0
    %3969 = vmatprep.subr.mxu0 0.0
    %3970 = vmatpush2.msra.mxu0 0.0
    %3971 = vmatprep.mubr.f32.mxu0 0.0
    %3972 = vmatmul.mubr.f32.gmra.mxu0 %v3076
    %v3973 = vpop.f32.mrf.mxu0
    %v3974 = vadd.f32 0.0, %v3973
    %v3975 = vpop.f32.mrf.mxu0
    %v3976 = vadd.f32 0.0, %v3975
    %3977 = vdwg.mxu0
    %v3978 = vmul.f32 %v3891, %v3891
    %v3979 = vmul.f32 %v3892, %v3892
    %v3980 = vmul.f32 %v3893, %v3893
    %3984 = vrot.lane.b32.xlu0 %v3978, 17
    %v3985 = vpop.permute.xlu0 %3984
    %3986 = vrot.lane.b32.xlu0 %v3979, 17
    %v3987 = vpop.permute.xlu0 %3986
    %3988 = vrot.lane.b32.xlu0 %v3980, 17
    %v3989 = vpop.permute.xlu0 %3988
    %v3990 = vsel %vm2186, %v3985, %v3987
    %v3991 = vsel %vm2186, %v3987, %v3989
    %3994 = vmatprep.subr.mxu0 0.0
    %3995 = vmatpush1.msra.mxu0 0.0
    %3996 = vmatprep.subr.mxu0 0.0
    %3997 = vmatpush1.msra.mxu0 0.0
    %3998 = vmatprep.subr.mxu0 0.0
    %3999 = vmatpush1.msra.mxu0 0.0
    %4000 = vmatprep.subr.mxu0 0.0
    %4001 = vmatpush1.msra.mxu0 0.0
    %4002 = vmatprep.subr.mxu0 0.0
    %4003 = vmatpush1.msra.mxu0 0.0
    %4004 = vmatprep.subr.mxu0 0.0
    %4005 = vmatpush1.msra.mxu0 0.0
    %4006 = vmatprep.subr.mxu0 0.0
    %4007 = vmatpush1.msra.mxu0 0.0
    %4008 = vmatprep.subr.mxu0 0.0
    %4009 = vmatpush1.msra.mxu0 0.0
    %4010 = vmatprep.subr.mxu0 0.0
    %4011 = vmatpush1.msra.mxu0 0.0
    %4012 = vmatprep.subr.mxu0 0.0
    %4013 = vmatpush1.msra.mxu0 0.0
    %4014 = vmatprep.subr.mxu0 0.0
    %4015 = vmatpush1.msra.mxu0 0.0
    %4016 = vmatprep.subr.mxu0 0.0
    %4017 = vmatpush1.msra.mxu0 0.0
    %4018 = vmatprep.subr.mxu0 0.0
    %4019 = vmatpush1.msra.mxu0 0.0
    %4020 = vmatprep.subr.mxu0 0.0
    %4021 = vmatpush1.msra.mxu0 0.0
    %4022 = vmatprep.subr.mxu0 0.0
    %4023 = vmatpush1.msra.mxu0 0.0
    %4024 = vmatprep.subr.mxu0 %v3991
    %4025 = vmatpush1.msra.mxu0 %v3990
    %4026 = vmatprep.subr.mxu0 0.0
    %4027 = vmatpush2.msra.mxu0 0.0
    %4028 = vmatprep.subr.mxu0 0.0
    %4029 = vmatpush2.msra.mxu0 0.0
    %4030 = vmatprep.subr.mxu0 0.0
    %4031 = vmatpush2.msra.mxu0 0.0
    %4032 = vmatprep.subr.mxu0 0.0
    %4033 = vmatpush2.msra.mxu0 0.0
    %4034 = vmatprep.subr.mxu0 0.0
    %4035 = vmatpush2.msra.mxu0 0.0
    %4036 = vmatprep.subr.mxu0 0.0
    %4037 = vmatpush2.msra.mxu0 0.0
    %4038 = vmatprep.subr.mxu0 0.0
    %4039 = vmatpush2.msra.mxu0 0.0
    %4040 = vmatprep.subr.mxu0 0.0
    %4041 = vmatpush2.msra.mxu0 0.0
    %4042 = vmatprep.subr.mxu0 0.0
    %4043 = vmatpush2.msra.mxu0 0.0
    %4044 = vmatprep.subr.mxu0 0.0
    %4045 = vmatpush2.msra.mxu0 0.0
    %4046 = vmatprep.subr.mxu0 0.0
    %4047 = vmatpush2.msra.mxu0 0.0
    %4048 = vmatprep.subr.mxu0 0.0
    %4049 = vmatpush2.msra.mxu0 0.0
    %4050 = vmatprep.subr.mxu0 0.0
    %4051 = vmatpush2.msra.mxu0 0.0
    %4052 = vmatprep.subr.mxu0 0.0
    %4053 = vmatpush2.msra.mxu0 0.0
    %4054 = vmatprep.subr.mxu0 0.0
    %4055 = vmatpush2.msra.mxu0 0.0
    %4056 = vmatprep.subr.mxu0 0.0
    %4057 = vmatpush2.msra.mxu0 0.0
    %4058 = vmatprep.mubr.f32.mxu0 0.0
    %4059 = vmatmul.mubr.f32.gmra.mxu0 %v3076
    %v4060 = vpop.f32.mrf.mxu0
    %v4061 = vadd.f32 0.0, %v4060
    %v4062 = vpop.f32.mrf.mxu0
    %v4063 = vadd.f32 0.0, %v4062
    %4064 = vdwg.mxu0
    %v4065 = vadd.f32 %v3974, %v3976
    %4066 = vadd.xlane.f32.xlu0 %v4065
    %v4067 = vpop.xlane.xlu0 %4066
    %v4068 = vmul.f32 %v4067, 0.001953125
    %v4069 = vadd.f32 %v4061, %v4063
    %4070 = vadd.xlane.f32.xlu0 %v4069
    %v4071 = vpop.xlane.xlu0 %4070
    %v4072 = vmul.f32 %v4071, 0.001953125
    %v4073 = vmul.f32 %v4068, %v4068
    %v4074 = vsub.f32 %v4072, %v4073
    %v4075 = vadd.f32 %v4074, 1e-05
    %v4076 = vrsqrt.pop %v4075
    %v4077 = vsub.f32 %v3891, %v4068
    %v4078 = vsub.f32 %v3892, %v4068
    %v4079 = vsub.f32 %v3893, %v4068
    %v4080 = vmul.f32 %v4077, %v4076
    %v4081 = vmul.f32 %v4078, %v4076
    %v4082 = vmul.f32 %v4079, %v4076
    %v4083 = vmax.f32 %v4080, 0.0
    %v4084 = vmax.f32 %v4081, 0.0
    %v4085 = vmax.f32 %v4082, 0.0
    %v4086 = vld [vmem:[%s9] sm:$0xff]
    %4090 = vrot.lane.b32.xlu0 %v4083, 17
    %v4091 = vpop.permute.xlu0 %4090
    %4092 = vrot.lane.b32.xlu0 %v4084, 17
    %v4093 = vpop.permute.xlu0 %4092
    %4094 = vrot.lane.b32.xlu0 %v4085, 17
    %v4095 = vpop.permute.xlu0 %4094
    %v4096 = vsel %vm2186, %v4091, %v4093
    %v4097 = vsel %vm2186, %v4093, %v4095
    %v4101 = vsel %vm3074, %v4086, 0
    %4103 = vmatprep.subr.mxu0 0.0
    %4104 = vmatpush1.msra.mxu0 0.0
    %4105 = vmatprep.subr.mxu0 0.0
    %4106 = vmatpush1.msra.mxu0 0.0
    %4107 = vmatprep.subr.mxu0 0.0
    %4108 = vmatpush1.msra.mxu0 0.0
    %4109 = vmatprep.subr.mxu0 0.0
    %4110 = vmatpush1.msra.mxu0 0.0
    %4111 = vmatprep.subr.mxu0 0.0
    %4112 = vmatpush1.msra.mxu0 0.0
    %4113 = vmatprep.subr.mxu0 0.0
    %4114 = vmatpush1.msra.mxu0 0.0
    %4115 = vmatprep.subr.mxu0 0.0
    %4116 = vmatpush1.msra.mxu0 0.0
    %4117 = vmatprep.subr.mxu0 0.0
    %4118 = vmatpush1.msra.mxu0 0.0
    %4119 = vmatprep.subr.mxu0 0.0
    %4120 = vmatpush1.msra.mxu0 0.0
    %4121 = vmatprep.subr.mxu0 0.0
    %4122 = vmatpush1.msra.mxu0 0.0
    %4123 = vmatprep.subr.mxu0 0.0
    %4124 = vmatpush1.msra.mxu0 0.0
    %4125 = vmatprep.subr.mxu0 0.0
    %4126 = vmatpush1.msra.mxu0 0.0
    %4127 = vmatprep.subr.mxu0 0.0
    %4128 = vmatpush1.msra.mxu0 0.0
    %4129 = vmatprep.subr.mxu0 0.0
    %4130 = vmatpush1.msra.mxu0 0.0
    %4131 = vmatprep.subr.mxu0 0.0
    %4132 = vmatpush1.msra.mxu0 0.0
    %4133 = vmatprep.subr.mxu0 %v4097
    %4134 = vmatpush1.msra.mxu0 %v4096
    %4135 = vmatprep.subr.mxu0 0.0
    %4136 = vmatpush2.msra.mxu0 0.0
    %4137 = vmatprep.subr.mxu0 0.0
    %4138 = vmatpush2.msra.mxu0 0.0
    %4139 = vmatprep.subr.mxu0 0.0
    %4140 = vmatpush2.msra.mxu0 0.0
    %4141 = vmatprep.subr.mxu0 0.0
    %4142 = vmatpush2.msra.mxu0 0.0
    %4143 = vmatprep.subr.mxu0 0.0
    %4144 = vmatpush2.msra.mxu0 0.0
    %4145 = vmatprep.subr.mxu0 0.0
    %4146 = vmatpush2.msra.mxu0 0.0
    %4147 = vmatprep.subr.mxu0 0.0
    %4148 = vmatpush2.msra.mxu0 0.0
    %4149 = vmatprep.subr.mxu0 0.0
    %4150 = vmatpush2.msra.mxu0 0.0
    %4151 = vmatprep.subr.mxu0 0.0
    %4152 = vmatpush2.msra.mxu0 0.0
    %4153 = vmatprep.subr.mxu0 0.0
    %4154 = vmatpush2.msra.mxu0 0.0
    %4155 = vmatprep.subr.mxu0 0.0
    %4156 = vmatpush2.msra.mxu0 0.0
    %4157 = vmatprep.subr.mxu0 0.0
    %4158 = vmatpush2.msra.mxu0 0.0
    %4159 = vmatprep.subr.mxu0 0.0
    %4160 = vmatpush2.msra.mxu0 0.0
    %4161 = vmatprep.subr.mxu0 0.0
    %4162 = vmatpush2.msra.mxu0 0.0
    %4163 = vmatprep.subr.mxu0 0.0
    %4164 = vmatpush2.msra.mxu0 0.0
    %4165 = vmatprep.subr.mxu0 0.0
    %4166 = vmatpush2.msra.mxu0 0.0
    %4167 = vmatprep.mubr.f32.mxu0 0.0
    %4168 = vmatmul.mubr.f32.gmra.mxu0 %v4101
    %v4169 = vpop.f32.mrf.mxu0
    %v4170 = vadd.f32 0.0, %v4169
    %v4171 = vpop.f32.mrf.mxu0
    %v4172 = vadd.f32 0.0, %v4171
    %4173 = vdwg.mxu0
    %4177 = vrot.lane.b32.xlu0 %v2724, 34
    %v4178 = vpop.permute.xlu0 %4177
    %4179 = vrot.lane.b32.xlu0 %v2725, 34
    %v4180 = vpop.permute.xlu0 %4179
    %4181 = vrot.lane.b32.xlu0 %v2726, 34
    %v4182 = vpop.permute.xlu0 %4181
    %v4183 = vsel %vm2695, %v4178, %v4180
    %v4184 = vsel %vm2695, %v4180, %v4182
    %4187 = vmatprep.subr.mxu0 0.0
    %4188 = vmatpush1.msra.mxu0 0.0
    %4189 = vmatprep.subr.mxu0 0.0
    %4190 = vmatpush1.msra.mxu0 0.0
    %4191 = vmatprep.subr.mxu0 0.0
    %4192 = vmatpush1.msra.mxu0 0.0
    %4193 = vmatprep.subr.mxu0 0.0
    %4194 = vmatpush1.msra.mxu0 0.0
    %4195 = vmatprep.subr.mxu0 0.0
    %4196 = vmatpush1.msra.mxu0 0.0
    %4197 = vmatprep.subr.mxu0 0.0
    %4198 = vmatpush1.msra.mxu0 0.0
    %4199 = vmatprep.subr.mxu0 0.0
    %4200 = vmatpush1.msra.mxu0 0.0
    %4201 = vmatprep.subr.mxu0 0.0
    %4202 = vmatpush1.msra.mxu0 0.0
    %4203 = vmatprep.subr.mxu0 0.0
    %4204 = vmatpush1.msra.mxu0 0.0
    %4205 = vmatprep.subr.mxu0 0.0
    %4206 = vmatpush1.msra.mxu0 0.0
    %4207 = vmatprep.subr.mxu0 0.0
    %4208 = vmatpush1.msra.mxu0 0.0
    %4209 = vmatprep.subr.mxu0 0.0
    %4210 = vmatpush1.msra.mxu0 0.0
    %4211 = vmatprep.subr.mxu0 0.0
    %4212 = vmatpush1.msra.mxu0 0.0
    %4213 = vmatprep.subr.mxu0 0.0
    %4214 = vmatpush1.msra.mxu0 0.0
    %4215 = vmatprep.subr.mxu0 0.0
    %4216 = vmatpush1.msra.mxu0 0.0
    %4217 = vmatprep.subr.mxu0 %v4184
    %4218 = vmatpush1.msra.mxu0 %v4183
    %4219 = vmatprep.subr.mxu0 0.0
    %4220 = vmatpush2.msra.mxu0 0.0
    %4221 = vmatprep.subr.mxu0 0.0
    %4222 = vmatpush2.msra.mxu0 0.0
    %4223 = vmatprep.subr.mxu0 0.0
    %4224 = vmatpush2.msra.mxu0 0.0
    %4225 = vmatprep.subr.mxu0 0.0
    %4226 = vmatpush2.msra.mxu0 0.0
    %4227 = vmatprep.subr.mxu0 0.0
    %4228 = vmatpush2.msra.mxu0 0.0
    %4229 = vmatprep.subr.mxu0 0.0
    %4230 = vmatpush2.msra.mxu0 0.0
    %4231 = vmatprep.subr.mxu0 0.0
    %4232 = vmatpush2.msra.mxu0 0.0
    %4233 = vmatprep.subr.mxu0 0.0
    %4234 = vmatpush2.msra.mxu0 0.0
    %4235 = vmatprep.subr.mxu0 0.0
    %4236 = vmatpush2.msra.mxu0 0.0
    %4237 = vmatprep.subr.mxu0 0.0
    %4238 = vmatpush2.msra.mxu0 0.0
    %4239 = vmatprep.subr.mxu0 0.0
    %4240 = vmatpush2.msra.mxu0 0.0
    %4241 = vmatprep.subr.mxu0 0.0
    %4242 = vmatpush2.msra.mxu0 0.0
    %4243 = vmatprep.subr.mxu0 0.0
    %4244 = vmatpush2.msra.mxu0 0.0
    %4245 = vmatprep.subr.mxu0 0.0
    %4246 = vmatpush2.msra.mxu0 0.0
    %4247 = vmatprep.subr.mxu0 0.0
    %4248 = vmatpush2.msra.mxu0 0.0
    %4249 = vmatprep.subr.mxu0 0.0
    %4250 = vmatpush2.msra.mxu0 0.0
    %4251 = vmatprep.mubr.f32.mxu0 0.0
    %4252 = vmatmul.mubr.f32.gmra.mxu0 %v3076
    %v4253 = vpop.f32.mrf.mxu0
    %v4254 = vadd.f32 0.0, %v4253
    %v4255 = vpop.f32.mrf.mxu0
    %v4256 = vadd.f32 0.0, %v4255
    %4257 = vdwg.mxu0
    %v4258 = vmul.f32 %v2724, %v2724
    %v4259 = vmul.f32 %v2725, %v2725
    %v4260 = vmul.f32 %v2726, %v2726
    %4264 = vrot.lane.b32.xlu0 %v4258, 34
    %v4265 = vpop.permute.xlu0 %4264
    %4266 = vrot.lane.b32.xlu0 %v4259, 34
    %v4267 = vpop.permute.xlu0 %4266
    %4268 = vrot.lane.b32.xlu0 %v4260, 34
    %v4269 = vpop.permute.xlu0 %4268
    %v4270 = vsel %vm2695, %v4265, %v4267
    %v4271 = vsel %vm2695, %v4267, %v4269
    %4274 = vmatprep.subr.mxu0 0.0
    %4275 = vmatpush1.msra.mxu0 0.0
    %4276 = vmatprep.subr.mxu0 0.0
    %4277 = vmatpush1.msra.mxu0 0.0
    %4278 = vmatprep.subr.mxu0 0.0
    %4279 = vmatpush1.msra.mxu0 0.0
    %4280 = vmatprep.subr.mxu0 0.0
    %4281 = vmatpush1.msra.mxu0 0.0
    %4282 = vmatprep.subr.mxu0 0.0
    %4283 = vmatpush1.msra.mxu0 0.0
    %4284 = vmatprep.subr.mxu0 0.0
    %4285 = vmatpush1.msra.mxu0 0.0
    %4286 = vmatprep.subr.mxu0 0.0
    %4287 = vmatpush1.msra.mxu0 0.0
    %4288 = vmatprep.subr.mxu0 0.0
    %4289 = vmatpush1.msra.mxu0 0.0
    %4290 = vmatprep.subr.mxu0 0.0
    %4291 = vmatpush1.msra.mxu0 0.0
    %4292 = vmatprep.subr.mxu0 0.0
    %4293 = vmatpush1.msra.mxu0 0.0
    %4294 = vmatprep.subr.mxu0 0.0
    %4295 = vmatpush1.msra.mxu0 0.0
    %4296 = vmatprep.subr.mxu0 0.0
    %4297 = vmatpush1.msra.mxu0 0.0
    %4298 = vmatprep.subr.mxu0 0.0
    %4299 = vmatpush1.msra.mxu0 0.0
    %4300 = vmatprep.subr.mxu0 0.0
    %4301 = vmatpush1.msra.mxu0 0.0
    %4302 = vmatprep.subr.mxu0 0.0
    %4303 = vmatpush1.msra.mxu0 0.0
    %4304 = vmatprep.subr.mxu0 %v4271
    %4305 = vmatpush1.msra.mxu0 %v4270
    %4306 = vmatprep.subr.mxu0 0.0
    %4307 = vmatpush2.msra.mxu0 0.0
    %4308 = vmatprep.subr.mxu0 0.0
    %4309 = vmatpush2.msra.mxu0 0.0
    %4310 = vmatprep.subr.mxu0 0.0
    %4311 = vmatpush2.msra.mxu0 0.0
    %4312 = vmatprep.subr.mxu0 0.0
    %4313 = vmatpush2.msra.mxu0 0.0
    %4314 = vmatprep.subr.mxu0 0.0
    %4315 = vmatpush2.msra.mxu0 0.0
    %4316 = vmatprep.subr.mxu0 0.0
    %4317 = vmatpush2.msra.mxu0 0.0
    %4318 = vmatprep.subr.mxu0 0.0
    %4319 = vmatpush2.msra.mxu0 0.0
    %4320 = vmatprep.subr.mxu0 0.0
    %4321 = vmatpush2.msra.mxu0 0.0
    %4322 = vmatprep.subr.mxu0 0.0
    %4323 = vmatpush2.msra.mxu0 0.0
    %4324 = vmatprep.subr.mxu0 0.0
    %4325 = vmatpush2.msra.mxu0 0.0
    %4326 = vmatprep.subr.mxu0 0.0
    %4327 = vmatpush2.msra.mxu0 0.0
    %4328 = vmatprep.subr.mxu0 0.0
    %4329 = vmatpush2.msra.mxu0 0.0
    %4330 = vmatprep.subr.mxu0 0.0
    %4331 = vmatpush2.msra.mxu0 0.0
    %4332 = vmatprep.subr.mxu0 0.0
    %4333 = vmatpush2.msra.mxu0 0.0
    %4334 = vmatprep.subr.mxu0 0.0
    %4335 = vmatpush2.msra.mxu0 0.0
    %4336 = vmatprep.subr.mxu0 0.0
    %4337 = vmatpush2.msra.mxu0 0.0
    %4338 = vmatprep.mubr.f32.mxu0 0.0
    %4339 = vmatmul.mubr.f32.gmra.mxu0 %v3076
    %v4340 = vpop.f32.mrf.mxu0
    %v4341 = vadd.f32 0.0, %v4340
    %v4342 = vpop.f32.mrf.mxu0
    %v4343 = vadd.f32 0.0, %v4342
    %4344 = vdwg.mxu0
    %v4345 = vadd.f32 %v4254, %v4256
    %4346 = vadd.xlane.f32.xlu0 %v4345
    %v4347 = vpop.xlane.xlu0 %4346
    %v4348 = vmul.f32 %v4347, 0.001953125
    %v4349 = vadd.f32 %v4341, %v4343
    %4350 = vadd.xlane.f32.xlu0 %v4349
    %v4351 = vpop.xlane.xlu0 %4350
    %v4352 = vmul.f32 %v4351, 0.001953125
    %v4353 = vmul.f32 %v4348, %v4348
    %v4354 = vsub.f32 %v4352, %v4353
    %v4355 = vadd.f32 %v4354, 1e-05
    %v4356 = vrsqrt.pop %v4355
    %v4357 = vsub.f32 %v2724, %v4348
    %v4358 = vsub.f32 %v2725, %v4348
    %v4359 = vsub.f32 %v2726, %v4348
    %v4360 = vmul.f32 %v4357, %v4356
    %v4361 = vmul.f32 %v4358, %v4356
    %v4362 = vmul.f32 %v4359, %v4356
    %v4363 = vmax.f32 %v4360, 0.0
    %v4364 = vmax.f32 %v4361, 0.0
    %v4365 = vmax.f32 %v4362, 0.0
    %v4366 = vld [vmem:[%s11] sm:$0xff]
    %4370 = vrot.lane.b32.xlu0 %v4363, 34
    %v4371 = vpop.permute.xlu0 %4370
    %4372 = vrot.lane.b32.xlu0 %v4364, 34
    %v4373 = vpop.permute.xlu0 %4372
    %4374 = vrot.lane.b32.xlu0 %v4365, 34
    %v4375 = vpop.permute.xlu0 %4374
    %v4376 = vsel %vm2695, %v4371, %v4373
    %v4377 = vsel %vm2695, %v4373, %v4375
    %v4381 = vsel %vm3074, %v4366, 0
    %4383 = vmatprep.subr.mxu0 0.0
    %4384 = vmatpush1.msra.mxu0 0.0
    %4385 = vmatprep.subr.mxu0 0.0
    %4386 = vmatpush1.msra.mxu0 0.0
    %4387 = vmatprep.subr.mxu0 0.0
    %4388 = vmatpush1.msra.mxu0 0.0
    %4389 = vmatprep.subr.mxu0 0.0
    %4390 = vmatpush1.msra.mxu0 0.0
    %4391 = vmatprep.subr.mxu0 0.0
    %4392 = vmatpush1.msra.mxu0 0.0
    %4393 = vmatprep.subr.mxu0 0.0
    %4394 = vmatpush1.msra.mxu0 0.0
    %4395 = vmatprep.subr.mxu0 0.0
    %4396 = vmatpush1.msra.mxu0 0.0
    %4397 = vmatprep.subr.mxu0 0.0
    %4398 = vmatpush1.msra.mxu0 0.0
    %4399 = vmatprep.subr.mxu0 0.0
    %4400 = vmatpush1.msra.mxu0 0.0
    %4401 = vmatprep.subr.mxu0 0.0
    %4402 = vmatpush1.msra.mxu0 0.0
    %4403 = vmatprep.subr.mxu0 0.0
    %4404 = vmatpush1.msra.mxu0 0.0
    %4405 = vmatprep.subr.mxu0 0.0
    %4406 = vmatpush1.msra.mxu0 0.0
    %4407 = vmatprep.subr.mxu0 0.0
    %4408 = vmatpush1.msra.mxu0 0.0
    %4409 = vmatprep.subr.mxu0 0.0
    %4410 = vmatpush1.msra.mxu0 0.0
    %4411 = vmatprep.subr.mxu0 0.0
    %4412 = vmatpush1.msra.mxu0 0.0
    %4413 = vmatprep.subr.mxu0 %v4377
    %4414 = vmatpush1.msra.mxu0 %v4376
    %4415 = vmatprep.subr.mxu0 0.0
    %4416 = vmatpush2.msra.mxu0 0.0
    %4417 = vmatprep.subr.mxu0 0.0
    %4418 = vmatpush2.msra.mxu0 0.0
    %4419 = vmatprep.subr.mxu0 0.0
    %4420 = vmatpush2.msra.mxu0 0.0
    %4421 = vmatprep.subr.mxu0 0.0
    %4422 = vmatpush2.msra.mxu0 0.0
    %4423 = vmatprep.subr.mxu0 0.0
    %4424 = vmatpush2.msra.mxu0 0.0
    %4425 = vmatprep.subr.mxu0 0.0
    %4426 = vmatpush2.msra.mxu0 0.0
    %4427 = vmatprep.subr.mxu0 0.0
    %4428 = vmatpush2.msra.mxu0 0.0
    %4429 = vmatprep.subr.mxu0 0.0
    %4430 = vmatpush2.msra.mxu0 0.0
    %4431 = vmatprep.subr.mxu0 0.0
    %4432 = vmatpush2.msra.mxu0 0.0
    %4433 = vmatprep.subr.mxu0 0.0
    %4434 = vmatpush2.msra.mxu0 0.0
    %4435 = vmatprep.subr.mxu0 0.0
    %4436 = vmatpush2.msra.mxu0 0.0
    %4437 = vmatprep.subr.mxu0 0.0
    %4438 = vmatpush2.msra.mxu0 0.0
    %4439 = vmatprep.subr.mxu0 0.0
    %4440 = vmatpush2.msra.mxu0 0.0
    %4441 = vmatprep.subr.mxu0 0.0
    %4442 = vmatpush2.msra.mxu0 0.0
    %4443 = vmatprep.subr.mxu0 0.0
    %4444 = vmatpush2.msra.mxu0 0.0
    %4445 = vmatprep.subr.mxu0 0.0
    %4446 = vmatpush2.msra.mxu0 0.0
    %4447 = vmatprep.mubr.f32.mxu0 0.0
    %4448 = vmatmul.mubr.f32.gmra.mxu0 %v4381
    %v4449 = vpop.f32.mrf.mxu0
    %v4450 = vadd.f32 0.0, %v4449
    %v4451 = vpop.f32.mrf.mxu0
    %v4452 = vadd.f32 0.0, %v4451
    %4453 = vdwg.mxu0
    %4454 = vmatprep.subr.mxu0 0.0
    %4455 = vmatpush1.msra.mxu0 0.0
    %4456 = vmatprep.subr.mxu0 0.0
    %4457 = vmatpush1.msra.mxu0 0.0
    %4458 = vmatprep.subr.mxu0 0.0
    %4459 = vmatpush1.msra.mxu0 0.0
    %4460 = vmatprep.subr.mxu0 0.0
    %4461 = vmatpush1.msra.mxu0 0.0
    %4462 = vmatprep.subr.mxu0 0.0
    %4463 = vmatpush1.msra.mxu0 0.0
    %4464 = vmatprep.subr.mxu0 0.0
    %4465 = vmatpush1.msra.mxu0 0.0
    %4466 = vmatprep.subr.mxu0 0.0
    %4467 = vmatpush1.msra.mxu0 0.0
    %4468 = vmatprep.subr.mxu0 0.0
    %4469 = vmatpush1.msra.mxu0 0.0
    %4470 = vmatprep.subr.mxu0 0.0
    %4471 = vmatpush1.msra.mxu0 0.0
    %4472 = vmatprep.subr.mxu0 0.0
    %4473 = vmatpush1.msra.mxu0 0.0
    %4474 = vmatprep.subr.mxu0 0.0
    %4475 = vmatpush1.msra.mxu0 0.0
    %4476 = vmatprep.subr.mxu0 0.0
    %4477 = vmatpush1.msra.mxu0 0.0
    %4478 = vmatprep.subr.mxu0 0.0
    %4479 = vmatpush1.msra.mxu0 0.0
    %4480 = vmatprep.subr.mxu0 0.0
    %4481 = vmatpush1.msra.mxu0 0.0
    %4482 = vmatprep.subr.mxu0 0.0
    %4483 = vmatpush1.msra.mxu0 0.0
    %4484 = vmatprep.subr.mxu0 %v4452
    %4485 = vmatpush1.msra.mxu0 %v4450
    %4486 = vmatprep.subr.mxu0 0.0
    %4487 = vmatpush2.msra.mxu0 0.0
    %4488 = vmatprep.subr.mxu0 0.0
    %4489 = vmatpush2.msra.mxu0 0.0
    %4490 = vmatprep.subr.mxu0 0.0
    %4491 = vmatpush2.msra.mxu0 0.0
    %4492 = vmatprep.subr.mxu0 0.0
    %4493 = vmatpush2.msra.mxu0 0.0
    %4494 = vmatprep.subr.mxu0 0.0
    %4495 = vmatpush2.msra.mxu0 0.0
    %4496 = vmatprep.subr.mxu0 0.0
    %4497 = vmatpush2.msra.mxu0 0.0
    %4498 = vmatprep.subr.mxu0 0.0
    %4499 = vmatpush2.msra.mxu0 0.0
    %4500 = vmatprep.subr.mxu0 0.0
    %4501 = vmatpush2.msra.mxu0 0.0
    %4502 = vmatprep.subr.mxu0 0.0
    %4503 = vmatpush2.msra.mxu0 0.0
    %4504 = vmatprep.subr.mxu0 0.0
    %4505 = vmatpush2.msra.mxu0 0.0
    %4506 = vmatprep.subr.mxu0 0.0
    %4507 = vmatpush2.msra.mxu0 0.0
    %4508 = vmatprep.subr.mxu0 0.0
    %4509 = vmatpush2.msra.mxu0 0.0
    %4510 = vmatprep.subr.mxu0 0.0
    %4511 = vmatpush2.msra.mxu0 0.0
    %4512 = vmatprep.subr.mxu0 0.0
    %4513 = vmatpush2.msra.mxu0 0.0
    %4514 = vmatprep.subr.mxu0 0.0
    %4515 = vmatpush2.msra.mxu0 0.0
    %4516 = vmatprep.subr.mxu0 0.0
    %4517 = vmatpush2.msra.mxu0 0.0
    %4518 = vmatprep.mubr.f32.mxu0 0.0
    %4519 = vmatmul.mubr.f32.gmra.mxu0 %v3076
    %v4520 = vpop.f32.mrf.mxu0
    %v4521 = vadd.f32 0.0, %v4520
    %v4522 = vpop.f32.mrf.mxu0
    %v4523 = vadd.f32 0.0, %v4522
    %4524 = vdwg.mxu0
    %v4525 = vmul.f32 %v4450, %v4450
    %v4526 = vmul.f32 %v4452, %v4452
    %4527 = vmatprep.subr.mxu0 0.0
    %4528 = vmatpush1.msra.mxu0 0.0
    %4529 = vmatprep.subr.mxu0 0.0
    %4530 = vmatpush1.msra.mxu0 0.0
    %4531 = vmatprep.subr.mxu0 0.0
    %4532 = vmatpush1.msra.mxu0 0.0
    %4533 = vmatprep.subr.mxu0 0.0
    %4534 = vmatpush1.msra.mxu0 0.0
    %4535 = vmatprep.subr.mxu0 0.0
    %4536 = vmatpush1.msra.mxu0 0.0
    %4537 = vmatprep.subr.mxu0 0.0
    %4538 = vmatpush1.msra.mxu0 0.0
    %4539 = vmatprep.subr.mxu0 0.0
    %4540 = vmatpush1.msra.mxu0 0.0
    %4541 = vmatprep.subr.mxu0 0.0
    %4542 = vmatpush1.msra.mxu0 0.0
    %4543 = vmatprep.subr.mxu0 0.0
    %4544 = vmatpush1.msra.mxu0 0.0
    %4545 = vmatprep.subr.mxu0 0.0
    %4546 = vmatpush1.msra.mxu0 0.0
    %4547 = vmatprep.subr.mxu0 0.0
    %4548 = vmatpush1.msra.mxu0 0.0
    %4549 = vmatprep.subr.mxu0 0.0
    %4550 = vmatpush1.msra.mxu0 0.0
    %4551 = vmatprep.subr.mxu0 0.0
    %4552 = vmatpush1.msra.mxu0 0.0
    %4553 = vmatprep.subr.mxu0 0.0
    %4554 = vmatpush1.msra.mxu0 0.0
    %4555 = vmatprep.subr.mxu0 0.0
    %4556 = vmatpush1.msra.mxu0 0.0
    %4557 = vmatprep.subr.mxu0 %v4526
    %4558 = vmatpush1.msra.mxu0 %v4525
    %4559 = vmatprep.subr.mxu0 0.0
    %4560 = vmatpush2.msra.mxu0 0.0
    %4561 = vmatprep.subr.mxu0 0.0
    %4562 = vmatpush2.msra.mxu0 0.0
    %4563 = vmatprep.subr.mxu0 0.0
    %4564 = vmatpush2.msra.mxu0 0.0
    %4565 = vmatprep.subr.mxu0 0.0
    %4566 = vmatpush2.msra.mxu0 0.0
    %4567 = vmatprep.subr.mxu0 0.0
    %4568 = vmatpush2.msra.mxu0 0.0
    %4569 = vmatprep.subr.mxu0 0.0
    %4570 = vmatpush2.msra.mxu0 0.0
    %4571 = vmatprep.subr.mxu0 0.0
    %4572 = vmatpush2.msra.mxu0 0.0
    %4573 = vmatprep.subr.mxu0 0.0
    %4574 = vmatpush2.msra.mxu0 0.0
    %4575 = vmatprep.subr.mxu0 0.0
    %4576 = vmatpush2.msra.mxu0 0.0
    %4577 = vmatprep.subr.mxu0 0.0
    %4578 = vmatpush2.msra.mxu0 0.0
    %4579 = vmatprep.subr.mxu0 0.0
    %4580 = vmatpush2.msra.mxu0 0.0
    %4581 = vmatprep.subr.mxu0 0.0
    %4582 = vmatpush2.msra.mxu0 0.0
    %4583 = vmatprep.subr.mxu0 0.0
    %4584 = vmatpush2.msra.mxu0 0.0
    %4585 = vmatprep.subr.mxu0 0.0
    %4586 = vmatpush2.msra.mxu0 0.0
    %4587 = vmatprep.subr.mxu0 0.0
    %4588 = vmatpush2.msra.mxu0 0.0
    %4589 = vmatprep.subr.mxu0 0.0
    %4590 = vmatpush2.msra.mxu0 0.0
    %4591 = vmatprep.mubr.f32.mxu0 0.0
    %4592 = vmatmul.mubr.f32.gmra.mxu0 %v3076
    %v4593 = vpop.f32.mrf.mxu0
    %v4594 = vadd.f32 0.0, %v4593
    %v4595 = vpop.f32.mrf.mxu0
    %v4596 = vadd.f32 0.0, %v4595
    %4597 = vdwg.mxu0
    %v4598 = vadd.f32 %v4521, %v4523
    %4599 = vadd.xlane.f32.xlu0 %v4598
    %v4600 = vpop.xlane.xlu0 %4599
    %v4601 = vmul.f32 %v4600, 0.001953125
    %v4602 = vadd.f32 %v4594, %v4596
    %4603 = vadd.xlane.f32.xlu0 %v4602
    %v4604 = vpop.xlane.xlu0 %4603
    %v4605 = vmul.f32 %v4604, 0.001953125
    %v4606 = vmul.f32 %v4601, %v4601
    %v4607 = vsub.f32 %v4605, %v4606
    %v4608 = vadd.f32 %v4607, 1e-05
    %v4609 = vrsqrt.pop %v4608
    %v4610 = vsub.f32 %v4450, %v4601
    %v4611 = vsub.f32 %v4452, %v4601
    %v4612 = vmul.f32 %v4610, %v4609
    %v4613 = vmul.f32 %v4611, %v4609
    %4614 = vst [vmem:[#allocation2 + $0x8] sm:$0xff] %v4612
    %4615 = vst [vmem:[#allocation2 + $0x10] sm:$0xff] %v4613
    %v4616 = vld [vmem:[#allocation2] sm:$0xff]
    %v4617 = vld [vmem:[#allocation2 + $0x8] sm:$0xff]
    %v4618 = vld [vmem:[#allocation2 + $0x10] sm:$0xff]
    %v4619 = vld [vmem:[%s356] ss:$8 sm:$0x3]
    %v4621 = vlaneseq
    %v4622 = vshrl.u32 %v4621, 7
    %v4623 = vsub.s32 0, %v4622
    %v4624 = vrot.slane %v4619, %v4623
    %v4625 = vlaneseq
    %v4626 = vshrl.u32 %v4625, 7
    %v4627 = vsub.s32 1, %v4626
    %v4628 = vrot.slane %v4619, %v4627
    %4629 = vrot.lane.b32.xlu0 %v4624, 94
    %v4630 = vpop.permute.xlu0 %4629
    %4631 = vrot.lane.b32.xlu0 %v4628, 94
    %v4632 = vpop.permute.xlu0 %4631
    %v4633 = vsel %vm371, %v4630, %v4632
    %v4637 = vmul.f32 %v4616, %v4630
    %v4638 = vmul.f32 %v4617, %v4633
    %v4639 = vmul.f32 %v4618, %v4632
    %v4640 = vld [vmem:[%s12] sm:$0xff]
    %4642 = vset.pattern.permute.xlu0 0
    %4643 = vperm.xlu0 %4642, %v4640
    %v4644 = vpop.permute.xlu0 %4643
    %v4646 = vmul.f32 %v4637, %v4644
    %v4647 = vmul.f32 %v4638, %v4644
    %v4648 = vmul.f32 %v4639, %v4644
    %v4649 = vadd.f32 %v4646, 0.0
    %v4650 = vadd.f32 %v4647, 0.0
    %v4651 = vadd.f32 %v4648, 0.0
    %v4652 = vld [vmem:[%s427] ss:$8 sm:$0x3]
    %v4654 = vlaneseq
    %v4655 = vshrl.u32 %v4654, 7
    %v4656 = vsub.s32 0, %v4655
    %v4657 = vrot.slane %v4652, %v4656
    %v4658 = vlaneseq
    %v4659 = vshrl.u32 %v4658, 7
    %v4660 = vsub.s32 1, %v4659
    %v4661 = vrot.slane %v4652, %v4660
    %4662 = vrot.lane.b32.xlu0 %v4657, 95
    %v4663 = vpop.permute.xlu0 %4662
    %4664 = vrot.lane.b32.xlu0 %v4661, 95
    %v4665 = vpop.permute.xlu0 %4664
    %v4666 = vsel %vm442, %v4663, %v4665
    %v4670 = vmul.f32 %v4616, %v4663
    %v4671 = vmul.f32 %v4617, %v4666
    %v4672 = vmul.f32 %v4618, %v4665
    %4673 = vset.pattern.permute.xlu0 1
    %4674 = vperm.xlu0 %4673, %v4640
    %v4675 = vpop.permute.xlu0 %4674
    %v4677 = vmul.f32 %v4670, %v4675
    %v4678 = vmul.f32 %v4671, %v4675
    %v4679 = vmul.f32 %v4672, %v4675
    %4683 = vrot.lane.b32.xlu0 %v4677, 127
    %v4684 = vpop.permute.xlu0 %4683
    %4685 = vrot.lane.b32.xlu0 %v4678, 127
    %v4686 = vpop.permute.xlu0 %4685
    %4687 = vrot.lane.b32.xlu0 %v4679, 127
    %v4688 = vpop.permute.xlu0 %4687
    %v4689 = vsel %vm466, %v4684, %v4686
    %v4690 = vsel %vm466, %v4686, %v4688
    %v4694 = vadd.f32 %v4649, %v4689
    %v4695 = vadd.f32 %v4650, %v4690
    %v4696 = vadd.f32 %v4651, %v4688
    %v4697 = vld [vmem:[%s475] ss:$8 sm:$0x3]
    %v4699 = vlaneseq
    %v4700 = vshrl.u32 %v4699, 7
    %v4701 = vsub.s32 0, %v4700
    %v4702 = vrot.slane %v4697, %v4701
    %v4703 = vlaneseq
    %v4704 = vshrl.u32 %v4703, 7
    %v4705 = vsub.s32 1, %v4704
    %v4706 = vrot.slane %v4697, %v4705
    %4707 = vrot.lane.b32.xlu0 %v4702, 96
    %v4708 = vpop.permute.xlu0 %4707
    %4709 = vrot.lane.b32.xlu0 %v4706, 96
    %v4710 = vpop.permute.xlu0 %4709
    %v4711 = vsel %vm347, %v4708, %v4710
    %v4715 = vmul.f32 %v4616, %v4708
    %v4716 = vmul.f32 %v4617, %v4711
    %v4717 = vmul.f32 %v4618, %v4710
    %4718 = vset.pattern.permute.xlu0 2
    %4719 = vperm.xlu0 %4718, %v4640
    %v4720 = vpop.permute.xlu0 %4719
    %v4722 = vmul.f32 %v4715, %v4720
    %v4723 = vmul.f32 %v4716, %v4720
    %v4724 = vmul.f32 %v4717, %v4720
    %4728 = vrot.lane.b32.xlu0 %v4722, 126
    %v4729 = vpop.permute.xlu0 %4728
    %4730 = vrot.lane.b32.xlu0 %v4723, 126
    %v4731 = vpop.permute.xlu0 %4730
    %4732 = vrot.lane.b32.xlu0 %v4724, 126
    %v4733 = vpop.permute.xlu0 %4732
    %v4734 = vsel %vm155, %v4729, %v4731
    %v4735 = vsel %vm155, %v4731, %v4733
    %v4739 = vadd.f32 %v4694, %v4734
    %v4740 = vadd.f32 %v4695, %v4735
    %v4741 = vadd.f32 %v4696, %v4733
    %v4742 = vld [vmem:[%s569] ss:$8 sm:$0x3]
    %v4744 = vlaneseq
    %v4745 = vshrl.u32 %v4744, 7
    %v4746 = vsub.s32 0, %v4745
    %v4747 = vrot.slane %v4742, %v4746
    %v4748 = vlaneseq
    %v4749 = vshrl.u32 %v4748, 7
    %v4750 = vsub.s32 1, %v4749
    %v4751 = vrot.slane %v4742, %v4750
    %4752 = vrot.lane.b32.xlu0 %v4747, 97
    %v4753 = vpop.permute.xlu0 %4752
    %4754 = vrot.lane.b32.xlu0 %v4751, 97
    %v4755 = vpop.permute.xlu0 %4754
    %v4756 = vsel %vm584, %v4753, %v4755
    %v4760 = vmul.f32 %v4616, %v4753
    %v4761 = vmul.f32 %v4617, %v4756
    %v4762 = vmul.f32 %v4618, %v4755
    %4763 = vset.pattern.permute.xlu0 3
    %4764 = vperm.xlu0 %4763, %v4640
    %v4765 = vpop.permute.xlu0 %4764
    %v4767 = vmul.f32 %v4760, %v4765
    %v4768 = vmul.f32 %v4761, %v4765
    %v4769 = vmul.f32 %v4762, %v4765
    %4773 = vrot.lane.b32.xlu0 %v4767, 125
    %v4774 = vpop.permute.xlu0 %4773
    %4775 = vrot.lane.b32.xlu0 %v4768, 125
    %v4776 = vpop.permute.xlu0 %4775
    %4777 = vrot.lane.b32.xlu0 %v4769, 125
    %v4778 = vpop.permute.xlu0 %4777
    %v4779 = vsel %vm608, %v4774, %v4776
    %v4780 = vsel %vm608, %v4776, %v4778
    %v4784 = vadd.f32 %v4739, %v4779
    %v4785 = vadd.f32 %v4740, %v4780
    %v4786 = vadd.f32 %v4741, %v4778
    %v4787 = vld [vmem:[%s617] ss:$8 sm:$0x3]
    %v4789 = vlaneseq
    %v4790 = vshrl.u32 %v4789, 7
    %v4791 = vsub.s32 0, %v4790
    %v4792 = vrot.slane %v4787, %v4791
    %v4793 = vlaneseq
    %v4794 = vshrl.u32 %v4793, 7
    %v4795 = vsub.s32 1, %v4794
    %v4796 = vrot.slane %v4787, %v4795
    %4797 = vrot.lane.b32.xlu0 %v4792, 98
    %v4798 = vpop.permute.xlu0 %4797
    %4799 = vrot.lane.b32.xlu0 %v4796, 98
    %v4800 = vpop.permute.xlu0 %4799
    %v4801 = vsel %vm632, %v4798, %v4800
    %v4805 = vmul.f32 %v4616, %v4798
    %v4806 = vmul.f32 %v4617, %v4801
    %v4807 = vmul.f32 %v4618, %v4800
    %4808 = vset.pattern.permute.xlu0 4
    %4809 = vperm.xlu0 %4808, %v4640
    %v4810 = vpop.permute.xlu0 %4809
    %v4812 = vmul.f32 %v4805, %v4810
    %v4813 = vmul.f32 %v4806, %v4810
    %v4814 = vmul.f32 %v4807, %v4810
    %4818 = vrot.lane.b32.xlu0 %v4812, 124
    %v4819 = vpop.permute.xlu0 %4818
    %4820 = vrot.lane.b32.xlu0 %v4813, 124
    %v4821 = vpop.permute.xlu0 %4820
    %4822 = vrot.lane.b32.xlu0 %v4814, 124
    %v4823 = vpop.permute.xlu0 %4822
    %v4824 = vsel %vm203, %v4819, %v4821
    %v4825 = vsel %vm203, %v4821, %v4823
    %v4829 = vadd.f32 %v4784, %v4824
    %v4830 = vadd.f32 %v4785, %v4825
    %v4831 = vadd.f32 %v4786, %v4823
    %v4832 = vld [vmem:[%s761] ss:$8 sm:$0x3]
    %v4834 = vlaneseq
    %v4835 = vshrl.u32 %v4834, 7
    %v4836 = vsub.s32 0, %v4835
    %v4837 = vrot.slane %v4832, %v4836
    %v4838 = vlaneseq
    %v4839 = vshrl.u32 %v4838, 7
    %v4840 = vsub.s32 1, %v4839
    %v4841 = vrot.slane %v4832, %v4840
    %4842 = vrot.lane.b32.xlu0 %v4837, 110
    %v4843 = vpop.permute.xlu0 %4842
    %4844 = vrot.lane.b32.xlu0 %v4841, 110
    %v4845 = vpop.permute.xlu0 %4844
    %v4846 = vsel %vm776, %v4843, %v4845
    %v4850 = vmul.f32 %v4616, %v4843
    %v4851 = vmul.f32 %v4617, %v4846
    %v4852 = vmul.f32 %v4618, %v4845
    %4853 = vset.pattern.permute.xlu0 5
    %4854 = vperm.xlu0 %4853, %v4640
    %v4855 = vpop.permute.xlu0 %4854
    %v4857 = vmul.f32 %v4850, %v4855
    %v4858 = vmul.f32 %v4851, %v4855
    %v4859 = vmul.f32 %v4852, %v4855
    %4863 = vrot.lane.b32.xlu0 %v4857, 112
    %v4864 = vpop.permute.xlu0 %4863
    %4865 = vrot.lane.b32.xlu0 %v4858, 112
    %v4866 = vpop.permute.xlu0 %4865
    %4867 = vrot.lane.b32.xlu0 %v4859, 112
    %v4868 = vpop.permute.xlu0 %4867
    %v4869 = vsel %vm800, %v4864, %v4866
    %v4870 = vsel %vm800, %v4866, %v4868
    %v4874 = vadd.f32 %v4829, %v4869
    %v4875 = vadd.f32 %v4830, %v4870
    %v4876 = vadd.f32 %v4831, %v4868
    %v4877 = vld [vmem:[%s809] ss:$8 sm:$0x3]
    %v4879 = vlaneseq
    %v4880 = vshrl.u32 %v4879, 7
    %v4881 = vsub.s32 0, %v4880
    %v4882 = vrot.slane %v4877, %v4881
    %v4883 = vlaneseq
    %v4884 = vshrl.u32 %v4883, 7
    %v4885 = vsub.s32 1, %v4884
    %v4886 = vrot.slane %v4877, %v4885
    %4887 = vrot.lane.b32.xlu0 %v4882, 111
    %v4888 = vpop.permute.xlu0 %4887
    %4889 = vrot.lane.b32.xlu0 %v4886, 111
    %v4890 = vpop.permute.xlu0 %4889
    %v4891 = vsel %vm824, %v4888, %v4890
    %v4895 = vmul.f32 %v4616, %v4888
    %v4896 = vmul.f32 %v4617, %v4891
    %v4897 = vmul.f32 %v4618, %v4890
    %4898 = vset.pattern.permute.xlu0 6
    %4899 = vperm.xlu0 %4898, %v4640
    %v4900 = vpop.permute.xlu0 %4899
    %v4902 = vmul.f32 %v4895, %v4900
    %v4903 = vmul.f32 %v4896, %v4900
    %v4904 = vmul.f32 %v4897, %v4900
    %4908 = vrot.lane.b32.xlu0 %v4902, 111
    %v4909 = vpop.permute.xlu0 %4908
    %4910 = vrot.lane.b32.xlu0 %v4903, 111
    %v4911 = vpop.permute.xlu0 %4910
    %4912 = vrot.lane.b32.xlu0 %v4904, 111
    %v4913 = vpop.permute.xlu0 %4912
    %v4914 = vsel %vm824, %v4909, %v4911
    %v4915 = vsel %vm824, %v4911, %v4913
    %v4919 = vadd.f32 %v4874, %v4914
    %v4920 = vadd.f32 %v4875, %v4915
    %v4921 = vadd.f32 %v4876, %v4913
    %v4922 = vld [vmem:[%s892] ss:$8 sm:$0x3]
    %v4924 = vlaneseq
    %v4925 = vshrl.u32 %v4924, 7
    %v4926 = vsub.s32 0, %v4925
    %v4927 = vrot.slane %v4922, %v4926
    %v4928 = vlaneseq
    %v4929 = vshrl.u32 %v4928, 7
    %v4930 = vsub.s32 1, %v4929
    %v4931 = vrot.slane %v4922, %v4930
    %4932 = vrot.lane.b32.xlu0 %v4927, 112
    %v4933 = vpop.permute.xlu0 %4932
    %4934 = vrot.lane.b32.xlu0 %v4931, 112
    %v4935 = vpop.permute.xlu0 %4934
    %v4936 = vsel %vm800, %v4933, %v4935
    %v4940 = vmul.f32 %v4616, %v4933
    %v4941 = vmul.f32 %v4617, %v4936
    %v4942 = vmul.f32 %v4618, %v4935
    %4943 = vset.pattern.permute.xlu0 7
    %4944 = vperm.xlu0 %4943, %v4640
    %v4945 = vpop.permute.xlu0 %4944
    %v4947 = vmul.f32 %v4940, %v4945
    %v4948 = vmul.f32 %v4941, %v4945
    %v4949 = vmul.f32 %v4942, %v4945
    %4953 = vrot.lane.b32.xlu0 %v4947, 110
    %v4954 = vpop.permute.xlu0 %4953
    %4955 = vrot.lane.b32.xlu0 %v4948, 110
    %v4956 = vpop.permute.xlu0 %4955
    %4957 = vrot.lane.b32.xlu0 %v4949, 110
    %v4958 = vpop.permute.xlu0 %4957
    %v4959 = vsel %vm776, %v4954, %v4956
    %v4960 = vsel %vm776, %v4956, %v4958
    %v4964 = vadd.f32 %v4919, %v4959
    %v4965 = vadd.f32 %v4920, %v4960
    %v4966 = vadd.f32 %v4921, %v4958
    %v4967 = vld [vmem:[%s1018] ss:$8 sm:$0x3]
    %v4969 = vlaneseq
    %v4970 = vshrl.u32 %v4969, 7
    %v4971 = vsub.s32 0, %v4970
    %v4972 = vrot.slane %v4967, %v4971
    %v4973 = vlaneseq
    %v4974 = vshrl.u32 %v4973, 7
    %v4975 = vsub.s32 1, %v4974
    %v4976 = vrot.slane %v4967, %v4975
    %4977 = vrot.lane.b32.xlu0 %v4972, 113
    %v4978 = vpop.permute.xlu0 %4977
    %4979 = vrot.lane.b32.xlu0 %v4976, 113
    %v4980 = vpop.permute.xlu0 %4979
    %v4981 = vsel %vm1033, %v4978, %v4980
    %v4985 = vmul.f32 %v4616, %v4978
    %v4986 = vmul.f32 %v4617, %v4981
    %v4987 = vmul.f32 %v4618, %v4980
    %4988 = vset.pattern.permute.xlu0 8
    %4989 = vperm.xlu0 %4988, %v4640
    %v4990 = vpop.permute.xlu0 %4989
    %v4992 = vmul.f32 %v4985, %v4990
    %v4993 = vmul.f32 %v4986, %v4990
    %v4994 = vmul.f32 %v4987, %v4990
    %4998 = vrot.lane.b32.xlu0 %v4992, 109
    %v4999 = vpop.permute.xlu0 %4998
    %5000 = vrot.lane.b32.xlu0 %v4993, 109
    %v5001 = vpop.permute.xlu0 %5000
    %5002 = vrot.lane.b32.xlu0 %v4994, 109
    %v5003 = vpop.permute.xlu0 %5002
    %v5004 = vsel %vm1137, %v4999, %v5001
    %v5005 = vsel %vm1137, %v5001, %v5003
    %v5009 = vadd.f32 %v4964, %v5004
    %v5010 = vadd.f32 %v4965, %v5005
    %v5011 = vadd.f32 %v4966, %v5003
    %v5012 = vld [vmem:[%s1146] ss:$8 sm:$0x3]
    %v5014 = vlaneseq
    %v5015 = vshrl.u32 %v5014, 7
    %v5016 = vsub.s32 0, %v5015
    %v5017 = vrot.slane %v5012, %v5016
    %v5018 = vlaneseq
    %v5019 = vshrl.u32 %v5018, 7
    %v5020 = vsub.s32 1, %v5019
    %v5021 = vrot.slane %v5012, %v5020
    %5022 = vrot.lane.b32.xlu0 %v5017, 114
    %v5023 = vpop.permute.xlu0 %5022
    %5024 = vrot.lane.b32.xlu0 %v5021, 114
    %v5025 = vpop.permute.xlu0 %5024
    %v5026 = vsel %vm1161, %v5023, %v5025
    %v5030 = vmul.f32 %v4616, %v5023
    %v5031 = vmul.f32 %v4617, %v5026
    %v5032 = vmul.f32 %v4618, %v5025
    %5033 = vset.pattern.permute.xlu0 9
    %5034 = vperm.xlu0 %5033, %v4640
    %v5035 = vpop.permute.xlu0 %5034
    %v5037 = vmul.f32 %v5030, %v5035
    %v5038 = vmul.f32 %v5031, %v5035
    %v5039 = vmul.f32 %v5032, %v5035
    %5043 = vrot.lane.b32.xlu0 %v5037, 108
    %v5044 = vpop.permute.xlu0 %5043
    %5045 = vrot.lane.b32.xlu0 %v5038, 108
    %v5046 = vpop.permute.xlu0 %5045
    %5047 = vrot.lane.b32.xlu0 %v5039, 108
    %v5048 = vpop.permute.xlu0 %5047
    %v5049 = vsel %vm1185, %v5044, %v5046
    %v5050 = vsel %vm1185, %v5046, %v5048
    %v5054 = vadd.f32 %v5009, %v5049
    %v5055 = vadd.f32 %v5010, %v5050
    %v5056 = vadd.f32 %v5011, %v5048
    %v5057 = vld [vmem:[%s1240] ss:$8 sm:$0x3]
    %v5059 = vlaneseq
    %v5060 = vshrl.u32 %v5059, 7
    %v5061 = vsub.s32 0, %v5060
    %v5062 = vrot.slane %v5057, %v5061
    %v5063 = vlaneseq
    %v5064 = vshrl.u32 %v5063, 7
    %v5065 = vsub.s32 1, %v5064
    %v5066 = vrot.slane %v5057, %v5065
    %5067 = vrot.lane.b32.xlu0 %v5062, 126
    %v5068 = vpop.permute.xlu0 %5067
    %5069 = vrot.lane.b32.xlu0 %v5066, 126
    %v5070 = vpop.permute.xlu0 %5069
    %v5071 = vsel %vm155, %v5068, %v5070
    %v5075 = vmul.f32 %v4616, %v5068
    %v5076 = vmul.f32 %v4617, %v5071
    %v5077 = vmul.f32 %v4618, %v5070
    %5078 = vset.pattern.permute.xlu0 10
    %5079 = vperm.xlu0 %5078, %v4640
    %v5080 = vpop.permute.xlu0 %5079
    %v5082 = vmul.f32 %v5075, %v5080
    %v5083 = vmul.f32 %v5076, %v5080
    %v5084 = vmul.f32 %v5077, %v5080
    %5088 = vrot.lane.b32.xlu0 %v5082, 96
    %v5089 = vpop.permute.xlu0 %5088
    %5090 = vrot.lane.b32.xlu0 %v5083, 96
    %v5091 = vpop.permute.xlu0 %5090
    %5092 = vrot.lane.b32.xlu0 %v5084, 96
    %v5093 = vpop.permute.xlu0 %5092
    %v5094 = vsel %vm347, %v5089, %v5091
    %v5095 = vsel %vm347, %v5091, %v5093
    %v5099 = vadd.f32 %v5054, %v5094
    %v5100 = vadd.f32 %v5055, %v5095
    %v5101 = vadd.f32 %v5056, %v5093
    %v5102 = vld [vmem:[%s1334] ss:$8 sm:$0x3]
    %v5104 = vlaneseq
    %v5105 = vshrl.u32 %v5104, 7
    %v5106 = vsub.s32 0, %v5105
    %v5107 = vrot.slane %v5102, %v5106
    %v5108 = vlaneseq
    %v5109 = vshrl.u32 %v5108, 7
    %v5110 = vsub.s32 1, %v5109
    %v5111 = vrot.slane %v5102, %v5110
    %5112 = vrot.lane.b32.xlu0 %v5107, 127
    %v5113 = vpop.permute.xlu0 %5112
    %5114 = vrot.lane.b32.xlu0 %v5111, 127
    %v5115 = vpop.permute.xlu0 %5114
    %v5116 = vsel %vm466, %v5113, %v5115
    %v5120 = vmul.f32 %v4616, %v5113
    %v5121 = vmul.f32 %v4617, %v5116
    %v5122 = vmul.f32 %v4618, %v5115
    %5123 = vset.pattern.permute.xlu0 11
    %5124 = vperm.xlu0 %5123, %v4640
    %v5125 = vpop.permute.xlu0 %5124
    %v5127 = vmul.f32 %v5120, %v5125
    %v5128 = vmul.f32 %v5121, %v5125
    %v5129 = vmul.f32 %v5122, %v5125
    %5133 = vrot.lane.b32.xlu0 %v5127, 95
    %v5134 = vpop.permute.xlu0 %5133
    %5135 = vrot.lane.b32.xlu0 %v5128, 95
    %v5136 = vpop.permute.xlu0 %5135
    %5137 = vrot.lane.b32.xlu0 %v5129, 95
    %v5138 = vpop.permute.xlu0 %5137
    %v5139 = vsel %vm442, %v5134, %v5136
    %v5140 = vsel %vm442, %v5136, %v5138
    %v5144 = vadd.f32 %v5099, %v5139
    %v5145 = vadd.f32 %v5100, %v5140
    %v5146 = vadd.f32 %v5101, %v5138
    %v5147 = vld [vmem:[%s1460] ss:$8 sm:$0x3]
    %v5149 = vlaneseq
    %v5150 = vshrl.u32 %v5149, 7
    %v5151 = vsub.s32 0, %v5150
    %v5152 = vrot.slane %v5147, %v5151
    %v5153 = vlaneseq
    %v5154 = vshrl.u32 %v5153, 7
    %v5155 = vsub.s32 1, %v5154
    %v5156 = vrot.slane %v5147, %v5155
    %v5159 = vmul.f32 %v4617, %v5152
    %v5160 = vmul.f32 %v4618, %v5156
    %5161 = vset.pattern.permute.xlu0 12
    %5162 = vperm.xlu0 %5161, %v4640
    %v5163 = vpop.permute.xlu0 %5162
    %v5165 = vmul.f32 %v5159, %v5163
    %v5166 = vmul.f32 %v5160, %v5163
    %5169 = vrot.lane.b32.xlu0 %v5165, 94
    %v5170 = vpop.permute.xlu0 %5169
    %5171 = vrot.lane.b32.xlu0 %v5166, 94
    %v5172 = vpop.permute.xlu0 %5171
    %v5173 = vsel %vm371, %v5170, %v5172
    %v5177 = vadd.f32 %v5144, %v5170
    %v5178 = vadd.f32 %v5145, %v5173
    %v5179 = vadd.f32 %v5146, %v5172
    %v5180 = vld [vmem:[#allocation2 + $0x8] sm:$0xff]
    %v5181 = vld [vmem:[#allocation2 + $0x10] sm:$0xff]
    %v5182 = vld [vmem:[#allocation2 + $0x18] sm:$0xff]
    %v5183 = vld [vmem:[%s1595] ss:$8 sm:$0x3]
    %v5185 = vlaneseq
    %v5186 = vshrl.u32 %v5185, 7
    %v5187 = vsub.s32 0, %v5186
    %v5188 = vrot.slane %v5183, %v5187
    %v5189 = vlaneseq
    %v5190 = vshrl.u32 %v5189, 7
    %v5191 = vsub.s32 1, %v5190
    %v5192 = vrot.slane %v5183, %v5191
    %5193 = vrot.lane.b32.xlu0 %v5188, 1
    %v5194 = vpop.permute.xlu0 %5193
    %5195 = vrot.lane.b32.xlu0 %v5192, 1
    %v5196 = vpop.permute.xlu0 %5195
    %v5197 = vsel %vm1610, %v5194, %v5196
    %v5201 = vmul.f32 %v5180, %v5194
    %v5202 = vmul.f32 %v5181, %v5197
    %v5203 = vmul.f32 %v5182, %v5196
    %5204 = vset.pattern.permute.xlu0 13
    %5205 = vperm.xlu0 %5204, %v4640
    %v5206 = vpop.permute.xlu0 %5205
    %v5208 = vmul.f32 %v5201, %v5206
    %v5209 = vmul.f32 %v5202, %v5206
    %v5210 = vmul.f32 %v5203, %v5206
    %5214 = vrot.lane.b32.xlu0 %v5208, 93
    %v5215 = vpop.permute.xlu0 %5214
    %5216 = vrot.lane.b32.xlu0 %v5209, 93
    %v5217 = vpop.permute.xlu0 %5216
    %5218 = vrot.lane.b32.xlu0 %v5210, 93
    %v5219 = vpop.permute.xlu0 %5218
    %v5220 = vsel %vm1714, %v5215, %v5217
    %v5221 = vsel %vm1714, %v5217, %v5219
    %v5225 = vadd.f32 %v5177, %v5215
    %v5226 = vadd.f32 %v5178, %v5220
    %v5227 = vadd.f32 %v5179, %v5221
    %v5228 = vld [vmem:[%s1723] ss:$8 sm:$0x3]
    %v5230 = vlaneseq
    %v5231 = vshrl.u32 %v5230, 7
    %v5232 = vsub.s32 0, %v5231
    %v5233 = vrot.slane %v5228, %v5232
    %v5234 = vlaneseq
    %v5235 = vshrl.u32 %v5234, 7
    %v5236 = vsub.s32 1, %v5235
    %v5237 = vrot.slane %v5228, %v5236
    %5238 = vrot.lane.b32.xlu0 %v5233, 2
    %v5239 = vpop.permute.xlu0 %5238
    %5240 = vrot.lane.b32.xlu0 %v5237, 2
    %v5241 = vpop.permute.xlu0 %5240
    %v5242 = vsel %vm1738, %v5239, %v5241
    %v5246 = vmul.f32 %v5180, %v5239
    %v5247 = vmul.f32 %v5181, %v5242
    %v5248 = vmul.f32 %v5182, %v5241
    %5249 = vset.pattern.permute.xlu0 14
    %5250 = vperm.xlu0 %5249, %v4640
    %v5251 = vpop.permute.xlu0 %5250
    %v5253 = vmul.f32 %v5246, %v5251
    %v5254 = vmul.f32 %v5247, %v5251
    %v5255 = vmul.f32 %v5248, %v5251
    %5259 = vrot.lane.b32.xlu0 %v5253, 92
    %v5260 = vpop.permute.xlu0 %5259
    %5261 = vrot.lane.b32.xlu0 %v5254, 92
    %v5262 = vpop.permute.xlu0 %5261
    %5263 = vrot.lane.b32.xlu0 %v5255, 92
    %v5264 = vpop.permute.xlu0 %5263
    %v5265 = vsel %vm323, %v5260, %v5262
    %v5266 = vsel %vm323, %v5262, %v5264
    %v5270 = vadd.f32 %v5225, %v5260
    %v5271 = vadd.f32 %v5226, %v5265
    %v5272 = vadd.f32 %v5227, %v5266
    %v5273 = vld [vmem:[%s1867] ss:$8 sm:$0x3]
    %v5275 = vlaneseq
    %v5276 = vshrl.u32 %v5275, 7
    %v5277 = vsub.s32 0, %v5276
    %v5278 = vrot.slane %v5273, %v5277
    %v5279 = vlaneseq
    %v5280 = vshrl.u32 %v5279, 7
    %v5281 = vsub.s32 1, %v5280
    %v5282 = vrot.slane %v5273, %v5281
    %5283 = vrot.lane.b32.xlu0 %v5278, 14
    %v5284 = vpop.permute.xlu0 %5283
    %5285 = vrot.lane.b32.xlu0 %v5282, 14
    %v5286 = vpop.permute.xlu0 %5285
    %v5287 = vsel %vm1882, %v5284, %v5286
    %v5291 = vmul.f32 %v5180, %v5284
    %v5292 = vmul.f32 %v5181, %v5287
    %v5293 = vmul.f32 %v5182, %v5286
    %5294 = vset.pattern.permute.xlu0 15
    %5295 = vperm.xlu0 %5294, %v4640
    %v5296 = vpop.permute.xlu0 %5295
    %v5298 = vmul.f32 %v5291, %v5296
    %v5299 = vmul.f32 %v5292, %v5296
    %v5300 = vmul.f32 %v5293, %v5296
    %5304 = vrot.lane.b32.xlu0 %v5298, 80
    %v5305 = vpop.permute.xlu0 %5304
    %5306 = vrot.lane.b32.xlu0 %v5299, 80
    %v5307 = vpop.permute.xlu0 %5306
    %5308 = vrot.lane.b32.xlu0 %v5300, 80
    %v5309 = vpop.permute.xlu0 %5308
    %v5310 = vsel %vm1906, %v5305, %v5307
    %v5311 = vsel %vm1906, %v5307, %v5309
    %v5315 = vadd.f32 %v5270, %v5305
    %v5316 = vadd.f32 %v5271, %v5310
    %v5317 = vadd.f32 %v5272, %v5311
    %v5318 = vld [vmem:[%s1915] ss:$8 sm:$0x3]
    %v5320 = vlaneseq
    %v5321 = vshrl.u32 %v5320, 7
    %v5322 = vsub.s32 0, %v5321
    %v5323 = vrot.slane %v5318, %v5322
    %v5324 = vlaneseq
    %v5325 = vshrl.u32 %v5324, 7
    %v5326 = vsub.s32 1, %v5325
    %v5327 = vrot.slane %v5318, %v5326
    %5328 = vrot.lane.b32.xlu0 %v5323, 15
    %v5329 = vpop.permute.xlu0 %5328
    %5330 = vrot.lane.b32.xlu0 %v5327, 15
    %v5331 = vpop.permute.xlu0 %5330
    %v5332 = vsel %vm1930, %v5329, %v5331
    %v5336 = vmul.f32 %v5180, %v5329
    %v5337 = vmul.f32 %v5181, %v5332
    %v5338 = vmul.f32 %v5182, %v5331
    %5339 = vset.pattern.permute.xlu0 16
    %5340 = vperm.xlu0 %5339, %v4640
    %v5341 = vpop.permute.xlu0 %5340
    %v5343 = vmul.f32 %v5336, %v5341
    %v5344 = vmul.f32 %v5337, %v5341
    %v5345 = vmul.f32 %v5338, %v5341
    %5349 = vrot.lane.b32.xlu0 %v5343, 79
    %v5350 = vpop.permute.xlu0 %5349
    %5351 = vrot.lane.b32.xlu0 %v5344, 79
    %v5352 = vpop.permute.xlu0 %5351
    %5353 = vrot.lane.b32.xlu0 %v5345, 79
    %v5354 = vpop.permute.xlu0 %5353
    %v5355 = vsel %vm2034, %v5350, %v5352
    %v5356 = vsel %vm2034, %v5352, %v5354
    %v5360 = vadd.f32 %v5315, %v5350
    %v5361 = vadd.f32 %v5316, %v5355
    %v5362 = vadd.f32 %v5317, %v5356
    %v5363 = vld [vmem:[%s2043] ss:$8 sm:$0x3]
    %v5365 = vlaneseq
    %v5366 = vshrl.u32 %v5365, 7
    %v5367 = vsub.s32 0, %v5366
    %v5368 = vrot.slane %v5363, %v5367
    %v5369 = vlaneseq
    %v5370 = vshrl.u32 %v5369, 7
    %v5371 = vsub.s32 1, %v5370
    %v5372 = vrot.slane %v5363, %v5371
    %5373 = vrot.lane.b32.xlu0 %v5368, 16
    %v5374 = vpop.permute.xlu0 %5373
    %5375 = vrot.lane.b32.xlu0 %v5372, 16
    %v5376 = vpop.permute.xlu0 %5375
    %v5377 = vsel %vm2058, %v5374, %v5376
    %v5381 = vmul.f32 %v5180, %v5374
    %v5382 = vmul.f32 %v5181, %v5377
    %v5383 = vmul.f32 %v5182, %v5376
    %5384 = vset.pattern.permute.xlu0 17
    %5385 = vperm.xlu0 %5384, %v4640
    %v5386 = vpop.permute.xlu0 %5385
    %v5388 = vmul.f32 %v5381, %v5386
    %v5389 = vmul.f32 %v5382, %v5386
    %v5390 = vmul.f32 %v5383, %v5386
    %5394 = vrot.lane.b32.xlu0 %v5388, 78
    %v5395 = vpop.permute.xlu0 %5394
    %5396 = vrot.lane.b32.xlu0 %v5389, 78
    %v5397 = vpop.permute.xlu0 %5396
    %5398 = vrot.lane.b32.xlu0 %v5390, 78
    %v5399 = vpop.permute.xlu0 %5398
    %v5400 = vsel %vm2162, %v5395, %v5397
    %v5401 = vsel %vm2162, %v5397, %v5399
    %v5405 = vadd.f32 %v5360, %v5395
    %v5406 = vadd.f32 %v5361, %v5400
    %v5407 = vadd.f32 %v5362, %v5401
    %v5408 = vld [vmem:[%s2171] ss:$8 sm:$0x3]
    %v5410 = vlaneseq
    %v5411 = vshrl.u32 %v5410, 7
    %v5412 = vsub.s32 0, %v5411
    %v5413 = vrot.slane %v5408, %v5412
    %v5414 = vlaneseq
    %v5415 = vshrl.u32 %v5414, 7
    %v5416 = vsub.s32 1, %v5415
    %v5417 = vrot.slane %v5408, %v5416
    %5418 = vrot.lane.b32.xlu0 %v5413, 17
    %v5419 = vpop.permute.xlu0 %5418
    %5420 = vrot.lane.b32.xlu0 %v5417, 17
    %v5421 = vpop.permute.xlu0 %5420
    %v5422 = vsel %vm2186, %v5419, %v5421
    %v5426 = vmul.f32 %v5180, %v5419
    %v5427 = vmul.f32 %v5181, %v5422
    %v5428 = vmul.f32 %v5182, %v5421
    %5429 = vset.pattern.permute.xlu0 18
    %5430 = vperm.xlu0 %5429, %v4640
    %v5431 = vpop.permute.xlu0 %5430
    %v5433 = vmul.f32 %v5426, %v5431
    %v5434 = vmul.f32 %v5427, %v5431
    %v5435 = vmul.f32 %v5428, %v5431
    %5439 = vrot.lane.b32.xlu0 %v5433, 77
    %v5440 = vpop.permute.xlu0 %5439
    %5441 = vrot.lane.b32.xlu0 %v5434, 77
    %v5442 = vpop.permute.xlu0 %5441
    %5443 = vrot.lane.b32.xlu0 %v5435, 77
    %v5444 = vpop.permute.xlu0 %5443
    %v5445 = vsel %vm2290, %v5440, %v5442
    %v5446 = vsel %vm2290, %v5442, %v5444
    %v5450 = vadd.f32 %v5405, %v5440
    %v5451 = vadd.f32 %v5406, %v5445
    %v5452 = vadd.f32 %v5407, %v5446
    %v5453 = vld [vmem:[%s2299] ss:$8 sm:$0x3]
    %v5455 = vlaneseq
    %v5456 = vshrl.u32 %v5455, 7
    %v5457 = vsub.s32 0, %v5456
    %v5458 = vrot.slane %v5453, %v5457
    %v5459 = vlaneseq
    %v5460 = vshrl.u32 %v5459, 7
    %v5461 = vsub.s32 1, %v5460
    %v5462 = vrot.slane %v5453, %v5461
    %5463 = vrot.lane.b32.xlu0 %v5458, 18
    %v5464 = vpop.permute.xlu0 %5463
    %5465 = vrot.lane.b32.xlu0 %v5462, 18
    %v5466 = vpop.permute.xlu0 %5465
    %v5467 = vsel %vm2314, %v5464, %v5466
    %v5471 = vmul.f32 %v5180, %v5464
    %v5472 = vmul.f32 %v5181, %v5467
    %v5473 = vmul.f32 %v5182, %v5466
    %5474 = vset.pattern.permute.xlu0 19
    %5475 = vperm.xlu0 %5474, %v4640
    %v5476 = vpop.permute.xlu0 %5475
    %v5478 = vmul.f32 %v5471, %v5476
    %v5479 = vmul.f32 %v5472, %v5476
    %v5480 = vmul.f32 %v5473, %v5476
    %5484 = vrot.lane.b32.xlu0 %v5478, 76
    %v5485 = vpop.permute.xlu0 %5484
    %5486 = vrot.lane.b32.xlu0 %v5479, 76
    %v5487 = vpop.permute.xlu0 %5486
    %5488 = vrot.lane.b32.xlu0 %v5480, 76
    %v5489 = vpop.permute.xlu0 %5488
    %v5490 = vsel %vm2338, %v5485, %v5487
    %v5491 = vsel %vm2338, %v5487, %v5489
    %v5495 = vadd.f32 %v5450, %v5485
    %v5496 = vadd.f32 %v5451, %v5490
    %v5497 = vadd.f32 %v5452, %v5491
    %v5498 = vld [vmem:[%s2395] ss:$8 sm:$0x3]
    %v5500 = vlaneseq
    %v5501 = vshrl.u32 %v5500, 7
    %v5502 = vsub.s32 0, %v5501
    %v5503 = vrot.slane %v5498, %v5502
    %v5504 = vlaneseq
    %v5505 = vshrl.u32 %v5504, 7
    %v5506 = vsub.s32 1, %v5505
    %v5507 = vrot.slane %v5498, %v5506
    %5508 = vrot.lane.b32.xlu0 %v5503, 30
    %v5509 = vpop.permute.xlu0 %5508
    %5510 = vrot.lane.b32.xlu0 %v5507, 30
    %v5511 = vpop.permute.xlu0 %5510
    %v5512 = vsel %vm2410, %v5509, %v5511
    %v5516 = vmul.f32 %v5180, %v5509
    %v5517 = vmul.f32 %v5181, %v5512
    %v5518 = vmul.f32 %v5182, %v5511
    %5519 = vset.pattern.permute.xlu0 20
    %5520 = vperm.xlu0 %5519, %v4640
    %v5521 = vpop.permute.xlu0 %5520
    %v5523 = vmul.f32 %v5516, %v5521
    %v5524 = vmul.f32 %v5517, %v5521
    %v5525 = vmul.f32 %v5518, %v5521
    %5529 = vrot.lane.b32.xlu0 %v5523, 64
    %v5530 = vpop.permute.xlu0 %5529
    %5531 = vrot.lane.b32.xlu0 %v5524, 64
    %v5532 = vpop.permute.xlu0 %5531
    %5533 = vrot.lane.b32.xlu0 %v5525, 64
    %v5534 = vpop.permute.xlu0 %5533
    %v5535 = vsel %vm179, %v5530, %v5532
    %v5536 = vsel %vm179, %v5532, %v5534
    %v5540 = vadd.f32 %v5495, %v5530
    %v5541 = vadd.f32 %v5496, %v5535
    %v5542 = vadd.f32 %v5497, %v5536
    %v5543 = vld [vmem:[%s2490] ss:$8 sm:$0x3]
    %v5545 = vlaneseq
    %v5546 = vshrl.u32 %v5545, 7
    %v5547 = vsub.s32 0, %v5546
    %v5548 = vrot.slane %v5543, %v5547
    %v5549 = vlaneseq
    %v5550 = vshrl.u32 %v5549, 7
    %v5551 = vsub.s32 1, %v5550
    %v5552 = vrot.slane %v5543, %v5551
    %5553 = vrot.lane.b32.xlu0 %v5548, 31
    %v5554 = vpop.permute.xlu0 %5553
    %5555 = vrot.lane.b32.xlu0 %v5552, 31
    %v5556 = vpop.permute.xlu0 %5555
    %v5557 = vsel %vm2505, %v5554, %v5556
    %v5561 = vmul.f32 %v5180, %v5554
    %v5562 = vmul.f32 %v5181, %v5557
    %v5563 = vmul.f32 %v5182, %v5556
    %5564 = vset.pattern.permute.xlu0 21
    %5565 = vperm.xlu0 %5564, %v4640
    %v5566 = vpop.permute.xlu0 %5565
    %v5568 = vmul.f32 %v5561, %v5566
    %v5569 = vmul.f32 %v5562, %v5566
    %v5570 = vmul.f32 %v5563, %v5566
    %5574 = vrot.lane.b32.xlu0 %v5568, 63
    %v5575 = vpop.permute.xlu0 %5574
    %5576 = vrot.lane.b32.xlu0 %v5569, 63
    %v5577 = vpop.permute.xlu0 %5576
    %5578 = vrot.lane.b32.xlu0 %v5570, 63
    %v5579 = vpop.permute.xlu0 %5578
    %v5580 = vsel %vm2529, %v5575, %v5577
    %v5581 = vsel %vm2529, %v5577, %v5579
    %v5585 = vadd.f32 %v5540, %v5575
    %v5586 = vadd.f32 %v5541, %v5580
    %v5587 = vadd.f32 %v5542, %v5581
    %v5588 = vld [vmem:[%s2538] ss:$8 sm:$0x3]
    %v5590 = vlaneseq
    %v5591 = vshrl.u32 %v5590, 7
    %v5592 = vsub.s32 0, %v5591
    %v5593 = vrot.slane %v5588, %v5592
    %v5594 = vlaneseq
    %v5595 = vshrl.u32 %v5594, 7
    %v5596 = vsub.s32 1, %v5595
    %v5597 = vrot.slane %v5588, %v5596
    %5598 = vrot.lane.b32.xlu0 %v5593, 32
    %v5599 = vpop.permute.xlu0 %5598
    %5600 = vrot.lane.b32.xlu0 %v5597, 32
    %v5601 = vpop.permute.xlu0 %5600
    %v5602 = vsel %vm2386, %v5599, %v5601
    %v5606 = vmul.f32 %v5180, %v5599
    %v5607 = vmul.f32 %v5181, %v5602
    %v5608 = vmul.f32 %v5182, %v5601
    %5609 = vset.pattern.permute.xlu0 22
    %5610 = vperm.xlu0 %5609, %v4640
    %v5611 = vpop.permute.xlu0 %5610
    %v5613 = vmul.f32 %v5606, %v5611
    %v5614 = vmul.f32 %v5607, %v5611
    %v5615 = vmul.f32 %v5608, %v5611
    %5619 = vrot.lane.b32.xlu0 %v5613, 62
    %v5620 = vpop.permute.xlu0 %5619
    %5621 = vrot.lane.b32.xlu0 %v5614, 62
    %v5622 = vpop.permute.xlu0 %5621
    %5623 = vrot.lane.b32.xlu0 %v5615, 62
    %v5624 = vpop.permute.xlu0 %5623
    %v5625 = vsel %vm131, %v5620, %v5622
    %v5626 = vsel %vm131, %v5622, %v5624
    %v5630 = vadd.f32 %v5585, %v5620
    %v5631 = vadd.f32 %v5586, %v5625
    %v5632 = vadd.f32 %v5587, %v5626
    %v5633 = vld [vmem:[%s2632] ss:$8 sm:$0x3]
    %v5635 = vlaneseq
    %v5636 = vshrl.u32 %v5635, 7
    %v5637 = vsub.s32 0, %v5636
    %v5638 = vrot.slane %v5633, %v5637
    %v5639 = vlaneseq
    %v5640 = vshrl.u32 %v5639, 7
    %v5641 = vsub.s32 1, %v5640
    %v5642 = vrot.slane %v5633, %v5641
    %5643 = vrot.lane.b32.xlu0 %v5638, 33
    %v5644 = vpop.permute.xlu0 %5643
    %5645 = vrot.lane.b32.xlu0 %v5642, 33
    %v5646 = vpop.permute.xlu0 %5645
    %v5647 = vsel %vm2647, %v5644, %v5646
    %v5651 = vmul.f32 %v5180, %v5644
    %v5652 = vmul.f32 %v5181, %v5647
    %v5653 = vmul.f32 %v5182, %v5646
    %5654 = vset.pattern.permute.xlu0 23
    %5655 = vperm.xlu0 %5654, %v4640
    %v5656 = vpop.permute.xlu0 %5655
    %v5658 = vmul.f32 %v5651, %v5656
    %v5659 = vmul.f32 %v5652, %v5656
    %v5660 = vmul.f32 %v5653, %v5656
    %5664 = vrot.lane.b32.xlu0 %v5658, 61
    %v5665 = vpop.permute.xlu0 %5664
    %5666 = vrot.lane.b32.xlu0 %v5659, 61
    %v5667 = vpop.permute.xlu0 %5666
    %5668 = vrot.lane.b32.xlu0 %v5660, 61
    %v5669 = vpop.permute.xlu0 %5668
    %v5670 = vsel %vm2671, %v5665, %v5667
    %v5671 = vsel %vm2671, %v5667, %v5669
    %v5675 = vadd.f32 %v5630, %v5665
    %v5676 = vadd.f32 %v5631, %v5670
    %v5677 = vadd.f32 %v5632, %v5671
    %v5678 = vld [vmem:[%s2680] ss:$8 sm:$0x3]
    %v5680 = vlaneseq
    %v5681 = vshrl.u32 %v5680, 7
    %v5682 = vsub.s32 0, %v5681
    %v5683 = vrot.slane %v5678, %v5682
    %v5684 = vlaneseq
    %v5685 = vshrl.u32 %v5684, 7
    %v5686 = vsub.s32 1, %v5685
    %v5687 = vrot.slane %v5678, %v5686
    %5688 = vrot.lane.b32.xlu0 %v5683, 34
    %v5689 = vpop.permute.xlu0 %5688
    %5690 = vrot.lane.b32.xlu0 %v5687, 34
    %v5691 = vpop.permute.xlu0 %5690
    %v5692 = vsel %vm2695, %v5689, %v5691
    %v5696 = vmul.f32 %v5180, %v5689
    %v5697 = vmul.f32 %v5181, %v5692
    %v5698 = vmul.f32 %v5182, %v5691
    %5699 = vset.pattern.permute.xlu0 24
    %5700 = vperm.xlu0 %5699, %v4640
    %v5701 = vpop.permute.xlu0 %5700
    %v5703 = vmul.f32 %v5696, %v5701
    %v5704 = vmul.f32 %v5697, %v5701
    %v5705 = vmul.f32 %v5698, %v5701
    %5709 = vrot.lane.b32.xlu0 %v5703, 60
    %v5710 = vpop.permute.xlu0 %5709
    %5711 = vrot.lane.b32.xlu0 %v5704, 60
    %v5712 = vpop.permute.xlu0 %5711
    %5713 = vrot.lane.b32.xlu0 %v5705, 60
    %v5714 = vpop.permute.xlu0 %5713
    %v5715 = vsel %vm96, %v5710, %v5712
    %v5716 = vsel %vm96, %v5712, %v5714
    %v5720 = vadd.f32 %v5675, %v5710
    %v5721 = vadd.f32 %v5676, %v5715
    %v5722 = vadd.f32 %v5677, %v5716
    %5726 = vrot.lane.b32.xlu0 %v5720, 34
    %v5727 = vpop.permute.xlu0 %5726
    %5728 = vrot.lane.b32.xlu0 %v5721, 34
    %v5729 = vpop.permute.xlu0 %5728
    %5730 = vrot.lane.b32.xlu0 %v5722, 34
    %v5731 = vpop.permute.xlu0 %5730
    %v5732 = vsel %vm2695, %v5727, %v5729
    %v5733 = vsel %vm2695, %v5729, %v5731
    %5736 = vmatprep.subr.mxu0 0.0
    %5737 = vmatpush1.msra.mxu0 0.0
    %5738 = vmatprep.subr.mxu0 0.0
    %5739 = vmatpush1.msra.mxu0 0.0
    %5740 = vmatprep.subr.mxu0 0.0
    %5741 = vmatpush1.msra.mxu0 0.0
    %5742 = vmatprep.subr.mxu0 0.0
    %5743 = vmatpush1.msra.mxu0 0.0
    %5744 = vmatprep.subr.mxu0 0.0
    %5745 = vmatpush1.msra.mxu0 0.0
    %5746 = vmatprep.subr.mxu0 0.0
    %5747 = vmatpush1.msra.mxu0 0.0
    %5748 = vmatprep.subr.mxu0 0.0
    %5749 = vmatpush1.msra.mxu0 0.0
    %5750 = vmatprep.subr.mxu0 0.0
    %5751 = vmatpush1.msra.mxu0 0.0
    %5752 = vmatprep.subr.mxu0 0.0
    %5753 = vmatpush1.msra.mxu0 0.0
    %5754 = vmatprep.subr.mxu0 0.0
    %5755 = vmatpush1.msra.mxu0 0.0
    %5756 = vmatprep.subr.mxu0 0.0
    %5757 = vmatpush1.msra.mxu0 0.0
    %5758 = vmatprep.subr.mxu0 0.0
    %5759 = vmatpush1.msra.mxu0 0.0
    %5760 = vmatprep.subr.mxu0 0.0
    %5761 = vmatpush1.msra.mxu0 0.0
    %5762 = vmatprep.subr.mxu0 0.0
    %5763 = vmatpush1.msra.mxu0 0.0
    %5764 = vmatprep.subr.mxu0 0.0
    %5765 = vmatpush1.msra.mxu0 0.0
    %5766 = vmatprep.subr.mxu0 %v5733
    %5767 = vmatpush1.msra.mxu0 %v5732
    %5768 = vmatprep.subr.mxu0 0.0
    %5769 = vmatpush2.msra.mxu0 0.0
    %5770 = vmatprep.subr.mxu0 0.0
    %5771 = vmatpush2.msra.mxu0 0.0
    %5772 = vmatprep.subr.mxu0 0.0
    %5773 = vmatpush2.msra.mxu0 0.0
    %5774 = vmatprep.subr.mxu0 0.0
    %5775 = vmatpush2.msra.mxu0 0.0
    %5776 = vmatprep.subr.mxu0 0.0
    %5777 = vmatpush2.msra.mxu0 0.0
    %5778 = vmatprep.subr.mxu0 0.0
    %5779 = vmatpush2.msra.mxu0 0.0
    %5780 = vmatprep.subr.mxu0 0.0
    %5781 = vmatpush2.msra.mxu0 0.0
    %5782 = vmatprep.subr.mxu0 0.0
    %5783 = vmatpush2.msra.mxu0 0.0
    %5784 = vmatprep.subr.mxu0 0.0
    %5785 = vmatpush2.msra.mxu0 0.0
    %5786 = vmatprep.subr.mxu0 0.0
    %5787 = vmatpush2.msra.mxu0 0.0
    %5788 = vmatprep.subr.mxu0 0.0
    %5789 = vmatpush2.msra.mxu0 0.0
    %5790 = vmatprep.subr.mxu0 0.0
    %5791 = vmatpush2.msra.mxu0 0.0
    %5792 = vmatprep.subr.mxu0 0.0
    %5793 = vmatpush2.msra.mxu0 0.0
    %5794 = vmatprep.subr.mxu0 0.0
    %5795 = vmatpush2.msra.mxu0 0.0
    %5796 = vmatprep.subr.mxu0 0.0
    %5797 = vmatpush2.msra.mxu0 0.0
    %5798 = vmatprep.subr.mxu0 0.0
    %5799 = vmatpush2.msra.mxu0 0.0
    %5800 = vmatprep.mubr.f32.mxu0 0.0
    %5801 = vmatmul.mubr.f32.gmra.mxu0 %v3076
    %v5802 = vpop.f32.mrf.mxu0
    %v5803 = vadd.f32 0.0, %v5802
    %v5804 = vpop.f32.mrf.mxu0
    %v5805 = vadd.f32 0.0, %v5804
    %5806 = vdwg.mxu0
    %v5807 = vmul.f32 %v5720, %v5720
    %v5808 = vmul.f32 %v5721, %v5721
    %v5809 = vmul.f32 %v5722, %v5722
    %5813 = vrot.lane.b32.xlu0 %v5807, 34
    %v5814 = vpop.permute.xlu0 %5813
    %5815 = vrot.lane.b32.xlu0 %v5808, 34
    %v5816 = vpop.permute.xlu0 %5815
    %5817 = vrot.lane.b32.xlu0 %v5809, 34
    %v5818 = vpop.permute.xlu0 %5817
    %v5819 = vsel %vm2695, %v5814, %v5816
    %v5820 = vsel %vm2695, %v5816, %v5818
    %5823 = vmatprep.subr.mxu0 0.0
    %5824 = vmatpush1.msra.mxu0 0.0
    %5825 = vmatprep.subr.mxu0 0.0
    %5826 = vmatpush1.msra.mxu0 0.0
    %5827 = vmatprep.subr.mxu0 0.0
    %5828 = vmatpush1.msra.mxu0 0.0
    %5829 = vmatprep.subr.mxu0 0.0
    %5830 = vmatpush1.msra.mxu0 0.0
    %5831 = vmatprep.subr.mxu0 0.0
    %5832 = vmatpush1.msra.mxu0 0.0
    %5833 = vmatprep.subr.mxu0 0.0
    %5834 = vmatpush1.msra.mxu0 0.0
    %5835 = vmatprep.subr.mxu0 0.0
    %5836 = vmatpush1.msra.mxu0 0.0
    %5837 = vmatprep.subr.mxu0 0.0
    %5838 = vmatpush1.msra.mxu0 0.0
    %5839 = vmatprep.subr.mxu0 0.0
    %5840 = vmatpush1.msra.mxu0 0.0
    %5841 = vmatprep.subr.mxu0 0.0
    %5842 = vmatpush1.msra.mxu0 0.0
    %5843 = vmatprep.subr.mxu0 0.0
    %5844 = vmatpush1.msra.mxu0 0.0
    %5845 = vmatprep.subr.mxu0 0.0
    %5846 = vmatpush1.msra.mxu0 0.0
    %5847 = vmatprep.subr.mxu0 0.0
    %5848 = vmatpush1.msra.mxu0 0.0
    %5849 = vmatprep.subr.mxu0 0.0
    %5850 = vmatpush1.msra.mxu0 0.0
    %5851 = vmatprep.subr.mxu0 0.0
    %5852 = vmatpush1.msra.mxu0 0.0
    %5853 = vmatprep.subr.mxu0 %v5820
    %5854 = vmatpush1.msra.mxu0 %v5819
    %5855 = vmatprep.subr.mxu0 0.0
    %5856 = vmatpush2.msra.mxu0 0.0
    %5857 = vmatprep.subr.mxu0 0.0
    %5858 = vmatpush2.msra.mxu0 0.0
    %5859 = vmatprep.subr.mxu0 0.0
    %5860 = vmatpush2.msra.mxu0 0.0
    %5861 = vmatprep.subr.mxu0 0.0
    %5862 = vmatpush2.msra.mxu0 0.0
    %5863 = vmatprep.subr.mxu0 0.0
    %5864 = vmatpush2.msra.mxu0 0.0
    %5865 = vmatprep.subr.mxu0 0.0
    %5866 = vmatpush2.msra.mxu0 0.0
    %5867 = vmatprep.subr.mxu0 0.0
    %5868 = vmatpush2.msra.mxu0 0.0
    %5869 = vmatprep.subr.mxu0 0.0
    %5870 = vmatpush2.msra.mxu0 0.0
    %5871 = vmatprep.subr.mxu0 0.0
    %5872 = vmatpush2.msra.mxu0 0.0
    %5873 = vmatprep.subr.mxu0 0.0
    %5874 = vmatpush2.msra.mxu0 0.0
    %5875 = vmatprep.subr.mxu0 0.0
    %5876 = vmatpush2.msra.mxu0 0.0
    %5877 = vmatprep.subr.mxu0 0.0
    %5878 = vmatpush2.msra.mxu0 0.0
    %5879 = vmatprep.subr.mxu0 0.0
    %5880 = vmatpush2.msra.mxu0 0.0
    %5881 = vmatprep.subr.mxu0 0.0
    %5882 = vmatpush2.msra.mxu0 0.0
    %5883 = vmatprep.subr.mxu0 0.0
    %5884 = vmatpush2.msra.mxu0 0.0
    %5885 = vmatprep.subr.mxu0 0.0
    %5886 = vmatpush2.msra.mxu0 0.0
    %5887 = vmatprep.mubr.f32.mxu0 0.0
    %5888 = vmatmul.mubr.f32.gmra.mxu0 %v3076
    %v5889 = vpop.f32.mrf.mxu0
    %v5890 = vadd.f32 0.0, %v5889
    %v5891 = vpop.f32.mrf.mxu0
    %v5892 = vadd.f32 0.0, %v5891
    %5893 = vdwg.mxu0
    %v5894 = vadd.f32 %v5803, %v5805
    %5895 = vadd.xlane.f32.xlu0 %v5894
    %v5896 = vpop.xlane.xlu0 %5895
    %v5897 = vmul.f32 %v5896, 0.001953125
    %v5898 = vadd.f32 %v5890, %v5892
    %5899 = vadd.xlane.f32.xlu0 %v5898
    %v5900 = vpop.xlane.xlu0 %5899
    %v5901 = vmul.f32 %v5900, 0.001953125
    %v5902 = vmul.f32 %v5897, %v5897
    %v5903 = vsub.f32 %v5901, %v5902
    %v5904 = vadd.f32 %v5903, 1e-05
    %v5905 = vrsqrt.pop %v5904
    %v5906 = vsub.f32 %v5720, %v5897
    %v5907 = vsub.f32 %v5721, %v5897
    %v5908 = vsub.f32 %v5722, %v5897
    %v5909 = vmul.f32 %v5906, %v5905
    %v5910 = vmul.f32 %v5907, %v5905
    %v5911 = vmul.f32 %v5908, %v5905
    %v5912 = vmax.f32 %v5909, 0.0
    %v5913 = vmax.f32 %v5910, 0.0
    %v5914 = vmax.f32 %v5911, 0.0
    %v5915 = vld [vmem:[%s13] sm:$0xff]
    %5919 = vrot.lane.b32.xlu0 %v5912, 34
    %v5920 = vpop.permute.xlu0 %5919
    %5921 = vrot.lane.b32.xlu0 %v5913, 34
    %v5922 = vpop.permute.xlu0 %5921
    %5923 = vrot.lane.b32.xlu0 %v5914, 34
    %v5924 = vpop.permute.xlu0 %5923
    %v5925 = vsel %vm2695, %v5920, %v5922
    %v5926 = vsel %vm2695, %v5922, %v5924
    %v5930 = vsel %vm3074, %v5915, 0
    %5932 = vmatprep.subr.mxu0 0.0
    %5933 = vmatpush1.msra.mxu0 0.0
    %5934 = vmatprep.subr.mxu0 0.0
    %5935 = vmatpush1.msra.mxu0 0.0
    %5936 = vmatprep.subr.mxu0 0.0
    %5937 = vmatpush1.msra.mxu0 0.0
    %5938 = vmatprep.subr.mxu0 0.0
    %5939 = vmatpush1.msra.mxu0 0.0
    %5940 = vmatprep.subr.mxu0 0.0
    %5941 = vmatpush1.msra.mxu0 0.0
    %5942 = vmatprep.subr.mxu0 0.0
    %5943 = vmatpush1.msra.mxu0 0.0
    %5944 = vmatprep.subr.mxu0 0.0
    %5945 = vmatpush1.msra.mxu0 0.0
    %5946 = vmatprep.subr.mxu0 0.0
    %5947 = vmatpush1.msra.mxu0 0.0
    %5948 = vmatprep.subr.mxu0 0.0
    %5949 = vmatpush1.msra.mxu0 0.0
    %5950 = vmatprep.subr.mxu0 0.0
    %5951 = vmatpush1.msra.mxu0 0.0
    %5952 = vmatprep.subr.mxu0 0.0
    %5953 = vmatpush1.msra.mxu0 0.0
    %5954 = vmatprep.subr.mxu0 0.0
    %5955 = vmatpush1.msra.mxu0 0.0
    %5956 = vmatprep.subr.mxu0 0.0
    %5957 = vmatpush1.msra.mxu0 0.0
    %5958 = vmatprep.subr.mxu0 0.0
    %5959 = vmatpush1.msra.mxu0 0.0
    %5960 = vmatprep.subr.mxu0 0.0
    %5961 = vmatpush1.msra.mxu0 0.0
    %5962 = vmatprep.subr.mxu0 %v5926
    %5963 = vmatpush1.msra.mxu0 %v5925
    %5964 = vmatprep.subr.mxu0 0.0
    %5965 = vmatpush2.msra.mxu0 0.0
    %5966 = vmatprep.subr.mxu0 0.0
    %5967 = vmatpush2.msra.mxu0 0.0
    %5968 = vmatprep.subr.mxu0 0.0
    %5969 = vmatpush2.msra.mxu0 0.0
    %5970 = vmatprep.subr.mxu0 0.0
    %5971 = vmatpush2.msra.mxu0 0.0
    %5972 = vmatprep.subr.mxu0 0.0
    %5973 = vmatpush2.msra.mxu0 0.0
    %5974 = vmatprep.subr.mxu0 0.0
    %5975 = vmatpush2.msra.mxu0 0.0
    %5976 = vmatprep.subr.mxu0 0.0
    %5977 = vmatpush2.msra.mxu0 0.0
    %5978 = vmatprep.subr.mxu0 0.0
    %5979 = vmatpush2.msra.mxu0 0.0
    %5980 = vmatprep.subr.mxu0 0.0
    %5981 = vmatpush2.msra.mxu0 0.0
    %5982 = vmatprep.subr.mxu0 0.0
    %5983 = vmatpush2.msra.mxu0 0.0
    %5984 = vmatprep.subr.mxu0 0.0
    %5985 = vmatpush2.msra.mxu0 0.0
    %5986 = vmatprep.subr.mxu0 0.0
    %5987 = vmatpush2.msra.mxu0 0.0
    %5988 = vmatprep.subr.mxu0 0.0
    %5989 = vmatpush2.msra.mxu0 0.0
    %5990 = vmatprep.subr.mxu0 0.0
    %5991 = vmatpush2.msra.mxu0 0.0
    %5992 = vmatprep.subr.mxu0 0.0
    %5993 = vmatpush2.msra.mxu0 0.0
    %5994 = vmatprep.subr.mxu0 0.0
    %5995 = vmatpush2.msra.mxu0 0.0
    %5996 = vmatprep.mubr.f32.mxu0 0.0
    %5997 = vmatmul.mubr.f32.gmra.mxu0 %v5930
    %v5998 = vpop.f32.mrf.mxu0
    %v5999 = vadd.f32 0.0, %v5998
    %v6000 = vpop.f32.mrf.mxu0
    %v6001 = vadd.f32 0.0, %v6000
    %6002 = vdwg.mxu0
    %6006 = vrot.lane.b32.xlu0 %v2748, 34
    %v6007 = vpop.permute.xlu0 %6006
    %6008 = vrot.lane.b32.xlu0 %v2749, 34
    %v6009 = vpop.permute.xlu0 %6008
    %6010 = vrot.lane.b32.xlu0 %v2750, 34
    %v6011 = vpop.permute.xlu0 %6010
    %v6012 = vsel %vm2695, %v6007, %v6009
    %v6013 = vsel %vm2695, %v6009, %v6011
    %6016 = vmatprep.subr.mxu0 0.0
    %6017 = vmatpush1.msra.mxu0 0.0
    %6018 = vmatprep.subr.mxu0 0.0
    %6019 = vmatpush1.msra.mxu0 0.0
    %6020 = vmatprep.subr.mxu0 0.0
    %6021 = vmatpush1.msra.mxu0 0.0
    %6022 = vmatprep.subr.mxu0 0.0
    %6023 = vmatpush1.msra.mxu0 0.0
    %6024 = vmatprep.subr.mxu0 0.0
    %6025 = vmatpush1.msra.mxu0 0.0
    %6026 = vmatprep.subr.mxu0 0.0
    %6027 = vmatpush1.msra.mxu0 0.0
    %6028 = vmatprep.subr.mxu0 0.0
    %6029 = vmatpush1.msra.mxu0 0.0
    %6030 = vmatprep.subr.mxu0 0.0
    %6031 = vmatpush1.msra.mxu0 0.0
    %6032 = vmatprep.subr.mxu0 0.0
    %6033 = vmatpush1.msra.mxu0 0.0
    %6034 = vmatprep.subr.mxu0 0.0
    %6035 = vmatpush1.msra.mxu0 0.0
    %6036 = vmatprep.subr.mxu0 0.0
    %6037 = vmatpush1.msra.mxu0 0.0
    %6038 = vmatprep.subr.mxu0 0.0
    %6039 = vmatpush1.msra.mxu0 0.0
    %6040 = vmatprep.subr.mxu0 0.0
    %6041 = vmatpush1.msra.mxu0 0.0
    %6042 = vmatprep.subr.mxu0 0.0
    %6043 = vmatpush1.msra.mxu0 0.0
    %6044 = vmatprep.subr.mxu0 0.0
    %6045 = vmatpush1.msra.mxu0 0.0
    %6046 = vmatprep.subr.mxu0 %v6013
    %6047 = vmatpush1.msra.mxu0 %v6012
    %6048 = vmatprep.subr.mxu0 0.0
    %6049 = vmatpush2.msra.mxu0 0.0
    %6050 = vmatprep.subr.mxu0 0.0
    %6051 = vmatpush2.msra.mxu0 0.0
    %6052 = vmatprep.subr.mxu0 0.0
    %6053 = vmatpush2.msra.mxu0 0.0
    %6054 = vmatprep.subr.mxu0 0.0
    %6055 = vmatpush2.msra.mxu0 0.0
    %6056 = vmatprep.subr.mxu0 0.0
    %6057 = vmatpush2.msra.mxu0 0.0
    %6058 = vmatprep.subr.mxu0 0.0
    %6059 = vmatpush2.msra.mxu0 0.0
    %6060 = vmatprep.subr.mxu0 0.0
    %6061 = vmatpush2.msra.mxu0 0.0
    %6062 = vmatprep.subr.mxu0 0.0
    %6063 = vmatpush2.msra.mxu0 0.0
    %6064 = vmatprep.subr.mxu0 0.0
    %6065 = vmatpush2.msra.mxu0 0.0
    %6066 = vmatprep.subr.mxu0 0.0
    %6067 = vmatpush2.msra.mxu0 0.0
    %6068 = vmatprep.subr.mxu0 0.0
    %6069 = vmatpush2.msra.mxu0 0.0
    %6070 = vmatprep.subr.mxu0 0.0
    %6071 = vmatpush2.msra.mxu0 0.0
    %6072 = vmatprep.subr.mxu0 0.0
    %6073 = vmatpush2.msra.mxu0 0.0
    %6074 = vmatprep.subr.mxu0 0.0
    %6075 = vmatpush2.msra.mxu0 0.0
    %6076 = vmatprep.subr.mxu0 0.0
    %6077 = vmatpush2.msra.mxu0 0.0
    %6078 = vmatprep.subr.mxu0 0.0
    %6079 = vmatpush2.msra.mxu0 0.0
    %6080 = vmatprep.mubr.f32.mxu0 0.0
    %6081 = vmatmul.mubr.f32.gmra.mxu0 %v3076
    %v6082 = vpop.f32.mrf.mxu0
    %v6083 = vadd.f32 0.0, %v6082
    %v6084 = vpop.f32.mrf.mxu0
    %v6085 = vadd.f32 0.0, %v6084
    %6086 = vdwg.mxu0
    %v6087 = vmul.f32 %v2748, %v2748
    %v6088 = vmul.f32 %v2749, %v2749
    %v6089 = vmul.f32 %v2750, %v2750
    %6093 = vrot.lane.b32.xlu0 %v6087, 34
    %v6094 = vpop.permute.xlu0 %6093
    %6095 = vrot.lane.b32.xlu0 %v6088, 34
    %v6096 = vpop.permute.xlu0 %6095
    %6097 = vrot.lane.b32.xlu0 %v6089, 34
    %v6098 = vpop.permute.xlu0 %6097
    %v6099 = vsel %vm2695, %v6094, %v6096
    %v6100 = vsel %vm2695, %v6096, %v6098
    %6103 = vmatprep.subr.mxu0 0.0
    %6104 = vmatpush1.msra.mxu0 0.0
    %6105 = vmatprep.subr.mxu0 0.0
    %6106 = vmatpush1.msra.mxu0 0.0
    %6107 = vmatprep.subr.mxu0 0.0
    %6108 = vmatpush1.msra.mxu0 0.0
    %6109 = vmatprep.subr.mxu0 0.0
    %6110 = vmatpush1.msra.mxu0 0.0
    %6111 = vmatprep.subr.mxu0 0.0
    %6112 = vmatpush1.msra.mxu0 0.0
    %6113 = vmatprep.subr.mxu0 0.0
    %6114 = vmatpush1.msra.mxu0 0.0
    %6115 = vmatprep.subr.mxu0 0.0
    %6116 = vmatpush1.msra.mxu0 0.0
    %6117 = vmatprep.subr.mxu0 0.0
    %6118 = vmatpush1.msra.mxu0 0.0
    %6119 = vmatprep.subr.mxu0 0.0
    %6120 = vmatpush1.msra.mxu0 0.0
    %6121 = vmatprep.subr.mxu0 0.0
    %6122 = vmatpush1.msra.mxu0 0.0
    %6123 = vmatprep.subr.mxu0 0.0
    %6124 = vmatpush1.msra.mxu0 0.0
    %6125 = vmatprep.subr.mxu0 0.0
    %6126 = vmatpush1.msra.mxu0 0.0
    %6127 = vmatprep.subr.mxu0 0.0
    %6128 = vmatpush1.msra.mxu0 0.0
    %6129 = vmatprep.subr.mxu0 0.0
    %6130 = vmatpush1.msra.mxu0 0.0
    %6131 = vmatprep.subr.mxu0 0.0
    %6132 = vmatpush1.msra.mxu0 0.0
    %6133 = vmatprep.subr.mxu0 %v6100
    %6134 = vmatpush1.msra.mxu0 %v6099
    %6135 = vmatprep.subr.mxu0 0.0
    %6136 = vmatpush2.msra.mxu0 0.0
    %6137 = vmatprep.subr.mxu0 0.0
    %6138 = vmatpush2.msra.mxu0 0.0
    %6139 = vmatprep.subr.mxu0 0.0
    %6140 = vmatpush2.msra.mxu0 0.0
    %6141 = vmatprep.subr.mxu0 0.0
    %6142 = vmatpush2.msra.mxu0 0.0
    %6143 = vmatprep.subr.mxu0 0.0
    %6144 = vmatpush2.msra.mxu0 0.0
    %6145 = vmatprep.subr.mxu0 0.0
    %6146 = vmatpush2.msra.mxu0 0.0
    %6147 = vmatprep.subr.mxu0 0.0
    %6148 = vmatpush2.msra.mxu0 0.0
    %6149 = vmatprep.subr.mxu0 0.0
    %6150 = vmatpush2.msra.mxu0 0.0
    %6151 = vmatprep.subr.mxu0 0.0
    %6152 = vmatpush2.msra.mxu0 0.0
    %6153 = vmatprep.subr.mxu0 0.0
    %6154 = vmatpush2.msra.mxu0 0.0
    %6155 = vmatprep.subr.mxu0 0.0
    %6156 = vmatpush2.msra.mxu0 0.0
    %6157 = vmatprep.subr.mxu0 0.0
    %6158 = vmatpush2.msra.mxu0 0.0
    %6159 = vmatprep.subr.mxu0 0.0
    %6160 = vmatpush2.msra.mxu0 0.0
    %6161 = vmatprep.subr.mxu0 0.0
    %6162 = vmatpush2.msra.mxu0 0.0
    %6163 = vmatprep.subr.mxu0 0.0
    %6164 = vmatpush2.msra.mxu0 0.0
    %6165 = vmatprep.subr.mxu0 0.0
    %6166 = vmatpush2.msra.mxu0 0.0
    %6167 = vmatprep.mubr.f32.mxu0 0.0
    %6168 = vmatmul.mubr.f32.gmra.mxu0 %v3076
    %v6169 = vpop.f32.mrf.mxu0
    %v6170 = vadd.f32 0.0, %v6169
    %v6171 = vpop.f32.mrf.mxu0
    %v6172 = vadd.f32 0.0, %v6171
    %6173 = vdwg.mxu0
    %v6174 = vadd.f32 %v6083, %v6085
    %6175 = vadd.xlane.f32.xlu0 %v6174
    %v6176 = vpop.xlane.xlu0 %6175
    %v6177 = vmul.f32 %v6176, 0.001953125
    %v6178 = vadd.f32 %v6170, %v6172
    %6179 = vadd.xlane.f32.xlu0 %v6178
    %v6180 = vpop.xlane.xlu0 %6179
    %v6181 = vmul.f32 %v6180, 0.001953125
    %v6182 = vmul.f32 %v6177, %v6177
    %v6183 = vsub.f32 %v6181, %v6182
    %v6184 = vadd.f32 %v6183, 1e-05
    %v6185 = vrsqrt.pop %v6184
    %v6186 = vsub.f32 %v2748, %v6177
    %v6187 = vsub.f32 %v2749, %v6177
    %v6188 = vsub.f32 %v2750, %v6177
    %v6189 = vmul.f32 %v6186, %v6185
    %v6190 = vmul.f32 %v6187, %v6185
    %v6191 = vmul.f32 %v6188, %v6185
    %v6192 = vmax.f32 %v6189, 0.0
    %v6193 = vmax.f32 %v6190, 0.0
    %v6194 = vmax.f32 %v6191, 0.0
    %v6195 = vld [vmem:[%s15] sm:$0xff]
    %6199 = vrot.lane.b32.xlu0 %v6192, 34
    %v6200 = vpop.permute.xlu0 %6199
    %6201 = vrot.lane.b32.xlu0 %v6193, 34
    %v6202 = vpop.permute.xlu0 %6201
    %6203 = vrot.lane.b32.xlu0 %v6194, 34
    %v6204 = vpop.permute.xlu0 %6203
    %v6205 = vsel %vm2695, %v6200, %v6202
    %v6206 = vsel %vm2695, %v6202, %v6204
    %v6210 = vsel %vm3074, %v6195, 0
    %6212 = vmatprep.subr.mxu0 0.0
    %6213 = vmatpush1.msra.mxu0 0.0
    %6214 = vmatprep.subr.mxu0 0.0
    %6215 = vmatpush1.msra.mxu0 0.0
    %6216 = vmatprep.subr.mxu0 0.0
    %6217 = vmatpush1.msra.mxu0 0.0
    %6218 = vmatprep.subr.mxu0 0.0
    %6219 = vmatpush1.msra.mxu0 0.0
    %6220 = vmatprep.subr.mxu0 0.0
    %6221 = vmatpush1.msra.mxu0 0.0
    %6222 = vmatprep.subr.mxu0 0.0
    %6223 = vmatpush1.msra.mxu0 0.0
    %6224 = vmatprep.subr.mxu0 0.0
    %6225 = vmatpush1.msra.mxu0 0.0
    %6226 = vmatprep.subr.mxu0 0.0
    %6227 = vmatpush1.msra.mxu0 0.0
    %6228 = vmatprep.subr.mxu0 0.0
    %6229 = vmatpush1.msra.mxu0 0.0
    %6230 = vmatprep.subr.mxu0 0.0
    %6231 = vmatpush1.msra.mxu0 0.0
    %6232 = vmatprep.subr.mxu0 0.0
    %6233 = vmatpush1.msra.mxu0 0.0
    %6234 = vmatprep.subr.mxu0 0.0
    %6235 = vmatpush1.msra.mxu0 0.0
    %6236 = vmatprep.subr.mxu0 0.0
    %6237 = vmatpush1.msra.mxu0 0.0
    %6238 = vmatprep.subr.mxu0 0.0
    %6239 = vmatpush1.msra.mxu0 0.0
    %6240 = vmatprep.subr.mxu0 0.0
    %6241 = vmatpush1.msra.mxu0 0.0
    %6242 = vmatprep.subr.mxu0 %v6206
    %6243 = vmatpush1.msra.mxu0 %v6205
    %6244 = vmatprep.subr.mxu0 0.0
    %6245 = vmatpush2.msra.mxu0 0.0
    %6246 = vmatprep.subr.mxu0 0.0
    %6247 = vmatpush2.msra.mxu0 0.0
    %6248 = vmatprep.subr.mxu0 0.0
    %6249 = vmatpush2.msra.mxu0 0.0
    %6250 = vmatprep.subr.mxu0 0.0
    %6251 = vmatpush2.msra.mxu0 0.0
    %6252 = vmatprep.subr.mxu0 0.0
    %6253 = vmatpush2.msra.mxu0 0.0
    %6254 = vmatprep.subr.mxu0 0.0
    %6255 = vmatpush2.msra.mxu0 0.0
    %6256 = vmatprep.subr.mxu0 0.0
    %6257 = vmatpush2.msra.mxu0 0.0
    %6258 = vmatprep.subr.mxu0 0.0
    %6259 = vmatpush2.msra.mxu0 0.0
    %6260 = vmatprep.subr.mxu0 0.0
    %6261 = vmatpush2.msra.mxu0 0.0
    %6262 = vmatprep.subr.mxu0 0.0
    %6263 = vmatpush2.msra.mxu0 0.0
    %6264 = vmatprep.subr.mxu0 0.0
    %6265 = vmatpush2.msra.mxu0 0.0
    %6266 = vmatprep.subr.mxu0 0.0
    %6267 = vmatpush2.msra.mxu0 0.0
    %6268 = vmatprep.subr.mxu0 0.0
    %6269 = vmatpush2.msra.mxu0 0.0
    %6270 = vmatprep.subr.mxu0 0.0
    %6271 = vmatpush2.msra.mxu0 0.0
    %6272 = vmatprep.subr.mxu0 0.0
    %6273 = vmatpush2.msra.mxu0 0.0
    %6274 = vmatprep.subr.mxu0 0.0
    %6275 = vmatpush2.msra.mxu0 0.0
    %6276 = vmatprep.mubr.f32.mxu0 0.0
    %6277 = vmatmul.mubr.f32.gmra.mxu0 %v6210
    %v6278 = vpop.f32.mrf.mxu0
    %v6279 = vadd.f32 0.0, %v6278
    %v6280 = vpop.f32.mrf.mxu0
    %v6281 = vadd.f32 0.0, %v6280
    %6282 = vdwg.mxu0
    %6286 = vrot.lane.b32.xlu0 %v3037, 68
    %v6287 = vpop.permute.xlu0 %6286
    %6288 = vrot.lane.b32.xlu0 %v3038, 68
    %v6289 = vpop.permute.xlu0 %6288
    %6290 = vrot.lane.b32.xlu0 %v3039, 68
    %v6291 = vpop.permute.xlu0 %6290
    %v6292 = vsel %vm275, %v6287, %v6289
    %v6293 = vsel %vm275, %v6289, %v6291
    %6296 = vmatprep.subr.mxu0 0.0
    %6297 = vmatpush1.msra.mxu0 0.0
    %6298 = vmatprep.subr.mxu0 0.0
    %6299 = vmatpush1.msra.mxu0 0.0
    %6300 = vmatprep.subr.mxu0 0.0
    %6301 = vmatpush1.msra.mxu0 0.0
    %6302 = vmatprep.subr.mxu0 0.0
    %6303 = vmatpush1.msra.mxu0 0.0
    %6304 = vmatprep.subr.mxu0 0.0
    %6305 = vmatpush1.msra.mxu0 0.0
    %6306 = vmatprep.subr.mxu0 0.0
    %6307 = vmatpush1.msra.mxu0 0.0
    %6308 = vmatprep.subr.mxu0 0.0
    %6309 = vmatpush1.msra.mxu0 0.0
    %6310 = vmatprep.subr.mxu0 0.0
    %6311 = vmatpush1.msra.mxu0 0.0
    %6312 = vmatprep.subr.mxu0 0.0
    %6313 = vmatpush1.msra.mxu0 0.0
    %6314 = vmatprep.subr.mxu0 0.0
    %6315 = vmatpush1.msra.mxu0 0.0
    %6316 = vmatprep.subr.mxu0 0.0
    %6317 = vmatpush1.msra.mxu0 0.0
    %6318 = vmatprep.subr.mxu0 0.0
    %6319 = vmatpush1.msra.mxu0 0.0
    %6320 = vmatprep.subr.mxu0 0.0
    %6321 = vmatpush1.msra.mxu0 0.0
    %6322 = vmatprep.subr.mxu0 0.0
    %6323 = vmatpush1.msra.mxu0 0.0
    %6324 = vmatprep.subr.mxu0 0.0
    %6325 = vmatpush1.msra.mxu0 0.0
    %6326 = vmatprep.subr.mxu0 %v6293
    %6327 = vmatpush1.msra.mxu0 %v6292
    %6328 = vmatprep.subr.mxu0 0.0
    %6329 = vmatpush2.msra.mxu0 0.0
    %6330 = vmatprep.subr.mxu0 0.0
    %6331 = vmatpush2.msra.mxu0 0.0
    %6332 = vmatprep.subr.mxu0 0.0
    %6333 = vmatpush2.msra.mxu0 0.0
    %6334 = vmatprep.subr.mxu0 0.0
    %6335 = vmatpush2.msra.mxu0 0.0
    %6336 = vmatprep.subr.mxu0 0.0
    %6337 = vmatpush2.msra.mxu0 0.0
    %6338 = vmatprep.subr.mxu0 0.0
    %6339 = vmatpush2.msra.mxu0 0.0
    %6340 = vmatprep.subr.mxu0 0.0
    %6341 = vmatpush2.msra.mxu0 0.0
    %6342 = vmatprep.subr.mxu0 0.0
    %6343 = vmatpush2.msra.mxu0 0.0
    %6344 = vmatprep.subr.mxu0 0.0
    %6345 = vmatpush2.msra.mxu0 0.0
    %6346 = vmatprep.subr.mxu0 0.0
    %6347 = vmatpush2.msra.mxu0 0.0
    %6348 = vmatprep.subr.mxu0 0.0
    %6349 = vmatpush2.msra.mxu0 0.0
    %6350 = vmatprep.subr.mxu0 0.0
    %6351 = vmatpush2.msra.mxu0 0.0
    %6352 = vmatprep.subr.mxu0 0.0
    %6353 = vmatpush2.msra.mxu0 0.0
    %6354 = vmatprep.subr.mxu0 0.0
    %6355 = vmatpush2.msra.mxu0 0.0
    %6356 = vmatprep.subr.mxu0 0.0
    %6357 = vmatpush2.msra.mxu0 0.0
    %6358 = vmatprep.subr.mxu0 0.0
    %6359 = vmatpush2.msra.mxu0 0.0
    %6360 = vmatprep.mubr.f32.mxu0 0.0
    %6361 = vmatmul.mubr.f32.gmra.mxu0 %v3076
    %v6362 = vpop.f32.mrf.mxu0
    %v6363 = vadd.f32 0.0, %v6362
    %v6364 = vpop.f32.mrf.mxu0
    %v6365 = vadd.f32 0.0, %v6364
    %6366 = vdwg.mxu0
    %v6367 = vmul.f32 %v3037, %v3037
    %v6368 = vmul.f32 %v3038, %v3038
    %v6369 = vmul.f32 %v3039, %v3039
    %6373 = vrot.lane.b32.xlu0 %v6367, 68
    %v6374 = vpop.permute.xlu0 %6373
    %6375 = vrot.lane.b32.xlu0 %v6368, 68
    %v6376 = vpop.permute.xlu0 %6375
    %6377 = vrot.lane.b32.xlu0 %v6369, 68
    %v6378 = vpop.permute.xlu0 %6377
    %v6379 = vsel %vm275, %v6374, %v6376
    %v6380 = vsel %vm275, %v6376, %v6378
    %6383 = vmatprep.subr.mxu0 0.0
    %6384 = vmatpush1.msra.mxu0 0.0
    %6385 = vmatprep.subr.mxu0 0.0
    %6386 = vmatpush1.msra.mxu0 0.0
    %6387 = vmatprep.subr.mxu0 0.0
    %6388 = vmatpush1.msra.mxu0 0.0
    %6389 = vmatprep.subr.mxu0 0.0
    %6390 = vmatpush1.msra.mxu0 0.0
    %6391 = vmatprep.subr.mxu0 0.0
    %6392 = vmatpush1.msra.mxu0 0.0
    %6393 = vmatprep.subr.mxu0 0.0
    %6394 = vmatpush1.msra.mxu0 0.0
    %6395 = vmatprep.subr.mxu0 0.0
    %6396 = vmatpush1.msra.mxu0 0.0
    %6397 = vmatprep.subr.mxu0 0.0
    %6398 = vmatpush1.msra.mxu0 0.0
    %6399 = vmatprep.subr.mxu0 0.0
    %6400 = vmatpush1.msra.mxu0 0.0
    %6401 = vmatprep.subr.mxu0 0.0
    %6402 = vmatpush1.msra.mxu0 0.0
    %6403 = vmatprep.subr.mxu0 0.0
    %6404 = vmatpush1.msra.mxu0 0.0
    %6405 = vmatprep.subr.mxu0 0.0
    %6406 = vmatpush1.msra.mxu0 0.0
    %6407 = vmatprep.subr.mxu0 0.0
    %6408 = vmatpush1.msra.mxu0 0.0
    %6409 = vmatprep.subr.mxu0 0.0
    %6410 = vmatpush1.msra.mxu0 0.0
    %6411 = vmatprep.subr.mxu0 0.0
    %6412 = vmatpush1.msra.mxu0 0.0
    %6413 = vmatprep.subr.mxu0 %v6380
    %6414 = vmatpush1.msra.mxu0 %v6379
    %6415 = vmatprep.subr.mxu0 0.0
    %6416 = vmatpush2.msra.mxu0 0.0
    %6417 = vmatprep.subr.mxu0 0.0
    %6418 = vmatpush2.msra.mxu0 0.0
    %6419 = vmatprep.subr.mxu0 0.0
    %6420 = vmatpush2.msra.mxu0 0.0
    %6421 = vmatprep.subr.mxu0 0.0
    %6422 = vmatpush2.msra.mxu0 0.0
    %6423 = vmatprep.subr.mxu0 0.0
    %6424 = vmatpush2.msra.mxu0 0.0
    %6425 = vmatprep.subr.mxu0 0.0
    %6426 = vmatpush2.msra.mxu0 0.0
    %6427 = vmatprep.subr.mxu0 0.0
    %6428 = vmatpush2.msra.mxu0 0.0
    %6429 = vmatprep.subr.mxu0 0.0
    %6430 = vmatpush2.msra.mxu0 0.0
    %6431 = vmatprep.subr.mxu0 0.0
    %6432 = vmatpush2.msra.mxu0 0.0
    %6433 = vmatprep.subr.mxu0 0.0
    %6434 = vmatpush2.msra.mxu0 0.0
    %6435 = vmatprep.subr.mxu0 0.0
    %6436 = vmatpush2.msra.mxu0 0.0
    %6437 = vmatprep.subr.mxu0 0.0
    %6438 = vmatpush2.msra.mxu0 0.0
    %6439 = vmatprep.subr.mxu0 0.0
    %6440 = vmatpush2.msra.mxu0 0.0
    %6441 = vmatprep.subr.mxu0 0.0
    %6442 = vmatpush2.msra.mxu0 0.0
    %6443 = vmatprep.subr.mxu0 0.0
    %6444 = vmatpush2.msra.mxu0 0.0
    %6445 = vmatprep.subr.mxu0 0.0
    %6446 = vmatpush2.msra.mxu0 0.0
    %6447 = vmatprep.mubr.f32.mxu0 0.0
    %6448 = vmatmul.mubr.f32.gmra.mxu0 %v3076
    %v6449 = vpop.f32.mrf.mxu0
    %v6450 = vadd.f32 0.0, %v6449
    %v6451 = vpop.f32.mrf.mxu0
    %v6452 = vadd.f32 0.0, %v6451
    %6453 = vdwg.mxu0
    %v6454 = vadd.f32 %v6363, %v6365
    %6455 = vadd.xlane.f32.xlu0 %v6454
    %v6456 = vpop.xlane.xlu0 %6455
    %v6457 = vmul.f32 %v6456, 0.001953125
    %v6458 = vadd.f32 %v6450, %v6452
    %6459 = vadd.xlane.f32.xlu0 %v6458
    %v6460 = vpop.xlane.xlu0 %6459
    %v6461 = vmul.f32 %v6460, 0.001953125
    %v6462 = vmul.f32 %v6457, %v6457
    %v6463 = vsub.f32 %v6461, %v6462
    %v6464 = vadd.f32 %v6463, 1e-05
    %v6465 = vrsqrt.pop %v6464
    %v6466 = vsub.f32 %v3037, %v6457
    %v6467 = vsub.f32 %v3038, %v6457
    %v6468 = vsub.f32 %v3039, %v6457
    %v6469 = vmul.f32 %v6466, %v6465
    %v6470 = vmul.f32 %v6467, %v6465
    %v6471 = vmul.f32 %v6468, %v6465
    %v6472 = vmax.f32 %v6469, 0.0
    %v6473 = vmax.f32 %v6470, 0.0
    %v6474 = vmax.f32 %v6471, 0.0
    %v6475 = vld [vmem:[%s17] sm:$0xff]
    %6479 = vrot.lane.b32.xlu0 %v6472, 68
    %v6480 = vpop.permute.xlu0 %6479
    %6481 = vrot.lane.b32.xlu0 %v6473, 68
    %v6482 = vpop.permute.xlu0 %6481
    %6483 = vrot.lane.b32.xlu0 %v6474, 68
    %v6484 = vpop.permute.xlu0 %6483
    %v6485 = vsel %vm275, %v6480, %v6482
    %v6486 = vsel %vm275, %v6482, %v6484
    %v6490 = vsel %vm3074, %v6475, 0
    %6492 = vmatprep.subr.mxu0 0.0
    %6493 = vmatpush1.msra.mxu0 0.0
    %6494 = vmatprep.subr.mxu0 0.0
    %6495 = vmatpush1.msra.mxu0 0.0
    %6496 = vmatprep.subr.mxu0 0.0
    %6497 = vmatpush1.msra.mxu0 0.0
    %6498 = vmatprep.subr.mxu0 0.0
    %6499 = vmatpush1.msra.mxu0 0.0
    %6500 = vmatprep.subr.mxu0 0.0
    %6501 = vmatpush1.msra.mxu0 0.0
    %6502 = vmatprep.subr.mxu0 0.0
    %6503 = vmatpush1.msra.mxu0 0.0
    %6504 = vmatprep.subr.mxu0 0.0
    %6505 = vmatpush1.msra.mxu0 0.0
    %6506 = vmatprep.subr.mxu0 0.0
    %6507 = vmatpush1.msra.mxu0 0.0
    %6508 = vmatprep.subr.mxu0 0.0
    %6509 = vmatpush1.msra.mxu0 0.0
    %6510 = vmatprep.subr.mxu0 0.0
    %6511 = vmatpush1.msra.mxu0 0.0
    %6512 = vmatprep.subr.mxu0 0.0
    %6513 = vmatpush1.msra.mxu0 0.0
    %6514 = vmatprep.subr.mxu0 0.0
    %6515 = vmatpush1.msra.mxu0 0.0
    %6516 = vmatprep.subr.mxu0 0.0
    %6517 = vmatpush1.msra.mxu0 0.0
    %6518 = vmatprep.subr.mxu0 0.0
    %6519 = vmatpush1.msra.mxu0 0.0
    %6520 = vmatprep.subr.mxu0 0.0
    %6521 = vmatpush1.msra.mxu0 0.0
    %6522 = vmatprep.subr.mxu0 %v6486
    %6523 = vmatpush1.msra.mxu0 %v6485
    %6524 = vmatprep.subr.mxu0 0.0
    %6525 = vmatpush2.msra.mxu0 0.0
    %6526 = vmatprep.subr.mxu0 0.0
    %6527 = vmatpush2.msra.mxu0 0.0
    %6528 = vmatprep.subr.mxu0 0.0
    %6529 = vmatpush2.msra.mxu0 0.0
    %6530 = vmatprep.subr.mxu0 0.0
    %6531 = vmatpush2.msra.mxu0 0.0
    %6532 = vmatprep.subr.mxu0 0.0
    %6533 = vmatpush2.msra.mxu0 0.0
    %6534 = vmatprep.subr.mxu0 0.0
    %6535 = vmatpush2.msra.mxu0 0.0
    %6536 = vmatprep.subr.mxu0 0.0
    %6537 = vmatpush2.msra.mxu0 0.0
    %6538 = vmatprep.subr.mxu0 0.0
    %6539 = vmatpush2.msra.mxu0 0.0
    %6540 = vmatprep.subr.mxu0 0.0
    %6541 = vmatpush2.msra.mxu0 0.0
    %6542 = vmatprep.subr.mxu0 0.0
    %6543 = vmatpush2.msra.mxu0 0.0
    %6544 = vmatprep.subr.mxu0 0.0
    %6545 = vmatpush2.msra.mxu0 0.0
    %6546 = vmatprep.subr.mxu0 0.0
    %6547 = vmatpush2.msra.mxu0 0.0
    %6548 = vmatprep.subr.mxu0 0.0
    %6549 = vmatpush2.msra.mxu0 0.0
    %6550 = vmatprep.subr.mxu0 0.0
    %6551 = vmatpush2.msra.mxu0 0.0
    %6552 = vmatprep.subr.mxu0 0.0
    %6553 = vmatpush2.msra.mxu0 0.0
    %6554 = vmatprep.subr.mxu0 0.0
    %6555 = vmatpush2.msra.mxu0 0.0
    %6556 = vmatprep.mubr.f32.mxu0 0.0
    %6557 = vmatmul.mubr.f32.gmra.mxu0 %v6490
    %v6558 = vpop.f32.mrf.mxu0
    %v6559 = vadd.f32 0.0, %v6558
    %v6560 = vpop.f32.mrf.mxu0
    %v6561 = vadd.f32 0.0, %v6560
    %6562 = vdwg.mxu0
    %s6563 = sld [smem:[#allocation3 + $0x3]]
    %v6564 = vstv %s6563
    %v6565 = vmul.f32 %v75, %v6564
    %v6566 = vmul.f32 %v76, %v6564
    %6570 = vrot.lane.b32.xlu0 %v2230, 17
    %v6571 = vpop.permute.xlu0 %6570
    %6572 = vrot.lane.b32.xlu0 %v2231, 17
    %v6573 = vpop.permute.xlu0 %6572
    %6574 = vrot.lane.b32.xlu0 %v2232, 17
    %v6575 = vpop.permute.xlu0 %6574
    %v6576 = vsel %vm2186, %v6571, %v6573
    %v6577 = vsel %vm2186, %v6573, %v6575
    %6580 = vmatprep.subr.mxu0 0.0
    %6581 = vmatpush1.msra.mxu0 0.0
    %6582 = vmatprep.subr.mxu0 0.0
    %6583 = vmatpush1.msra.mxu0 0.0
    %6584 = vmatprep.subr.mxu0 0.0
    %6585 = vmatpush1.msra.mxu0 0.0
    %6586 = vmatprep.subr.mxu0 0.0
    %6587 = vmatpush1.msra.mxu0 0.0
    %6588 = vmatprep.subr.mxu0 0.0
    %6589 = vmatpush1.msra.mxu0 0.0
    %6590 = vmatprep.subr.mxu0 0.0
    %6591 = vmatpush1.msra.mxu0 0.0
    %6592 = vmatprep.subr.mxu0 0.0
    %6593 = vmatpush1.msra.mxu0 0.0
    %6594 = vmatprep.subr.mxu0 0.0
    %6595 = vmatpush1.msra.mxu0 0.0
    %6596 = vmatprep.subr.mxu0 0.0
    %6597 = vmatpush1.msra.mxu0 0.0
    %6598 = vmatprep.subr.mxu0 0.0
    %6599 = vmatpush1.msra.mxu0 0.0
    %6600 = vmatprep.subr.mxu0 0.0
    %6601 = vmatpush1.msra.mxu0 0.0
    %6602 = vmatprep.subr.mxu0 0.0
    %6603 = vmatpush1.msra.mxu0 0.0
    %6604 = vmatprep.subr.mxu0 0.0
    %6605 = vmatpush1.msra.mxu0 0.0
    %6606 = vmatprep.subr.mxu0 0.0
    %6607 = vmatpush1.msra.mxu0 0.0
    %6608 = vmatprep.subr.mxu0 0.0
    %6609 = vmatpush1.msra.mxu0 0.0
    %6610 = vmatprep.subr.mxu0 %v6577
    %6611 = vmatpush1.msra.mxu0 %v6576
    %6612 = vmatprep.subr.mxu0 0.0
    %6613 = vmatpush2.msra.mxu0 0.0
    %6614 = vmatprep.subr.mxu0 0.0
    %6615 = vmatpush2.msra.mxu0 0.0
    %6616 = vmatprep.subr.mxu0 0.0
    %6617 = vmatpush2.msra.mxu0 0.0
    %6618 = vmatprep.subr.mxu0 0.0
    %6619 = vmatpush2.msra.mxu0 0.0
    %6620 = vmatprep.subr.mxu0 0.0
    %6621 = vmatpush2.msra.mxu0 0.0
    %6622 = vmatprep.subr.mxu0 0.0
    %6623 = vmatpush2.msra.mxu0 0.0
    %6624 = vmatprep.subr.mxu0 0.0
    %6625 = vmatpush2.msra.mxu0 0.0
    %6626 = vmatprep.subr.mxu0 0.0
    %6627 = vmatpush2.msra.mxu0 0.0
    %6628 = vmatprep.subr.mxu0 0.0
    %6629 = vmatpush2.msra.mxu0 0.0
    %6630 = vmatprep.subr.mxu0 0.0
    %6631 = vmatpush2.msra.mxu0 0.0
    %6632 = vmatprep.subr.mxu0 0.0
    %6633 = vmatpush2.msra.mxu0 0.0
    %6634 = vmatprep.subr.mxu0 0.0
    %6635 = vmatpush2.msra.mxu0 0.0
    %6636 = vmatprep.subr.mxu0 0.0
    %6637 = vmatpush2.msra.mxu0 0.0
    %6638 = vmatprep.subr.mxu0 0.0
    %6639 = vmatpush2.msra.mxu0 0.0
    %6640 = vmatprep.subr.mxu0 0.0
    %6641 = vmatpush2.msra.mxu0 0.0
    %6642 = vmatprep.subr.mxu0 0.0
    %6643 = vmatpush2.msra.mxu0 0.0
    %6644 = vmatprep.mubr.f32.mxu0 0.0
    %6645 = vmatmul.mubr.f32.gmra.mxu0 %v3076
    %v6646 = vpop.f32.mrf.mxu0
    %v6647 = vadd.f32 0.0, %v6646
    %v6648 = vpop.f32.mrf.mxu0
    %v6649 = vadd.f32 0.0, %v6648
    %6650 = vdwg.mxu0
    %v6651 = vmul.f32 %v2230, %v2230
    %v6652 = vmul.f32 %v2231, %v2231
    %v6653 = vmul.f32 %v2232, %v2232
    %6657 = vrot.lane.b32.xlu0 %v6651, 17
    %v6658 = vpop.permute.xlu0 %6657
    %6659 = vrot.lane.b32.xlu0 %v6652, 17
    %v6660 = vpop.permute.xlu0 %6659
    %6661 = vrot.lane.b32.xlu0 %v6653, 17
    %v6662 = vpop.permute.xlu0 %6661
    %v6663 = vsel %vm2186, %v6658, %v6660
    %v6664 = vsel %vm2186, %v6660, %v6662
    %6667 = vmatprep.subr.mxu0 0.0
    %6668 = vmatpush1.msra.mxu0 0.0
    %6669 = vmatprep.subr.mxu0 0.0
    %6670 = vmatpush1.msra.mxu0 0.0
    %6671 = vmatprep.subr.mxu0 0.0
    %6672 = vmatpush1.msra.mxu0 0.0
    %6673 = vmatprep.subr.mxu0 0.0
    %6674 = vmatpush1.msra.mxu0 0.0
    %6675 = vmatprep.subr.mxu0 0.0
    %6676 = vmatpush1.msra.mxu0 0.0
    %6677 = vmatprep.subr.mxu0 0.0
    %6678 = vmatpush1.msra.mxu0 0.0
    %6679 = vmatprep.subr.mxu0 0.0
    %6680 = vmatpush1.msra.mxu0 0.0
    %6681 = vmatprep.subr.mxu0 0.0
    %6682 = vmatpush1.msra.mxu0 0.0
    %6683 = vmatprep.subr.mxu0 0.0
    %6684 = vmatpush1.msra.mxu0 0.0
    %6685 = vmatprep.subr.mxu0 0.0
    %6686 = vmatpush1.msra.mxu0 0.0
    %6687 = vmatprep.subr.mxu0 0.0
    %6688 = vmatpush1.msra.mxu0 0.0
    %6689 = vmatprep.subr.mxu0 0.0
    %6690 = vmatpush1.msra.mxu0 0.0
    %6691 = vmatprep.subr.mxu0 0.0
    %6692 = vmatpush1.msra.mxu0 0.0
    %6693 = vmatprep.subr.mxu0 0.0
    %6694 = vmatpush1.msra.mxu0 0.0
    %6695 = vmatprep.subr.mxu0 0.0
    %6696 = vmatpush1.msra.mxu0 0.0
    %6697 = vmatprep.subr.mxu0 %v6664
    %6698 = vmatpush1.msra.mxu0 %v6663
    %6699 = vmatprep.subr.mxu0 0.0
    %6700 = vmatpush2.msra.mxu0 0.0
    %6701 = vmatprep.subr.mxu0 0.0
    %6702 = vmatpush2.msra.mxu0 0.0
    %6703 = vmatprep.subr.mxu0 0.0
    %6704 = vmatpush2.msra.mxu0 0.0
    %6705 = vmatprep.subr.mxu0 0.0
    %6706 = vmatpush2.msra.mxu0 0.0
    %6707 = vmatprep.subr.mxu0 0.0
    %6708 = vmatpush2.msra.mxu0 0.0
    %6709 = vmatprep.subr.mxu0 0.0
    %6710 = vmatpush2.msra.mxu0 0.0
    %6711 = vmatprep.subr.mxu0 0.0
    %6712 = vmatpush2.msra.mxu0 0.0
    %6713 = vmatprep.subr.mxu0 0.0
    %6714 = vmatpush2.msra.mxu0 0.0
    %6715 = vmatprep.subr.mxu0 0.0
    %6716 = vmatpush2.msra.mxu0 0.0
    %6717 = vmatprep.subr.mxu0 0.0
    %6718 = vmatpush2.msra.mxu0 0.0
    %6719 = vmatprep.subr.mxu0 0.0
    %6720 = vmatpush2.msra.mxu0 0.0
    %6721 = vmatprep.subr.mxu0 0.0
    %6722 = vmatpush2.msra.mxu0 0.0
    %6723 = vmatprep.subr.mxu0 0.0
    %6724 = vmatpush2.msra.mxu0 0.0
    %6725 = vmatprep.subr.mxu0 0.0
    %6726 = vmatpush2.msra.mxu0 0.0
    %6727 = vmatprep.subr.mxu0 0.0
    %6728 = vmatpush2.msra.mxu0 0.0
    %6729 = vmatprep.subr.mxu0 0.0
    %6730 = vmatpush2.msra.mxu0 0.0
    %6731 = vmatprep.mubr.f32.mxu0 0.0
    %6732 = vmatmul.mubr.f32.gmra.mxu0 %v3076
    %v6733 = vpop.f32.mrf.mxu0
    %v6734 = vadd.f32 0.0, %v6733
    %v6735 = vpop.f32.mrf.mxu0
    %v6736 = vadd.f32 0.0, %v6735
    %6737 = vdwg.mxu0
    %v6738 = vadd.f32 %v6647, %v6649
    %6739 = vadd.xlane.f32.xlu0 %v6738
    %v6740 = vpop.xlane.xlu0 %6739
    %v6741 = vmul.f32 %v6740, 0.001953125
    %v6742 = vadd.f32 %v6734, %v6736
    %6743 = vadd.xlane.f32.xlu0 %v6742
    %v6744 = vpop.xlane.xlu0 %6743
    %v6745 = vmul.f32 %v6744, 0.001953125
    %v6746 = vmul.f32 %v6741, %v6741
    %v6747 = vsub.f32 %v6745, %v6746
    %v6748 = vadd.f32 %v6747, 1e-05
    %v6749 = vrsqrt.pop %v6748
    %s6750 = sld [smem:[#allocation3 + $0x1]]
    %v6751 = vstv %s6750
    %v6752 = vmul.f32 %v6749, %v6751
    %v6753 = vmul.f32 %v2230, %v6752
    %v6754 = vmul.f32 %v2231, %v6752
    %v6755 = vmul.f32 %v2232, %v6752
    %6759 = vrot.lane.b32.xlu0 %v6753, 17
    %v6760 = vpop.permute.xlu0 %6759
    %6761 = vrot.lane.b32.xlu0 %v6754, 17
    %v6762 = vpop.permute.xlu0 %6761
    %6763 = vrot.lane.b32.xlu0 %v6755, 17
    %v6764 = vpop.permute.xlu0 %6763
    %v6765 = vsel %vm2186, %v6760, %v6762
    %v6766 = vsel %vm2186, %v6762, %v6764
    %v6769 = vadd.f32 %v6565, %v6765
    %v6770 = vadd.f32 %v6566, %v6766
    %v6771 = vmul.f32 %v6741, %v6752
    %v6772 = vsub.f32 0.0, %v6771
    %6776 = vrot.lane.b32.xlu0 %v3058, 17
    %v6777 = vpop.permute.xlu0 %6776
    %6778 = vrot.lane.b32.xlu0 %v3059, 17
    %v6779 = vpop.permute.xlu0 %6778
    %6780 = vrot.lane.b32.xlu0 %v3060, 17
    %v6781 = vpop.permute.xlu0 %6780
    %v6782 = vsel %vm2186, %v6777, %v6779
    %v6783 = vsel %vm2186, %v6779, %v6781
    %6786 = vmatprep.subr.mxu0 0.0
    %6787 = vmatpush1.msra.mxu0 0.0
    %6788 = vmatprep.subr.mxu0 0.0
    %6789 = vmatpush1.msra.mxu0 0.0
    %6790 = vmatprep.subr.mxu0 0.0
    %6791 = vmatpush1.msra.mxu0 0.0
    %6792 = vmatprep.subr.mxu0 0.0
    %6793 = vmatpush1.msra.mxu0 0.0
    %6794 = vmatprep.subr.mxu0 0.0
    %6795 = vmatpush1.msra.mxu0 0.0
    %6796 = vmatprep.subr.mxu0 0.0
    %6797 = vmatpush1.msra.mxu0 0.0
    %6798 = vmatprep.subr.mxu0 0.0
    %6799 = vmatpush1.msra.mxu0 0.0
    %6800 = vmatprep.subr.mxu0 0.0
    %6801 = vmatpush1.msra.mxu0 0.0
    %6802 = vmatprep.subr.mxu0 0.0
    %6803 = vmatpush1.msra.mxu0 0.0
    %6804 = vmatprep.subr.mxu0 0.0
    %6805 = vmatpush1.msra.mxu0 0.0
    %6806 = vmatprep.subr.mxu0 0.0
    %6807 = vmatpush1.msra.mxu0 0.0
    %6808 = vmatprep.subr.mxu0 0.0
    %6809 = vmatpush1.msra.mxu0 0.0
    %6810 = vmatprep.subr.mxu0 0.0
    %6811 = vmatpush1.msra.mxu0 0.0
    %6812 = vmatprep.subr.mxu0 0.0
    %6813 = vmatpush1.msra.mxu0 0.0
    %6814 = vmatprep.subr.mxu0 0.0
    %6815 = vmatpush1.msra.mxu0 0.0
    %6816 = vmatprep.subr.mxu0 %v6783
    %6817 = vmatpush1.msra.mxu0 %v6782
    %6818 = vmatprep.subr.mxu0 0.0
    %6819 = vmatpush2.msra.mxu0 0.0
    %6820 = vmatprep.subr.mxu0 0.0
    %6821 = vmatpush2.msra.mxu0 0.0
    %6822 = vmatprep.subr.mxu0 0.0
    %6823 = vmatpush2.msra.mxu0 0.0
    %6824 = vmatprep.subr.mxu0 0.0
    %6825 = vmatpush2.msra.mxu0 0.0
    %6826 = vmatprep.subr.mxu0 0.0
    %6827 = vmatpush2.msra.mxu0 0.0
    %6828 = vmatprep.subr.mxu0 0.0
    %6829 = vmatpush2.msra.mxu0 0.0
    %6830 = vmatprep.subr.mxu0 0.0
    %6831 = vmatpush2.msra.mxu0 0.0
    %6832 = vmatprep.subr.mxu0 0.0
    %6833 = vmatpush2.msra.mxu0 0.0
    %6834 = vmatprep.subr.mxu0 0.0
    %6835 = vmatpush2.msra.mxu0 0.0
    %6836 = vmatprep.subr.mxu0 0.0
    %6837 = vmatpush2.msra.mxu0 0.0
    %6838 = vmatprep.subr.mxu0 0.0
    %6839 = vmatpush2.msra.mxu0 0.0
    %6840 = vmatprep.subr.mxu0 0.0
    %6841 = vmatpush2.msra.mxu0 0.0
    %6842 = vmatprep.subr.mxu0 0.0
    %6843 = vmatpush2.msra.mxu0 0.0
    %6844 = vmatprep.subr.mxu0 0.0
    %6845 = vmatpush2.msra.mxu0 0.0
    %6846 = vmatprep.subr.mxu0 0.0
    %6847 = vmatpush2.msra.mxu0 0.0
    %6848 = vmatprep.subr.mxu0 0.0
    %6849 = vmatpush2.msra.mxu0 0.0
    %6850 = vmatprep.mubr.f32.mxu0 0.0
    %6851 = vmatmul.mubr.f32.gmra.mxu0 %v3076
    %v6852 = vpop.f32.mrf.mxu0
    %v6853 = vadd.f32 0.0, %v6852
    %v6854 = vpop.f32.mrf.mxu0
    %v6855 = vadd.f32 0.0, %v6854
    %6856 = vdwg.mxu0
    %v6857 = vmul.f32 %v3058, %v3058
    %v6858 = vmul.f32 %v3059, %v3059
    %v6859 = vmul.f32 %v3060, %v3060
    %6863 = vrot.lane.b32.xlu0 %v6857, 17
    %v6864 = vpop.permute.xlu0 %6863
    %6865 = vrot.lane.b32.xlu0 %v6858, 17
    %v6866 = vpop.permute.xlu0 %6865
    %6867 = vrot.lane.b32.xlu0 %v6859, 17
    %v6868 = vpop.permute.xlu0 %6867
    %v6869 = vsel %vm2186, %v6864, %v6866
    %v6870 = vsel %vm2186, %v6866, %v6868
    %6873 = vmatprep.subr.mxu0 0.0
    %6874 = vmatpush1.msra.mxu0 0.0
    %6875 = vmatprep.subr.mxu0 0.0
    %6876 = vmatpush1.msra.mxu0 0.0
    %6877 = vmatprep.subr.mxu0 0.0
    %6878 = vmatpush1.msra.mxu0 0.0
    %6879 = vmatprep.subr.mxu0 0.0
    %6880 = vmatpush1.msra.mxu0 0.0
    %6881 = vmatprep.subr.mxu0 0.0
    %6882 = vmatpush1.msra.mxu0 0.0
    %6883 = vmatprep.subr.mxu0 0.0
    %6884 = vmatpush1.msra.mxu0 0.0
    %6885 = vmatprep.subr.mxu0 0.0
    %6886 = vmatpush1.msra.mxu0 0.0
    %6887 = vmatprep.subr.mxu0 0.0
    %6888 = vmatpush1.msra.mxu0 0.0
    %6889 = vmatprep.subr.mxu0 0.0
    %6890 = vmatpush1.msra.mxu0 0.0
    %6891 = vmatprep.subr.mxu0 0.0
    %6892 = vmatpush1.msra.mxu0 0.0
    %6893 = vmatprep.subr.mxu0 0.0
    %6894 = vmatpush1.msra.mxu0 0.0
    %6895 = vmatprep.subr.mxu0 0.0
    %6896 = vmatpush1.msra.mxu0 0.0
    %6897 = vmatprep.subr.mxu0 0.0
    %6898 = vmatpush1.msra.mxu0 0.0
    %6899 = vmatprep.subr.mxu0 0.0
    %6900 = vmatpush1.msra.mxu0 0.0
    %6901 = vmatprep.subr.mxu0 0.0
    %6902 = vmatpush1.msra.mxu0 0.0
    %6903 = vmatprep.subr.mxu0 %v6870
    %6904 = vmatpush1.msra.mxu0 %v6869
    %6905 = vmatprep.subr.mxu0 0.0
    %6906 = vmatpush2.msra.mxu0 0.0
    %6907 = vmatprep.subr.mxu0 0.0
    %6908 = vmatpush2.msra.mxu0 0.0
    %6909 = vmatprep.subr.mxu0 0.0
    %6910 = vmatpush2.msra.mxu0 0.0
    %6911 = vmatprep.subr.mxu0 0.0
    %6912 = vmatpush2.msra.mxu0 0.0
    %6913 = vmatprep.subr.mxu0 0.0
    %6914 = vmatpush2.msra.mxu0 0.0
    %6915 = vmatprep.subr.mxu0 0.0
    %6916 = vmatpush2.msra.mxu0 0.0
    %6917 = vmatprep.subr.mxu0 0.0
    %6918 = vmatpush2.msra.mxu0 0.0
    %6919 = vmatprep.subr.mxu0 0.0
    %6920 = vmatpush2.msra.mxu0 0.0
    %6921 = vmatprep.subr.mxu0 0.0
    %6922 = vmatpush2.msra.mxu0 0.0
    %6923 = vmatprep.subr.mxu0 0.0
    %6924 = vmatpush2.msra.mxu0 0.0
    %6925 = vmatprep.subr.mxu0 0.0
    %6926 = vmatpush2.msra.mxu0 0.0
    %6927 = vmatprep.subr.mxu0 0.0
    %6928 = vmatpush2.msra.mxu0 0.0
    %6929 = vmatprep.subr.mxu0 0.0
    %6930 = vmatpush2.msra.mxu0 0.0
    %6931 = vmatprep.subr.mxu0 0.0
    %6932 = vmatpush2.msra.mxu0 0.0
    %6933 = vmatprep.subr.mxu0 0.0
    %6934 = vmatpush2.msra.mxu0 0.0
    %6935 = vmatprep.subr.mxu0 0.0
    %6936 = vmatpush2.msra.mxu0 0.0
    %6937 = vmatprep.mubr.f32.mxu0 0.0
    %6938 = vmatmul.mubr.f32.gmra.mxu0 %v3076
    %v6939 = vpop.f32.mrf.mxu0
    %v6940 = vadd.f32 0.0, %v6939
    %v6941 = vpop.f32.mrf.mxu0
    %v6942 = vadd.f32 0.0, %v6941
    %6943 = vdwg.mxu0
    %v6944 = vadd.f32 %v6853, %v6855
    %6945 = vadd.xlane.f32.xlu0 %v6944
    %v6946 = vpop.xlane.xlu0 %6945
    %v6947 = vmul.f32 %v6946, 0.001953125
    %v6948 = vadd.f32 %v6940, %v6942
    %6949 = vadd.xlane.f32.xlu0 %v6948
    %v6950 = vpop.xlane.xlu0 %6949
    %v6951 = vmul.f32 %v6950, 0.001953125
    %v6952 = vmul.f32 %v6947, %v6947
    %v6953 = vsub.f32 %v6951, %v6952
    %v6954 = vadd.f32 %v6953, 1e-05
    %v6955 = vrsqrt.pop %v6954
    %s6956 = sld [smem:[#allocation3 + $0x2]]
    %v6957 = vstv %s6956
    %v6958 = vmul.f32 %v6955, %v6957
    %v6959 = vmul.f32 %v3058, %v6958
    %v6960 = vmul.f32 %v3059, %v6958
    %v6961 = vmul.f32 %v3060, %v6958
    %6965 = vrot.lane.b32.xlu0 %v6959, 17
    %v6966 = vpop.permute.xlu0 %6965
    %6967 = vrot.lane.b32.xlu0 %v6960, 17
    %v6968 = vpop.permute.xlu0 %6967
    %6969 = vrot.lane.b32.xlu0 %v6961, 17
    %v6970 = vpop.permute.xlu0 %6969
    %v6971 = vsel %vm2186, %v6966, %v6968
    %v6972 = vsel %vm2186, %v6968, %v6970
    %v6975 = vadd.f32 %v6769, %v6971
    %v6976 = vadd.f32 %v6770, %v6972
    %v6977 = vmul.f32 %v6947, %v6958
    %v6978 = vsub.f32 %v6772, %v6977
    %6979 = vmatprep.subr.mxu0 0.0
    %6980 = vmatpush1.msra.mxu0 0.0
    %6981 = vmatprep.subr.mxu0 0.0
    %6982 = vmatpush1.msra.mxu0 0.0
    %6983 = vmatprep.subr.mxu0 0.0
    %6984 = vmatpush1.msra.mxu0 0.0
    %6985 = vmatprep.subr.mxu0 0.0
    %6986 = vmatpush1.msra.mxu0 0.0
    %6987 = vmatprep.subr.mxu0 0.0
    %6988 = vmatpush1.msra.mxu0 0.0
    %6989 = vmatprep.subr.mxu0 0.0
    %6990 = vmatpush1.msra.mxu0 0.0
    %6991 = vmatprep.subr.mxu0 0.0
    %6992 = vmatpush1.msra.mxu0 0.0
    %6993 = vmatprep.subr.mxu0 0.0
    %6994 = vmatpush1.msra.mxu0 0.0
    %6995 = vmatprep.subr.mxu0 0.0
    %6996 = vmatpush1.msra.mxu0 0.0
    %6997 = vmatprep.subr.mxu0 0.0
    %6998 = vmatpush1.msra.mxu0 0.0
    %6999 = vmatprep.subr.mxu0 0.0
    %7000 = vmatpush1.msra.mxu0 0.0
    %7001 = vmatprep.subr.mxu0 0.0
    %7002 = vmatpush1.msra.mxu0 0.0
    %7003 = vmatprep.subr.mxu0 0.0
    %7004 = vmatpush1.msra.mxu0 0.0
    %7005 = vmatprep.subr.mxu0 0.0
    %7006 = vmatpush1.msra.mxu0 0.0
    %7007 = vmatprep.subr.mxu0 0.0
    %7008 = vmatpush1.msra.mxu0 0.0
    %7009 = vmatprep.subr.mxu0 %v4172
    %7010 = vmatpush1.msra.mxu0 %v4170
    %7011 = vmatprep.subr.mxu0 0.0
    %7012 = vmatpush2.msra.mxu0 0.0
    %7013 = vmatprep.subr.mxu0 0.0
    %7014 = vmatpush2.msra.mxu0 0.0
    %7015 = vmatprep.subr.mxu0 0.0
    %7016 = vmatpush2.msra.mxu0 0.0
    %7017 = vmatprep.subr.mxu0 0.0
    %7018 = vmatpush2.msra.mxu0 0.0
    %7019 = vmatprep.subr.mxu0 0.0
    %7020 = vmatpush2.msra.mxu0 0.0
    %7021 = vmatprep.subr.mxu0 0.0
    %7022 = vmatpush2.msra.mxu0 0.0
    %7023 = vmatprep.subr.mxu0 0.0
    %7024 = vmatpush2.msra.mxu0 0.0
    %7025 = vmatprep.subr.mxu0 0.0
    %7026 = vmatpush2.msra.mxu0 0.0
    %7027 = vmatprep.subr.mxu0 0.0
    %7028 = vmatpush2.msra.mxu0 0.0
    %7029 = vmatprep.subr.mxu0 0.0
    %7030 = vmatpush2.msra.mxu0 0.0
    %7031 = vmatprep.subr.mxu0 0.0
    %7032 = vmatpush2.msra.mxu0 0.0
    %7033 = vmatprep.subr.mxu0 0.0
    %7034 = vmatpush2.msra.mxu0 0.0
    %7035 = vmatprep.subr.mxu0 0.0
    %7036 = vmatpush2.msra.mxu0 0.0
    %7037 = vmatprep.subr.mxu0 0.0
    %7038 = vmatpush2.msra.mxu0 0.0
    %7039 = vmatprep.subr.mxu0 0.0
    %7040 = vmatpush2.msra.mxu0 0.0
    %7041 = vmatprep.subr.mxu0 0.0
    %7042 = vmatpush2.msra.mxu0 0.0
    %7043 = vmatprep.mubr.f32.mxu0 0.0
    %7044 = vmatmul.mubr.f32.gmra.mxu0 %v3076
    %v7045 = vpop.f32.mrf.mxu0
    %v7046 = vadd.f32 0.0, %v7045
    %v7047 = vpop.f32.mrf.mxu0
    %v7048 = vadd.f32 0.0, %v7047
    %7049 = vdwg.mxu0
    %v7050 = vmul.f32 %v4170, %v4170
    %v7051 = vmul.f32 %v4172, %v4172
    %7052 = vmatprep.subr.mxu0 0.0
    %7053 = vmatpush1.msra.mxu0 0.0
    %7054 = vmatprep.subr.mxu0 0.0
    %7055 = vmatpush1.msra.mxu0 0.0
    %7056 = vmatprep.subr.mxu0 0.0
    %7057 = vmatpush1.msra.mxu0 0.0
    %7058 = vmatprep.subr.mxu0 0.0
    %7059 = vmatpush1.msra.mxu0 0.0
    %7060 = vmatprep.subr.mxu0 0.0
    %7061 = vmatpush1.msra.mxu0 0.0
    %7062 = vmatprep.subr.mxu0 0.0
    %7063 = vmatpush1.msra.mxu0 0.0
    %7064 = vmatprep.subr.mxu0 0.0
    %7065 = vmatpush1.msra.mxu0 0.0
    %7066 = vmatprep.subr.mxu0 0.0
    %7067 = vmatpush1.msra.mxu0 0.0
    %7068 = vmatprep.subr.mxu0 0.0
    %7069 = vmatpush1.msra.mxu0 0.0
    %7070 = vmatprep.subr.mxu0 0.0
    %7071 = vmatpush1.msra.mxu0 0.0
    %7072 = vmatprep.subr.mxu0 0.0
    %7073 = vmatpush1.msra.mxu0 0.0
    %7074 = vmatprep.subr.mxu0 0.0
    %7075 = vmatpush1.msra.mxu0 0.0
    %7076 = vmatprep.subr.mxu0 0.0
    %7077 = vmatpush1.msra.mxu0 0.0
    %7078 = vmatprep.subr.mxu0 0.0
    %7079 = vmatpush1.msra.mxu0 0.0
    %7080 = vmatprep.subr.mxu0 0.0
    %7081 = vmatpush1.msra.mxu0 0.0
    %7082 = vmatprep.subr.mxu0 %v7051
    %7083 = vmatpush1.msra.mxu0 %v7050
    %7084 = vmatprep.subr.mxu0 0.0
    %7085 = vmatpush2.msra.mxu0 0.0
    %7086 = vmatprep.subr.mxu0 0.0
    %7087 = vmatpush2.msra.mxu0 0.0
    %7088 = vmatprep.subr.mxu0 0.0
    %7089 = vmatpush2.msra.mxu0 0.0
    %7090 = vmatprep.subr.mxu0 0.0
    %7091 = vmatpush2.msra.mxu0 0.0
    %7092 = vmatprep.subr.mxu0 0.0
    %7093 = vmatpush2.msra.mxu0 0.0
    %7094 = vmatprep.subr.mxu0 0.0
    %7095 = vmatpush2.msra.mxu0 0.0
    %7096 = vmatprep.subr.mxu0 0.0
    %7097 = vmatpush2.msra.mxu0 0.0
    %7098 = vmatprep.subr.mxu0 0.0
    %7099 = vmatpush2.msra.mxu0 0.0
    %7100 = vmatprep.subr.mxu0 0.0
    %7101 = vmatpush2.msra.mxu0 0.0
    %7102 = vmatprep.subr.mxu0 0.0
    %7103 = vmatpush2.msra.mxu0 0.0
    %7104 = vmatprep.subr.mxu0 0.0
    %7105 = vmatpush2.msra.mxu0 0.0
    %7106 = vmatprep.subr.mxu0 0.0
    %7107 = vmatpush2.msra.mxu0 0.0
    %7108 = vmatprep.subr.mxu0 0.0
    %7109 = vmatpush2.msra.mxu0 0.0
    %7110 = vmatprep.subr.mxu0 0.0
    %7111 = vmatpush2.msra.mxu0 0.0
    %7112 = vmatprep.subr.mxu0 0.0
    %7113 = vmatpush2.msra.mxu0 0.0
    %7114 = vmatprep.subr.mxu0 0.0
    %7115 = vmatpush2.msra.mxu0 0.0
    %7116 = vmatprep.mubr.f32.mxu0 0.0
    %7117 = vmatmul.mubr.f32.gmra.mxu0 %v3076
    %v7118 = vpop.f32.mrf.mxu0
    %v7119 = vadd.f32 0.0, %v7118
    %v7120 = vpop.f32.mrf.mxu0
    %v7121 = vadd.f32 0.0, %v7120
    %7122 = vdwg.mxu0
    %v7123 = vadd.f32 %v7046, %v7048
    %7124 = vadd.xlane.f32.xlu0 %v7123
    %v7125 = vpop.xlane.xlu0 %7124
    %v7126 = vmul.f32 %v7125, 0.001953125
    %v7127 = vadd.f32 %v7119, %v7121
    %7128 = vadd.xlane.f32.xlu0 %v7127
    %v7129 = vpop.xlane.xlu0 %7128
    %v7130 = vmul.f32 %v7129, 0.001953125
    %v7131 = vmul.f32 %v7126, %v7126
    %v7132 = vsub.f32 %v7130, %v7131
    %v7133 = vadd.f32 %v7132, 1e-05
    %v7134 = vrsqrt.pop %v7133
    %s7135 = sld [smem:[#allocation3 + $0x4]]
    %v7136 = vstv %s7135
    %v7137 = vmul.f32 %v7134, %v7136
    %v7138 = vmul.f32 %v4170, %v7137
    %v7139 = vmul.f32 %v4172, %v7137
    %v7140 = vadd.f32 %v6975, %v7138
    %v7141 = vadd.f32 %v6976, %v7139
    %v7142 = vmul.f32 %v7126, %v7137
    %v7143 = vsub.f32 %v6978, %v7142
    %7144 = vmatprep.subr.mxu0 0.0
    %7145 = vmatpush1.msra.mxu0 0.0
    %7146 = vmatprep.subr.mxu0 0.0
    %7147 = vmatpush1.msra.mxu0 0.0
    %7148 = vmatprep.subr.mxu0 0.0
    %7149 = vmatpush1.msra.mxu0 0.0
    %7150 = vmatprep.subr.mxu0 0.0
    %7151 = vmatpush1.msra.mxu0 0.0
    %7152 = vmatprep.subr.mxu0 0.0
    %7153 = vmatpush1.msra.mxu0 0.0
    %7154 = vmatprep.subr.mxu0 0.0
    %7155 = vmatpush1.msra.mxu0 0.0
    %7156 = vmatprep.subr.mxu0 0.0
    %7157 = vmatpush1.msra.mxu0 0.0
    %7158 = vmatprep.subr.mxu0 0.0
    %7159 = vmatpush1.msra.mxu0 0.0
    %7160 = vmatprep.subr.mxu0 0.0
    %7161 = vmatpush1.msra.mxu0 0.0
    %7162 = vmatprep.subr.mxu0 0.0
    %7163 = vmatpush1.msra.mxu0 0.0
    %7164 = vmatprep.subr.mxu0 0.0
    %7165 = vmatpush1.msra.mxu0 0.0
    %7166 = vmatprep.subr.mxu0 0.0
    %7167 = vmatpush1.msra.mxu0 0.0
    %7168 = vmatprep.subr.mxu0 0.0
    %7169 = vmatpush1.msra.mxu0 0.0
    %7170 = vmatprep.subr.mxu0 0.0
    %7171 = vmatpush1.msra.mxu0 0.0
    %7172 = vmatprep.subr.mxu0 0.0
    %7173 = vmatpush1.msra.mxu0 0.0
    %7174 = vmatprep.subr.mxu0 %v6001
    %7175 = vmatpush1.msra.mxu0 %v5999
    %7176 = vmatprep.subr.mxu0 0.0
    %7177 = vmatpush2.msra.mxu0 0.0
    %7178 = vmatprep.subr.mxu0 0.0
    %7179 = vmatpush2.msra.mxu0 0.0
    %7180 = vmatprep.subr.mxu0 0.0
    %7181 = vmatpush2.msra.mxu0 0.0
    %7182 = vmatprep.subr.mxu0 0.0
    %7183 = vmatpush2.msra.mxu0 0.0
    %7184 = vmatprep.subr.mxu0 0.0
    %7185 = vmatpush2.msra.mxu0 0.0
    %7186 = vmatprep.subr.mxu0 0.0
    %7187 = vmatpush2.msra.mxu0 0.0
    %7188 = vmatprep.subr.mxu0 0.0
    %7189 = vmatpush2.msra.mxu0 0.0
    %7190 = vmatprep.subr.mxu0 0.0
    %7191 = vmatpush2.msra.mxu0 0.0
    %7192 = vmatprep.subr.mxu0 0.0
    %7193 = vmatpush2.msra.mxu0 0.0
    %7194 = vmatprep.subr.mxu0 0.0
    %7195 = vmatpush2.msra.mxu0 0.0
    %7196 = vmatprep.subr.mxu0 0.0
    %7197 = vmatpush2.msra.mxu0 0.0
    %7198 = vmatprep.subr.mxu0 0.0
    %7199 = vmatpush2.msra.mxu0 0.0
    %7200 = vmatprep.subr.mxu0 0.0
    %7201 = vmatpush2.msra.mxu0 0.0
    %7202 = vmatprep.subr.mxu0 0.0
    %7203 = vmatpush2.msra.mxu0 0.0
    %7204 = vmatprep.subr.mxu0 0.0
    %7205 = vmatpush2.msra.mxu0 0.0
    %7206 = vmatprep.subr.mxu0 0.0
    %7207 = vmatpush2.msra.mxu0 0.0
    %7208 = vmatprep.mubr.f32.mxu0 0.0
    %7209 = vmatmul.mubr.f32.gmra.mxu0 %v3076
    %v7210 = vpop.f32.mrf.mxu0
    %v7211 = vadd.f32 0.0, %v7210
    %v7212 = vpop.f32.mrf.mxu0
    %v7213 = vadd.f32 0.0, %v7212
    %7214 = vdwg.mxu0
    %v7215 = vmul.f32 %v5999, %v5999
    %v7216 = vmul.f32 %v6001, %v6001
    %7217 = vmatprep.subr.mxu0 0.0
    %7218 = vmatpush1.msra.mxu0 0.0
    %7219 = vmatprep.subr.mxu0 0.0
    %7220 = vmatpush1.msra.mxu0 0.0
    %7221 = vmatprep.subr.mxu0 0.0
    %7222 = vmatpush1.msra.mxu0 0.0
    %7223 = vmatprep.subr.mxu0 0.0
    %7224 = vmatpush1.msra.mxu0 0.0
    %7225 = vmatprep.subr.mxu0 0.0
    %7226 = vmatpush1.msra.mxu0 0.0
    %7227 = vmatprep.subr.mxu0 0.0
    %7228 = vmatpush1.msra.mxu0 0.0
    %7229 = vmatprep.subr.mxu0 0.0
    %7230 = vmatpush1.msra.mxu0 0.0
    %7231 = vmatprep.subr.mxu0 0.0
    %7232 = vmatpush1.msra.mxu0 0.0
    %7233 = vmatprep.subr.mxu0 0.0
    %7234 = vmatpush1.msra.mxu0 0.0
    %7235 = vmatprep.subr.mxu0 0.0
    %7236 = vmatpush1.msra.mxu0 0.0
    %7237 = vmatprep.subr.mxu0 0.0
    %7238 = vmatpush1.msra.mxu0 0.0
    %7239 = vmatprep.subr.mxu0 0.0
    %7240 = vmatpush1.msra.mxu0 0.0
    %7241 = vmatprep.subr.mxu0 0.0
    %7242 = vmatpush1.msra.mxu0 0.0
    %7243 = vmatprep.subr.mxu0 0.0
    %7244 = vmatpush1.msra.mxu0 0.0
    %7245 = vmatprep.subr.mxu0 0.0
    %7246 = vmatpush1.msra.mxu0 0.0
    %7247 = vmatprep.subr.mxu0 %v7216
    %7248 = vmatpush1.msra.mxu0 %v7215
    %7249 = vmatprep.subr.mxu0 0.0
    %7250 = vmatpush2.msra.mxu0 0.0
    %7251 = vmatprep.subr.mxu0 0.0
    %7252 = vmatpush2.msra.mxu0 0.0
    %7253 = vmatprep.subr.mxu0 0.0
    %7254 = vmatpush2.msra.mxu0 0.0
    %7255 = vmatprep.subr.mxu0 0.0
    %7256 = vmatpush2.msra.mxu0 0.0
    %7257 = vmatprep.subr.mxu0 0.0
    %7258 = vmatpush2.msra.mxu0 0.0
    %7259 = vmatprep.subr.mxu0 0.0
    %7260 = vmatpush2.msra.mxu0 0.0
    %7261 = vmatprep.subr.mxu0 0.0
    %7262 = vmatpush2.msra.mxu0 0.0
    %7263 = vmatprep.subr.mxu0 0.0
    %7264 = vmatpush2.msra.mxu0 0.0
    %7265 = vmatprep.subr.mxu0 0.0
    %7266 = vmatpush2.msra.mxu0 0.0
    %7267 = vmatprep.subr.mxu0 0.0
    %7268 = vmatpush2.msra.mxu0 0.0
    %7269 = vmatprep.subr.mxu0 0.0
    %7270 = vmatpush2.msra.mxu0 0.0
    %7271 = vmatprep.subr.mxu0 0.0
    %7272 = vmatpush2.msra.mxu0 0.0
    %7273 = vmatprep.subr.mxu0 0.0
    %7274 = vmatpush2.msra.mxu0 0.0
    %7275 = vmatprep.subr.mxu0 0.0
    %7276 = vmatpush2.msra.mxu0 0.0
    %7277 = vmatprep.subr.mxu0 0.0
    %7278 = vmatpush2.msra.mxu0 0.0
    %7279 = vmatprep.subr.mxu0 0.0
    %7280 = vmatpush2.msra.mxu0 0.0
    %7281 = vmatprep.mubr.f32.mxu0 0.0
    %7282 = vmatmul.mubr.f32.gmra.mxu0 %v3076
    %v7283 = vpop.f32.mrf.mxu0
    %v7284 = vadd.f32 0.0, %v7283
    %v7285 = vpop.f32.mrf.mxu0
    %v7286 = vadd.f32 0.0, %v7285
    %7287 = vdwg.mxu0
    %v7288 = vadd.f32 %v7211, %v7213
    %7289 = vadd.xlane.f32.xlu0 %v7288
    %v7290 = vpop.xlane.xlu0 %7289
    %v7291 = vmul.f32 %v7290, 0.001953125
    %v7292 = vadd.f32 %v7284, %v7286
    %7293 = vadd.xlane.f32.xlu0 %v7292
    %v7294 = vpop.xlane.xlu0 %7293
    %v7295 = vmul.f32 %v7294, 0.001953125
    %v7296 = vmul.f32 %v7291, %v7291
    %v7297 = vsub.f32 %v7295, %v7296
    %v7298 = vadd.f32 %v7297, 1e-05
    %v7299 = vrsqrt.pop %v7298
    %s7300 = sld [smem:[#allocation3 + $0x5]]
    %v7301 = vstv %s7300
    %v7302 = vmul.f32 %v7299, %v7301
    %v7303 = vmul.f32 %v5999, %v7302
    %v7304 = vmul.f32 %v6001, %v7302
    %v7305 = vadd.f32 %v7140, %v7303
    %v7306 = vadd.f32 %v7141, %v7304
    %v7307 = vmul.f32 %v7291, %v7302
    %v7308 = vsub.f32 %v7143, %v7307
    %7309 = vmatprep.subr.mxu0 0.0
    %7310 = vmatpush1.msra.mxu0 0.0
    %7311 = vmatprep.subr.mxu0 0.0
    %7312 = vmatpush1.msra.mxu0 0.0
    %7313 = vmatprep.subr.mxu0 0.0
    %7314 = vmatpush1.msra.mxu0 0.0
    %7315 = vmatprep.subr.mxu0 0.0
    %7316 = vmatpush1.msra.mxu0 0.0
    %7317 = vmatprep.subr.mxu0 0.0
    %7318 = vmatpush1.msra.mxu0 0.0
    %7319 = vmatprep.subr.mxu0 0.0
    %7320 = vmatpush1.msra.mxu0 0.0
    %7321 = vmatprep.subr.mxu0 0.0
    %7322 = vmatpush1.msra.mxu0 0.0
    %7323 = vmatprep.subr.mxu0 0.0
    %7324 = vmatpush1.msra.mxu0 0.0
    %7325 = vmatprep.subr.mxu0 0.0
    %7326 = vmatpush1.msra.mxu0 0.0
    %7327 = vmatprep.subr.mxu0 0.0
    %7328 = vmatpush1.msra.mxu0 0.0
    %7329 = vmatprep.subr.mxu0 0.0
    %7330 = vmatpush1.msra.mxu0 0.0
    %7331 = vmatprep.subr.mxu0 0.0
    %7332 = vmatpush1.msra.mxu0 0.0
    %7333 = vmatprep.subr.mxu0 0.0
    %7334 = vmatpush1.msra.mxu0 0.0
    %7335 = vmatprep.subr.mxu0 0.0
    %7336 = vmatpush1.msra.mxu0 0.0
    %7337 = vmatprep.subr.mxu0 0.0
    %7338 = vmatpush1.msra.mxu0 0.0
    %7339 = vmatprep.subr.mxu0 %v6281
    %7340 = vmatpush1.msra.mxu0 %v6279
    %7341 = vmatprep.subr.mxu0 0.0
    %7342 = vmatpush2.msra.mxu0 0.0
    %7343 = vmatprep.subr.mxu0 0.0
    %7344 = vmatpush2.msra.mxu0 0.0
    %7345 = vmatprep.subr.mxu0 0.0
    %7346 = vmatpush2.msra.mxu0 0.0
    %7347 = vmatprep.subr.mxu0 0.0
    %7348 = vmatpush2.msra.mxu0 0.0
    %7349 = vmatprep.subr.mxu0 0.0
    %7350 = vmatpush2.msra.mxu0 0.0
    %7351 = vmatprep.subr.mxu0 0.0
    %7352 = vmatpush2.msra.mxu0 0.0
    %7353 = vmatprep.subr.mxu0 0.0
    %7354 = vmatpush2.msra.mxu0 0.0
    %7355 = vmatprep.subr.mxu0 0.0
    %7356 = vmatpush2.msra.mxu0 0.0
    %7357 = vmatprep.subr.mxu0 0.0
    %7358 = vmatpush2.msra.mxu0 0.0
    %7359 = vmatprep.subr.mxu0 0.0
    %7360 = vmatpush2.msra.mxu0 0.0
    %7361 = vmatprep.subr.mxu0 0.0
    %7362 = vmatpush2.msra.mxu0 0.0
    %7363 = vmatprep.subr.mxu0 0.0
    %7364 = vmatpush2.msra.mxu0 0.0
    %7365 = vmatprep.subr.mxu0 0.0
    %7366 = vmatpush2.msra.mxu0 0.0
    %7367 = vmatprep.subr.mxu0 0.0
    %7368 = vmatpush2.msra.mxu0 0.0
    %7369 = vmatprep.subr.mxu0 0.0
    %7370 = vmatpush2.msra.mxu0 0.0
    %7371 = vmatprep.subr.mxu0 0.0
    %7372 = vmatpush2.msra.mxu0 0.0
    %7373 = vmatprep.mubr.f32.mxu0 0.0
    %7374 = vmatmul.mubr.f32.gmra.mxu0 %v3076
    %v7375 = vpop.f32.mrf.mxu0
    %v7376 = vadd.f32 0.0, %v7375
    %v7377 = vpop.f32.mrf.mxu0
    %v7378 = vadd.f32 0.0, %v7377
    %7379 = vdwg.mxu0
    %v7380 = vmul.f32 %v6279, %v6279
    %v7381 = vmul.f32 %v6281, %v6281
    %7382 = vmatprep.subr.mxu0 0.0
    %7383 = vmatpush1.msra.mxu0 0.0
    %7384 = vmatprep.subr.mxu0 0.0
    %7385 = vmatpush1.msra.mxu0 0.0
    %7386 = vmatprep.subr.mxu0 0.0
    %7387 = vmatpush1.msra.mxu0 0.0
    %7388 = vmatprep.subr.mxu0 0.0
    %7389 = vmatpush1.msra.mxu0 0.0
    %7390 = vmatprep.subr.mxu0 0.0
    %7391 = vmatpush1.msra.mxu0 0.0
    %7392 = vmatprep.subr.mxu0 0.0
    %7393 = vmatpush1.msra.mxu0 0.0
    %7394 = vmatprep.subr.mxu0 0.0
    %7395 = vmatpush1.msra.mxu0 0.0
    %7396 = vmatprep.subr.mxu0 0.0
    %7397 = vmatpush1.msra.mxu0 0.0
    %7398 = vmatprep.subr.mxu0 0.0
    %7399 = vmatpush1.msra.mxu0 0.0
    %7400 = vmatprep.subr.mxu0 0.0
    %7401 = vmatpush1.msra.mxu0 0.0
    %7402 = vmatprep.subr.mxu0 0.0
    %7403 = vmatpush1.msra.mxu0 0.0
    %7404 = vmatprep.subr.mxu0 0.0
    %7405 = vmatpush1.msra.mxu0 0.0
    %7406 = vmatprep.subr.mxu0 0.0
    %7407 = vmatpush1.msra.mxu0 0.0
    %7408 = vmatprep.subr.mxu0 0.0
    %7409 = vmatpush1.msra.mxu0 0.0
    %7410 = vmatprep.subr.mxu0 0.0
    %7411 = vmatpush1.msra.mxu0 0.0
    %7412 = vmatprep.subr.mxu0 %v7381
    %7413 = vmatpush1.msra.mxu0 %v7380
    %7414 = vmatprep.subr.mxu0 0.0
    %7415 = vmatpush2.msra.mxu0 0.0
    %7416 = vmatprep.subr.mxu0 0.0
    %7417 = vmatpush2.msra.mxu0 0.0
    %7418 = vmatprep.subr.mxu0 0.0
    %7419 = vmatpush2.msra.mxu0 0.0
    %7420 = vmatprep.subr.mxu0 0.0
    %7421 = vmatpush2.msra.mxu0 0.0
    %7422 = vmatprep.subr.mxu0 0.0
    %7423 = vmatpush2.msra.mxu0 0.0
    %7424 = vmatprep.subr.mxu0 0.0
    %7425 = vmatpush2.msra.mxu0 0.0
    %7426 = vmatprep.subr.mxu0 0.0
    %7427 = vmatpush2.msra.mxu0 0.0
    %7428 = vmatprep.subr.mxu0 0.0
    %7429 = vmatpush2.msra.mxu0 0.0
    %7430 = vmatprep.subr.mxu0 0.0
    %7431 = vmatpush2.msra.mxu0 0.0
    %7432 = vmatprep.subr.mxu0 0.0
    %7433 = vmatpush2.msra.mxu0 0.0
    %7434 = vmatprep.subr.mxu0 0.0
    %7435 = vmatpush2.msra.mxu0 0.0
    %7436 = vmatprep.subr.mxu0 0.0
    %7437 = vmatpush2.msra.mxu0 0.0
    %7438 = vmatprep.subr.mxu0 0.0
    %7439 = vmatpush2.msra.mxu0 0.0
    %7440 = vmatprep.subr.mxu0 0.0
    %7441 = vmatpush2.msra.mxu0 0.0
    %7442 = vmatprep.subr.mxu0 0.0
    %7443 = vmatpush2.msra.mxu0 0.0
    %7444 = vmatprep.subr.mxu0 0.0
    %7445 = vmatpush2.msra.mxu0 0.0
    %7446 = vmatprep.mubr.f32.mxu0 0.0
    %7447 = vmatmul.mubr.f32.gmra.mxu0 %v3076
    %v7448 = vpop.f32.mrf.mxu0
    %v7449 = vadd.f32 0.0, %v7448
    %v7450 = vpop.f32.mrf.mxu0
    %v7451 = vadd.f32 0.0, %v7450
    %7452 = vdwg.mxu0
    %v7453 = vadd.f32 %v7376, %v7378
    %7454 = vadd.xlane.f32.xlu0 %v7453
    %v7455 = vpop.xlane.xlu0 %7454
    %v7456 = vmul.f32 %v7455, 0.001953125
    %v7457 = vadd.f32 %v7449, %v7451
    %7458 = vadd.xlane.f32.xlu0 %v7457
    %v7459 = vpop.xlane.xlu0 %7458
    %v7460 = vmul.f32 %v7459, 0.001953125
    %v7461 = vmul.f32 %v7456, %v7456
    %v7462 = vsub.f32 %v7460, %v7461
    %v7463 = vadd.f32 %v7462, 1e-05
    %v7464 = vrsqrt.pop %v7463
    %s7465 = sld [smem:[#allocation3 + $0x6]]
    %v7466 = vstv %s7465
    %v7467 = vmul.f32 %v7464, %v7466
    %v7468 = vmul.f32 %v6279, %v7467
    %v7469 = vmul.f32 %v6281, %v7467
    %v7470 = vadd.f32 %v7305, %v7468
    %v7471 = vadd.f32 %v7306, %v7469
    %v7472 = vmul.f32 %v7456, %v7467
    %v7473 = vsub.f32 %v7308, %v7472
    %7474 = vmatprep.subr.mxu0 0.0
    %7475 = vmatpush1.msra.mxu0 0.0
    %7476 = vmatprep.subr.mxu0 0.0
    %7477 = vmatpush1.msra.mxu0 0.0
    %7478 = vmatprep.subr.mxu0 0.0
    %7479 = vmatpush1.msra.mxu0 0.0
    %7480 = vmatprep.subr.mxu0 0.0
    %7481 = vmatpush1.msra.mxu0 0.0
    %7482 = vmatprep.subr.mxu0 0.0
    %7483 = vmatpush1.msra.mxu0 0.0
    %7484 = vmatprep.subr.mxu0 0.0
    %7485 = vmatpush1.msra.mxu0 0.0
    %7486 = vmatprep.subr.mxu0 0.0
    %7487 = vmatpush1.msra.mxu0 0.0
    %7488 = vmatprep.subr.mxu0 0.0
    %7489 = vmatpush1.msra.mxu0 0.0
    %7490 = vmatprep.subr.mxu0 0.0
    %7491 = vmatpush1.msra.mxu0 0.0
    %7492 = vmatprep.subr.mxu0 0.0
    %7493 = vmatpush1.msra.mxu0 0.0
    %7494 = vmatprep.subr.mxu0 0.0
    %7495 = vmatpush1.msra.mxu0 0.0
    %7496 = vmatprep.subr.mxu0 0.0
    %7497 = vmatpush1.msra.mxu0 0.0
    %7498 = vmatprep.subr.mxu0 0.0
    %7499 = vmatpush1.msra.mxu0 0.0
    %7500 = vmatprep.subr.mxu0 0.0
    %7501 = vmatpush1.msra.mxu0 0.0
    %7502 = vmatprep.subr.mxu0 0.0
    %7503 = vmatpush1.msra.mxu0 0.0
    %7504 = vmatprep.subr.mxu0 %v6561
    %7505 = vmatpush1.msra.mxu0 %v6559
    %7506 = vmatprep.subr.mxu0 0.0
    %7507 = vmatpush2.msra.mxu0 0.0
    %7508 = vmatprep.subr.mxu0 0.0
    %7509 = vmatpush2.msra.mxu0 0.0
    %7510 = vmatprep.subr.mxu0 0.0
    %7511 = vmatpush2.msra.mxu0 0.0
    %7512 = vmatprep.subr.mxu0 0.0
    %7513 = vmatpush2.msra.mxu0 0.0
    %7514 = vmatprep.subr.mxu0 0.0
    %7515 = vmatpush2.msra.mxu0 0.0
    %7516 = vmatprep.subr.mxu0 0.0
    %7517 = vmatpush2.msra.mxu0 0.0
    %7518 = vmatprep.subr.mxu0 0.0
    %7519 = vmatpush2.msra.mxu0 0.0
    %7520 = vmatprep.subr.mxu0 0.0
    %7521 = vmatpush2.msra.mxu0 0.0
    %7522 = vmatprep.subr.mxu0 0.0
    %7523 = vmatpush2.msra.mxu0 0.0
    %7524 = vmatprep.subr.mxu0 0.0
    %7525 = vmatpush2.msra.mxu0 0.0
    %7526 = vmatprep.subr.mxu0 0.0
    %7527 = vmatpush2.msra.mxu0 0.0
    %7528 = vmatprep.subr.mxu0 0.0
    %7529 = vmatpush2.msra.mxu0 0.0
    %7530 = vmatprep.subr.mxu0 0.0
    %7531 = vmatpush2.msra.mxu0 0.0
    %7532 = vmatprep.subr.mxu0 0.0
    %7533 = vmatpush2.msra.mxu0 0.0
    %7534 = vmatprep.subr.mxu0 0.0
    %7535 = vmatpush2.msra.mxu0 0.0
    %7536 = vmatprep.subr.mxu0 0.0
    %7537 = vmatpush2.msra.mxu0 0.0
    %7538 = vmatprep.mubr.f32.mxu0 0.0
    %7539 = vmatmul.mubr.f32.gmra.mxu0 %v3076
    %v7540 = vpop.f32.mrf.mxu0
    %v7541 = vadd.f32 0.0, %v7540
    %v7542 = vpop.f32.mrf.mxu0
    %v7543 = vadd.f32 0.0, %v7542
    %7544 = vdwg.mxu0
    %v7545 = vmul.f32 %v6559, %v6559
    %v7546 = vmul.f32 %v6561, %v6561
    %7547 = vmatprep.subr.mxu0 0.0
    %7548 = vmatpush1.msra.mxu0 0.0
    %7549 = vmatprep.subr.mxu0 0.0
    %7550 = vmatpush1.msra.mxu0 0.0
    %7551 = vmatprep.subr.mxu0 0.0
    %7552 = vmatpush1.msra.mxu0 0.0
    %7553 = vmatprep.subr.mxu0 0.0
    %7554 = vmatpush1.msra.mxu0 0.0
    %7555 = vmatprep.subr.mxu0 0.0
    %7556 = vmatpush1.msra.mxu0 0.0
    %7557 = vmatprep.subr.mxu0 0.0
    %7558 = vmatpush1.msra.mxu0 0.0
    %7559 = vmatprep.subr.mxu0 0.0
    %7560 = vmatpush1.msra.mxu0 0.0
    %7561 = vmatprep.subr.mxu0 0.0
    %7562 = vmatpush1.msra.mxu0 0.0
    %7563 = vmatprep.subr.mxu0 0.0
    %7564 = vmatpush1.msra.mxu0 0.0
    %7565 = vmatprep.subr.mxu0 0.0
    %7566 = vmatpush1.msra.mxu0 0.0
    %7567 = vmatprep.subr.mxu0 0.0
    %7568 = vmatpush1.msra.mxu0 0.0
    %7569 = vmatprep.subr.mxu0 0.0
    %7570 = vmatpush1.msra.mxu0 0.0
    %7571 = vmatprep.subr.mxu0 0.0
    %7572 = vmatpush1.msra.mxu0 0.0
    %7573 = vmatprep.subr.mxu0 0.0
    %7574 = vmatpush1.msra.mxu0 0.0
    %7575 = vmatprep.subr.mxu0 0.0
    %7576 = vmatpush1.msra.mxu0 0.0
    %7577 = vmatprep.subr.mxu0 %v7546
    %7578 = vmatpush1.msra.mxu0 %v7545
    %7579 = vmatprep.subr.mxu0 0.0
    %7580 = vmatpush2.msra.mxu0 0.0
    %7581 = vmatprep.subr.mxu0 0.0
    %7582 = vmatpush2.msra.mxu0 0.0
    %7583 = vmatprep.subr.mxu0 0.0
    %7584 = vmatpush2.msra.mxu0 0.0
    %7585 = vmatprep.subr.mxu0 0.0
    %7586 = vmatpush2.msra.mxu0 0.0
    %7587 = vmatprep.subr.mxu0 0.0
    %7588 = vmatpush2.msra.mxu0 0.0
    %7589 = vmatprep.subr.mxu0 0.0
    %7590 = vmatpush2.msra.mxu0 0.0
    %7591 = vmatprep.subr.mxu0 0.0
    %7592 = vmatpush2.msra.mxu0 0.0
    %7593 = vmatprep.subr.mxu0 0.0
    %7594 = vmatpush2.msra.mxu0 0.0
    %7595 = vmatprep.subr.mxu0 0.0
    %7596 = vmatpush2.msra.mxu0 0.0
    %7597 = vmatprep.subr.mxu0 0.0
    %7598 = vmatpush2.msra.mxu0 0.0
    %7599 = vmatprep.subr.mxu0 0.0
    %7600 = vmatpush2.msra.mxu0 0.0
    %7601 = vmatprep.subr.mxu0 0.0
    %7602 = vmatpush2.msra.mxu0 0.0
    %7603 = vmatprep.subr.mxu0 0.0
    %7604 = vmatpush2.msra.mxu0 0.0
    %7605 = vmatprep.subr.mxu0 0.0
    %7606 = vmatpush2.msra.mxu0 0.0
    %7607 = vmatprep.subr.mxu0 0.0
    %7608 = vmatpush2.msra.mxu0 0.0
    %7609 = vmatprep.subr.mxu0 0.0
    %7610 = vmatpush2.msra.mxu0 0.0
    %7611 = vmatprep.mubr.f32.mxu0 0.0
    %7612 = vmatmul.mubr.f32.gmra.mxu0 %v3076
    %v7613 = vpop.f32.mrf.mxu0
    %v7614 = vadd.f32 0.0, %v7613
    %v7615 = vpop.f32.mrf.mxu0
    %v7616 = vadd.f32 0.0, %v7615
    %7617 = vdwg.mxu0
    %v7618 = vadd.f32 %v7541, %v7543
    %7619 = vadd.xlane.f32.xlu0 %v7618
    %v7620 = vpop.xlane.xlu0 %7619
    %v7621 = vmul.f32 %v7620, 0.001953125
    %v7622 = vadd.f32 %v7614, %v7616
    %7623 = vadd.xlane.f32.xlu0 %v7622
    %v7624 = vpop.xlane.xlu0 %7623
    %v7625 = vmul.f32 %v7624, 0.001953125
    %v7626 = vmul.f32 %v7621, %v7621
    %v7627 = vsub.f32 %v7625, %v7626
    %v7628 = vadd.f32 %v7627, 1e-05
    %v7629 = vrsqrt.pop %v7628
    %s7630 = sld [smem:[#allocation3 + $0x7]]
    %v7631 = vstv %s7630
    %v7632 = vmul.f32 %v7629, %v7631
    %v7633 = vmul.f32 %v6559, %v7632
    %v7634 = vmul.f32 %v6561, %v7632
    %v7635 = vadd.f32 %v7470, %v7633
    %v7636 = vadd.f32 %v7471, %v7634
    %v7637 = vmul.f32 %v7621, %v7632
    %v7638 = vsub.f32 %v7473, %v7637
    %v7639 = vadd.f32 %v7635, %v7638
    %v7640 = vadd.f32 %v7636, %v7638
    %7641 = vst [vmem:[%s18] sm:$0xff] %v7639
    %7642 = vst [vmem:[%s18 + $0x8] sm:$0xff] %v7640
    // Predicated region
    $region78: #{mixed_op_forward.1} parent=1 // pred_check
      _
    $region79: #{mixed_op_forward.1} parent=1 // pred_check_branch
      %7644 = sbr.rel (0) target = $region81
    $region80: #{mixed_op_forward.1} parent=1 // pred_region
      _
    $region81: #{mixed_op_forward.1} parent=1 // pred_fallthru
      _
    // Predicated region
    $region82: #{mixed_op_forward.1} parent=1 // pred_check
      _
    $region83: #{mixed_op_forward.1} parent=1 // pred_check_branch
      %7646 = sbr.rel (0) target = $region85
    $region84: #{mixed_op_forward.1} parent=1 // pred_region
      _
    $region85: #{mixed_op_forward.1} parent=1 // pred_fallthru
      _
    %7647 = vsyncpa [#allocation4], 1

</llo_original>
